<compile_context>
chip_gen: v6e
topology: v6e:2x2x1
jax: 0.10.0
libtpu: 0.0.40
codegen_flags: <defaults>
</compile_context>

<pallas_src>
import functools

import jax
import jax.numpy as jnp
from jax import lax
from jax.experimental import pallas as pl
from jax.experimental.pallas import tpu as pltpu


# ---------------------------------------------------------------------------
# Helpers
# ---------------------------------------------------------------------------
def _round_up(x, m):
    return (x + m - 1) // m * m


@functools.lru_cache(maxsize=1)
def _vmem_caps():
    """Per-generation VMEM tile budget and scoped limit (review item 6)."""
    try:
        info = pltpu.get_tpu_info()
        cap = int(getattr(info, "vmem_capacity_bytes", 64 << 20))
    except Exception:  # pragma: no cover - CPU interpret / older API
        cap = 64 << 20
    budget = min(cap // 3, 24 << 20)          # double-buffered tile footprint
    limit = min(cap * 3 // 4, 96 << 20)       # vmem_limit_bytes for Mosaic
    return int(budget), int(limit)


def _pick_tn(tm, tk, M, out_bytes, budget):
    """Largest lane-dense (multiple of 128) output tile fitting the budget."""
    m128 = _round_up(M, 128)
    for tn in (4096, 2048, 1024, 512, 256, 128):
        if tn > m128:
            continue
        fp = (2 * (tm * tk + tk * tn) * 2      # bf16 inputs, double-buffered
              + 2 * tm * tn * out_bytes        # output, double-buffered
              + tm * tn * 4 + tm * 8)          # f32 accumulator + bias
        if fp <= budget:
            return tn
    return 128


# ---------------------------------------------------------------------------
# Pallas kernel: fused matmul + bias + activation (the hot path)
#   W_tile: (tm, tk) bf16,  A_tile: (tk, tn) bf16,  bias: (tm, 1) f32
#   acc   : (tm, tn) f32 VMEM scratch, reduced over the K grid axis
#   out   : (tm, tn) f32 or bf16 (tn multiple of 128 -> lane-dense stores)
# ---------------------------------------------------------------------------
def _mm_bias_act_kernel(w_ref, a_ref, b_ref, o_ref, acc_ref, *, act):
    @pl.when(pl.program_id(2) == 0)
    def _init():
        acc_ref[...] = jnp.zeros_like(acc_ref)

    acc_ref[...] += jnp.dot(w_ref[...], a_ref[...],
                            preferred_element_type=jnp.float32)

    @pl.when(pl.program_id(2) == pl.num_programs(2) - 1)
    def _finalize():
        acc = acc_ref[...] + b_ref[...]            # (tm,1) broadcast over lanes
        if act == "relu":
            acc = jnp.maximum(acc, 0.0)
        elif act == "lrelu":
            acc = jnp.where(acc >= 0.0, acc, 0.1 * acc)
        elif act == "sigmoid":
            # numerically stable sigmoid via tanh (EUP slot, otherwise idle)
            acc = 0.5 * (jnp.tanh(0.5 * acc) + 1.0)
        o_ref[...] = acc.astype(o_ref.dtype)


@functools.lru_cache(maxsize=None)
def _get_mm_fn(Cp, Kp, Mp, tm, tn, tk, act, out_dtype_name, vmem_limit):
    nk = Kp // tk
    kernel = functools.partial(_mm_bias_act_kernel, act=act)
    out_dtype = jnp.dtype(out_dtype_name)
    return pl.pallas_call(
        kernel,
        out_shape=jax.ShapeDtypeStruct((Cp, Mp), out_dtype),
        # Grid order: M-tiles (outer), Cout-tiles, K reduction (innermost).
        # A's block index depends only on (m, k) -> it is NOT re-fetched while
        # the inner Cout axis advances (review item 4).
        grid=(Mp // tn, Cp // tm, nk),
        in_specs=[
            pl.BlockSpec((tm, tk), lambda m, c, k: (c, k)),   # weights
            pl.BlockSpec((tk, tn), lambda m, c, k: (k, m)),   # im2col patches
            pl.BlockSpec((tm, 1), lambda m, c, k: (c, 0)),    # bias (per row)
        ],
        out_specs=pl.BlockSpec((tm, tn), lambda m, c, k: (c, m)),
        scratch_shapes=[pltpu.VMEM((tm, tn), jnp.float32)],
        compiler_params=pltpu.CompilerParams(
            dimension_semantics=("parallel", "parallel", "arbitrary"),
            vmem_limit_bytes=vmem_limit),
    )


def fused_matmul_bias_act(wmat, a, bias, act="none",
                          out_dtype=jnp.float32, tk=None):
    """act(wmat @ a + bias): wmat (Cout,K), a (K,M), bias (Cout,) -> (Cout,M)."""
    Cout, K = wmat.shape
    Kb, M = a.shape
    assert Kb == K
    budget, vlimit = _vmem_caps()
    tm = 128 if Cout >= 128 else _round_up(Cout, 8)
    if tk is not None and tk < K:
        tk_eff = _round_up(min(int(tk), K), 128)   # tiled-K (accumulator) path
    else:
        tk_eff = K                                  # single MXU pass over K
    Kp = _round_up(K, tk_eff)
    out_bytes = jnp.dtype(out_dtype).itemsize
    tn = _pick_tn(tm, tk_eff, M, out_bytes, budget)
    Cp = _round_up(Cout, tm)
    Mp = _round_up(M, tn)
    wp = jnp.pad(wmat.astype(jnp.bfloat16), ((0, Cp - Cout), (0, Kp - K)))
    ap = jnp.pad(a.astype(jnp.bfloat16), ((0, Kp - K), (0, Mp - M)))
    bp = jnp.pad(bias.reshape(-1, 1).astype(jnp.float32), ((0, Cp - Cout), (0, 0)))
    fn = _get_mm_fn(int(Cp), int(Kp), int(Mp), int(tm), int(tn), int(tk_eff),
                    act, jnp.dtype(out_dtype).name, int(vlimit))
    out = fn(wp, ap, bp)
    return out[:Cout, :M]


# ---------------------------------------------------------------------------
# Convolution dispatcher: tiny convs -> XLA (fused), big convs -> Pallas.
# ---------------------------------------------------------------------------
def _apply_act(y, act):
    if act == "relu":
        return jnp.maximum(y, 0.0)
    if act == "lrelu":
        return jnp.where(y >= 0.0, y, 0.1 * y)
    if act == "sigmoid":
        return jax.nn.sigmoid(y)
    return y


def _use_pallas(Cout, K, M):
    # Pallas launch (~0.35 us/grid step + custom-call dispatch) only pays off
    # once the tiles actually fill the HBM/MXU pipeline (review items 2 & 3).
    return (M >= 2048) and (Cout >= 16) and (K >= 16)


def conv2d(x, w, b, stride=1, padding=None, act="none",
           out_dtype=jnp.float32, tk=None):
    """x: (N, C, H, W); w: (Cout, Cin, kh, kw); b: (Cout,)."""
    N, C, H, W = x.shape
    Cout, Cin, kh, kw = w.shape
    if padding is None:
        padding = kh // 2
    Ho = (H + 2 * padding - kh) // stride + 1
    Wo = (W + 2 * padding - kw) // stride + 1
    M = N * Ho * Wo
    K = Cin * kh * kw

    if not _use_pallas(Cout, K, M):
        # Small conv: let XLA handle it and fuse with surrounding glue.
        y = lax.conv_general_dilated(
            x, w, (stride, stride), [(padding, padding), (padding, padding)],
            dimension_numbers=("NCHW", "OIHW", "NCHW"))
        y = y + b.reshape(1, -1, 1, 1)
        return _apply_act(y, act).astype(out_dtype)

    # ---- Pallas path: im2col (bf16) + fused matmul/bias/act kernel ----
    xb = x.astype(jnp.bfloat16)
    if kh == 1 and kw == 1 and stride == 1 and padding == 0:
        a = xb.transpose(1, 0, 2, 3).reshape(C, M)                       # (K, M)
    else:
        xc = jnp.pad(xb.transpose(1, 0, 2, 3),
                     ((0, 0), (0, 0), (padding, padding), (padding, padding)))
        # TODO(synk): replace the kh*kw-times materialized patch matrix with an
        # in-kernel tap loop over a halo'd VMEM row tile (needs pl.Element /
        # manual-DMA overlapping blocks); until then the patches are built in
        # bf16 to halve the materialization cost.
        cols = [xc[:, :, i:i + stride * Ho:stride, j:j + stride * Wo:stride]
                for i in range(kh) for j in range(kw)]
        a = jnp.stack(cols, axis=1).reshape(C * kh * kw, M)              # (K, M)
    wmat = w.reshape(Cout, K)                                            # (Cout, K)
    out = fused_matmul_bias_act(wmat, a, b, act=act,
                                out_dtype=out_dtype, tk=tk)              # (Cout, M)
    return out.reshape(Cout, N, Ho, Wo).transpose(1, 0, 2, 3)            # NCHW


def pixel_shuffle(x, r):
    N, C, H, W = x.shape
    Co = C // (r * r)
    x = x.reshape(N, Co, r, r, H, W)
    x = x.transpose(0, 1, 4, 2, 5, 3)
    return x.reshape(N, Co, H * r, W * r)


# ---------------------------------------------------------------------------
# Deterministic parameter init
# ---------------------------------------------------------------------------
class KeyGen:
    def __init__(self, seed=0):
        self.key = jax.random.PRNGKey(seed)

    def __call__(self):
        self.key, sub = jax.random.split(self.key)
        return sub


def init_conv(kg, cin, cout, k):
    fan_in = cin * k * k
    w = jax.random.normal(kg(), (cout, cin, k, k), jnp.float32) * (0.5 / jnp.sqrt(fan_in))
    b = jnp.zeros((cout,), jnp.float32)
    return {"w": w, "b": b}


# ---------------------------------------------------------------------------
# Building blocks (reconstructions of common.*)
# ---------------------------------------------------------------------------
def apply_convbnrelu(p, x):                 # common.ConvBNReLU2D (norm=None, act)
    return conv2d(x, p["w"], p["b"], act="relu")


def init_freblock(kg, nf):                  # common.FreBlock9
    return {
        "fpre": init_conv(kg, nf, nf, 1),
        "amp1": init_conv(kg, nf, nf, 1), "amp2": init_conv(kg, nf, nf, 1),
        "pha1": init_conv(kg, nf, nf, 1), "pha2": init_conv(kg, nf, nf, 1),
        "post": init_conv(kg, nf, nf, 1),
    }


def apply_freblock(p, x):
    N, C, H, W = x.shape
    y = conv2d(x, p["fpre"]["w"], p["fpre"]["b"])
    # TODO(synk): rfft2/irfft2 have no Pallas equivalent; done with jnp.fft glue.
    F = jnp.fft.rfft2(y + 1e-8)
    amp = jnp.abs(F)
    pha = jnp.angle(F)
    amp = conv2d(amp, p["amp1"]["w"], p["amp1"]["b"], act="lrelu")
    amp = conv2d(amp, p["amp2"]["w"], p["amp2"]["b"])
    pha = conv2d(pha, p["pha1"]["w"], p["pha1"]["b"], act="lrelu")
    pha = conv2d(pha, p["pha2"]["w"], p["pha2"]["b"])
    real = amp * jnp.cos(pha) + 1e-8
    imag = amp * jnp.sin(pha) + 1e-8
    out = jnp.abs(jnp.fft.irfft2(real + 1j * imag, s=(H, W)))
    out = conv2d(out, p["post"]["w"], p["post"]["b"])
    out = out + x
    return jnp.nan_to_num(out, nan=1e-5, posinf=1e-5, neginf=1e-5)


def init_rcab(kg, nf, reduction=4):
    red = max(nf // reduction, 1)
    return {"c1": init_conv(kg, nf, nf, 3), "c2": init_conv(kg, nf, nf, 3),
            "ca1": init_conv(kg, nf, red, 1), "ca2": init_conv(kg, red, nf, 1)}


def apply_rcab(p, x):
    y = conv2d(x, p["c1"]["w"], p["c1"]["b"], act="relu")
    y = conv2d(y, p["c2"]["w"], p["c2"]["b"])
    # channel attention: GAP + two 1x1 convs on (N, C, 1, 1) — trivially small,
    # routed to XLA by the dispatcher and fused with surrounding elementwise.
    g = jnp.mean(y, axis=(2, 3), keepdims=True)
    g = conv2d(g, p["ca1"]["w"], p["ca1"]["b"], act="relu")
    g = conv2d(g, p["ca2"]["w"], p["ca2"]["b"], act="sigmoid")
    return x + y * g


def init_resgroup(kg, nf, n_blocks, reduction=4):              # common.ResidualGroup
    return {"blocks": [init_rcab(kg, nf, reduction) for _ in range(n_blocks)],
            "tail": init_conv(kg, nf, nf, 3)}


def apply_resgroup(p, x):
    y = x
    for bp in p["blocks"]:
        y = apply_rcab(bp, y)
    y = conv2d(y, p["tail"]["w"], p["tail"]["b"])
    return x + y


def init_fuseblock(kg, nf):                 # common.FuseBlock7 / Modality_FuseBlock6
    return {
        "fre": init_conv(kg, nf, nf, 3), "spa": init_conv(kg, nf, nf, 3),
        "fre_att": init_conv(kg, nf, nf, 3), "spa_att": init_conv(kg, nf, nf, 3),
        "fuse1": init_conv(kg, 2 * nf, nf, 3), "fuse2": init_conv(kg, nf, 2 * nf, 3),
    }


def apply_fuseblock(p, fre, spa):
    # TODO(synk): reference FuseBlock7 source unavailable; the sequential
    # attention order below matches the previous reconstruction.
    fre = conv2d(fre, p["fre"]["w"], p["fre"]["b"])
    spa = conv2d(spa, p["spa"]["w"], p["spa"]["b"])
    fre = conv2d(spa, p["fre_att"]["w"], p["fre_att"]["b"], act="sigmoid") * fre + fre
    spa = conv2d(fre, p["spa_att"]["w"], p["spa_att"]["b"], act="sigmoid") * spa + spa
    cat = jnp.concatenate([fre, spa], axis=1)
    g = conv2d(cat, p["fuse1"]["w"], p["fuse1"]["b"])
    g = conv2d(g, p["fuse2"]["w"], p["fuse2"]["b"], act="sigmoid")
    fre_a, spa_a = jnp.split(g, 2, axis=1)
    res = fre * fre_a + spa * spa_a
    return jnp.nan_to_num(res, nan=1e-5, posinf=1e-5, neginf=1e-5)


# stage helpers -------------------------------------------------------------
def apply_down_fre(p, x):
    y = conv2d(x, p["down"]["w"], p["down"]["b"], stride=2)    # DownSample (no act)
    return apply_freblock(p["fre"], y)


def apply_up_fre(p, x):
    y = pixel_shuffle(conv2d(x, p["up"]["w"], p["up"]["b"]), 2)  # UpSampler(2, nf)
    return apply_freblock(p["fre"], y)


def apply_down_spa(p, x):
    y = conv2d(x, p["down"]["w"], p["down"]["b"], stride=2)
    return apply_resgroup(p["rg"], y)


def apply_up_spa(p, x):
    y = pixel_shuffle(conv2d(x, p["up"]["w"], p["up"]["b"]), 2)
    return apply_resgroup(p["rg"], y)


# ---------------------------------------------------------------------------
# TwoBranch parameters + forward
# ---------------------------------------------------------------------------
def init_twobranch(seed, nf, n_every, num_channels):
    kg = KeyGen(seed)
    P = {}
    # T2 frequency branch
    P["head_fre"] = init_conv(kg, 1, nf, 3)
    for name in ["down1_fre", "down2_fre", "down3_fre"]:
        P[name] = {"down": init_conv(kg, nf, nf, 3), "fre": init_freblock(kg, nf)}
        P[name + "_mo"] = init_freblock(kg, nf)
    P["neck_fre"] = init_freblock(kg, nf)
    P["neck_fre_mo"] = init_freblock(kg, nf)
    for name in ["up1_fre", "up2_fre", "up3_fre"]:
        P[name] = {"up": init_conv(kg, nf, 4 * nf, 3), "fre": init_freblock(kg, nf)}
        P[name + "_mo"] = init_freblock(kg, nf)
    P["tail_fre"] = init_conv(kg, nf, num_channels, 3)
    # T2 spatial branch
    P["head"] = init_conv(kg, 1, nf, 3)
    for name in ["down1", "down2", "down3"]:
        P[name] = {"down": init_conv(kg, nf, nf, 3), "rg": init_resgroup(kg, nf, n_every)}
        P[name + "_mo"] = init_resgroup(kg, nf, n_every)
    P["neck"] = init_resgroup(kg, nf, n_every)
    P["neck_mo"] = init_resgroup(kg, nf, n_every)
    for name in ["up1", "up2", "up3"]:
        P[name] = {"up": init_conv(kg, nf, 4 * nf, 3), "rg": init_resgroup(kg, nf, n_every)}
        P[name + "_mo"] = init_resgroup(kg, nf, n_every)
    P["tail"] = init_conv(kg, nf, num_channels, 3)
    # T2 fre-spa fusion
    P["conv_fuse"] = [init_fuseblock(kg, nf) for _ in range(14)]
    # T1 frequency branch
    P["head_fre_T1"] = init_conv(kg, 1, nf, 3)
    for i in (1, 2, 3):
        P[f"down{i}_fre_T1"] = {"down": init_conv(kg, nf, nf, 3), "fre": init_freblock(kg, nf)}
        P[f"down{i}_fre_mo_T1"] = init_freblock(kg, nf)
    P["neck_fre_T1"] = init_freblock(kg, nf)
    P["neck_fre_mo_T1"] = init_freblock(kg, nf)
    # T1 spatial branch
    P["head_T1"] = init_conv(kg, 1, nf, 3)
    for i in (1, 2, 3):
        P[f"down{i}_T1"] = {"down": init_conv(kg, nf, nf, 3), "rg": init_resgroup(kg, nf, n_every)}
        P[f"down{i}_mo_T1"] = init_resgroup(kg, nf, n_every)
    P["neck_T1"] = init_resgroup(kg, nf, n_every)
    P["neck_mo_T1"] = init_resgroup(kg, nf, n_every)
    # modality fusions
    P["conv_fuse_fre"] = [init_fuseblock(kg, nf) for _ in range(5)]
    P["conv_fuse_spa"] = [init_fuseblock(kg, nf) for _ in range(5)]
    return P


def twobranch_forward(P, main, aux):
    # ----- T1 frequency branch -----
    t1_fre = apply_convbnrelu(P["head_fre_T1"], aux)
    down1_fre_t1 = apply_down_fre(P["down1_fre_T1"], t1_fre)
    down1_fre_mo_t1 = apply_freblock(P["down1_fre_mo_T1"], down1_fre_t1)
    down2_fre_t1 = apply_down_fre(P["down2_fre_T1"], down1_fre_mo_t1)
    down2_fre_mo_t1 = apply_freblock(P["down2_fre_mo_T1"], down2_fre_t1)
    down3_fre_t1 = apply_down_fre(P["down3_fre_T1"], down2_fre_mo_t1)
    down3_fre_mo_t1 = apply_freblock(P["down3_fre_mo_T1"], down3_fre_t1)
    neck_fre_t1 = apply_freblock(P["neck_fre_T1"], down3_fre_mo_t1)
    neck_fre_mo_t1 = apply_freblock(P["neck_fre_mo_T1"], neck_fre_t1)

    # ----- T2 frequency branch (with modality fusion) -----
    x_fre = apply_convbnrelu(P["head_fre"], main)
    x_fre_fuse = apply_fuseblock(P["conv_fuse_fre"][0], t1_fre, x_fre)
    down1_fre = apply_down_fre(P["down1_fre"], x_fre_fuse)
    down1_fre_mo = apply_freblock(P["down1_fre_mo"], down1_fre)
    down1_fre_mo_fuse = apply_fuseblock(P["conv_fuse_fre"][1], down1_fre_mo_t1, down1_fre_mo)
    down2_fre = apply_down_fre(P["down2_fre"], down1_fre_mo_fuse)
    down2_fre_mo = apply_freblock(P["down2_fre_mo"], down2_fre)
    down2_fre_mo_fuse = apply_fuseblock(P["conv_fuse_fre"][2], down2_fre_mo_t1, down2_fre_mo)
    down3_fre = apply_down_fre(P["down3_fre"], down2_fre_mo_fuse)
    down3_fre_mo = apply_freblock(P["down3_fre_mo"], down3_fre)
    down3_fre_mo_fuse = apply_fuseblock(P["conv_fuse_fre"][3], down3_fre_mo_t1, down3_fre_mo)
    neck_fre = apply_freblock(P["neck_fre"], down3_fre_mo_fuse)
    neck_fre_mo = apply_freblock(P["neck_fre_mo"], neck_fre)
    neck_fre_mo_fuse = apply_fuseblock(P["conv_fuse_fre"][4], neck_fre_mo_t1, neck_fre_mo)
    neck_fre_mo = neck_fre_mo_fuse + down3_fre_mo_fuse
    up1_fre = apply_up_fre(P["up1_fre"], neck_fre_mo)
    up1_fre_mo = apply_freblock(P["up1_fre_mo"], up1_fre)
    up1_fre_mo = up1_fre_mo + down2_fre_mo_fuse
    up2_fre = apply_up_fre(P["up2_fre"], up1_fre_mo)
    up2_fre_mo = apply_freblock(P["up2_fre_mo"], up2_fre)
    up2_fre_mo = up2_fre_mo + down1_fre_mo_fuse
    up3_fre = apply_up_fre(P["up3_fre"], up2_fre_mo)
    up3_fre_mo = apply_freblock(P["up3_fre_mo"], up3_fre)
    up3_fre_mo = up3_fre_mo + x_fre_fuse
    res_fre = apply_convbnrelu(P["tail_fre"], up3_fre_mo)

    # ----- T1 spatial branch -----
    x_t1 = apply_convbnrelu(P["head_T1"], aux)
    down1_t1 = apply_down_spa(P["down1_T1"], x_t1)
    down1_mo_t1 = apply_resgroup(P["down1_mo_T1"], down1_t1)
    down2_t1 = apply_down_spa(P["down2_T1"], down1_mo_t1)
    down2_mo_t1 = apply_resgroup(P["down2_mo_T1"], down2_t1)
    down3_t1 = apply_down_spa(P["down3_T1"], down2_mo_t1)
    down3_mo_t1 = apply_resgroup(P["down3_mo_T1"], down3_t1)
    neck_t1 = apply_resgroup(P["neck_T1"], down3_mo_t1)
    neck_mo_t1 = apply_resgroup(P["neck_mo_T1"], neck_t1)

    # ----- T2 spatial branch (with fre-spa + modality fusion) -----
    x = apply_convbnrelu(P["head"], main)
    x_fuse = apply_fuseblock(P["conv_fuse_spa"][0], x_t1, x)
    down1 = apply_down_spa(P["down1"], x_fuse)
    down1_fuse = apply_fuseblock(P["conv_fuse"][0], down1_fre, down1)
    down1_mo = apply_resgroup(P["down1_mo"], down1_fuse)
    down1_fuse_mo = apply_fuseblock(P["conv_fuse"][1], down1_fre_mo_fuse, down1_mo)
    down1_fuse_mo_fuse = apply_fuseblock(P["conv_fuse_spa"][1], down1_mo_t1, down1_fuse_mo)
    down2 = apply_down_spa(P["down2"], down1_fuse_mo_fuse)
    down2_fuse = apply_fuseblock(P["conv_fuse"][2], down2_fre, down2)
    down2_mo = apply_resgroup(P["down2_mo"], down2_fuse)
    down2_fuse_mo = apply_fuseblock(P["conv_fuse"][3], down2_fre_mo, down2_mo)
    down2_fuse_mo_fuse = apply_fuseblock(P["conv_fuse_spa"][2], down2_mo_t1, down2_fuse_mo)
    down3 = apply_down_spa(P["down3"], down2_fuse_mo_fuse)
    down3_fuse = apply_fuseblock(P["conv_fuse"][4], down3_fre, down3)
    down3_mo = apply_resgroup(P["down3_mo"], down3_fuse)
    down3_fuse_mo = apply_fuseblock(P["conv_fuse"][5], down3_fre_mo, down3_mo)
    down3_fuse_mo_fuse = apply_fuseblock(P["conv_fuse_spa"][3], down3_mo_t1, down3_fuse_mo)
    neck = apply_resgroup(P["neck"], down3_fuse_mo_fuse)
    neck_fuse = apply_fuseblock(P["conv_fuse"][6], neck_fre, neck)
    neck_mo = apply_resgroup(P["neck_mo"], neck_fuse)
    neck_mo = neck_mo + down3_mo
    neck_fuse_mo = apply_fuseblock(P["conv_fuse"][7], neck_fre_mo, neck_mo)
    neck_fuse_mo_fuse = apply_fuseblock(P["conv_fuse_spa"][4], neck_mo_t1, neck_fuse_mo)
    up1 = apply_up_spa(P["up1"], neck_fuse_mo_fuse)
    up1_fuse = apply_fuseblock(P["conv_fuse"][8], up1_fre, up1)
    up1_mo = apply_resgroup(P["up1_mo"], up1_fuse)
    up1_mo = up1_mo + down2_mo
    up1_fuse_mo = apply_fuseblock(P["conv_fuse"][9], up1_fre_mo, up1_mo)
    up2 = apply_up_spa(P["up2"], up1_fuse_mo)
    up2_fuse = apply_fuseblock(P["conv_fuse"][10], up2_fre, up2)
    up2_mo = apply_resgroup(P["up2_mo"], up2_fuse)
    up2_mo = up2_mo + down1_mo
    up2_fuse_mo = apply_fuseblock(P["conv_fuse"][11], up2_fre_mo, up2_mo)
    up3 = apply_up_spa(P["up3"], up2_fuse_mo)
    up3_fuse = apply_fuseblock(P["conv_fuse"][12], up3_fre, up3)
    up3_mo = apply_resgroup(P["up3_mo"], up3_fuse)
    up3_mo = up3_mo + x
    up3_fuse_mo = apply_fuseblock(P["conv_fuse"][13], up3_fre_mo, up3_mo)
    res = apply_convbnrelu(P["tail"], up3_fuse_mo)

    return {"img_out": res + main, "img_fre": res_fre + main}


# One jit over the whole network: the small-conv / FFT / elementwise glue is
# fused by XLA and there is no per-conv host dispatch.
twobranch_forward_jit = jax.jit(twobranch_forward)


# ---------------------------------------------------------------------------
if __name__ == "__main__":
    key = jax.random.PRNGKey(0)
    k1, k2, k3, k4, k5 = jax.random.split(key, 5)

    # ----- Pallas conv-kernel self-test (above the XLA-dispatch threshold) -----
    xt = jax.random.normal(k3, (2, 16, 64, 64), jnp.float32)        # M = 8192
    wt = jax.random.normal(k4, (64, 16, 3, 3), jnp.float32) * 0.05  # K = 144
    bt = jax.random.normal(k5, (64,), jnp.float32) * 0.1

    conv_p = jax.jit(lambda x, w, b: conv2d(x, w, b, act="relu"))
    conv_p_ktiled = jax.jit(lambda x, w, b: conv2d(x, w, b, act="relu", tk=128))
    conv_p_bf16 = jax.jit(lambda x, w, b: conv2d(x, w, b, act="relu",
                                                 out_dtype=jnp.bfloat16))

    # Reference with bf16-quantized inputs (tests kernel math, not the cast).
    xq = xt.astype(jnp.bfloat16).astype(jnp.float32)
    wq = wt.astype(jnp.bfloat16).astype(jnp.float32)
    ref = lax.conv_general_dilated(xq, wq, (1, 1), [(1, 1), (1, 1)],
                                   dimension_numbers=("NCHW", "OIHW", "NCHW"))
    ref = jnp.maximum(ref + bt.reshape(1, -1, 1, 1), 0.0)
    scale = float(jnp.max(jnp.abs(ref))) + 1e-6

    y0 = conv_p(xt, wt, bt)                 # single-pass K, f32 out
    y1 = conv_p_ktiled(xt, wt, bt)          # K reduction grid axis + accumulator
    y2 = conv_p_bf16(xt, wt, bt)            # bf16 store path
    jax.block_until_ready((y0, y1, y2))
    assert y0.shape == ref.shape
    assert float(jnp.max(jnp.abs(y0 - ref))) <= 5e-3 * scale
    assert float(jnp.max(jnp.abs(y1 - ref))) <= 5e-3 * scale
    assert float(jnp.max(jnp.abs(y2.astype(jnp.float32) - ref))) <= 2e-2 * scale
    assert bool(jnp.all(jnp.isfinite(y0)))

    # ----- Full TwoBranch forward at small demo shapes -----
    NUM_FEATURES = 8        # args.num_features
    NUM_CHANNELS = 1        # args.num_channels
    N_EVERY_GROUP = 1       # args.base_num_every_group
    B, H, W = 2, 16, 16     # spatial must be divisible by 8 (3 downsamples)

    params = init_twobranch(seed=42, nf=NUM_FEATURES,
                            n_every=N_EVERY_GROUP, num_channels=NUM_CHANNELS)
    main = jax.random.normal(k1, (B, 1, H, W), jnp.float32)
    aux = jax.random.normal(k2, (B, 1, H, W), jnp.float32)

    out = twobranch_forward_jit(params, main, aux)
    jax.block_until_ready(out["img_out"])
    jax.block_until_ready(out["img_fre"])
    assert out["img_out"].shape == (B, NUM_CHANNELS, H, W)
    assert out["img_fre"].shape == (B, NUM_CHANNELS, H, W)
    assert bool(jnp.all(jnp.isfinite(out["img_out"])))
    assert bool(jnp.all(jnp.isfinite(out["img_fre"])))
    print("KERNEL_OK")
</pallas_src>

<mosaic_0001>
module attributes {stable_mosaic.version = 11 : i64} {
  func.func @_mm_bias_act_kernel(%arg0: i32, %arg1: i32, %arg2: i32, %arg3: memref<64x144xbf16, #tpu.memory_space<vmem>>, %arg4: memref<144x4096xbf16, #tpu.memory_space<vmem>>, %arg5: memref<64x1xf32, #tpu.memory_space<vmem>>, %arg6: memref<64x4096xf32, #tpu.memory_space<vmem>>, %arg7: memref<64x4096xf32, #tpu.memory_space<vmem>>) attributes {dimension_semantics = [#tpu.dimension_semantics<parallel>, #tpu.dimension_semantics<parallel>, #tpu.dimension_semantics<arbitrary>], iteration_bounds = array<i64: 2, 1, 1>, scalar_prefetch = 0 : i64, scratch_operands = 1 : i64, tpu.core_type = #tpu.core_type<tc>, window_params = [{transform_indices = @transform_0, window_bounds = array<i64: 64, 144>}, {transform_indices = @transform_1, window_bounds = array<i64: 144, 4096>}, {transform_indices = @transform_2, window_bounds = array<i64: 64, 1>}, {transform_indices = @transform_3, window_bounds = array<i64: 64, 4096>}]} {
    %c0_i32 = arith.constant 0 : i32
    %0 = arith.cmpi eq, %arg2, %c0_i32 : i32
    %1 = arith.extui %0 : i1 to i32
    %c0_i32_0 = arith.constant 0 : i32
    %2 = arith.cmpi ne, %1, %c0_i32_0 : i32
    scf.if %2 {
      %cst_10 = arith.constant 0.000000e+00 : f32
      %12 = vector.broadcast %cst_10 : f32 to vector<64x4096xf32>
      %c0_11 = arith.constant 0 : index
      %c0_12 = arith.constant 0 : index
      %13 = vector.load %arg7[%c0_11, %c0_12] : memref<64x4096xf32, #tpu.memory_space<vmem>>, vector<64x4096xf32>
      tpu.vector_store %arg7[%c0_11, %c0_12], %12 {strides = array<i32>} : memref<64x4096xf32, #tpu.memory_space<vmem>>, vector<64x4096xf32>,
    } else {
    }
    %c0 = arith.constant 0 : index
    %c0_1 = arith.constant 0 : index
    %3 = vector.load %arg7[%c0, %c0_1] : memref<64x4096xf32, #tpu.memory_space<vmem>>, vector<64x4096xf32>
    %c0_2 = arith.constant 0 : index
    %c0_3 = arith.constant 0 : index
    %4 = vector.load %arg3[%c0_2, %c0_3] : memref<64x144xbf16, #tpu.memory_space<vmem>>, vector<64x144xbf16>
    %c0_4 = arith.constant 0 : index
    %c0_5 = arith.constant 0 : index
    %5 = vector.load %arg4[%c0_4, %c0_5] : memref<144x4096xbf16, #tpu.memory_space<vmem>>, vector<144x4096xbf16>
    %cst = arith.constant dense<0.000000e+00> : vector<64x4096xf32>
    %6 = tpu.matmul %4, %5, %cst {dimension_numbers = #tpu.dot_dimension_numbers<[1], [0], [0], [1], [0, 0, 1, 1], [], []>} : vector<64x144xbf16>, vector<144x4096xbf16>, vector<64x4096xf32> -> vector<64x4096xf32>
    %7 = arith.addf %3, %6 : vector<64x4096xf32>
    %c0_6 = arith.constant 0 : index
    %c0_7 = arith.constant 0 : index
    %8 = vector.load %arg7[%c0_6, %c0_7] : memref<64x4096xf32, #tpu.memory_space<vmem>>, vector<64x4096xf32>
    tpu.vector_store %arg7[%c0_6, %c0_7], %7 {strides = array<i32>} : memref<64x4096xf32, #tpu.memory_space<vmem>>, vector<64x4096xf32>,
    %c0_i32_8 = arith.constant 0 : i32
    %9 = arith.cmpi eq, %arg2, %c0_i32_8 : i32
    %10 = arith.extui %9 : i1 to i32
    %c0_i32_9 = arith.constant 0 : i32
    %11 = arith.cmpi ne, %10, %c0_i32_9 : i32
    scf.if %11 {
      %c0_10 = arith.constant 0 : index
      %c0_11 = arith.constant 0 : index
      %12 = vector.load %arg7[%c0_10, %c0_11] : memref<64x4096xf32, #tpu.memory_space<vmem>>, vector<64x4096xf32>
      %c0_12 = arith.constant 0 : index
      %c0_13 = arith.constant 0 : index
      %13 = vector.load %arg5[%c0_12, %c0_13] : memref<64x1xf32, #tpu.memory_space<vmem>>, vector<64x1xf32>
      %14 = vector.broadcast %13 : vector<64x1xf32> to vector<64x4096xf32>
      %15 = arith.addf %12, %14 : vector<64x4096xf32>
      %cst_14 = arith.constant 0.000000e+00 : f32
      %16 = vector.broadcast %cst_14 : f32 to vector<64x4096xf32>
      %17 = arith.maximumf %15, %16 : vector<64x4096xf32>
      %c0_15 = arith.constant 0 : index
      %c0_16 = arith.constant 0 : index
      %18 = vector.load %arg6[%c0_15, %c0_16] : memref<64x4096xf32, #tpu.memory_space<vmem>>, vector<64x4096xf32>
      tpu.vector_store %arg6[%c0_15, %c0_16], %17 {strides = array<i32>} : memref<64x4096xf32, #tpu.memory_space<vmem>>, vector<64x4096xf32>,
    } else {
    }
    return
  }
  func.func @transform_0(%arg0: i32, %arg1: i32, %arg2: i32) -> (i32, i32) {
    %c0_i32 = arith.constant 0 : i32
    return %arg1, %arg2 : i32, i32
  }
  func.func @transform_1(%arg0: i32, %arg1: i32, %arg2: i32) -> (i32, i32) {
    %c0_i32 = arith.constant 0 : i32
    return %arg2, %arg0 : i32, i32
  }
  func.func @transform_2(%arg0: i32, %arg1: i32, %arg2: i32) -> (i32, i32) {
    %c0_i32 = arith.constant 0 : i32
    %c0_i32_0 = arith.constant 0 : i32
    return %arg1, %c0_i32 : i32, i32
  }
  func.func @transform_3(%arg0: i32, %arg1: i32, %arg2: i32) -> (i32, i32) {
    %c0_i32 = arith.constant 0 : i32
    return %arg1, %arg0 : i32, i32
  }
}

</mosaic_0001>

<llo_original>
// kernel: _lambda_.1
$region0: #{_lambda_.1}
  #allocation0 [shape = 'u32[]', space=smem, size = 0x4, offset = 0x4, fixed_abs, tag = 'smem constant byte address 0x4 - core index']
  #allocation1 [shape = 'u32[144,128]{1,0:T(1,128)}', space=vmem, size = 0x12000, scoped, tag = 'internal scratch']
  #allocation2 [shape = 'f32[64,4096]{1,0:T(8,128)}', space=vmem, size = 0x100000, scoped, tag = 'scratch operand']
  %s0 = inlined_call_operand.vmem [shape: bf16[64,144], index: 0, kind: input, shape index: {}]
  %s1 = inlined_call_operand.vmem [shape: bf16[144,8192], index: 1, kind: input, shape index: {}]
  %s2 = inlined_call_operand.vmem [shape: f32[64,1], index: 2, kind: input, shape index: {}]
  %s3 = inlined_call_operand.vmem [shape: f32[64,8192], index: 3, kind: output, shape index: {}]
  %s4 = sld [smem:[#allocation0]]
  $region95: #{_lambda_.1} parent=0
    _
  %s6 = ssub.s32 1, %s4
  %s7 = scalar_select 0, %s6, %s4
  $region1: #{_lambda_.1} parent=0
    #allocation3 [shape = 'u8[2359296]{0}', space=vmem, size = 0x240000, scoped, tag = 'input window, operand 1']
    #allocation4 [shape = 'u8[2097152]{0}', space=vmem, size = 0x200000, scoped, tag = 'output window, operand 0']
    loop: start=0, step=1, limit=4
    $region2: #{_lambda_.1} parent=1 // loop_pre_header
      _
    $region3: #{_lambda_.1} parent=1 // loop_header
      %s9 = sphi 0, %s13
      %p10 = scmp.ge.s32.totalorder %s9, 4
      %s16 = sphi 0, %s35
      %s17 = sphi 0, %s31
      %s18 = sphi 0, %s27
      %s19 = sphi 0, %s16
      %s20 = sphi 0, %s17
      %s21 = sphi 0, %s18
      %s22 = sphi 0, %s19
      %s23 = sphi 0, %s20
      %s24 = sphi 0, %s21
      %s40 = sphi 0, %s42
      %s43 = sphi 0, %s40
      %s44 = sphi 0, %s43
      %s60 = sphi 0, %s44
      %s68 = sphi 0, %s70
      %s71 = sphi 0, %s68
      %s72 = sphi 0, %s71
      %s88 = sphi 0, %s72
      %s94 = sphi 0, %s96
      %s97 = sphi 0, %s94
      %s98 = sphi 0, %s97
      %s114 = sphi 0, %s98
      %s122 = sphi 0, %s124
      %s125 = sphi 0, %s122
      %s126 = sphi 0, %s125
      %s142 = sphi 0, %s126
    $region4: #{_lambda_.1} parent=1 // loop_header_branch
      %12 = sbr.rel (%p10) target = $region8
    $region5: #{_lambda_.1} parent=1 // loop_body
      %s14 = ssub.s32 %s9, 1
      %s15 = ssub.s32 %s9, 2
      %s25 = sadd.s32 1, %s18
      %p26 = scmp.ge.s32.totalorder %s25, 1
      %s27 = scalar_select %p26, 0, %s25
      %s28 = sadd.s32 1, %s17
      %s29 = scalar_select %p26, %s28, %s17
      %p30 = scmp.ge.s32.totalorder %s29, 1
      %s31 = scalar_select %p30, 0, %s29
      %s32 = sadd.s32 1, %s16
      %s33 = scalar_select %p30, %s32, %s16
      %p34 = scmp.ge.s32.totalorder %s33, 2
      %s35 = scalar_select %p34, 0, %s33
      %s36 = ssub.s32 %s17, %s31
      %s37 = ssub.s32 %s18, %s27
      %s38 = sor.u32 %s36, %s37
      %p39 = scmp.eq.s32.totalorder %s38, 0
      %s41 = sadd.s32 %s40, 1
      %s42 = scalar_select %p39, %s40, %s41
      %p45 = pneg %p39
      %p46 = scmp.eq.s32.totalorder %s9, 1
      %p47 = por %p45, %p46
      %p48 = scmp.ne.s32.totalorder %s40, %s43
      %p49 = scmp.eq.s32.totalorder %s9, 0
      %p50 = por %p48, %p49
      %p51 = scmp.ne.s32.totalorder %s40, %s43
      %p52 = scmp.eq.s32.totalorder %s14, 1
      %p53 = por %p51, %p52
      %p54 = scmp.ne.s32.totalorder %s43, %s44
      %p55 = scmp.eq.s32.totalorder %s14, 0
      %p56 = por %p54, %p55
      %p57 = scmp.ne.s32.totalorder %s43, %s44
      %p58 = scmp.eq.s32.totalorder %s15, 1
      %p59 = por %p57, %p58
      %p61 = scmp.ne.s32.totalorder %s44, %s60
      %p62 = scmp.eq.s32.totalorder %s15, 0
      %p63 = por %p61, %p62
      %s64 = ssub.s32 %s18, %s27
      %s65 = ssub.s32 %s16, %s35
      %s66 = sor.u32 %s64, %s65
      %p67 = scmp.eq.s32.totalorder %s66, 0
      %s69 = sadd.s32 %s68, 1
      %s70 = scalar_select %p67, %s68, %s69
      %p73 = pneg %p67
      %p74 = scmp.eq.s32.totalorder %s9, 1
      %p75 = por %p73, %p74
      %p76 = scmp.ne.s32.totalorder %s68, %s71
      %p77 = scmp.eq.s32.totalorder %s9, 0
      %p78 = por %p76, %p77
      %p79 = scmp.ne.s32.totalorder %s68, %s71
      %p80 = scmp.eq.s32.totalorder %s14, 1
      %p81 = por %p79, %p80
      %p82 = scmp.ne.s32.totalorder %s71, %s72
      %p83 = scmp.eq.s32.totalorder %s14, 0
      %p84 = por %p82, %p83
      %p85 = scmp.ne.s32.totalorder %s71, %s72
      %p86 = scmp.eq.s32.totalorder %s15, 1
      %p87 = por %p85, %p86
      %p89 = scmp.ne.s32.totalorder %s72, %s88
      %p90 = scmp.eq.s32.totalorder %s15, 0
      %p91 = por %p89, %p90
      %s92 = ssub.s32 %s17, %s31
      %p93 = scmp.eq.s32.totalorder %s92, 0
      %s95 = sadd.s32 %s94, 1
      %s96 = scalar_select %p93, %s94, %s95
      %p99 = pneg %p93
      %p100 = scmp.eq.s32.totalorder %s9, 1
      %p101 = por %p99, %p100
      %p102 = scmp.ne.s32.totalorder %s94, %s97
      %p103 = scmp.eq.s32.totalorder %s9, 0
      %p104 = por %p102, %p103
      %p105 = scmp.ne.s32.totalorder %s94, %s97
      %p106 = scmp.eq.s32.totalorder %s14, 1
      %p107 = por %p105, %p106
      %p108 = scmp.ne.s32.totalorder %s97, %s98
      %p109 = scmp.eq.s32.totalorder %s14, 0
      %p110 = por %p108, %p109
      %p111 = scmp.ne.s32.totalorder %s97, %s98
      %p112 = scmp.eq.s32.totalorder %s15, 1
      %p113 = por %p111, %p112
      %p115 = scmp.ne.s32.totalorder %s98, %s114
      %p116 = scmp.eq.s32.totalorder %s15, 0
      %p117 = por %p115, %p116
      %s118 = ssub.s32 %s17, %s31
      %s119 = ssub.s32 %s16, %s35
      %s120 = sor.u32 %s118, %s119
      %p121 = scmp.eq.s32.totalorder %s120, 0
      %s123 = sadd.s32 %s122, 1
      %s124 = scalar_select %p121, %s122, %s123
      %p127 = pneg %p121
      %p128 = scmp.eq.s32.totalorder %s9, 1
      %p129 = por %p127, %p128
      %p130 = scmp.ne.s32.totalorder %s122, %s125
      %p131 = scmp.eq.s32.totalorder %s9, 0
      %p132 = por %p130, %p131
      %p133 = scmp.ne.s32.totalorder %s122, %s125
      %p134 = scmp.eq.s32.totalorder %s14, 1
      %p135 = por %p133, %p134
      %p136 = scmp.ne.s32.totalorder %s125, %s126
      %p137 = scmp.eq.s32.totalorder %s14, 0
      %p138 = por %p136, %p137
      %p139 = scmp.ne.s32.totalorder %s125, %s126
      %p140 = scmp.eq.s32.totalorder %s15, 1
      %p141 = por %p139, %p140
      %p143 = scmp.ne.s32.totalorder %s126, %s142
      %p144 = scmp.eq.s32.totalorder %s15, 0
      %p145 = por %p143, %p144
      %p146 = scmp.le.s32.totalorder 1, %s9
      %p147 = scmp.lt.s32.totalorder %s9, 3
      %p148 = pnand %p146, %p147
      %p149 = pneg %p148
      // Predicated region
      $region9: #{_lambda_.1} parent=5 // pred_check
        _
      $region10: #{_lambda_.1} parent=5 // pred_check_branch
        %151 = sbr.rel (%p148) target = $region12
      $region11: #{_lambda_.1} parent=5 // pred_region
        %s152 = ssub.s32 %s9, 1
        // Predicated region
        $region13: #{_lambda_.1} parent=11 // pred_check
          %p153 = pneg %p56
        $region14: #{_lambda_.1} parent=11 // pred_check_branch
          %155 = sbr.rel (%p153) target = $region16
        $region15: #{_lambda_.1} parent=11 // pred_region
          %s156 = smul.u32 8, %s20
          %s157 = smul.u32 2, %s21
          %p158 = scmp.lt.s32.totalorder %s156, 7
          %s159 = scalar_select %p158, %s156, 7
          %p160 = scmp.lt.s32.totalorder %s157, 1
          %s161 = scalar_select %p160, %s157, 1
          %s162 = smul.addr %s159, 2
          %s163 = sadd.s32 %s161, %s162
          %s164 = smul.addr %s163, 4
          %s165 = scalar_lea.vmem %s0, %s164
          %s166 = smul.u32 8, %s20
          %s167 = smul.u32 2, %s21
        $region16: #{_lambda_.1} parent=11 // pred_fallthru
          _
        // Predicated region
        $region17: #{_lambda_.1} parent=11 // pred_check
          %p168 = pneg %p110
        $region18: #{_lambda_.1} parent=11 // pred_check_branch
          %170 = sbr.rel (%p168) target = $region20
        $region19: #{_lambda_.1} parent=11 // pred_region
          %s171 = smul.u32 8, %s20
          %p172 = scmp.lt.s32.totalorder %s171, 7
          %s173 = scalar_select %p172, %s171, 7
          %s174 = smul.addr %s173, 8
          %s175 = scalar_lea.vmem %s2, %s174
          %s176 = smul.u32 8, %s20
        $region20: #{_lambda_.1} parent=11 // pred_fallthru
          _
      $region12: #{_lambda_.1} parent=5 // pred_fallthru
        _
      %p177 = scmp.lt.s32.totalorder %s9, 2
      // Predicated region
      $region21: #{_lambda_.1} parent=5 // pred_check
        %p178 = pneg %p177
      $region22: #{_lambda_.1} parent=5 // pred_check_branch
        %180 = sbr.rel (%p178) target = $region24
      $region23: #{_lambda_.1} parent=5 // pred_region
        // Predicated region
        $region25: #{_lambda_.1} parent=23 // pred_check
          %p181 = pneg %p78
        $region26: #{_lambda_.1} parent=23 // pred_check_branch
          %183 = sbr.rel (%p181) target = $region28
        $region27: #{_lambda_.1} parent=23 // pred_region
          %s184 = sand.u32 %s68, 1
          %s185 = sand.u32 %s68, 1
          %s186 = smul.addr %s185, 2304
          %s187 = scalar_lea.vmem [#allocation3], %s186
          %s188 = smul.u32 18, %s18
          %s189 = smul.u32 32, %s16
          %s190 = smul.addr %s188, 64
          %s191 = sadd.s32 %s189, %s190
          %s192 = smul.addr %s191, 4
          %s193 = scalar_lea.vmem %s1, %s192
          // Predicated region
          $region29: #{_lambda_.1} parent=27 // pred_check
            _
          $region30: #{_lambda_.1} parent=27 // pred_check_branch
            %195 = sbr.rel (0) target = $region32
          $region31: #{_lambda_.1} parent=27 // pred_region
            // Predicated region
            $region33: #{_lambda_.1} parent=31 // pred_check
              _
            $region34: #{_lambda_.1} parent=31 // pred_check_branch
              %197 = sbr.rel (0) target = $region36
            $region35: #{_lambda_.1} parent=31 // pred_region
              loop: start=0, step=1, limit=1
              $region37: #{_lambda_.1} parent=35 // loop_pre_header
                _
              $region38: #{_lambda_.1} parent=35 // loop_header
                %s199 = sphi 0, %s203
                %p200 = scmp.ge.s32.totalorder %s199, 1
                %s204 = sphi %s193, %s193
                %s205 = sphi %s187, %s187
              $region39: #{_lambda_.1} parent=35 // loop_header_branch
                %202 = sbr.rel (%p200) target = $region43
              $region40: #{_lambda_.1} parent=35 // loop_body
                %v206 = vld [vmem:[%s204] sm:$0xff]
                %207 = vst [vmem:[%s205] sm:$0xff] %v206
                %v208 = vld [vmem:[%s204 + $0x8] sm:$0xff]
                %209 = vst [vmem:[%s205 + $0x8] sm:$0xff] %v208
                %v210 = vld [vmem:[%s204 + $0x10] sm:$0xff]
                %211 = vst [vmem:[%s205 + $0x10] sm:$0xff] %v210
                %v212 = vld [vmem:[%s204 + $0x18] sm:$0xff]
                %213 = vst [vmem:[%s205 + $0x18] sm:$0xff] %v212
                %v214 = vld [vmem:[%s204 + $0x20] sm:$0xff]
                %215 = vst [vmem:[%s205 + $0x20] sm:$0xff] %v214
                %v216 = vld [vmem:[%s204 + $0x28] sm:$0xff]
                %217 = vst [vmem:[%s205 + $0x28] sm:$0xff] %v216
                %v218 = vld [vmem:[%s204 + $0x30] sm:$0xff]
                %219 = vst [vmem:[%s205 + $0x30] sm:$0xff] %v218
                %v220 = vld [vmem:[%s204 + $0x38] sm:$0xff]
                %221 = vst [vmem:[%s205 + $0x38] sm:$0xff] %v220
                %v222 = vld [vmem:[%s204 + $0x40] sm:$0xff]
                %223 = vst [vmem:[%s205 + $0x40] sm:$0xff] %v222
                %v224 = vld [vmem:[%s204 + $0x48] sm:$0xff]
                %225 = vst [vmem:[%s205 + $0x48] sm:$0xff] %v224
                %v226 = vld [vmem:[%s204 + $0x50] sm:$0xff]
                %227 = vst [vmem:[%s205 + $0x50] sm:$0xff] %v226
                %v228 = vld [vmem:[%s204 + $0x58] sm:$0xff]
                %229 = vst [vmem:[%s205 + $0x58] sm:$0xff] %v228
                %v230 = vld [vmem:[%s204 + $0x60] sm:$0xff]
                %231 = vst [vmem:[%s205 + $0x60] sm:$0xff] %v230
                %v232 = vld [vmem:[%s204 + $0x68] sm:$0xff]
                %233 = vst [vmem:[%s205 + $0x68] sm:$0xff] %v232
                %v234 = vld [vmem:[%s204 + $0x70] sm:$0xff]
                %235 = vst [vmem:[%s205 + $0x70] sm:$0xff] %v234
                %v236 = vld [vmem:[%s204 + $0x78] sm:$0xff]
                %237 = vst [vmem:[%s205 + $0x78] sm:$0xff] %v236
                %v238 = vld [vmem:[%s204 + $0x100] sm:$0xff]
                %239 = vst [vmem:[%s205 + $0x80] sm:$0xff] %v238
                %v240 = vld [vmem:[%s204 + $0x108] sm:$0xff]
                %241 = vst [vmem:[%s205 + $0x88] sm:$0xff] %v240
                %v242 = vld [vmem:[%s204 + $0x110] sm:$0xff]
                %243 = vst [vmem:[%s205 + $0x90] sm:$0xff] %v242
                %v244 = vld [vmem:[%s204 + $0x118] sm:$0xff]
                %245 = vst [vmem:[%s205 + $0x98] sm:$0xff] %v244
                %v246 = vld [vmem:[%s204 + $0x120] sm:$0xff]
                %247 = vst [vmem:[%s205 + $0xa0] sm:$0xff] %v246
                %v248 = vld [vmem:[%s204 + $0x128] sm:$0xff]
                %249 = vst [vmem:[%s205 + $0xa8] sm:$0xff] %v248
                %v250 = vld [vmem:[%s204 + $0x130] sm:$0xff]
                %251 = vst [vmem:[%s205 + $0xb0] sm:$0xff] %v250
                %v252 = vld [vmem:[%s204 + $0x138] sm:$0xff]
                %253 = vst [vmem:[%s205 + $0xb8] sm:$0xff] %v252
                %v254 = vld [vmem:[%s204 + $0x140] sm:$0xff]
                %255 = vst [vmem:[%s205 + $0xc0] sm:$0xff] %v254
                %v256 = vld [vmem:[%s204 + $0x148] sm:$0xff]
                %257 = vst [vmem:[%s205 + $0xc8] sm:$0xff] %v256
                %v258 = vld [vmem:[%s204 + $0x150] sm:$0xff]
                %259 = vst [vmem:[%s205 + $0xd0] sm:$0xff] %v258
                %v260 = vld [vmem:[%s204 + $0x158] sm:$0xff]
                %261 = vst [vmem:[%s205 + $0xd8] sm:$0xff] %v260
                %v262 = vld [vmem:[%s204 + $0x160] sm:$0xff]
                %263 = vst [vmem:[%s205 + $0xe0] sm:$0xff] %v262
                %v264 = vld [vmem:[%s204 + $0x168] sm:$0xff]
                %265 = vst [vmem:[%s205 + $0xe8] sm:$0xff] %v264
                %v266 = vld [vmem:[%s204 + $0x170] sm:$0xff]
                %267 = vst [vmem:[%s205 + $0xf0] sm:$0xff] %v266
                %v268 = vld [vmem:[%s204 + $0x178] sm:$0xff]
                %269 = vst [vmem:[%s205 + $0xf8] sm:$0xff] %v268
                %v270 = vld [vmem:[%s204 + $0x200] sm:$0xff]
                %271 = vst [vmem:[%s205 + $0x100] sm:$0xff] %v270
                %v272 = vld [vmem:[%s204 + $0x208] sm:$0xff]
                %273 = vst [vmem:[%s205 + $0x108] sm:$0xff] %v272
                %v274 = vld [vmem:[%s204 + $0x210] sm:$0xff]
                %275 = vst [vmem:[%s205 + $0x110] sm:$0xff] %v274
                %v276 = vld [vmem:[%s204 + $0x218] sm:$0xff]
                %277 = vst [vmem:[%s205 + $0x118] sm:$0xff] %v276
                %v278 = vld [vmem:[%s204 + $0x220] sm:$0xff]
                %279 = vst [vmem:[%s205 + $0x120] sm:$0xff] %v278
                %v280 = vld [vmem:[%s204 + $0x228] sm:$0xff]
                %281 = vst [vmem:[%s205 + $0x128] sm:$0xff] %v280
                %v282 = vld [vmem:[%s204 + $0x230] sm:$0xff]
                %283 = vst [vmem:[%s205 + $0x130] sm:$0xff] %v282
                %v284 = vld [vmem:[%s204 + $0x238] sm:$0xff]
                %285 = vst [vmem:[%s205 + $0x138] sm:$0xff] %v284
                %v286 = vld [vmem:[%s204 + $0x240] sm:$0xff]
                %287 = vst [vmem:[%s205 + $0x140] sm:$0xff] %v286
                %v288 = vld [vmem:[%s204 + $0x248] sm:$0xff]
                %289 = vst [vmem:[%s205 + $0x148] sm:$0xff] %v288
                %v290 = vld [vmem:[%s204 + $0x250] sm:$0xff]
                %291 = vst [vmem:[%s205 + $0x150] sm:$0xff] %v290
                %v292 = vld [vmem:[%s204 + $0x258] sm:$0xff]
                %293 = vst [vmem:[%s205 + $0x158] sm:$0xff] %v292
                %v294 = vld [vmem:[%s204 + $0x260] sm:$0xff]
                %295 = vst [vmem:[%s205 + $0x160] sm:$0xff] %v294
                %v296 = vld [vmem:[%s204 + $0x268] sm:$0xff]
                %297 = vst [vmem:[%s205 + $0x168] sm:$0xff] %v296
                %v298 = vld [vmem:[%s204 + $0x270] sm:$0xff]
                %299 = vst [vmem:[%s205 + $0x170] sm:$0xff] %v298
                %v300 = vld [vmem:[%s204 + $0x278] sm:$0xff]
                %301 = vst [vmem:[%s205 + $0x178] sm:$0xff] %v300
                %v302 = vld [vmem:[%s204 + $0x300] sm:$0xff]
                %303 = vst [vmem:[%s205 + $0x180] sm:$0xff] %v302
                %v304 = vld [vmem:[%s204 + $0x308] sm:$0xff]
                %305 = vst [vmem:[%s205 + $0x188] sm:$0xff] %v304
                %v306 = vld [vmem:[%s204 + $0x310] sm:$0xff]
                %307 = vst [vmem:[%s205 + $0x190] sm:$0xff] %v306
                %v308 = vld [vmem:[%s204 + $0x318] sm:$0xff]
                %309 = vst [vmem:[%s205 + $0x198] sm:$0xff] %v308
                %v310 = vld [vmem:[%s204 + $0x320] sm:$0xff]
                %311 = vst [vmem:[%s205 + $0x1a0] sm:$0xff] %v310
                %v312 = vld [vmem:[%s204 + $0x328] sm:$0xff]
                %313 = vst [vmem:[%s205 + $0x1a8] sm:$0xff] %v312
                %v314 = vld [vmem:[%s204 + $0x330] sm:$0xff]
                %315 = vst [vmem:[%s205 + $0x1b0] sm:$0xff] %v314
                %v316 = vld [vmem:[%s204 + $0x338] sm:$0xff]
                %317 = vst [vmem:[%s205 + $0x1b8] sm:$0xff] %v316
                %v318 = vld [vmem:[%s204 + $0x340] sm:$0xff]
                %319 = vst [vmem:[%s205 + $0x1c0] sm:$0xff] %v318
                %v320 = vld [vmem:[%s204 + $0x348] sm:$0xff]
                %321 = vst [vmem:[%s205 + $0x1c8] sm:$0xff] %v320
                %v322 = vld [vmem:[%s204 + $0x350] sm:$0xff]
                %323 = vst [vmem:[%s205 + $0x1d0] sm:$0xff] %v322
                %v324 = vld [vmem:[%s204 + $0x358] sm:$0xff]
                %325 = vst [vmem:[%s205 + $0x1d8] sm:$0xff] %v324
                %v326 = vld [vmem:[%s204 + $0x360] sm:$0xff]
                %327 = vst [vmem:[%s205 + $0x1e0] sm:$0xff] %v326
                %v328 = vld [vmem:[%s204 + $0x368] sm:$0xff]
                %329 = vst [vmem:[%s205 + $0x1e8] sm:$0xff] %v328
                %v330 = vld [vmem:[%s204 + $0x370] sm:$0xff]
                %331 = vst [vmem:[%s205 + $0x1f0] sm:$0xff] %v330
                %v332 = vld [vmem:[%s204 + $0x378] sm:$0xff]
                %333 = vst [vmem:[%s205 + $0x1f8] sm:$0xff] %v332
                %v334 = vld [vmem:[%s204 + $0x400] sm:$0xff]
                %335 = vst [vmem:[%s205 + $0x200] sm:$0xff] %v334
                %v336 = vld [vmem:[%s204 + $0x408] sm:$0xff]
                %337 = vst [vmem:[%s205 + $0x208] sm:$0xff] %v336
                %v338 = vld [vmem:[%s204 + $0x410] sm:$0xff]
                %339 = vst [vmem:[%s205 + $0x210] sm:$0xff] %v338
                %v340 = vld [vmem:[%s204 + $0x418] sm:$0xff]
                %341 = vst [vmem:[%s205 + $0x218] sm:$0xff] %v340
                %v342 = vld [vmem:[%s204 + $0x420] sm:$0xff]
                %343 = vst [vmem:[%s205 + $0x220] sm:$0xff] %v342
                %v344 = vld [vmem:[%s204 + $0x428] sm:$0xff]
                %345 = vst [vmem:[%s205 + $0x228] sm:$0xff] %v344
                %v346 = vld [vmem:[%s204 + $0x430] sm:$0xff]
                %347 = vst [vmem:[%s205 + $0x230] sm:$0xff] %v346
                %v348 = vld [vmem:[%s204 + $0x438] sm:$0xff]
                %349 = vst [vmem:[%s205 + $0x238] sm:$0xff] %v348
                %v350 = vld [vmem:[%s204 + $0x440] sm:$0xff]
                %351 = vst [vmem:[%s205 + $0x240] sm:$0xff] %v350
                %v352 = vld [vmem:[%s204 + $0x448] sm:$0xff]
                %353 = vst [vmem:[%s205 + $0x248] sm:$0xff] %v352
                %v354 = vld [vmem:[%s204 + $0x450] sm:$0xff]
                %355 = vst [vmem:[%s205 + $0x250] sm:$0xff] %v354
                %v356 = vld [vmem:[%s204 + $0x458] sm:$0xff]
                %357 = vst [vmem:[%s205 + $0x258] sm:$0xff] %v356
                %v358 = vld [vmem:[%s204 + $0x460] sm:$0xff]
                %359 = vst [vmem:[%s205 + $0x260] sm:$0xff] %v358
                %v360 = vld [vmem:[%s204 + $0x468] sm:$0xff]
                %361 = vst [vmem:[%s205 + $0x268] sm:$0xff] %v360
                %v362 = vld [vmem:[%s204 + $0x470] sm:$0xff]
                %363 = vst [vmem:[%s205 + $0x270] sm:$0xff] %v362
                %v364 = vld [vmem:[%s204 + $0x478] sm:$0xff]
                %365 = vst [vmem:[%s205 + $0x278] sm:$0xff] %v364
                %v366 = vld [vmem:[%s204 + $0x500] sm:$0xff]
                %367 = vst [vmem:[%s205 + $0x280] sm:$0xff] %v366
                %v368 = vld [vmem:[%s204 + $0x508] sm:$0xff]
                %369 = vst [vmem:[%s205 + $0x288] sm:$0xff] %v368
                %v370 = vld [vmem:[%s204 + $0x510] sm:$0xff]
                %371 = vst [vmem:[%s205 + $0x290] sm:$0xff] %v370
                %v372 = vld [vmem:[%s204 + $0x518] sm:$0xff]
                %373 = vst [vmem:[%s205 + $0x298] sm:$0xff] %v372
                %v374 = vld [vmem:[%s204 + $0x520] sm:$0xff]
                %375 = vst [vmem:[%s205 + $0x2a0] sm:$0xff] %v374
                %v376 = vld [vmem:[%s204 + $0x528] sm:$0xff]
                %377 = vst [vmem:[%s205 + $0x2a8] sm:$0xff] %v376
                %v378 = vld [vmem:[%s204 + $0x530] sm:$0xff]
                %379 = vst [vmem:[%s205 + $0x2b0] sm:$0xff] %v378
                %v380 = vld [vmem:[%s204 + $0x538] sm:$0xff]
                %381 = vst [vmem:[%s205 + $0x2b8] sm:$0xff] %v380
                %v382 = vld [vmem:[%s204 + $0x540] sm:$0xff]
                %383 = vst [vmem:[%s205 + $0x2c0] sm:$0xff] %v382
                %v384 = vld [vmem:[%s204 + $0x548] sm:$0xff]
                %385 = vst [vmem:[%s205 + $0x2c8] sm:$0xff] %v384
                %v386 = vld [vmem:[%s204 + $0x550] sm:$0xff]
                %387 = vst [vmem:[%s205 + $0x2d0] sm:$0xff] %v386
                %v388 = vld [vmem:[%s204 + $0x558] sm:$0xff]
                %389 = vst [vmem:[%s205 + $0x2d8] sm:$0xff] %v388
                %v390 = vld [vmem:[%s204 + $0x560] sm:$0xff]
                %391 = vst [vmem:[%s205 + $0x2e0] sm:$0xff] %v390
                %v392 = vld [vmem:[%s204 + $0x568] sm:$0xff]
                %393 = vst [vmem:[%s205 + $0x2e8] sm:$0xff] %v392
                %v394 = vld [vmem:[%s204 + $0x570] sm:$0xff]
                %395 = vst [vmem:[%s205 + $0x2f0] sm:$0xff] %v394
                %v396 = vld [vmem:[%s204 + $0x578] sm:$0xff]
                %397 = vst [vmem:[%s205 + $0x2f8] sm:$0xff] %v396
                %v398 = vld [vmem:[%s204 + $0x600] sm:$0xff]
                %399 = vst [vmem:[%s205 + $0x300] sm:$0xff] %v398
                %v400 = vld [vmem:[%s204 + $0x608] sm:$0xff]
                %401 = vst [vmem:[%s205 + $0x308] sm:$0xff] %v400
                %v402 = vld [vmem:[%s204 + $0x610] sm:$0xff]
                %403 = vst [vmem:[%s205 + $0x310] sm:$0xff] %v402
                %v404 = vld [vmem:[%s204 + $0x618] sm:$0xff]
                %405 = vst [vmem:[%s205 + $0x318] sm:$0xff] %v404
                %v406 = vld [vmem:[%s204 + $0x620] sm:$0xff]
                %407 = vst [vmem:[%s205 + $0x320] sm:$0xff] %v406
                %v408 = vld [vmem:[%s204 + $0x628] sm:$0xff]
                %409 = vst [vmem:[%s205 + $0x328] sm:$0xff] %v408
                %v410 = vld [vmem:[%s204 + $0x630] sm:$0xff]
                %411 = vst [vmem:[%s205 + $0x330] sm:$0xff] %v410
                %v412 = vld [vmem:[%s204 + $0x638] sm:$0xff]
                %413 = vst [vmem:[%s205 + $0x338] sm:$0xff] %v412
                %v414 = vld [vmem:[%s204 + $0x640] sm:$0xff]
                %415 = vst [vmem:[%s205 + $0x340] sm:$0xff] %v414
                %v416 = vld [vmem:[%s204 + $0x648] sm:$0xff]
                %417 = vst [vmem:[%s205 + $0x348] sm:$0xff] %v416
                %v418 = vld [vmem:[%s204 + $0x650] sm:$0xff]
                %419 = vst [vmem:[%s205 + $0x350] sm:$0xff] %v418
                %v420 = vld [vmem:[%s204 + $0x658] sm:$0xff]
                %421 = vst [vmem:[%s205 + $0x358] sm:$0xff] %v420
                %v422 = vld [vmem:[%s204 + $0x660] sm:$0xff]
                %423 = vst [vmem:[%s205 + $0x360] sm:$0xff] %v422
                %v424 = vld [vmem:[%s204 + $0x668] sm:$0xff]
                %425 = vst [vmem:[%s205 + $0x368] sm:$0xff] %v424
                %v426 = vld [vmem:[%s204 + $0x670] sm:$0xff]
                %427 = vst [vmem:[%s205 + $0x370] sm:$0xff] %v426
                %v428 = vld [vmem:[%s204 + $0x678] sm:$0xff]
                %429 = vst [vmem:[%s205 + $0x378] sm:$0xff] %v428
                %v430 = vld [vmem:[%s204 + $0x700] sm:$0xff]
                %431 = vst [vmem:[%s205 + $0x380] sm:$0xff] %v430
                %v432 = vld [vmem:[%s204 + $0x708] sm:$0xff]
                %433 = vst [vmem:[%s205 + $0x388] sm:$0xff] %v432
                %v434 = vld [vmem:[%s204 + $0x710] sm:$0xff]
                %435 = vst [vmem:[%s205 + $0x390] sm:$0xff] %v434
                %v436 = vld [vmem:[%s204 + $0x718] sm:$0xff]
                %437 = vst [vmem:[%s205 + $0x398] sm:$0xff] %v436
                %v438 = vld [vmem:[%s204 + $0x720] sm:$0xff]
                %439 = vst [vmem:[%s205 + $0x3a0] sm:$0xff] %v438
                %v440 = vld [vmem:[%s204 + $0x728] sm:$0xff]
                %441 = vst [vmem:[%s205 + $0x3a8] sm:$0xff] %v440
                %v442 = vld [vmem:[%s204 + $0x730] sm:$0xff]
                %443 = vst [vmem:[%s205 + $0x3b0] sm:$0xff] %v442
                %v444 = vld [vmem:[%s204 + $0x738] sm:$0xff]
                %445 = vst [vmem:[%s205 + $0x3b8] sm:$0xff] %v444
                %v446 = vld [vmem:[%s204 + $0x740] sm:$0xff]
                %447 = vst [vmem:[%s205 + $0x3c0] sm:$0xff] %v446
                %v448 = vld [vmem:[%s204 + $0x748] sm:$0xff]
                %449 = vst [vmem:[%s205 + $0x3c8] sm:$0xff] %v448
                %v450 = vld [vmem:[%s204 + $0x750] sm:$0xff]
                %451 = vst [vmem:[%s205 + $0x3d0] sm:$0xff] %v450
                %v452 = vld [vmem:[%s204 + $0x758] sm:$0xff]
                %453 = vst [vmem:[%s205 + $0x3d8] sm:$0xff] %v452
                %v454 = vld [vmem:[%s204 + $0x760] sm:$0xff]
                %455 = vst [vmem:[%s205 + $0x3e0] sm:$0xff] %v454
                %v456 = vld [vmem:[%s204 + $0x768] sm:$0xff]
                %457 = vst [vmem:[%s205 + $0x3e8] sm:$0xff] %v456
                %v458 = vld [vmem:[%s204 + $0x770] sm:$0xff]
                %459 = vst [vmem:[%s205 + $0x3f0] sm:$0xff] %v458
                %v460 = vld [vmem:[%s204 + $0x778] sm:$0xff]
                %461 = vst [vmem:[%s205 + $0x3f8] sm:$0xff] %v460
                %v462 = vld [vmem:[%s204 + $0x800] sm:$0xff]
                %463 = vst [vmem:[%s205 + $0x400] sm:$0xff] %v462
                %v464 = vld [vmem:[%s204 + $0x808] sm:$0xff]
                %465 = vst [vmem:[%s205 + $0x408] sm:$0xff] %v464
                %v466 = vld [vmem:[%s204 + $0x810] sm:$0xff]
                %467 = vst [vmem:[%s205 + $0x410] sm:$0xff] %v466
                %v468 = vld [vmem:[%s204 + $0x818] sm:$0xff]
                %469 = vst [vmem:[%s205 + $0x418] sm:$0xff] %v468
                %v470 = vld [vmem:[%s204 + $0x820] sm:$0xff]
                %471 = vst [vmem:[%s205 + $0x420] sm:$0xff] %v470
                %v472 = vld [vmem:[%s204 + $0x828] sm:$0xff]
                %473 = vst [vmem:[%s205 + $0x428] sm:$0xff] %v472
                %v474 = vld [vmem:[%s204 + $0x830] sm:$0xff]
                %475 = vst [vmem:[%s205 + $0x430] sm:$0xff] %v474
                %v476 = vld [vmem:[%s204 + $0x838] sm:$0xff]
                %477 = vst [vmem:[%s205 + $0x438] sm:$0xff] %v476
                %v478 = vld [vmem:[%s204 + $0x840] sm:$0xff]
                %479 = vst [vmem:[%s205 + $0x440] sm:$0xff] %v478
                %v480 = vld [vmem:[%s204 + $0x848] sm:$0xff]
                %481 = vst [vmem:[%s205 + $0x448] sm:$0xff] %v480
                %v482 = vld [vmem:[%s204 + $0x850] sm:$0xff]
                %483 = vst [vmem:[%s205 + $0x450] sm:$0xff] %v482
                %v484 = vld [vmem:[%s204 + $0x858] sm:$0xff]
                %485 = vst [vmem:[%s205 + $0x458] sm:$0xff] %v484
                %v486 = vld [vmem:[%s204 + $0x860] sm:$0xff]
                %487 = vst [vmem:[%s205 + $0x460] sm:$0xff] %v486
                %v488 = vld [vmem:[%s204 + $0x868] sm:$0xff]
                %489 = vst [vmem:[%s205 + $0x468] sm:$0xff] %v488
                %v490 = vld [vmem:[%s204 + $0x870] sm:$0xff]
                %491 = vst [vmem:[%s205 + $0x470] sm:$0xff] %v490
                %v492 = vld [vmem:[%s204 + $0x878] sm:$0xff]
                %493 = vst [vmem:[%s205 + $0x478] sm:$0xff] %v492
                %v494 = vld [vmem:[%s204 + $0x900] sm:$0xff]
                %495 = vst [vmem:[%s205 + $0x480] sm:$0xff] %v494
                %v496 = vld [vmem:[%s204 + $0x908] sm:$0xff]
                %497 = vst [vmem:[%s205 + $0x488] sm:$0xff] %v496
                %v498 = vld [vmem:[%s204 + $0x910] sm:$0xff]
                %499 = vst [vmem:[%s205 + $0x490] sm:$0xff] %v498
                %v500 = vld [vmem:[%s204 + $0x918] sm:$0xff]
                %501 = vst [vmem:[%s205 + $0x498] sm:$0xff] %v500
                %v502 = vld [vmem:[%s204 + $0x920] sm:$0xff]
                %503 = vst [vmem:[%s205 + $0x4a0] sm:$0xff] %v502
                %v504 = vld [vmem:[%s204 + $0x928] sm:$0xff]
                %505 = vst [vmem:[%s205 + $0x4a8] sm:$0xff] %v504
                %v506 = vld [vmem:[%s204 + $0x930] sm:$0xff]
                %507 = vst [vmem:[%s205 + $0x4b0] sm:$0xff] %v506
                %v508 = vld [vmem:[%s204 + $0x938] sm:$0xff]
                %509 = vst [vmem:[%s205 + $0x4b8] sm:$0xff] %v508
                %v510 = vld [vmem:[%s204 + $0x940] sm:$0xff]
                %511 = vst [vmem:[%s205 + $0x4c0] sm:$0xff] %v510
                %v512 = vld [vmem:[%s204 + $0x948] sm:$0xff]
                %513 = vst [vmem:[%s205 + $0x4c8] sm:$0xff] %v512
                %v514 = vld [vmem:[%s204 + $0x950] sm:$0xff]
                %515 = vst [vmem:[%s205 + $0x4d0] sm:$0xff] %v514
                %v516 = vld [vmem:[%s204 + $0x958] sm:$0xff]
                %517 = vst [vmem:[%s205 + $0x4d8] sm:$0xff] %v516
                %v518 = vld [vmem:[%s204 + $0x960] sm:$0xff]
                %519 = vst [vmem:[%s205 + $0x4e0] sm:$0xff] %v518
                %v520 = vld [vmem:[%s204 + $0x968] sm:$0xff]
                %521 = vst [vmem:[%s205 + $0x4e8] sm:$0xff] %v520
                %v522 = vld [vmem:[%s204 + $0x970] sm:$0xff]
                %523 = vst [vmem:[%s205 + $0x4f0] sm:$0xff] %v522
                %v524 = vld [vmem:[%s204 + $0x978] sm:$0xff]
                %525 = vst [vmem:[%s205 + $0x4f8] sm:$0xff] %v524
                %v526 = vld [vmem:[%s204 + $0xa00] sm:$0xff]
                %527 = vst [vmem:[%s205 + $0x500] sm:$0xff] %v526
                %v528 = vld [vmem:[%s204 + $0xa08] sm:$0xff]
                %529 = vst [vmem:[%s205 + $0x508] sm:$0xff] %v528
                %v530 = vld [vmem:[%s204 + $0xa10] sm:$0xff]
                %531 = vst [vmem:[%s205 + $0x510] sm:$0xff] %v530
                %v532 = vld [vmem:[%s204 + $0xa18] sm:$0xff]
                %533 = vst [vmem:[%s205 + $0x518] sm:$0xff] %v532
                %v534 = vld [vmem:[%s204 + $0xa20] sm:$0xff]
                %535 = vst [vmem:[%s205 + $0x520] sm:$0xff] %v534
                %v536 = vld [vmem:[%s204 + $0xa28] sm:$0xff]
                %537 = vst [vmem:[%s205 + $0x528] sm:$0xff] %v536
                %v538 = vld [vmem:[%s204 + $0xa30] sm:$0xff]
                %539 = vst [vmem:[%s205 + $0x530] sm:$0xff] %v538
                %v540 = vld [vmem:[%s204 + $0xa38] sm:$0xff]
                %541 = vst [vmem:[%s205 + $0x538] sm:$0xff] %v540
                %v542 = vld [vmem:[%s204 + $0xa40] sm:$0xff]
                %543 = vst [vmem:[%s205 + $0x540] sm:$0xff] %v542
                %v544 = vld [vmem:[%s204 + $0xa48] sm:$0xff]
                %545 = vst [vmem:[%s205 + $0x548] sm:$0xff] %v544
                %v546 = vld [vmem:[%s204 + $0xa50] sm:$0xff]
                %547 = vst [vmem:[%s205 + $0x550] sm:$0xff] %v546
                %v548 = vld [vmem:[%s204 + $0xa58] sm:$0xff]
                %549 = vst [vmem:[%s205 + $0x558] sm:$0xff] %v548
                %v550 = vld [vmem:[%s204 + $0xa60] sm:$0xff]
                %551 = vst [vmem:[%s205 + $0x560] sm:$0xff] %v550
                %v552 = vld [vmem:[%s204 + $0xa68] sm:$0xff]
                %553 = vst [vmem:[%s205 + $0x568] sm:$0xff] %v552
                %v554 = vld [vmem:[%s204 + $0xa70] sm:$0xff]
                %555 = vst [vmem:[%s205 + $0x570] sm:$0xff] %v554
                %v556 = vld [vmem:[%s204 + $0xa78] sm:$0xff]
                %557 = vst [vmem:[%s205 + $0x578] sm:$0xff] %v556
                %v558 = vld [vmem:[%s204 + $0xb00] sm:$0xff]
                %559 = vst [vmem:[%s205 + $0x580] sm:$0xff] %v558
                %v560 = vld [vmem:[%s204 + $0xb08] sm:$0xff]
                %561 = vst [vmem:[%s205 + $0x588] sm:$0xff] %v560
                %v562 = vld [vmem:[%s204 + $0xb10] sm:$0xff]
                %563 = vst [vmem:[%s205 + $0x590] sm:$0xff] %v562
                %v564 = vld [vmem:[%s204 + $0xb18] sm:$0xff]
                %565 = vst [vmem:[%s205 + $0x598] sm:$0xff] %v564
                %v566 = vld [vmem:[%s204 + $0xb20] sm:$0xff]
                %567 = vst [vmem:[%s205 + $0x5a0] sm:$0xff] %v566
                %v568 = vld [vmem:[%s204 + $0xb28] sm:$0xff]
                %569 = vst [vmem:[%s205 + $0x5a8] sm:$0xff] %v568
                %v570 = vld [vmem:[%s204 + $0xb30] sm:$0xff]
                %571 = vst [vmem:[%s205 + $0x5b0] sm:$0xff] %v570
                %v572 = vld [vmem:[%s204 + $0xb38] sm:$0xff]
                %573 = vst [vmem:[%s205 + $0x5b8] sm:$0xff] %v572
                %v574 = vld [vmem:[%s204 + $0xb40] sm:$0xff]
                %575 = vst [vmem:[%s205 + $0x5c0] sm:$0xff] %v574
                %v576 = vld [vmem:[%s204 + $0xb48] sm:$0xff]
                %577 = vst [vmem:[%s205 + $0x5c8] sm:$0xff] %v576
                %v578 = vld [vmem:[%s204 + $0xb50] sm:$0xff]
                %579 = vst [vmem:[%s205 + $0x5d0] sm:$0xff] %v578
                %v580 = vld [vmem:[%s204 + $0xb58] sm:$0xff]
                %581 = vst [vmem:[%s205 + $0x5d8] sm:$0xff] %v580
                %v582 = vld [vmem:[%s204 + $0xb60] sm:$0xff]
                %583 = vst [vmem:[%s205 + $0x5e0] sm:$0xff] %v582
                %v584 = vld [vmem:[%s204 + $0xb68] sm:$0xff]
                %585 = vst [vmem:[%s205 + $0x5e8] sm:$0xff] %v584
                %v586 = vld [vmem:[%s204 + $0xb70] sm:$0xff]
                %587 = vst [vmem:[%s205 + $0x5f0] sm:$0xff] %v586
                %v588 = vld [vmem:[%s204 + $0xb78] sm:$0xff]
                %589 = vst [vmem:[%s205 + $0x5f8] sm:$0xff] %v588
                %v590 = vld [vmem:[%s204 + $0xc00] sm:$0xff]
                %591 = vst [vmem:[%s205 + $0x600] sm:$0xff] %v590
                %v592 = vld [vmem:[%s204 + $0xc08] sm:$0xff]
                %593 = vst [vmem:[%s205 + $0x608] sm:$0xff] %v592
                %v594 = vld [vmem:[%s204 + $0xc10] sm:$0xff]
                %595 = vst [vmem:[%s205 + $0x610] sm:$0xff] %v594
                %v596 = vld [vmem:[%s204 + $0xc18] sm:$0xff]
                %597 = vst [vmem:[%s205 + $0x618] sm:$0xff] %v596
                %v598 = vld [vmem:[%s204 + $0xc20] sm:$0xff]
                %599 = vst [vmem:[%s205 + $0x620] sm:$0xff] %v598
                %v600 = vld [vmem:[%s204 + $0xc28] sm:$0xff]
                %601 = vst [vmem:[%s205 + $0x628] sm:$0xff] %v600
                %v602 = vld [vmem:[%s204 + $0xc30] sm:$0xff]
                %603 = vst [vmem:[%s205 + $0x630] sm:$0xff] %v602
                %v604 = vld [vmem:[%s204 + $0xc38] sm:$0xff]
                %605 = vst [vmem:[%s205 + $0x638] sm:$0xff] %v604
                %v606 = vld [vmem:[%s204 + $0xc40] sm:$0xff]
                %607 = vst [vmem:[%s205 + $0x640] sm:$0xff] %v606
                %v608 = vld [vmem:[%s204 + $0xc48] sm:$0xff]
                %609 = vst [vmem:[%s205 + $0x648] sm:$0xff] %v608
                %v610 = vld [vmem:[%s204 + $0xc50] sm:$0xff]
                %611 = vst [vmem:[%s205 + $0x650] sm:$0xff] %v610
                %v612 = vld [vmem:[%s204 + $0xc58] sm:$0xff]
                %613 = vst [vmem:[%s205 + $0x658] sm:$0xff] %v612
                %v614 = vld [vmem:[%s204 + $0xc60] sm:$0xff]
                %615 = vst [vmem:[%s205 + $0x660] sm:$0xff] %v614
                %v616 = vld [vmem:[%s204 + $0xc68] sm:$0xff]
                %617 = vst [vmem:[%s205 + $0x668] sm:$0xff] %v616
                %v618 = vld [vmem:[%s204 + $0xc70] sm:$0xff]
                %619 = vst [vmem:[%s205 + $0x670] sm:$0xff] %v618
                %v620 = vld [vmem:[%s204 + $0xc78] sm:$0xff]
                %621 = vst [vmem:[%s205 + $0x678] sm:$0xff] %v620
                %v622 = vld [vmem:[%s204 + $0xd00] sm:$0xff]
                %623 = vst [vmem:[%s205 + $0x680] sm:$0xff] %v622
                %v624 = vld [vmem:[%s204 + $0xd08] sm:$0xff]
                %625 = vst [vmem:[%s205 + $0x688] sm:$0xff] %v624
                %v626 = vld [vmem:[%s204 + $0xd10] sm:$0xff]
                %627 = vst [vmem:[%s205 + $0x690] sm:$0xff] %v626
                %v628 = vld [vmem:[%s204 + $0xd18] sm:$0xff]
                %629 = vst [vmem:[%s205 + $0x698] sm:$0xff] %v628
                %v630 = vld [vmem:[%s204 + $0xd20] sm:$0xff]
                %631 = vst [vmem:[%s205 + $0x6a0] sm:$0xff] %v630
                %v632 = vld [vmem:[%s204 + $0xd28] sm:$0xff]
                %633 = vst [vmem:[%s205 + $0x6a8] sm:$0xff] %v632
                %v634 = vld [vmem:[%s204 + $0xd30] sm:$0xff]
                %635 = vst [vmem:[%s205 + $0x6b0] sm:$0xff] %v634
                %v636 = vld [vmem:[%s204 + $0xd38] sm:$0xff]
                %637 = vst [vmem:[%s205 + $0x6b8] sm:$0xff] %v636
                %v638 = vld [vmem:[%s204 + $0xd40] sm:$0xff]
                %639 = vst [vmem:[%s205 + $0x6c0] sm:$0xff] %v638
                %v640 = vld [vmem:[%s204 + $0xd48] sm:$0xff]
                %641 = vst [vmem:[%s205 + $0x6c8] sm:$0xff] %v640
                %v642 = vld [vmem:[%s204 + $0xd50] sm:$0xff]
                %643 = vst [vmem:[%s205 + $0x6d0] sm:$0xff] %v642
                %v644 = vld [vmem:[%s204 + $0xd58] sm:$0xff]
                %645 = vst [vmem:[%s205 + $0x6d8] sm:$0xff] %v644
                %v646 = vld [vmem:[%s204 + $0xd60] sm:$0xff]
                %647 = vst [vmem:[%s205 + $0x6e0] sm:$0xff] %v646
                %v648 = vld [vmem:[%s204 + $0xd68] sm:$0xff]
                %649 = vst [vmem:[%s205 + $0x6e8] sm:$0xff] %v648
                %v650 = vld [vmem:[%s204 + $0xd70] sm:$0xff]
                %651 = vst [vmem:[%s205 + $0x6f0] sm:$0xff] %v650
                %v652 = vld [vmem:[%s204 + $0xd78] sm:$0xff]
                %653 = vst [vmem:[%s205 + $0x6f8] sm:$0xff] %v652
                %v654 = vld [vmem:[%s204 + $0xe00] sm:$0xff]
                %655 = vst [vmem:[%s205 + $0x700] sm:$0xff] %v654
                %v656 = vld [vmem:[%s204 + $0xe08] sm:$0xff]
                %657 = vst [vmem:[%s205 + $0x708] sm:$0xff] %v656
                %v658 = vld [vmem:[%s204 + $0xe10] sm:$0xff]
                %659 = vst [vmem:[%s205 + $0x710] sm:$0xff] %v658
                %v660 = vld [vmem:[%s204 + $0xe18] sm:$0xff]
                %661 = vst [vmem:[%s205 + $0x718] sm:$0xff] %v660
                %v662 = vld [vmem:[%s204 + $0xe20] sm:$0xff]
                %663 = vst [vmem:[%s205 + $0x720] sm:$0xff] %v662
                %v664 = vld [vmem:[%s204 + $0xe28] sm:$0xff]
                %665 = vst [vmem:[%s205 + $0x728] sm:$0xff] %v664
                %v666 = vld [vmem:[%s204 + $0xe30] sm:$0xff]
                %667 = vst [vmem:[%s205 + $0x730] sm:$0xff] %v666
                %v668 = vld [vmem:[%s204 + $0xe38] sm:$0xff]
                %669 = vst [vmem:[%s205 + $0x738] sm:$0xff] %v668
                %v670 = vld [vmem:[%s204 + $0xe40] sm:$0xff]
                %671 = vst [vmem:[%s205 + $0x740] sm:$0xff] %v670
                %v672 = vld [vmem:[%s204 + $0xe48] sm:$0xff]
                %673 = vst [vmem:[%s205 + $0x748] sm:$0xff] %v672
                %v674 = vld [vmem:[%s204 + $0xe50] sm:$0xff]
                %675 = vst [vmem:[%s205 + $0x750] sm:$0xff] %v674
                %v676 = vld [vmem:[%s204 + $0xe58] sm:$0xff]
                %677 = vst [vmem:[%s205 + $0x758] sm:$0xff] %v676
                %v678 = vld [vmem:[%s204 + $0xe60] sm:$0xff]
                %679 = vst [vmem:[%s205 + $0x760] sm:$0xff] %v678
                %v680 = vld [vmem:[%s204 + $0xe68] sm:$0xff]
                %681 = vst [vmem:[%s205 + $0x768] sm:$0xff] %v680
                %v682 = vld [vmem:[%s204 + $0xe70] sm:$0xff]
                %683 = vst [vmem:[%s205 + $0x770] sm:$0xff] %v682
                %v684 = vld [vmem:[%s204 + $0xe78] sm:$0xff]
                %685 = vst [vmem:[%s205 + $0x778] sm:$0xff] %v684
                %v686 = vld [vmem:[%s204 + $0xf00] sm:$0xff]
                %687 = vst [vmem:[%s205 + $0x780] sm:$0xff] %v686
                %v688 = vld [vmem:[%s204 + $0xf08] sm:$0xff]
                %689 = vst [vmem:[%s205 + $0x788] sm:$0xff] %v688
                %v690 = vld [vmem:[%s204 + $0xf10] sm:$0xff]
                %691 = vst [vmem:[%s205 + $0x790] sm:$0xff] %v690
                %v692 = vld [vmem:[%s204 + $0xf18] sm:$0xff]
                %693 = vst [vmem:[%s205 + $0x798] sm:$0xff] %v692
                %v694 = vld [vmem:[%s204 + $0xf20] sm:$0xff]
                %695 = vst [vmem:[%s205 + $0x7a0] sm:$0xff] %v694
                %v696 = vld [vmem:[%s204 + $0xf28] sm:$0xff]
                %697 = vst [vmem:[%s205 + $0x7a8] sm:$0xff] %v696
                %v698 = vld [vmem:[%s204 + $0xf30] sm:$0xff]
                %699 = vst [vmem:[%s205 + $0x7b0] sm:$0xff] %v698
                %v700 = vld [vmem:[%s204 + $0xf38] sm:$0xff]
                %701 = vst [vmem:[%s205 + $0x7b8] sm:$0xff] %v700
                %v702 = vld [vmem:[%s204 + $0xf40] sm:$0xff]
                %703 = vst [vmem:[%s205 + $0x7c0] sm:$0xff] %v702
                %v704 = vld [vmem:[%s204 + $0xf48] sm:$0xff]
                %705 = vst [vmem:[%s205 + $0x7c8] sm:$0xff] %v704
                %v706 = vld [vmem:[%s204 + $0xf50] sm:$0xff]
                %707 = vst [vmem:[%s205 + $0x7d0] sm:$0xff] %v706
                %v708 = vld [vmem:[%s204 + $0xf58] sm:$0xff]
                %709 = vst [vmem:[%s205 + $0x7d8] sm:$0xff] %v708
                %v710 = vld [vmem:[%s204 + $0xf60] sm:$0xff]
                %711 = vst [vmem:[%s205 + $0x7e0] sm:$0xff] %v710
                %v712 = vld [vmem:[%s204 + $0xf68] sm:$0xff]
                %713 = vst [vmem:[%s205 + $0x7e8] sm:$0xff] %v712
                %v714 = vld [vmem:[%s204 + $0xf70] sm:$0xff]
                %715 = vst [vmem:[%s205 + $0x7f0] sm:$0xff] %v714
                %v716 = vld [vmem:[%s204 + $0xf78] sm:$0xff]
                %717 = vst [vmem:[%s205 + $0x7f8] sm:$0xff] %v716
                %v718 = vld [vmem:[%s204 + $0x1000] sm:$0xff]
                %719 = vst [vmem:[%s205 + $0x800] sm:$0xff] %v718
                %v720 = vld [vmem:[%s204 + $0x1008] sm:$0xff]
                %721 = vst [vmem:[%s205 + $0x808] sm:$0xff] %v720
                %v722 = vld [vmem:[%s204 + $0x1010] sm:$0xff]
                %723 = vst [vmem:[%s205 + $0x810] sm:$0xff] %v722
                %v724 = vld [vmem:[%s204 + $0x1018] sm:$0xff]
                %725 = vst [vmem:[%s205 + $0x818] sm:$0xff] %v724
                %v726 = vld [vmem:[%s204 + $0x1020] sm:$0xff]
                %727 = vst [vmem:[%s205 + $0x820] sm:$0xff] %v726
                %v728 = vld [vmem:[%s204 + $0x1028] sm:$0xff]
                %729 = vst [vmem:[%s205 + $0x828] sm:$0xff] %v728
                %v730 = vld [vmem:[%s204 + $0x1030] sm:$0xff]
                %731 = vst [vmem:[%s205 + $0x830] sm:$0xff] %v730
                %v732 = vld [vmem:[%s204 + $0x1038] sm:$0xff]
                %733 = vst [vmem:[%s205 + $0x838] sm:$0xff] %v732
                %v734 = vld [vmem:[%s204 + $0x1040] sm:$0xff]
                %735 = vst [vmem:[%s205 + $0x840] sm:$0xff] %v734
                %v736 = vld [vmem:[%s204 + $0x1048] sm:$0xff]
                %737 = vst [vmem:[%s205 + $0x848] sm:$0xff] %v736
                %v738 = vld [vmem:[%s204 + $0x1050] sm:$0xff]
                %739 = vst [vmem:[%s205 + $0x850] sm:$0xff] %v738
                %v740 = vld [vmem:[%s204 + $0x1058] sm:$0xff]
                %741 = vst [vmem:[%s205 + $0x858] sm:$0xff] %v740
                %v742 = vld [vmem:[%s204 + $0x1060] sm:$0xff]
                %743 = vst [vmem:[%s205 + $0x860] sm:$0xff] %v742
                %v744 = vld [vmem:[%s204 + $0x1068] sm:$0xff]
                %745 = vst [vmem:[%s205 + $0x868] sm:$0xff] %v744
                %v746 = vld [vmem:[%s204 + $0x1070] sm:$0xff]
                %747 = vst [vmem:[%s205 + $0x870] sm:$0xff] %v746
                %v748 = vld [vmem:[%s204 + $0x1078] sm:$0xff]
                %749 = vst [vmem:[%s205 + $0x878] sm:$0xff] %v748
                %v750 = vld [vmem:[%s204 + $0x1100] sm:$0xff]
                %751 = vst [vmem:[%s205 + $0x880] sm:$0xff] %v750
                %v752 = vld [vmem:[%s204 + $0x1108] sm:$0xff]
                %753 = vst [vmem:[%s205 + $0x888] sm:$0xff] %v752
                %v754 = vld [vmem:[%s204 + $0x1110] sm:$0xff]
                %755 = vst [vmem:[%s205 + $0x890] sm:$0xff] %v754
                %v756 = vld [vmem:[%s204 + $0x1118] sm:$0xff]
                %757 = vst [vmem:[%s205 + $0x898] sm:$0xff] %v756
                %v758 = vld [vmem:[%s204 + $0x1120] sm:$0xff]
                %759 = vst [vmem:[%s205 + $0x8a0] sm:$0xff] %v758
                %v760 = vld [vmem:[%s204 + $0x1128] sm:$0xff]
                %761 = vst [vmem:[%s205 + $0x8a8] sm:$0xff] %v760
                %v762 = vld [vmem:[%s204 + $0x1130] sm:$0xff]
                %763 = vst [vmem:[%s205 + $0x8b0] sm:$0xff] %v762
                %v764 = vld [vmem:[%s204 + $0x1138] sm:$0xff]
                %765 = vst [vmem:[%s205 + $0x8b8] sm:$0xff] %v764
                %v766 = vld [vmem:[%s204 + $0x1140] sm:$0xff]
                %767 = vst [vmem:[%s205 + $0x8c0] sm:$0xff] %v766
                %v768 = vld [vmem:[%s204 + $0x1148] sm:$0xff]
                %769 = vst [vmem:[%s205 + $0x8c8] sm:$0xff] %v768
                %v770 = vld [vmem:[%s204 + $0x1150] sm:$0xff]
                %771 = vst [vmem:[%s205 + $0x8d0] sm:$0xff] %v770
                %v772 = vld [vmem:[%s204 + $0x1158] sm:$0xff]
                %773 = vst [vmem:[%s205 + $0x8d8] sm:$0xff] %v772
                %v774 = vld [vmem:[%s204 + $0x1160] sm:$0xff]
                %775 = vst [vmem:[%s205 + $0x8e0] sm:$0xff] %v774
                %v776 = vld [vmem:[%s204 + $0x1168] sm:$0xff]
                %777 = vst [vmem:[%s205 + $0x8e8] sm:$0xff] %v776
                %v778 = vld [vmem:[%s204 + $0x1170] sm:$0xff]
                %779 = vst [vmem:[%s205 + $0x8f0] sm:$0xff] %v778
                %v780 = vld [vmem:[%s204 + $0x1178] sm:$0xff]
                %781 = vst [vmem:[%s205 + $0x8f8] sm:$0xff] %v780
              $region41: #{_lambda_.1} parent=35 // loop_footer
                %s203 = sadd.s32 1, %s199
              $region42: #{_lambda_.1} parent=35 // loop_footer_branch
                %198 = sbr.rel target = $region38
              $region43: #{_lambda_.1} parent=35 // loop_exit
                _
            $region36: #{_lambda_.1} parent=31 // pred_fallthru
              _
            // Predicated region
            $region44: #{_lambda_.1} parent=31 // pred_check
              _
            $region45: #{_lambda_.1} parent=31 // pred_check_branch
              %783 = sbr.rel target = $region47
            $region46: #{_lambda_.1} parent=31 // pred_region
              _
            $region47: #{_lambda_.1} parent=31 // pred_fallthru
              _
          $region32: #{_lambda_.1} parent=27 // pred_fallthru
            _
          %784 = vnop
        $region28: #{_lambda_.1} parent=23 // pred_fallthru
          _
      $region24: #{_lambda_.1} parent=5 // pred_fallthru
        _
      %p785 = scmp.le.s32.totalorder 1, %s9
      %p786 = scmp.lt.s32.totalorder %s9, 3
      %p787 = pnand %p785, %p786
      %p788 = pneg %p787
      // Predicated region
      $region48: #{_lambda_.1} parent=5 // pred_check
        _
      $region49: #{_lambda_.1} parent=5 // pred_check_branch
        %790 = sbr.rel (%p787) target = $region51
      $region50: #{_lambda_.1} parent=5 // pred_region
        %s791 = ssub.s32 %s9, 1
        %s792 = sand.u32 %s71, 1
        %s793 = sand.u32 %s71, 1
        %s794 = smul.addr %s793, 2304
        %s795 = scalar_lea.vmem [#allocation3], %s794
        // Predicated region
        $region52: #{_lambda_.1} parent=50 // pred_check
          %p796 = pneg %p84
        $region53: #{_lambda_.1} parent=50 // pred_check_branch
          %798 = sbr.rel (%p796) target = $region55
        $region54: #{_lambda_.1} parent=50 // pred_region
          _
        $region55: #{_lambda_.1} parent=50 // pred_fallthru
          _
        %s799 = smul.u32 8, %s20
        %s800 = smul.u32 2, %s21
        %p801 = scmp.lt.s32.totalorder %s799, 7
        %s802 = scalar_select %p801, %s799, 7
        %p803 = scmp.lt.s32.totalorder %s800, 1
        %s804 = scalar_select %p803, %s800, 1
        %s805 = smul.addr %s802, 2
        %s806 = sadd.s32 %s804, %s805
        %s807 = smul.addr %s806, 4
        %s808 = scalar_lea.vmem %s0, %s807
        %p809 = pneg %p56
        %p810 = pneg %p53
        %s811 = sand.u32 %s71, 1
        %s812 = sand.u32 %s71, 1
        %s813 = smul.addr %s812, 2304
        %s814 = scalar_lea.vmem [#allocation3], %s813
        %p815 = pneg %p84
        %p816 = pneg %p81
        %s817 = smul.u32 8, %s20
        %p818 = scmp.lt.s32.totalorder %s817, 7
        %s819 = scalar_select %p818, %s817, 7
        %s820 = smul.addr %s819, 8
        %s821 = scalar_lea.vmem %s2, %s820
        %p822 = pneg %p110
        %p823 = pneg %p107
        %p824 = pneg %p138
        %p825 = pneg %p135
        %s826 = sand.u32 %s125, 1
        %s827 = sand.u32 %s125, 1
        %s828 = smul.addr %s827, 2048
        %s829 = scalar_lea.vmem [#allocation4], %s828
        %s830 = smul.u32 8, %s20
        %s831 = smul.u32 2, %s21
        %p832 = scmp.lt.s32.totalorder %s830, 7
        %s833 = scalar_select %p832, %s830, 7
        %p834 = scmp.lt.s32.totalorder %s831, 1
        %s835 = scalar_select %p834, %s831, 1
        %s836 = smul.addr %s833, 2
        %s837 = sadd.s32 %s835, %s836
        %s838 = smul.addr %s837, 4
        %s839 = scalar_lea.vmem %s0, %s838
        %s840 = smul.u32 8, %s20
        %s841 = smul.u32 2, %s21
        %s842 = smul.u32 18, %s21
        %s843 = smul.u32 32, %s19
        %s844 = smul.u32 8, %s20
        %p845 = scmp.lt.s32.totalorder %s844, 7
        %s846 = scalar_select %p845, %s844, 7
        %s847 = smul.addr %s846, 8
        %s848 = scalar_lea.vmem %s2, %s847
        %s849 = smul.u32 8, %s20
        %s850 = smul.u32 8, %s20
        %s851 = smul.u32 32, %s19
        %p853 = scmp.eq.s32.totalorder %s21, 0
        // Predicated region
        $region56: #{_lambda_.1} parent=50 // pred_check
          %p854 = pneg %p853
        $region57: #{_lambda_.1} parent=50 // pred_check_branch
          %856 = sbr.rel (%p854) target = $region59
        $region58: #{_lambda_.1} parent=50 // pred_region
          %857 = vst [vmem:[#allocation2] sm:$0xff] 0.0
          %858 = vst [vmem:[#allocation2 + $0x8] sm:$0xff] 0.0
          %859 = vst [vmem:[#allocation2 + $0x10] sm:$0xff] 0.0
          %860 = vst [vmem:[#allocation2 + $0x18] sm:$0xff] 0.0
          %861 = vst [vmem:[#allocation2 + $0x20] sm:$0xff] 0.0
          %862 = vst [vmem:[#allocation2 + $0x28] sm:$0xff] 0.0
          %863 = vst [vmem:[#allocation2 + $0x30] sm:$0xff] 0.0
          %864 = vst [vmem:[#allocation2 + $0x38] sm:$0xff] 0.0
          %865 = vst [vmem:[#allocation2 + $0x40] sm:$0xff] 0.0
          %866 = vst [vmem:[#allocation2 + $0x48] sm:$0xff] 0.0
          %867 = vst [vmem:[#allocation2 + $0x50] sm:$0xff] 0.0
          %868 = vst [vmem:[#allocation2 + $0x58] sm:$0xff] 0.0
          %869 = vst [vmem:[#allocation2 + $0x60] sm:$0xff] 0.0
          %870 = vst [vmem:[#allocation2 + $0x68] sm:$0xff] 0.0
          %871 = vst [vmem:[#allocation2 + $0x70] sm:$0xff] 0.0
          %872 = vst [vmem:[#allocation2 + $0x78] sm:$0xff] 0.0
          %873 = vst [vmem:[#allocation2 + $0x80] sm:$0xff] 0.0
          %874 = vst [vmem:[#allocation2 + $0x88] sm:$0xff] 0.0
          %875 = vst [vmem:[#allocation2 + $0x90] sm:$0xff] 0.0
          %876 = vst [vmem:[#allocation2 + $0x98] sm:$0xff] 0.0
          %877 = vst [vmem:[#allocation2 + $0xa0] sm:$0xff] 0.0
          %878 = vst [vmem:[#allocation2 + $0xa8] sm:$0xff] 0.0
          %879 = vst [vmem:[#allocation2 + $0xb0] sm:$0xff] 0.0
          %880 = vst [vmem:[#allocation2 + $0xb8] sm:$0xff] 0.0
          %881 = vst [vmem:[#allocation2 + $0xc0] sm:$0xff] 0.0
          %882 = vst [vmem:[#allocation2 + $0xc8] sm:$0xff] 0.0
          %883 = vst [vmem:[#allocation2 + $0xd0] sm:$0xff] 0.0
          %884 = vst [vmem:[#allocation2 + $0xd8] sm:$0xff] 0.0
          %885 = vst [vmem:[#allocation2 + $0xe0] sm:$0xff] 0.0
          %886 = vst [vmem:[#allocation2 + $0xe8] sm:$0xff] 0.0
          %887 = vst [vmem:[#allocation2 + $0xf0] sm:$0xff] 0.0
          %888 = vst [vmem:[#allocation2 + $0xf8] sm:$0xff] 0.0
          %889 = vst [vmem:[#allocation2 + $0x100] sm:$0xff] 0.0
          %890 = vst [vmem:[#allocation2 + $0x108] sm:$0xff] 0.0
          %891 = vst [vmem:[#allocation2 + $0x110] sm:$0xff] 0.0
          %892 = vst [vmem:[#allocation2 + $0x118] sm:$0xff] 0.0
          %893 = vst [vmem:[#allocation2 + $0x120] sm:$0xff] 0.0
          %894 = vst [vmem:[#allocation2 + $0x128] sm:$0xff] 0.0
          %895 = vst [vmem:[#allocation2 + $0x130] sm:$0xff] 0.0
          %896 = vst [vmem:[#allocation2 + $0x138] sm:$0xff] 0.0
          %897 = vst [vmem:[#allocation2 + $0x140] sm:$0xff] 0.0
          %898 = vst [vmem:[#allocation2 + $0x148] sm:$0xff] 0.0
          %899 = vst [vmem:[#allocation2 + $0x150] sm:$0xff] 0.0
          %900 = vst [vmem:[#allocation2 + $0x158] sm:$0xff] 0.0
          %901 = vst [vmem:[#allocation2 + $0x160] sm:$0xff] 0.0
          %902 = vst [vmem:[#allocation2 + $0x168] sm:$0xff] 0.0
          %903 = vst [vmem:[#allocation2 + $0x170] sm:$0xff] 0.0
          %904 = vst [vmem:[#allocation2 + $0x178] sm:$0xff] 0.0
          %905 = vst [vmem:[#allocation2 + $0x180] sm:$0xff] 0.0
          %906 = vst [vmem:[#allocation2 + $0x188] sm:$0xff] 0.0
          %907 = vst [vmem:[#allocation2 + $0x190] sm:$0xff] 0.0
          %908 = vst [vmem:[#allocation2 + $0x198] sm:$0xff] 0.0
          %909 = vst [vmem:[#allocation2 + $0x1a0] sm:$0xff] 0.0
          %910 = vst [vmem:[#allocation2 + $0x1a8] sm:$0xff] 0.0
          %911 = vst [vmem:[#allocation2 + $0x1b0] sm:$0xff] 0.0
          %912 = vst [vmem:[#allocation2 + $0x1b8] sm:$0xff] 0.0
          %913 = vst [vmem:[#allocation2 + $0x1c0] sm:$0xff] 0.0
          %914 = vst [vmem:[#allocation2 + $0x1c8] sm:$0xff] 0.0
          %915 = vst [vmem:[#allocation2 + $0x1d0] sm:$0xff] 0.0
          %916 = vst [vmem:[#allocation2 + $0x1d8] sm:$0xff] 0.0
          %917 = vst [vmem:[#allocation2 + $0x1e0] sm:$0xff] 0.0
          %918 = vst [vmem:[#allocation2 + $0x1e8] sm:$0xff] 0.0
          %919 = vst [vmem:[#allocation2 + $0x1f0] sm:$0xff] 0.0
          %920 = vst [vmem:[#allocation2 + $0x1f8] sm:$0xff] 0.0
          %921 = vst [vmem:[#allocation2 + $0x200] sm:$0xff] 0.0
          %922 = vst [vmem:[#allocation2 + $0x208] sm:$0xff] 0.0
          %923 = vst [vmem:[#allocation2 + $0x210] sm:$0xff] 0.0
          %924 = vst [vmem:[#allocation2 + $0x218] sm:$0xff] 0.0
          %925 = vst [vmem:[#allocation2 + $0x220] sm:$0xff] 0.0
          %926 = vst [vmem:[#allocation2 + $0x228] sm:$0xff] 0.0
          %927 = vst [vmem:[#allocation2 + $0x230] sm:$0xff] 0.0
          %928 = vst [vmem:[#allocation2 + $0x238] sm:$0xff] 0.0
          %929 = vst [vmem:[#allocation2 + $0x240] sm:$0xff] 0.0
          %930 = vst [vmem:[#allocation2 + $0x248] sm:$0xff] 0.0
          %931 = vst [vmem:[#allocation2 + $0x250] sm:$0xff] 0.0
          %932 = vst [vmem:[#allocation2 + $0x258] sm:$0xff] 0.0
          %933 = vst [vmem:[#allocation2 + $0x260] sm:$0xff] 0.0
          %934 = vst [vmem:[#allocation2 + $0x268] sm:$0xff] 0.0
          %935 = vst [vmem:[#allocation2 + $0x270] sm:$0xff] 0.0
          %936 = vst [vmem:[#allocation2 + $0x278] sm:$0xff] 0.0
          %937 = vst [vmem:[#allocation2 + $0x280] sm:$0xff] 0.0
          %938 = vst [vmem:[#allocation2 + $0x288] sm:$0xff] 0.0
          %939 = vst [vmem:[#allocation2 + $0x290] sm:$0xff] 0.0
          %940 = vst [vmem:[#allocation2 + $0x298] sm:$0xff] 0.0
          %941 = vst [vmem:[#allocation2 + $0x2a0] sm:$0xff] 0.0
          %942 = vst [vmem:[#allocation2 + $0x2a8] sm:$0xff] 0.0
          %943 = vst [vmem:[#allocation2 + $0x2b0] sm:$0xff] 0.0
          %944 = vst [vmem:[#allocation2 + $0x2b8] sm:$0xff] 0.0
          %945 = vst [vmem:[#allocation2 + $0x2c0] sm:$0xff] 0.0
          %946 = vst [vmem:[#allocation2 + $0x2c8] sm:$0xff] 0.0
          %947 = vst [vmem:[#allocation2 + $0x2d0] sm:$0xff] 0.0
          %948 = vst [vmem:[#allocation2 + $0x2d8] sm:$0xff] 0.0
          %949 = vst [vmem:[#allocation2 + $0x2e0] sm:$0xff] 0.0
          %950 = vst [vmem:[#allocation2 + $0x2e8] sm:$0xff] 0.0
          %951 = vst [vmem:[#allocation2 + $0x2f0] sm:$0xff] 0.0
          %952 = vst [vmem:[#allocation2 + $0x2f8] sm:$0xff] 0.0
          %953 = vst [vmem:[#allocation2 + $0x300] sm:$0xff] 0.0
          %954 = vst [vmem:[#allocation2 + $0x308] sm:$0xff] 0.0
          %955 = vst [vmem:[#allocation2 + $0x310] sm:$0xff] 0.0
          %956 = vst [vmem:[#allocation2 + $0x318] sm:$0xff] 0.0
          %957 = vst [vmem:[#allocation2 + $0x320] sm:$0xff] 0.0
          %958 = vst [vmem:[#allocation2 + $0x328] sm:$0xff] 0.0
          %959 = vst [vmem:[#allocation2 + $0x330] sm:$0xff] 0.0
          %960 = vst [vmem:[#allocation2 + $0x338] sm:$0xff] 0.0
          %961 = vst [vmem:[#allocation2 + $0x340] sm:$0xff] 0.0
          %962 = vst [vmem:[#allocation2 + $0x348] sm:$0xff] 0.0
          %963 = vst [vmem:[#allocation2 + $0x350] sm:$0xff] 0.0
          %964 = vst [vmem:[#allocation2 + $0x358] sm:$0xff] 0.0
          %965 = vst [vmem:[#allocation2 + $0x360] sm:$0xff] 0.0
          %966 = vst [vmem:[#allocation2 + $0x368] sm:$0xff] 0.0
          %967 = vst [vmem:[#allocation2 + $0x370] sm:$0xff] 0.0
          %968 = vst [vmem:[#allocation2 + $0x378] sm:$0xff] 0.0
          %969 = vst [vmem:[#allocation2 + $0x380] sm:$0xff] 0.0
          %970 = vst [vmem:[#allocation2 + $0x388] sm:$0xff] 0.0
          %971 = vst [vmem:[#allocation2 + $0x390] sm:$0xff] 0.0
          %972 = vst [vmem:[#allocation2 + $0x398] sm:$0xff] 0.0
          %973 = vst [vmem:[#allocation2 + $0x3a0] sm:$0xff] 0.0
          %974 = vst [vmem:[#allocation2 + $0x3a8] sm:$0xff] 0.0
          %975 = vst [vmem:[#allocation2 + $0x3b0] sm:$0xff] 0.0
          %976 = vst [vmem:[#allocation2 + $0x3b8] sm:$0xff] 0.0
          %977 = vst [vmem:[#allocation2 + $0x3c0] sm:$0xff] 0.0
          %978 = vst [vmem:[#allocation2 + $0x3c8] sm:$0xff] 0.0
          %979 = vst [vmem:[#allocation2 + $0x3d0] sm:$0xff] 0.0
          %980 = vst [vmem:[#allocation2 + $0x3d8] sm:$0xff] 0.0
          %981 = vst [vmem:[#allocation2 + $0x3e0] sm:$0xff] 0.0
          %982 = vst [vmem:[#allocation2 + $0x3e8] sm:$0xff] 0.0
          %983 = vst [vmem:[#allocation2 + $0x3f0] sm:$0xff] 0.0
          %984 = vst [vmem:[#allocation2 + $0x3f8] sm:$0xff] 0.0
          %985 = vst [vmem:[#allocation2 + $0x400] sm:$0xff] 0.0
          %986 = vst [vmem:[#allocation2 + $0x408] sm:$0xff] 0.0
          %987 = vst [vmem:[#allocation2 + $0x410] sm:$0xff] 0.0
          %988 = vst [vmem:[#allocation2 + $0x418] sm:$0xff] 0.0
          %989 = vst [vmem:[#allocation2 + $0x420] sm:$0xff] 0.0
          %990 = vst [vmem:[#allocation2 + $0x428] sm:$0xff] 0.0
          %991 = vst [vmem:[#allocation2 + $0x430] sm:$0xff] 0.0
          %992 = vst [vmem:[#allocation2 + $0x438] sm:$0xff] 0.0
          %993 = vst [vmem:[#allocation2 + $0x440] sm:$0xff] 0.0
          %994 = vst [vmem:[#allocation2 + $0x448] sm:$0xff] 0.0
          %995 = vst [vmem:[#allocation2 + $0x450] sm:$0xff] 0.0
          %996 = vst [vmem:[#allocation2 + $0x458] sm:$0xff] 0.0
          %997 = vst [vmem:[#allocation2 + $0x460] sm:$0xff] 0.0
          %998 = vst [vmem:[#allocation2 + $0x468] sm:$0xff] 0.0
          %999 = vst [vmem:[#allocation2 + $0x470] sm:$0xff] 0.0
          %1000 = vst [vmem:[#allocation2 + $0x478] sm:$0xff] 0.0
          %1001 = vst [vmem:[#allocation2 + $0x480] sm:$0xff] 0.0
          %1002 = vst [vmem:[#allocation2 + $0x488] sm:$0xff] 0.0
          %1003 = vst [vmem:[#allocation2 + $0x490] sm:$0xff] 0.0
          %1004 = vst [vmem:[#allocation2 + $0x498] sm:$0xff] 0.0
          %1005 = vst [vmem:[#allocation2 + $0x4a0] sm:$0xff] 0.0
          %1006 = vst [vmem:[#allocation2 + $0x4a8] sm:$0xff] 0.0
          %1007 = vst [vmem:[#allocation2 + $0x4b0] sm:$0xff] 0.0
          %1008 = vst [vmem:[#allocation2 + $0x4b8] sm:$0xff] 0.0
          %1009 = vst [vmem:[#allocation2 + $0x4c0] sm:$0xff] 0.0
          %1010 = vst [vmem:[#allocation2 + $0x4c8] sm:$0xff] 0.0
          %1011 = vst [vmem:[#allocation2 + $0x4d0] sm:$0xff] 0.0
          %1012 = vst [vmem:[#allocation2 + $0x4d8] sm:$0xff] 0.0
          %1013 = vst [vmem:[#allocation2 + $0x4e0] sm:$0xff] 0.0
          %1014 = vst [vmem:[#allocation2 + $0x4e8] sm:$0xff] 0.0
          %1015 = vst [vmem:[#allocation2 + $0x4f0] sm:$0xff] 0.0
          %1016 = vst [vmem:[#allocation2 + $0x4f8] sm:$0xff] 0.0
          %1017 = vst [vmem:[#allocation2 + $0x500] sm:$0xff] 0.0
          %1018 = vst [vmem:[#allocation2 + $0x508] sm:$0xff] 0.0
          %1019 = vst [vmem:[#allocation2 + $0x510] sm:$0xff] 0.0
          %1020 = vst [vmem:[#allocation2 + $0x518] sm:$0xff] 0.0
          %1021 = vst [vmem:[#allocation2 + $0x520] sm:$0xff] 0.0
          %1022 = vst [vmem:[#allocation2 + $0x528] sm:$0xff] 0.0
          %1023 = vst [vmem:[#allocation2 + $0x530] sm:$0xff] 0.0
          %1024 = vst [vmem:[#allocation2 + $0x538] sm:$0xff] 0.0
          %1025 = vst [vmem:[#allocation2 + $0x540] sm:$0xff] 0.0
          %1026 = vst [vmem:[#allocation2 + $0x548] sm:$0xff] 0.0
          %1027 = vst [vmem:[#allocation2 + $0x550] sm:$0xff] 0.0
          %1028 = vst [vmem:[#allocation2 + $0x558] sm:$0xff] 0.0
          %1029 = vst [vmem:[#allocation2 + $0x560] sm:$0xff] 0.0
          %1030 = vst [vmem:[#allocation2 + $0x568] sm:$0xff] 0.0
          %1031 = vst [vmem:[#allocation2 + $0x570] sm:$0xff] 0.0
          %1032 = vst [vmem:[#allocation2 + $0x578] sm:$0xff] 0.0
          %1033 = vst [vmem:[#allocation2 + $0x580] sm:$0xff] 0.0
          %1034 = vst [vmem:[#allocation2 + $0x588] sm:$0xff] 0.0
          %1035 = vst [vmem:[#allocation2 + $0x590] sm:$0xff] 0.0
          %1036 = vst [vmem:[#allocation2 + $0x598] sm:$0xff] 0.0
          %1037 = vst [vmem:[#allocation2 + $0x5a0] sm:$0xff] 0.0
          %1038 = vst [vmem:[#allocation2 + $0x5a8] sm:$0xff] 0.0
          %1039 = vst [vmem:[#allocation2 + $0x5b0] sm:$0xff] 0.0
          %1040 = vst [vmem:[#allocation2 + $0x5b8] sm:$0xff] 0.0
          %1041 = vst [vmem:[#allocation2 + $0x5c0] sm:$0xff] 0.0
          %1042 = vst [vmem:[#allocation2 + $0x5c8] sm:$0xff] 0.0
          %1043 = vst [vmem:[#allocation2 + $0x5d0] sm:$0xff] 0.0
          %1044 = vst [vmem:[#allocation2 + $0x5d8] sm:$0xff] 0.0
          %1045 = vst [vmem:[#allocation2 + $0x5e0] sm:$0xff] 0.0
          %1046 = vst [vmem:[#allocation2 + $0x5e8] sm:$0xff] 0.0
          %1047 = vst [vmem:[#allocation2 + $0x5f0] sm:$0xff] 0.0
          %1048 = vst [vmem:[#allocation2 + $0x5f8] sm:$0xff] 0.0
          %1049 = vst [vmem:[#allocation2 + $0x600] sm:$0xff] 0.0
          %1050 = vst [vmem:[#allocation2 + $0x608] sm:$0xff] 0.0
          %1051 = vst [vmem:[#allocation2 + $0x610] sm:$0xff] 0.0
          %1052 = vst [vmem:[#allocation2 + $0x618] sm:$0xff] 0.0
          %1053 = vst [vmem:[#allocation2 + $0x620] sm:$0xff] 0.0
          %1054 = vst [vmem:[#allocation2 + $0x628] sm:$0xff] 0.0
          %1055 = vst [vmem:[#allocation2 + $0x630] sm:$0xff] 0.0
          %1056 = vst [vmem:[#allocation2 + $0x638] sm:$0xff] 0.0
          %1057 = vst [vmem:[#allocation2 + $0x640] sm:$0xff] 0.0
          %1058 = vst [vmem:[#allocation2 + $0x648] sm:$0xff] 0.0
          %1059 = vst [vmem:[#allocation2 + $0x650] sm:$0xff] 0.0
          %1060 = vst [vmem:[#allocation2 + $0x658] sm:$0xff] 0.0
          %1061 = vst [vmem:[#allocation2 + $0x660] sm:$0xff] 0.0
          %1062 = vst [vmem:[#allocation2 + $0x668] sm:$0xff] 0.0
          %1063 = vst [vmem:[#allocation2 + $0x670] sm:$0xff] 0.0
          %1064 = vst [vmem:[#allocation2 + $0x678] sm:$0xff] 0.0
          %1065 = vst [vmem:[#allocation2 + $0x680] sm:$0xff] 0.0
          %1066 = vst [vmem:[#allocation2 + $0x688] sm:$0xff] 0.0
          %1067 = vst [vmem:[#allocation2 + $0x690] sm:$0xff] 0.0
          %1068 = vst [vmem:[#allocation2 + $0x698] sm:$0xff] 0.0
          %1069 = vst [vmem:[#allocation2 + $0x6a0] sm:$0xff] 0.0
          %1070 = vst [vmem:[#allocation2 + $0x6a8] sm:$0xff] 0.0
          %1071 = vst [vmem:[#allocation2 + $0x6b0] sm:$0xff] 0.0
          %1072 = vst [vmem:[#allocation2 + $0x6b8] sm:$0xff] 0.0
          %1073 = vst [vmem:[#allocation2 + $0x6c0] sm:$0xff] 0.0
          %1074 = vst [vmem:[#allocation2 + $0x6c8] sm:$0xff] 0.0
          %1075 = vst [vmem:[#allocation2 + $0x6d0] sm:$0xff] 0.0
          %1076 = vst [vmem:[#allocation2 + $0x6d8] sm:$0xff] 0.0
          %1077 = vst [vmem:[#allocation2 + $0x6e0] sm:$0xff] 0.0
          %1078 = vst [vmem:[#allocation2 + $0x6e8] sm:$0xff] 0.0
          %1079 = vst [vmem:[#allocation2 + $0x6f0] sm:$0xff] 0.0
          %1080 = vst [vmem:[#allocation2 + $0x6f8] sm:$0xff] 0.0
          %1081 = vst [vmem:[#allocation2 + $0x700] sm:$0xff] 0.0
          %1082 = vst [vmem:[#allocation2 + $0x708] sm:$0xff] 0.0
          %1083 = vst [vmem:[#allocation2 + $0x710] sm:$0xff] 0.0
          %1084 = vst [vmem:[#allocation2 + $0x718] sm:$0xff] 0.0
          %1085 = vst [vmem:[#allocation2 + $0x720] sm:$0xff] 0.0
          %1086 = vst [vmem:[#allocation2 + $0x728] sm:$0xff] 0.0
          %1087 = vst [vmem:[#allocation2 + $0x730] sm:$0xff] 0.0
          %1088 = vst [vmem:[#allocation2 + $0x738] sm:$0xff] 0.0
          %1089 = vst [vmem:[#allocation2 + $0x740] sm:$0xff] 0.0
          %1090 = vst [vmem:[#allocation2 + $0x748] sm:$0xff] 0.0
          %1091 = vst [vmem:[#allocation2 + $0x750] sm:$0xff] 0.0
          %1092 = vst [vmem:[#allocation2 + $0x758] sm:$0xff] 0.0
          %1093 = vst [vmem:[#allocation2 + $0x760] sm:$0xff] 0.0
          %1094 = vst [vmem:[#allocation2 + $0x768] sm:$0xff] 0.0
          %1095 = vst [vmem:[#allocation2 + $0x770] sm:$0xff] 0.0
          %1096 = vst [vmem:[#allocation2 + $0x778] sm:$0xff] 0.0
          %1097 = vst [vmem:[#allocation2 + $0x780] sm:$0xff] 0.0
          %1098 = vst [vmem:[#allocation2 + $0x788] sm:$0xff] 0.0
          %1099 = vst [vmem:[#allocation2 + $0x790] sm:$0xff] 0.0
          %1100 = vst [vmem:[#allocation2 + $0x798] sm:$0xff] 0.0
          %1101 = vst [vmem:[#allocation2 + $0x7a0] sm:$0xff] 0.0
          %1102 = vst [vmem:[#allocation2 + $0x7a8] sm:$0xff] 0.0
          %1103 = vst [vmem:[#allocation2 + $0x7b0] sm:$0xff] 0.0
          %1104 = vst [vmem:[#allocation2 + $0x7b8] sm:$0xff] 0.0
          %1105 = vst [vmem:[#allocation2 + $0x7c0] sm:$0xff] 0.0
          %1106 = vst [vmem:[#allocation2 + $0x7c8] sm:$0xff] 0.0
          %1107 = vst [vmem:[#allocation2 + $0x7d0] sm:$0xff] 0.0
          %1108 = vst [vmem:[#allocation2 + $0x7d8] sm:$0xff] 0.0
          %1109 = vst [vmem:[#allocation2 + $0x7e0] sm:$0xff] 0.0
          %1110 = vst [vmem:[#allocation2 + $0x7e8] sm:$0xff] 0.0
          %1111 = vst [vmem:[#allocation2 + $0x7f0] sm:$0xff] 0.0
          %1112 = vst [vmem:[#allocation2 + $0x7f8] sm:$0xff] 0.0
        $region59: #{_lambda_.1} parent=50 // pred_fallthru
          _
        %v1113 = vld [vmem:[#allocation2] sm:$0xff]
        %v1114 = vld [vmem:[#allocation2 + $0x8] sm:$0xff]
        %v1115 = vld [vmem:[#allocation2 + $0x10] sm:$0xff]
        %v1116 = vld [vmem:[#allocation2 + $0x18] sm:$0xff]
        %v1117 = vld [vmem:[#allocation2 + $0x20] sm:$0xff]
        %v1118 = vld [vmem:[#allocation2 + $0x28] sm:$0xff]
        %v1119 = vld [vmem:[#allocation2 + $0x30] sm:$0xff]
        %v1120 = vld [vmem:[#allocation2 + $0x38] sm:$0xff]
        %v1121 = vld [vmem:[#allocation2 + $0x40] sm:$0xff]
        %v1122 = vld [vmem:[#allocation2 + $0x48] sm:$0xff]
        %v1123 = vld [vmem:[#allocation2 + $0x50] sm:$0xff]
        %v1124 = vld [vmem:[#allocation2 + $0x58] sm:$0xff]
        %v1125 = vld [vmem:[#allocation2 + $0x60] sm:$0xff]
        %v1126 = vld [vmem:[#allocation2 + $0x68] sm:$0xff]
        %v1127 = vld [vmem:[#allocation2 + $0x70] sm:$0xff]
        %v1128 = vld [vmem:[#allocation2 + $0x78] sm:$0xff]
        %v1129 = vld [vmem:[#allocation2 + $0x80] sm:$0xff]
        %v1130 = vld [vmem:[#allocation2 + $0x88] sm:$0xff]
        %v1131 = vld [vmem:[#allocation2 + $0x90] sm:$0xff]
        %v1132 = vld [vmem:[#allocation2 + $0x98] sm:$0xff]
        %v1133 = vld [vmem:[#allocation2 + $0xa0] sm:$0xff]
        %v1134 = vld [vmem:[#allocation2 + $0xa8] sm:$0xff]
        %v1135 = vld [vmem:[#allocation2 + $0xb0] sm:$0xff]
        %v1136 = vld [vmem:[#allocation2 + $0xb8] sm:$0xff]
        %v1137 = vld [vmem:[#allocation2 + $0xc0] sm:$0xff]
        %v1138 = vld [vmem:[#allocation2 + $0xc8] sm:$0xff]
        %v1139 = vld [vmem:[#allocation2 + $0xd0] sm:$0xff]
        %v1140 = vld [vmem:[#allocation2 + $0xd8] sm:$0xff]
        %v1141 = vld [vmem:[#allocation2 + $0xe0] sm:$0xff]
        %v1142 = vld [vmem:[#allocation2 + $0xe8] sm:$0xff]
        %v1143 = vld [vmem:[#allocation2 + $0xf0] sm:$0xff]
        %v1144 = vld [vmem:[#allocation2 + $0xf8] sm:$0xff]
        %v1145 = vld [vmem:[#allocation2 + $0x100] sm:$0xff]
        %v1146 = vld [vmem:[#allocation2 + $0x108] sm:$0xff]
        %v1147 = vld [vmem:[#allocation2 + $0x110] sm:$0xff]
        %v1148 = vld [vmem:[#allocation2 + $0x118] sm:$0xff]
        %v1149 = vld [vmem:[#allocation2 + $0x120] sm:$0xff]
        %v1150 = vld [vmem:[#allocation2 + $0x128] sm:$0xff]
        %v1151 = vld [vmem:[#allocation2 + $0x130] sm:$0xff]
        %v1152 = vld [vmem:[#allocation2 + $0x138] sm:$0xff]
        %v1153 = vld [vmem:[#allocation2 + $0x140] sm:$0xff]
        %v1154 = vld [vmem:[#allocation2 + $0x148] sm:$0xff]
        %v1155 = vld [vmem:[#allocation2 + $0x150] sm:$0xff]
        %v1156 = vld [vmem:[#allocation2 + $0x158] sm:$0xff]
        %v1157 = vld [vmem:[#allocation2 + $0x160] sm:$0xff]
        %v1158 = vld [vmem:[#allocation2 + $0x168] sm:$0xff]
        %v1159 = vld [vmem:[#allocation2 + $0x170] sm:$0xff]
        %v1160 = vld [vmem:[#allocation2 + $0x178] sm:$0xff]
        %v1161 = vld [vmem:[#allocation2 + $0x180] sm:$0xff]
        %v1162 = vld [vmem:[#allocation2 + $0x188] sm:$0xff]
        %v1163 = vld [vmem:[#allocation2 + $0x190] sm:$0xff]
        %v1164 = vld [vmem:[#allocation2 + $0x198] sm:$0xff]
        %v1165 = vld [vmem:[#allocation2 + $0x1a0] sm:$0xff]
        %v1166 = vld [vmem:[#allocation2 + $0x1a8] sm:$0xff]
        %v1167 = vld [vmem:[#allocation2 + $0x1b0] sm:$0xff]
        %v1168 = vld [vmem:[#allocation2 + $0x1b8] sm:$0xff]
        %v1169 = vld [vmem:[#allocation2 + $0x1c0] sm:$0xff]
        %v1170 = vld [vmem:[#allocation2 + $0x1c8] sm:$0xff]
        %v1171 = vld [vmem:[#allocation2 + $0x1d0] sm:$0xff]
        %v1172 = vld [vmem:[#allocation2 + $0x1d8] sm:$0xff]
        %v1173 = vld [vmem:[#allocation2 + $0x1e0] sm:$0xff]
        %v1174 = vld [vmem:[#allocation2 + $0x1e8] sm:$0xff]
        %v1175 = vld [vmem:[#allocation2 + $0x1f0] sm:$0xff]
        %v1176 = vld [vmem:[#allocation2 + $0x1f8] sm:$0xff]
        %v1177 = vld [vmem:[#allocation2 + $0x200] sm:$0xff]
        %v1178 = vld [vmem:[#allocation2 + $0x208] sm:$0xff]
        %v1179 = vld [vmem:[#allocation2 + $0x210] sm:$0xff]
        %v1180 = vld [vmem:[#allocation2 + $0x218] sm:$0xff]
        %v1181 = vld [vmem:[#allocation2 + $0x220] sm:$0xff]
        %v1182 = vld [vmem:[#allocation2 + $0x228] sm:$0xff]
        %v1183 = vld [vmem:[#allocation2 + $0x230] sm:$0xff]
        %v1184 = vld [vmem:[#allocation2 + $0x238] sm:$0xff]
        %v1185 = vld [vmem:[#allocation2 + $0x240] sm:$0xff]
        %v1186 = vld [vmem:[#allocation2 + $0x248] sm:$0xff]
        %v1187 = vld [vmem:[#allocation2 + $0x250] sm:$0xff]
        %v1188 = vld [vmem:[#allocation2 + $0x258] sm:$0xff]
        %v1189 = vld [vmem:[#allocation2 + $0x260] sm:$0xff]
        %v1190 = vld [vmem:[#allocation2 + $0x268] sm:$0xff]
        %v1191 = vld [vmem:[#allocation2 + $0x270] sm:$0xff]
        %v1192 = vld [vmem:[#allocation2 + $0x278] sm:$0xff]
        %v1193 = vld [vmem:[#allocation2 + $0x280] sm:$0xff]
        %v1194 = vld [vmem:[#allocation2 + $0x288] sm:$0xff]
        %v1195 = vld [vmem:[#allocation2 + $0x290] sm:$0xff]
        %v1196 = vld [vmem:[#allocation2 + $0x298] sm:$0xff]
        %v1197 = vld [vmem:[#allocation2 + $0x2a0] sm:$0xff]
        %v1198 = vld [vmem:[#allocation2 + $0x2a8] sm:$0xff]
        %v1199 = vld [vmem:[#allocation2 + $0x2b0] sm:$0xff]
        %v1200 = vld [vmem:[#allocation2 + $0x2b8] sm:$0xff]
        %v1201 = vld [vmem:[#allocation2 + $0x2c0] sm:$0xff]
        %v1202 = vld [vmem:[#allocation2 + $0x2c8] sm:$0xff]
        %v1203 = vld [vmem:[#allocation2 + $0x2d0] sm:$0xff]
        %v1204 = vld [vmem:[#allocation2 + $0x2d8] sm:$0xff]
        %v1205 = vld [vmem:[#allocation2 + $0x2e0] sm:$0xff]
        %v1206 = vld [vmem:[#allocation2 + $0x2e8] sm:$0xff]
        %v1207 = vld [vmem:[#allocation2 + $0x2f0] sm:$0xff]
        %v1208 = vld [vmem:[#allocation2 + $0x2f8] sm:$0xff]
        %v1209 = vld [vmem:[#allocation2 + $0x300] sm:$0xff]
        %v1210 = vld [vmem:[#allocation2 + $0x308] sm:$0xff]
        %v1211 = vld [vmem:[#allocation2 + $0x310] sm:$0xff]
        %v1212 = vld [vmem:[#allocation2 + $0x318] sm:$0xff]
        %v1213 = vld [vmem:[#allocation2 + $0x320] sm:$0xff]
        %v1214 = vld [vmem:[#allocation2 + $0x328] sm:$0xff]
        %v1215 = vld [vmem:[#allocation2 + $0x330] sm:$0xff]
        %v1216 = vld [vmem:[#allocation2 + $0x338] sm:$0xff]
        %v1217 = vld [vmem:[#allocation2 + $0x340] sm:$0xff]
        %v1218 = vld [vmem:[#allocation2 + $0x348] sm:$0xff]
        %v1219 = vld [vmem:[#allocation2 + $0x350] sm:$0xff]
        %v1220 = vld [vmem:[#allocation2 + $0x358] sm:$0xff]
        %v1221 = vld [vmem:[#allocation2 + $0x360] sm:$0xff]
        %v1222 = vld [vmem:[#allocation2 + $0x368] sm:$0xff]
        %v1223 = vld [vmem:[#allocation2 + $0x370] sm:$0xff]
        %v1224 = vld [vmem:[#allocation2 + $0x378] sm:$0xff]
        %v1225 = vld [vmem:[#allocation2 + $0x380] sm:$0xff]
        %v1226 = vld [vmem:[#allocation2 + $0x388] sm:$0xff]
        %v1227 = vld [vmem:[#allocation2 + $0x390] sm:$0xff]
        %v1228 = vld [vmem:[#allocation2 + $0x398] sm:$0xff]
        %v1229 = vld [vmem:[#allocation2 + $0x3a0] sm:$0xff]
        %v1230 = vld [vmem:[#allocation2 + $0x3a8] sm:$0xff]
        %v1231 = vld [vmem:[#allocation2 + $0x3b0] sm:$0xff]
        %v1232 = vld [vmem:[#allocation2 + $0x3b8] sm:$0xff]
        %v1233 = vld [vmem:[#allocation2 + $0x3c0] sm:$0xff]
        %v1234 = vld [vmem:[#allocation2 + $0x3c8] sm:$0xff]
        %v1235 = vld [vmem:[#allocation2 + $0x3d0] sm:$0xff]
        %v1236 = vld [vmem:[#allocation2 + $0x3d8] sm:$0xff]
        %v1237 = vld [vmem:[#allocation2 + $0x3e0] sm:$0xff]
        %v1238 = vld [vmem:[#allocation2 + $0x3e8] sm:$0xff]
        %v1239 = vld [vmem:[#allocation2 + $0x3f0] sm:$0xff]
        %v1240 = vld [vmem:[#allocation2 + $0x3f8] sm:$0xff]
        %v1241 = vld [vmem:[#allocation2 + $0x400] sm:$0xff]
        %v1242 = vld [vmem:[#allocation2 + $0x408] sm:$0xff]
        %v1243 = vld [vmem:[#allocation2 + $0x410] sm:$0xff]
        %v1244 = vld [vmem:[#allocation2 + $0x418] sm:$0xff]
        %v1245 = vld [vmem:[#allocation2 + $0x420] sm:$0xff]
        %v1246 = vld [vmem:[#allocation2 + $0x428] sm:$0xff]
        %v1247 = vld [vmem:[#allocation2 + $0x430] sm:$0xff]
        %v1248 = vld [vmem:[#allocation2 + $0x438] sm:$0xff]
        %v1249 = vld [vmem:[#allocation2 + $0x440] sm:$0xff]
        %v1250 = vld [vmem:[#allocation2 + $0x448] sm:$0xff]
        %v1251 = vld [vmem:[#allocation2 + $0x450] sm:$0xff]
        %v1252 = vld [vmem:[#allocation2 + $0x458] sm:$0xff]
        %v1253 = vld [vmem:[#allocation2 + $0x460] sm:$0xff]
        %v1254 = vld [vmem:[#allocation2 + $0x468] sm:$0xff]
        %v1255 = vld [vmem:[#allocation2 + $0x470] sm:$0xff]
        %v1256 = vld [vmem:[#allocation2 + $0x478] sm:$0xff]
        %v1257 = vld [vmem:[#allocation2 + $0x480] sm:$0xff]
        %v1258 = vld [vmem:[#allocation2 + $0x488] sm:$0xff]
        %v1259 = vld [vmem:[#allocation2 + $0x490] sm:$0xff]
        %v1260 = vld [vmem:[#allocation2 + $0x498] sm:$0xff]
        %v1261 = vld [vmem:[#allocation2 + $0x4a0] sm:$0xff]
        %v1262 = vld [vmem:[#allocation2 + $0x4a8] sm:$0xff]
        %v1263 = vld [vmem:[#allocation2 + $0x4b0] sm:$0xff]
        %v1264 = vld [vmem:[#allocation2 + $0x4b8] sm:$0xff]
        %v1265 = vld [vmem:[#allocation2 + $0x4c0] sm:$0xff]
        %v1266 = vld [vmem:[#allocation2 + $0x4c8] sm:$0xff]
        %v1267 = vld [vmem:[#allocation2 + $0x4d0] sm:$0xff]
        %v1268 = vld [vmem:[#allocation2 + $0x4d8] sm:$0xff]
        %v1269 = vld [vmem:[#allocation2 + $0x4e0] sm:$0xff]
        %v1270 = vld [vmem:[#allocation2 + $0x4e8] sm:$0xff]
        %v1271 = vld [vmem:[#allocation2 + $0x4f0] sm:$0xff]
        %v1272 = vld [vmem:[#allocation2 + $0x4f8] sm:$0xff]
        %v1273 = vld [vmem:[#allocation2 + $0x500] sm:$0xff]
        %v1274 = vld [vmem:[#allocation2 + $0x508] sm:$0xff]
        %v1275 = vld [vmem:[#allocation2 + $0x510] sm:$0xff]
        %v1276 = vld [vmem:[#allocation2 + $0x518] sm:$0xff]
        %v1277 = vld [vmem:[#allocation2 + $0x520] sm:$0xff]
        %v1278 = vld [vmem:[#allocation2 + $0x528] sm:$0xff]
        %v1279 = vld [vmem:[#allocation2 + $0x530] sm:$0xff]
        %v1280 = vld [vmem:[#allocation2 + $0x538] sm:$0xff]
        %v1281 = vld [vmem:[#allocation2 + $0x540] sm:$0xff]
        %v1282 = vld [vmem:[#allocation2 + $0x548] sm:$0xff]
        %v1283 = vld [vmem:[#allocation2 + $0x550] sm:$0xff]
        %v1284 = vld [vmem:[#allocation2 + $0x558] sm:$0xff]
        %v1285 = vld [vmem:[#allocation2 + $0x560] sm:$0xff]
        %v1286 = vld [vmem:[#allocation2 + $0x568] sm:$0xff]
        %v1287 = vld [vmem:[#allocation2 + $0x570] sm:$0xff]
        %v1288 = vld [vmem:[#allocation2 + $0x578] sm:$0xff]
        %v1289 = vld [vmem:[#allocation2 + $0x580] sm:$0xff]
        %v1290 = vld [vmem:[#allocation2 + $0x588] sm:$0xff]
        %v1291 = vld [vmem:[#allocation2 + $0x590] sm:$0xff]
        %v1292 = vld [vmem:[#allocation2 + $0x598] sm:$0xff]
        %v1293 = vld [vmem:[#allocation2 + $0x5a0] sm:$0xff]
        %v1294 = vld [vmem:[#allocation2 + $0x5a8] sm:$0xff]
        %v1295 = vld [vmem:[#allocation2 + $0x5b0] sm:$0xff]
        %v1296 = vld [vmem:[#allocation2 + $0x5b8] sm:$0xff]
        %v1297 = vld [vmem:[#allocation2 + $0x5c0] sm:$0xff]
        %v1298 = vld [vmem:[#allocation2 + $0x5c8] sm:$0xff]
        %v1299 = vld [vmem:[#allocation2 + $0x5d0] sm:$0xff]
        %v1300 = vld [vmem:[#allocation2 + $0x5d8] sm:$0xff]
        %v1301 = vld [vmem:[#allocation2 + $0x5e0] sm:$0xff]
        %v1302 = vld [vmem:[#allocation2 + $0x5e8] sm:$0xff]
        %v1303 = vld [vmem:[#allocation2 + $0x5f0] sm:$0xff]
        %v1304 = vld [vmem:[#allocation2 + $0x5f8] sm:$0xff]
        %v1305 = vld [vmem:[#allocation2 + $0x600] sm:$0xff]
        %v1306 = vld [vmem:[#allocation2 + $0x608] sm:$0xff]
        %v1307 = vld [vmem:[#allocation2 + $0x610] sm:$0xff]
        %v1308 = vld [vmem:[#allocation2 + $0x618] sm:$0xff]
        %v1309 = vld [vmem:[#allocation2 + $0x620] sm:$0xff]
        %v1310 = vld [vmem:[#allocation2 + $0x628] sm:$0xff]
        %v1311 = vld [vmem:[#allocation2 + $0x630] sm:$0xff]
        %v1312 = vld [vmem:[#allocation2 + $0x638] sm:$0xff]
        %v1313 = vld [vmem:[#allocation2 + $0x640] sm:$0xff]
        %v1314 = vld [vmem:[#allocation2 + $0x648] sm:$0xff]
        %v1315 = vld [vmem:[#allocation2 + $0x650] sm:$0xff]
        %v1316 = vld [vmem:[#allocation2 + $0x658] sm:$0xff]
        %v1317 = vld [vmem:[#allocation2 + $0x660] sm:$0xff]
        %v1318 = vld [vmem:[#allocation2 + $0x668] sm:$0xff]
        %v1319 = vld [vmem:[#allocation2 + $0x670] sm:$0xff]
        %v1320 = vld [vmem:[#allocation2 + $0x678] sm:$0xff]
        %v1321 = vld [vmem:[#allocation2 + $0x680] sm:$0xff]
        %v1322 = vld [vmem:[#allocation2 + $0x688] sm:$0xff]
        %v1323 = vld [vmem:[#allocation2 + $0x690] sm:$0xff]
        %v1324 = vld [vmem:[#allocation2 + $0x698] sm:$0xff]
        %v1325 = vld [vmem:[#allocation2 + $0x6a0] sm:$0xff]
        %v1326 = vld [vmem:[#allocation2 + $0x6a8] sm:$0xff]
        %v1327 = vld [vmem:[#allocation2 + $0x6b0] sm:$0xff]
        %v1328 = vld [vmem:[#allocation2 + $0x6b8] sm:$0xff]
        %v1329 = vld [vmem:[#allocation2 + $0x6c0] sm:$0xff]
        %v1330 = vld [vmem:[#allocation2 + $0x6c8] sm:$0xff]
        %v1331 = vld [vmem:[#allocation2 + $0x6d0] sm:$0xff]
        %v1332 = vld [vmem:[#allocation2 + $0x6d8] sm:$0xff]
        %v1333 = vld [vmem:[#allocation2 + $0x6e0] sm:$0xff]
        %v1334 = vld [vmem:[#allocation2 + $0x6e8] sm:$0xff]
        %v1335 = vld [vmem:[#allocation2 + $0x6f0] sm:$0xff]
        %v1336 = vld [vmem:[#allocation2 + $0x6f8] sm:$0xff]
        %v1337 = vld [vmem:[#allocation2 + $0x700] sm:$0xff]
        %v1338 = vld [vmem:[#allocation2 + $0x708] sm:$0xff]
        %v1339 = vld [vmem:[#allocation2 + $0x710] sm:$0xff]
        %v1340 = vld [vmem:[#allocation2 + $0x718] sm:$0xff]
        %v1341 = vld [vmem:[#allocation2 + $0x720] sm:$0xff]
        %v1342 = vld [vmem:[#allocation2 + $0x728] sm:$0xff]
        %v1343 = vld [vmem:[#allocation2 + $0x730] sm:$0xff]
        %v1344 = vld [vmem:[#allocation2 + $0x738] sm:$0xff]
        %v1345 = vld [vmem:[#allocation2 + $0x740] sm:$0xff]
        %v1346 = vld [vmem:[#allocation2 + $0x748] sm:$0xff]
        %v1347 = vld [vmem:[#allocation2 + $0x750] sm:$0xff]
        %v1348 = vld [vmem:[#allocation2 + $0x758] sm:$0xff]
        %v1349 = vld [vmem:[#allocation2 + $0x760] sm:$0xff]
        %v1350 = vld [vmem:[#allocation2 + $0x768] sm:$0xff]
        %v1351 = vld [vmem:[#allocation2 + $0x770] sm:$0xff]
        %v1352 = vld [vmem:[#allocation2 + $0x778] sm:$0xff]
        %v1353 = vld [vmem:[#allocation2 + $0x780] sm:$0xff]
        %v1354 = vld [vmem:[#allocation2 + $0x788] sm:$0xff]
        %v1355 = vld [vmem:[#allocation2 + $0x790] sm:$0xff]
        %v1356 = vld [vmem:[#allocation2 + $0x798] sm:$0xff]
        %v1357 = vld [vmem:[#allocation2 + $0x7a0] sm:$0xff]
        %v1358 = vld [vmem:[#allocation2 + $0x7a8] sm:$0xff]
        %v1359 = vld [vmem:[#allocation2 + $0x7b0] sm:$0xff]
        %v1360 = vld [vmem:[#allocation2 + $0x7b8] sm:$0xff]
        %v1361 = vld [vmem:[#allocation2 + $0x7c0] sm:$0xff]
        %v1362 = vld [vmem:[#allocation2 + $0x7c8] sm:$0xff]
        %v1363 = vld [vmem:[#allocation2 + $0x7d0] sm:$0xff]
        %v1364 = vld [vmem:[#allocation2 + $0x7d8] sm:$0xff]
        %v1365 = vld [vmem:[#allocation2 + $0x7e0] sm:$0xff]
        %v1366 = vld [vmem:[#allocation2 + $0x7e8] sm:$0xff]
        %v1367 = vld [vmem:[#allocation2 + $0x7f0] sm:$0xff]
        %v1368 = vld [vmem:[#allocation2 + $0x7f8] sm:$0xff]
        %v1369 = vld [vmem:[%s839] sm:$0xff]
        %v1370 = vld [vmem:[%s839 + $0x8] sm:$0xff]
        %v1371 = vld [vmem:[%s839 + $0x10] sm:$0xff]
        %v1372 = vld [vmem:[%s839 + $0x18] sm:$0xff]
        %v1373 = vld [vmem:[%s839 + $0x20] sm:$0xff]
        %v1374 = vld [vmem:[%s839 + $0x28] sm:$0xff]
        %v1375 = vld [vmem:[%s839 + $0x30] sm:$0xff]
        %v1376 = vld [vmem:[%s839 + $0x38] sm:$0xff]
        %v1377 = vld [vmem:[%s795] sm:$0xff]
        %v1378 = vld [vmem:[%s795 + $0x8] sm:$0xff]
        %v1379 = vld [vmem:[%s795 + $0x10] sm:$0xff]
        %v1380 = vld [vmem:[%s795 + $0x18] sm:$0xff]
        %v1381 = vld [vmem:[%s795 + $0x20] sm:$0xff]
        %v1382 = vld [vmem:[%s795 + $0x28] sm:$0xff]
        %v1383 = vld [vmem:[%s795 + $0x30] sm:$0xff]
        %v1384 = vld [vmem:[%s795 + $0x38] sm:$0xff]
        %v1385 = vld [vmem:[%s795 + $0x40] sm:$0xff]
        %v1386 = vld [vmem:[%s795 + $0x48] sm:$0xff]
        %v1387 = vld [vmem:[%s795 + $0x50] sm:$0xff]
        %v1388 = vld [vmem:[%s795 + $0x58] sm:$0xff]
        %v1389 = vld [vmem:[%s795 + $0x60] sm:$0xff]
        %v1390 = vld [vmem:[%s795 + $0x68] sm:$0xff]
        %v1391 = vld [vmem:[%s795 + $0x70] sm:$0xff]
        %v1392 = vld [vmem:[%s795 + $0x78] sm:$0xff]
        %v1393 = vld [vmem:[%s795 + $0x80] sm:$0xff]
        %v1394 = vld [vmem:[%s795 + $0x88] sm:$0xff]
        %v1395 = vld [vmem:[%s795 + $0x90] sm:$0xff]
        %v1396 = vld [vmem:[%s795 + $0x98] sm:$0xff]
        %v1397 = vld [vmem:[%s795 + $0xa0] sm:$0xff]
        %v1398 = vld [vmem:[%s795 + $0xa8] sm:$0xff]
        %v1399 = vld [vmem:[%s795 + $0xb0] sm:$0xff]
        %v1400 = vld [vmem:[%s795 + $0xb8] sm:$0xff]
        %v1401 = vld [vmem:[%s795 + $0xc0] sm:$0xff]
        %v1402 = vld [vmem:[%s795 + $0xc8] sm:$0xff]
        %v1403 = vld [vmem:[%s795 + $0xd0] sm:$0xff]
        %v1404 = vld [vmem:[%s795 + $0xd8] sm:$0xff]
        %v1405 = vld [vmem:[%s795 + $0xe0] sm:$0xff]
        %v1406 = vld [vmem:[%s795 + $0xe8] sm:$0xff]
        %v1407 = vld [vmem:[%s795 + $0xf0] sm:$0xff]
        %v1408 = vld [vmem:[%s795 + $0xf8] sm:$0xff]
        %v1409 = vld [vmem:[%s795 + $0x100] sm:$0xff]
        %v1410 = vld [vmem:[%s795 + $0x108] sm:$0xff]
        %v1411 = vld [vmem:[%s795 + $0x110] sm:$0xff]
        %v1412 = vld [vmem:[%s795 + $0x118] sm:$0xff]
        %v1413 = vld [vmem:[%s795 + $0x120] sm:$0xff]
        %v1414 = vld [vmem:[%s795 + $0x128] sm:$0xff]
        %v1415 = vld [vmem:[%s795 + $0x130] sm:$0xff]
        %v1416 = vld [vmem:[%s795 + $0x138] sm:$0xff]
        %v1417 = vld [vmem:[%s795 + $0x140] sm:$0xff]
        %v1418 = vld [vmem:[%s795 + $0x148] sm:$0xff]
        %v1419 = vld [vmem:[%s795 + $0x150] sm:$0xff]
        %v1420 = vld [vmem:[%s795 + $0x158] sm:$0xff]
        %v1421 = vld [vmem:[%s795 + $0x160] sm:$0xff]
        %v1422 = vld [vmem:[%s795 + $0x168] sm:$0xff]
        %v1423 = vld [vmem:[%s795 + $0x170] sm:$0xff]
        %v1424 = vld [vmem:[%s795 + $0x178] sm:$0xff]
        %v1425 = vld [vmem:[%s795 + $0x180] sm:$0xff]
        %v1426 = vld [vmem:[%s795 + $0x188] sm:$0xff]
        %v1427 = vld [vmem:[%s795 + $0x190] sm:$0xff]
        %v1428 = vld [vmem:[%s795 + $0x198] sm:$0xff]
        %v1429 = vld [vmem:[%s795 + $0x1a0] sm:$0xff]
        %v1430 = vld [vmem:[%s795 + $0x1a8] sm:$0xff]
        %v1431 = vld [vmem:[%s795 + $0x1b0] sm:$0xff]
        %v1432 = vld [vmem:[%s795 + $0x1b8] sm:$0xff]
        %v1433 = vld [vmem:[%s795 + $0x1c0] sm:$0xff]
        %v1434 = vld [vmem:[%s795 + $0x1c8] sm:$0xff]
        %v1435 = vld [vmem:[%s795 + $0x1d0] sm:$0xff]
        %v1436 = vld [vmem:[%s795 + $0x1d8] sm:$0xff]
        %v1437 = vld [vmem:[%s795 + $0x1e0] sm:$0xff]
        %v1438 = vld [vmem:[%s795 + $0x1e8] sm:$0xff]
        %v1439 = vld [vmem:[%s795 + $0x1f0] sm:$0xff]
        %v1440 = vld [vmem:[%s795 + $0x1f8] sm:$0xff]
        %v1441 = vld [vmem:[%s795 + $0x200] sm:$0xff]
        %v1442 = vld [vmem:[%s795 + $0x208] sm:$0xff]
        %v1443 = vld [vmem:[%s795 + $0x210] sm:$0xff]
        %v1444 = vld [vmem:[%s795 + $0x218] sm:$0xff]
        %v1445 = vld [vmem:[%s795 + $0x220] sm:$0xff]
        %v1446 = vld [vmem:[%s795 + $0x228] sm:$0xff]
        %v1447 = vld [vmem:[%s795 + $0x230] sm:$0xff]
        %v1448 = vld [vmem:[%s795 + $0x238] sm:$0xff]
        %v1449 = vld [vmem:[%s795 + $0x240] sm:$0xff]
        %v1450 = vld [vmem:[%s795 + $0x248] sm:$0xff]
        %v1451 = vld [vmem:[%s795 + $0x250] sm:$0xff]
        %v1452 = vld [vmem:[%s795 + $0x258] sm:$0xff]
        %v1453 = vld [vmem:[%s795 + $0x260] sm:$0xff]
        %v1454 = vld [vmem:[%s795 + $0x268] sm:$0xff]
        %v1455 = vld [vmem:[%s795 + $0x270] sm:$0xff]
        %v1456 = vld [vmem:[%s795 + $0x278] sm:$0xff]
        %v1457 = vld [vmem:[%s795 + $0x280] sm:$0xff]
        %v1458 = vld [vmem:[%s795 + $0x288] sm:$0xff]
        %v1459 = vld [vmem:[%s795 + $0x290] sm:$0xff]
        %v1460 = vld [vmem:[%s795 + $0x298] sm:$0xff]
        %v1461 = vld [vmem:[%s795 + $0x2a0] sm:$0xff]
        %v1462 = vld [vmem:[%s795 + $0x2a8] sm:$0xff]
        %v1463 = vld [vmem:[%s795 + $0x2b0] sm:$0xff]
        %v1464 = vld [vmem:[%s795 + $0x2b8] sm:$0xff]
        %v1465 = vld [vmem:[%s795 + $0x2c0] sm:$0xff]
        %v1466 = vld [vmem:[%s795 + $0x2c8] sm:$0xff]
        %v1467 = vld [vmem:[%s795 + $0x2d0] sm:$0xff]
        %v1468 = vld [vmem:[%s795 + $0x2d8] sm:$0xff]
        %v1469 = vld [vmem:[%s795 + $0x2e0] sm:$0xff]
        %v1470 = vld [vmem:[%s795 + $0x2e8] sm:$0xff]
        %v1471 = vld [vmem:[%s795 + $0x2f0] sm:$0xff]
        %v1472 = vld [vmem:[%s795 + $0x2f8] sm:$0xff]
        %v1473 = vld [vmem:[%s795 + $0x300] sm:$0xff]
        %v1474 = vld [vmem:[%s795 + $0x308] sm:$0xff]
        %v1475 = vld [vmem:[%s795 + $0x310] sm:$0xff]
        %v1476 = vld [vmem:[%s795 + $0x318] sm:$0xff]
        %v1477 = vld [vmem:[%s795 + $0x320] sm:$0xff]
        %v1478 = vld [vmem:[%s795 + $0x328] sm:$0xff]
        %v1479 = vld [vmem:[%s795 + $0x330] sm:$0xff]
        %v1480 = vld [vmem:[%s795 + $0x338] sm:$0xff]
        %v1481 = vld [vmem:[%s795 + $0x340] sm:$0xff]
        %v1482 = vld [vmem:[%s795 + $0x348] sm:$0xff]
        %v1483 = vld [vmem:[%s795 + $0x350] sm:$0xff]
        %v1484 = vld [vmem:[%s795 + $0x358] sm:$0xff]
        %v1485 = vld [vmem:[%s795 + $0x360] sm:$0xff]
        %v1486 = vld [vmem:[%s795 + $0x368] sm:$0xff]
        %v1487 = vld [vmem:[%s795 + $0x370] sm:$0xff]
        %v1488 = vld [vmem:[%s795 + $0x378] sm:$0xff]
        %v1489 = vld [vmem:[%s795 + $0x380] sm:$0xff]
        %v1490 = vld [vmem:[%s795 + $0x388] sm:$0xff]
        %v1491 = vld [vmem:[%s795 + $0x390] sm:$0xff]
        %v1492 = vld [vmem:[%s795 + $0x398] sm:$0xff]
        %v1493 = vld [vmem:[%s795 + $0x3a0] sm:$0xff]
        %v1494 = vld [vmem:[%s795 + $0x3a8] sm:$0xff]
        %v1495 = vld [vmem:[%s795 + $0x3b0] sm:$0xff]
        %v1496 = vld [vmem:[%s795 + $0x3b8] sm:$0xff]
        %v1497 = vld [vmem:[%s795 + $0x3c0] sm:$0xff]
        %v1498 = vld [vmem:[%s795 + $0x3c8] sm:$0xff]
        %v1499 = vld [vmem:[%s795 + $0x3d0] sm:$0xff]
        %v1500 = vld [vmem:[%s795 + $0x3d8] sm:$0xff]
        %v1501 = vld [vmem:[%s795 + $0x3e0] sm:$0xff]
        %v1502 = vld [vmem:[%s795 + $0x3e8] sm:$0xff]
        %v1503 = vld [vmem:[%s795 + $0x3f0] sm:$0xff]
        %v1504 = vld [vmem:[%s795 + $0x3f8] sm:$0xff]
        %v1505 = vld [vmem:[%s795 + $0x400] sm:$0xff]
        %v1506 = vld [vmem:[%s795 + $0x408] sm:$0xff]
        %v1507 = vld [vmem:[%s795 + $0x410] sm:$0xff]
        %v1508 = vld [vmem:[%s795 + $0x418] sm:$0xff]
        %v1509 = vld [vmem:[%s795 + $0x420] sm:$0xff]
        %v1510 = vld [vmem:[%s795 + $0x428] sm:$0xff]
        %v1511 = vld [vmem:[%s795 + $0x430] sm:$0xff]
        %v1512 = vld [vmem:[%s795 + $0x438] sm:$0xff]
        %v1513 = vld [vmem:[%s795 + $0x440] sm:$0xff]
        %v1514 = vld [vmem:[%s795 + $0x448] sm:$0xff]
        %v1515 = vld [vmem:[%s795 + $0x450] sm:$0xff]
        %v1516 = vld [vmem:[%s795 + $0x458] sm:$0xff]
        %v1517 = vld [vmem:[%s795 + $0x460] sm:$0xff]
        %v1518 = vld [vmem:[%s795 + $0x468] sm:$0xff]
        %v1519 = vld [vmem:[%s795 + $0x470] sm:$0xff]
        %v1520 = vld [vmem:[%s795 + $0x478] sm:$0xff]
        %v1521 = vld [vmem:[%s795 + $0x480] sm:$0xff]
        %v1522 = vld [vmem:[%s795 + $0x488] sm:$0xff]
        %v1523 = vld [vmem:[%s795 + $0x490] sm:$0xff]
        %v1524 = vld [vmem:[%s795 + $0x498] sm:$0xff]
        %v1525 = vld [vmem:[%s795 + $0x4a0] sm:$0xff]
        %v1526 = vld [vmem:[%s795 + $0x4a8] sm:$0xff]
        %v1527 = vld [vmem:[%s795 + $0x4b0] sm:$0xff]
        %v1528 = vld [vmem:[%s795 + $0x4b8] sm:$0xff]
        %v1529 = vld [vmem:[%s795 + $0x4c0] sm:$0xff]
        %v1530 = vld [vmem:[%s795 + $0x4c8] sm:$0xff]
        %v1531 = vld [vmem:[%s795 + $0x4d0] sm:$0xff]
        %v1532 = vld [vmem:[%s795 + $0x4d8] sm:$0xff]
        %v1533 = vld [vmem:[%s795 + $0x4e0] sm:$0xff]
        %v1534 = vld [vmem:[%s795 + $0x4e8] sm:$0xff]
        %v1535 = vld [vmem:[%s795 + $0x4f0] sm:$0xff]
        %v1536 = vld [vmem:[%s795 + $0x4f8] sm:$0xff]
        %v1537 = vld [vmem:[%s795 + $0x500] sm:$0xff]
        %v1538 = vld [vmem:[%s795 + $0x508] sm:$0xff]
        %v1539 = vld [vmem:[%s795 + $0x510] sm:$0xff]
        %v1540 = vld [vmem:[%s795 + $0x518] sm:$0xff]
        %v1541 = vld [vmem:[%s795 + $0x520] sm:$0xff]
        %v1542 = vld [vmem:[%s795 + $0x528] sm:$0xff]
        %v1543 = vld [vmem:[%s795 + $0x530] sm:$0xff]
        %v1544 = vld [vmem:[%s795 + $0x538] sm:$0xff]
        %v1545 = vld [vmem:[%s795 + $0x540] sm:$0xff]
        %v1546 = vld [vmem:[%s795 + $0x548] sm:$0xff]
        %v1547 = vld [vmem:[%s795 + $0x550] sm:$0xff]
        %v1548 = vld [vmem:[%s795 + $0x558] sm:$0xff]
        %v1549 = vld [vmem:[%s795 + $0x560] sm:$0xff]
        %v1550 = vld [vmem:[%s795 + $0x568] sm:$0xff]
        %v1551 = vld [vmem:[%s795 + $0x570] sm:$0xff]
        %v1552 = vld [vmem:[%s795 + $0x578] sm:$0xff]
        %v1553 = vld [vmem:[%s795 + $0x580] sm:$0xff]
        %v1554 = vld [vmem:[%s795 + $0x588] sm:$0xff]
        %v1555 = vld [vmem:[%s795 + $0x590] sm:$0xff]
        %v1556 = vld [vmem:[%s795 + $0x598] sm:$0xff]
        %v1557 = vld [vmem:[%s795 + $0x5a0] sm:$0xff]
        %v1558 = vld [vmem:[%s795 + $0x5a8] sm:$0xff]
        %v1559 = vld [vmem:[%s795 + $0x5b0] sm:$0xff]
        %v1560 = vld [vmem:[%s795 + $0x5b8] sm:$0xff]
        %v1561 = vld [vmem:[%s795 + $0x5c0] sm:$0xff]
        %v1562 = vld [vmem:[%s795 + $0x5c8] sm:$0xff]
        %v1563 = vld [vmem:[%s795 + $0x5d0] sm:$0xff]
        %v1564 = vld [vmem:[%s795 + $0x5d8] sm:$0xff]
        %v1565 = vld [vmem:[%s795 + $0x5e0] sm:$0xff]
        %v1566 = vld [vmem:[%s795 + $0x5e8] sm:$0xff]
        %v1567 = vld [vmem:[%s795 + $0x5f0] sm:$0xff]
        %v1568 = vld [vmem:[%s795 + $0x5f8] sm:$0xff]
        %v1569 = vld [vmem:[%s795 + $0x600] sm:$0xff]
        %v1570 = vld [vmem:[%s795 + $0x608] sm:$0xff]
        %v1571 = vld [vmem:[%s795 + $0x610] sm:$0xff]
        %v1572 = vld [vmem:[%s795 + $0x618] sm:$0xff]
        %v1573 = vld [vmem:[%s795 + $0x620] sm:$0xff]
        %v1574 = vld [vmem:[%s795 + $0x628] sm:$0xff]
        %v1575 = vld [vmem:[%s795 + $0x630] sm:$0xff]
        %v1576 = vld [vmem:[%s795 + $0x638] sm:$0xff]
        %v1577 = vld [vmem:[%s795 + $0x640] sm:$0xff]
        %v1578 = vld [vmem:[%s795 + $0x648] sm:$0xff]
        %v1579 = vld [vmem:[%s795 + $0x650] sm:$0xff]
        %v1580 = vld [vmem:[%s795 + $0x658] sm:$0xff]
        %v1581 = vld [vmem:[%s795 + $0x660] sm:$0xff]
        %v1582 = vld [vmem:[%s795 + $0x668] sm:$0xff]
        %v1583 = vld [vmem:[%s795 + $0x670] sm:$0xff]
        %v1584 = vld [vmem:[%s795 + $0x678] sm:$0xff]
        %v1585 = vld [vmem:[%s795 + $0x680] sm:$0xff]
        %v1586 = vld [vmem:[%s795 + $0x688] sm:$0xff]
        %v1587 = vld [vmem:[%s795 + $0x690] sm:$0xff]
        %v1588 = vld [vmem:[%s795 + $0x698] sm:$0xff]
        %v1589 = vld [vmem:[%s795 + $0x6a0] sm:$0xff]
        %v1590 = vld [vmem:[%s795 + $0x6a8] sm:$0xff]
        %v1591 = vld [vmem:[%s795 + $0x6b0] sm:$0xff]
        %v1592 = vld [vmem:[%s795 + $0x6b8] sm:$0xff]
        %v1593 = vld [vmem:[%s795 + $0x6c0] sm:$0xff]
        %v1594 = vld [vmem:[%s795 + $0x6c8] sm:$0xff]
        %v1595 = vld [vmem:[%s795 + $0x6d0] sm:$0xff]
        %v1596 = vld [vmem:[%s795 + $0x6d8] sm:$0xff]
        %v1597 = vld [vmem:[%s795 + $0x6e0] sm:$0xff]
        %v1598 = vld [vmem:[%s795 + $0x6e8] sm:$0xff]
        %v1599 = vld [vmem:[%s795 + $0x6f0] sm:$0xff]
        %v1600 = vld [vmem:[%s795 + $0x6f8] sm:$0xff]
        %v1601 = vld [vmem:[%s795 + $0x700] sm:$0xff]
        %v1602 = vld [vmem:[%s795 + $0x708] sm:$0xff]
        %v1603 = vld [vmem:[%s795 + $0x710] sm:$0xff]
        %v1604 = vld [vmem:[%s795 + $0x718] sm:$0xff]
        %v1605 = vld [vmem:[%s795 + $0x720] sm:$0xff]
        %v1606 = vld [vmem:[%s795 + $0x728] sm:$0xff]
        %v1607 = vld [vmem:[%s795 + $0x730] sm:$0xff]
        %v1608 = vld [vmem:[%s795 + $0x738] sm:$0xff]
        %v1609 = vld [vmem:[%s795 + $0x740] sm:$0xff]
        %v1610 = vld [vmem:[%s795 + $0x748] sm:$0xff]
        %v1611 = vld [vmem:[%s795 + $0x750] sm:$0xff]
        %v1612 = vld [vmem:[%s795 + $0x758] sm:$0xff]
        %v1613 = vld [vmem:[%s795 + $0x760] sm:$0xff]
        %v1614 = vld [vmem:[%s795 + $0x768] sm:$0xff]
        %v1615 = vld [vmem:[%s795 + $0x770] sm:$0xff]
        %v1616 = vld [vmem:[%s795 + $0x778] sm:$0xff]
        %v1617 = vld [vmem:[%s795 + $0x780] sm:$0xff]
        %v1618 = vld [vmem:[%s795 + $0x788] sm:$0xff]
        %v1619 = vld [vmem:[%s795 + $0x790] sm:$0xff]
        %v1620 = vld [vmem:[%s795 + $0x798] sm:$0xff]
        %v1621 = vld [vmem:[%s795 + $0x7a0] sm:$0xff]
        %v1622 = vld [vmem:[%s795 + $0x7a8] sm:$0xff]
        %v1623 = vld [vmem:[%s795 + $0x7b0] sm:$0xff]
        %v1624 = vld [vmem:[%s795 + $0x7b8] sm:$0xff]
        %v1625 = vld [vmem:[%s795 + $0x7c0] sm:$0xff]
        %v1626 = vld [vmem:[%s795 + $0x7c8] sm:$0xff]
        %v1627 = vld [vmem:[%s795 + $0x7d0] sm:$0xff]
        %v1628 = vld [vmem:[%s795 + $0x7d8] sm:$0xff]
        %v1629 = vld [vmem:[%s795 + $0x7e0] sm:$0xff]
        %v1630 = vld [vmem:[%s795 + $0x7e8] sm:$0xff]
        %v1631 = vld [vmem:[%s795 + $0x7f0] sm:$0xff]
        %v1632 = vld [vmem:[%s795 + $0x7f8] sm:$0xff]
        %v1633 = vld [vmem:[%s795 + $0x800] sm:$0xff]
        %v1634 = vld [vmem:[%s795 + $0x808] sm:$0xff]
        %v1635 = vld [vmem:[%s795 + $0x810] sm:$0xff]
        %v1636 = vld [vmem:[%s795 + $0x818] sm:$0xff]
        %v1637 = vld [vmem:[%s795 + $0x820] sm:$0xff]
        %v1638 = vld [vmem:[%s795 + $0x828] sm:$0xff]
        %v1639 = vld [vmem:[%s795 + $0x830] sm:$0xff]
        %v1640 = vld [vmem:[%s795 + $0x838] sm:$0xff]
        %v1641 = vld [vmem:[%s795 + $0x840] sm:$0xff]
        %v1642 = vld [vmem:[%s795 + $0x848] sm:$0xff]
        %v1643 = vld [vmem:[%s795 + $0x850] sm:$0xff]
        %v1644 = vld [vmem:[%s795 + $0x858] sm:$0xff]
        %v1645 = vld [vmem:[%s795 + $0x860] sm:$0xff]
        %v1646 = vld [vmem:[%s795 + $0x868] sm:$0xff]
        %v1647 = vld [vmem:[%s795 + $0x870] sm:$0xff]
        %v1648 = vld [vmem:[%s795 + $0x878] sm:$0xff]
        %v1649 = vld [vmem:[%s795 + $0x880] sm:$0xff]
        %v1650 = vld [vmem:[%s795 + $0x888] sm:$0xff]
        %v1651 = vld [vmem:[%s795 + $0x890] sm:$0xff]
        %v1652 = vld [vmem:[%s795 + $0x898] sm:$0xff]
        %v1653 = vld [vmem:[%s795 + $0x8a0] sm:$0xff]
        %v1654 = vld [vmem:[%s795 + $0x8a8] sm:$0xff]
        %v1655 = vld [vmem:[%s795 + $0x8b0] sm:$0xff]
        %v1656 = vld [vmem:[%s795 + $0x8b8] sm:$0xff]
        %v1657 = vld [vmem:[%s795 + $0x8c0] sm:$0xff]
        %v1658 = vld [vmem:[%s795 + $0x8c8] sm:$0xff]
        %v1659 = vld [vmem:[%s795 + $0x8d0] sm:$0xff]
        %v1660 = vld [vmem:[%s795 + $0x8d8] sm:$0xff]
        %v1661 = vld [vmem:[%s795 + $0x8e0] sm:$0xff]
        %v1662 = vld [vmem:[%s795 + $0x8e8] sm:$0xff]
        %v1663 = vld [vmem:[%s795 + $0x8f0] sm:$0xff]
        %v1664 = vld [vmem:[%s795 + $0x8f8] sm:$0xff]
        %v1673 = vunpack.c.l.b16 %v1369
        %v1674 = vunpack.c.h.b16 %v1369
        %v1675 = vunpack.c.l.b16 %v1370
        %v1676 = vunpack.c.h.b16 %v1370
        %v1677 = vunpack.c.l.b16 %v1371
        %v1678 = vunpack.c.h.b16 %v1371
        %v1679 = vunpack.c.l.b16 %v1372
        %v1680 = vunpack.c.h.b16 %v1372
        %v1681 = vunpack.c.l.b16 %v1373
        %v1682 = vunpack.c.h.b16 %v1373
        %v1683 = vunpack.c.l.b16 %v1374
        %v1684 = vunpack.c.h.b16 %v1374
        %v1685 = vunpack.c.l.b16 %v1375
        %v1686 = vunpack.c.h.b16 %v1375
        %v1687 = vunpack.c.l.b16 %v1376
        %v1688 = vunpack.c.h.b16 %v1376
        %v1689 = vpack.c.b16 %v1675, %v1673
        %v1690 = vpack.c.b16 %v1676, %v1674
        %v1691 = vpack.c.b16 %v1679, %v1677
        %v1692 = vpack.c.b16 %v1680, %v1678
        %v1693 = vpack.c.b16 %v1683, %v1681
        %v1694 = vpack.c.b16 %v1684, %v1682
        %v1695 = vpack.c.b16 %v1687, %v1685
        %v1696 = vpack.c.b16 %v1688, %v1686
        %v1989 = vunpack.c.l.b16 %v1377
        %v1990 = vunpack.c.h.b16 %v1377
        %v1991 = vunpack.c.l.b16 %v1378
        %v1992 = vunpack.c.h.b16 %v1378
        %v1993 = vunpack.c.l.b16 %v1379
        %v1994 = vunpack.c.h.b16 %v1379
        %v1995 = vunpack.c.l.b16 %v1380
        %v1996 = vunpack.c.h.b16 %v1380
        %v1997 = vunpack.c.l.b16 %v1381
        %v1998 = vunpack.c.h.b16 %v1381
        %v1999 = vunpack.c.l.b16 %v1382
        %v2000 = vunpack.c.h.b16 %v1382
        %v2001 = vunpack.c.l.b16 %v1383
        %v2002 = vunpack.c.h.b16 %v1383
        %v2003 = vunpack.c.l.b16 %v1384
        %v2004 = vunpack.c.h.b16 %v1384
        %v2005 = vunpack.c.l.b16 %v1385
        %v2006 = vunpack.c.h.b16 %v1385
        %v2007 = vunpack.c.l.b16 %v1386
        %v2008 = vunpack.c.h.b16 %v1386
        %v2009 = vunpack.c.l.b16 %v1387
        %v2010 = vunpack.c.h.b16 %v1387
        %v2011 = vunpack.c.l.b16 %v1388
        %v2012 = vunpack.c.h.b16 %v1388
        %v2013 = vunpack.c.l.b16 %v1389
        %v2014 = vunpack.c.h.b16 %v1389
        %v2015 = vunpack.c.l.b16 %v1390
        %v2016 = vunpack.c.h.b16 %v1390
        %v2017 = vunpack.c.l.b16 %v1391
        %v2018 = vunpack.c.h.b16 %v1391
        %v2019 = vunpack.c.l.b16 %v1392
        %v2020 = vunpack.c.h.b16 %v1392
        %v2021 = vunpack.c.l.b16 %v1393
        %v2022 = vunpack.c.h.b16 %v1393
        %v2023 = vunpack.c.l.b16 %v1394
        %v2024 = vunpack.c.h.b16 %v1394
        %v2025 = vunpack.c.l.b16 %v1395
        %v2026 = vunpack.c.h.b16 %v1395
        %v2027 = vunpack.c.l.b16 %v1396
        %v2028 = vunpack.c.h.b16 %v1396
        %v2029 = vunpack.c.l.b16 %v1397
        %v2030 = vunpack.c.h.b16 %v1397
        %v2031 = vunpack.c.l.b16 %v1398
        %v2032 = vunpack.c.h.b16 %v1398
        %v2033 = vunpack.c.l.b16 %v1399
        %v2034 = vunpack.c.h.b16 %v1399
        %v2035 = vunpack.c.l.b16 %v1400
        %v2036 = vunpack.c.h.b16 %v1400
        %v2037 = vunpack.c.l.b16 %v1401
        %v2038 = vunpack.c.h.b16 %v1401
        %v2039 = vunpack.c.l.b16 %v1402
        %v2040 = vunpack.c.h.b16 %v1402
        %v2041 = vunpack.c.l.b16 %v1403
        %v2042 = vunpack.c.h.b16 %v1403
        %v2043 = vunpack.c.l.b16 %v1404
        %v2044 = vunpack.c.h.b16 %v1404
        %v2045 = vunpack.c.l.b16 %v1405
        %v2046 = vunpack.c.h.b16 %v1405
        %v2047 = vunpack.c.l.b16 %v1406
        %v2048 = vunpack.c.h.b16 %v1406
        %v2049 = vunpack.c.l.b16 %v1407
        %v2050 = vunpack.c.h.b16 %v1407
        %v2051 = vunpack.c.l.b16 %v1408
        %v2052 = vunpack.c.h.b16 %v1408
        %v2053 = vunpack.c.l.b16 %v1409
        %v2054 = vunpack.c.h.b16 %v1409
        %v2055 = vunpack.c.l.b16 %v1410
        %v2056 = vunpack.c.h.b16 %v1410
        %v2057 = vunpack.c.l.b16 %v1411
        %v2058 = vunpack.c.h.b16 %v1411
        %v2059 = vunpack.c.l.b16 %v1412
        %v2060 = vunpack.c.h.b16 %v1412
        %v2061 = vunpack.c.l.b16 %v1413
        %v2062 = vunpack.c.h.b16 %v1413
        %v2063 = vunpack.c.l.b16 %v1414
        %v2064 = vunpack.c.h.b16 %v1414
        %v2065 = vunpack.c.l.b16 %v1415
        %v2066 = vunpack.c.h.b16 %v1415
        %v2067 = vunpack.c.l.b16 %v1416
        %v2068 = vunpack.c.h.b16 %v1416
        %v2069 = vunpack.c.l.b16 %v1417
        %v2070 = vunpack.c.h.b16 %v1417
        %v2071 = vunpack.c.l.b16 %v1418
        %v2072 = vunpack.c.h.b16 %v1418
        %v2073 = vunpack.c.l.b16 %v1419
        %v2074 = vunpack.c.h.b16 %v1419
        %v2075 = vunpack.c.l.b16 %v1420
        %v2076 = vunpack.c.h.b16 %v1420
        %v2077 = vunpack.c.l.b16 %v1421
        %v2078 = vunpack.c.h.b16 %v1421
        %v2079 = vunpack.c.l.b16 %v1422
        %v2080 = vunpack.c.h.b16 %v1422
        %v2081 = vunpack.c.l.b16 %v1423
        %v2082 = vunpack.c.h.b16 %v1423
        %v2083 = vunpack.c.l.b16 %v1424
        %v2084 = vunpack.c.h.b16 %v1424
        %v2085 = vunpack.c.l.b16 %v1425
        %v2086 = vunpack.c.h.b16 %v1425
        %v2087 = vunpack.c.l.b16 %v1426
        %v2088 = vunpack.c.h.b16 %v1426
        %v2089 = vunpack.c.l.b16 %v1427
        %v2090 = vunpack.c.h.b16 %v1427
        %v2091 = vunpack.c.l.b16 %v1428
        %v2092 = vunpack.c.h.b16 %v1428
        %v2093 = vunpack.c.l.b16 %v1429
        %v2094 = vunpack.c.h.b16 %v1429
        %v2095 = vunpack.c.l.b16 %v1430
        %v2096 = vunpack.c.h.b16 %v1430
        %v2097 = vunpack.c.l.b16 %v1431
        %v2098 = vunpack.c.h.b16 %v1431
        %v2099 = vunpack.c.l.b16 %v1432
        %v2100 = vunpack.c.h.b16 %v1432
        %v2101 = vunpack.c.l.b16 %v1433
        %v2102 = vunpack.c.h.b16 %v1433
        %v2103 = vunpack.c.l.b16 %v1434
        %v2104 = vunpack.c.h.b16 %v1434
        %v2105 = vunpack.c.l.b16 %v1435
        %v2106 = vunpack.c.h.b16 %v1435
        %v2107 = vunpack.c.l.b16 %v1436
        %v2108 = vunpack.c.h.b16 %v1436
        %v2109 = vunpack.c.l.b16 %v1437
        %v2110 = vunpack.c.h.b16 %v1437
        %v2111 = vunpack.c.l.b16 %v1438
        %v2112 = vunpack.c.h.b16 %v1438
        %v2113 = vunpack.c.l.b16 %v1439
        %v2114 = vunpack.c.h.b16 %v1439
        %v2115 = vunpack.c.l.b16 %v1440
        %v2116 = vunpack.c.h.b16 %v1440
        %v2117 = vunpack.c.l.b16 %v1441
        %v2118 = vunpack.c.h.b16 %v1441
        %v2119 = vunpack.c.l.b16 %v1442
        %v2120 = vunpack.c.h.b16 %v1442
        %v2121 = vunpack.c.l.b16 %v1443
        %v2122 = vunpack.c.h.b16 %v1443
        %v2123 = vunpack.c.l.b16 %v1444
        %v2124 = vunpack.c.h.b16 %v1444
        %v2125 = vunpack.c.l.b16 %v1445
        %v2126 = vunpack.c.h.b16 %v1445
        %v2127 = vunpack.c.l.b16 %v1446
        %v2128 = vunpack.c.h.b16 %v1446
        %v2129 = vunpack.c.l.b16 %v1447
        %v2130 = vunpack.c.h.b16 %v1447
        %v2131 = vunpack.c.l.b16 %v1448
        %v2132 = vunpack.c.h.b16 %v1448
        %v2133 = vunpack.c.l.b16 %v1449
        %v2134 = vunpack.c.h.b16 %v1449
        %v2135 = vunpack.c.l.b16 %v1450
        %v2136 = vunpack.c.h.b16 %v1450
        %v2137 = vunpack.c.l.b16 %v1451
        %v2138 = vunpack.c.h.b16 %v1451
        %v2139 = vunpack.c.l.b16 %v1452
        %v2140 = vunpack.c.h.b16 %v1452
        %v2141 = vunpack.c.l.b16 %v1453
        %v2142 = vunpack.c.h.b16 %v1453
        %v2143 = vunpack.c.l.b16 %v1454
        %v2144 = vunpack.c.h.b16 %v1454
        %v2145 = vunpack.c.l.b16 %v1455
        %v2146 = vunpack.c.h.b16 %v1455
        %v2147 = vunpack.c.l.b16 %v1456
        %v2148 = vunpack.c.h.b16 %v1456
        %v2149 = vunpack.c.l.b16 %v1457
        %v2150 = vunpack.c.h.b16 %v1457
        %v2151 = vunpack.c.l.b16 %v1458
        %v2152 = vunpack.c.h.b16 %v1458
        %v2153 = vunpack.c.l.b16 %v1459
        %v2154 = vunpack.c.h.b16 %v1459
        %v2155 = vunpack.c.l.b16 %v1460
        %v2156 = vunpack.c.h.b16 %v1460
        %v2157 = vunpack.c.l.b16 %v1461
        %v2158 = vunpack.c.h.b16 %v1461
        %v2159 = vunpack.c.l.b16 %v1462
        %v2160 = vunpack.c.h.b16 %v1462
        %v2161 = vunpack.c.l.b16 %v1463
        %v2162 = vunpack.c.h.b16 %v1463
        %v2163 = vunpack.c.l.b16 %v1464
        %v2164 = vunpack.c.h.b16 %v1464
        %v2165 = vunpack.c.l.b16 %v1465
        %v2166 = vunpack.c.h.b16 %v1465
        %v2167 = vunpack.c.l.b16 %v1466
        %v2168 = vunpack.c.h.b16 %v1466
        %v2169 = vunpack.c.l.b16 %v1467
        %v2170 = vunpack.c.h.b16 %v1467
        %v2171 = vunpack.c.l.b16 %v1468
        %v2172 = vunpack.c.h.b16 %v1468
        %v2173 = vunpack.c.l.b16 %v1469
        %v2174 = vunpack.c.h.b16 %v1469
        %v2175 = vunpack.c.l.b16 %v1470
        %v2176 = vunpack.c.h.b16 %v1470
        %v2177 = vunpack.c.l.b16 %v1471
        %v2178 = vunpack.c.h.b16 %v1471
        %v2179 = vunpack.c.l.b16 %v1472
        %v2180 = vunpack.c.h.b16 %v1472
        %v2181 = vunpack.c.l.b16 %v1473
        %v2182 = vunpack.c.h.b16 %v1473
        %v2183 = vunpack.c.l.b16 %v1474
        %v2184 = vunpack.c.h.b16 %v1474
        %v2185 = vunpack.c.l.b16 %v1475
        %v2186 = vunpack.c.h.b16 %v1475
        %v2187 = vunpack.c.l.b16 %v1476
        %v2188 = vunpack.c.h.b16 %v1476
        %v2189 = vunpack.c.l.b16 %v1477
        %v2190 = vunpack.c.h.b16 %v1477
        %v2191 = vunpack.c.l.b16 %v1478
        %v2192 = vunpack.c.h.b16 %v1478
        %v2193 = vunpack.c.l.b16 %v1479
        %v2194 = vunpack.c.h.b16 %v1479
        %v2195 = vunpack.c.l.b16 %v1480
        %v2196 = vunpack.c.h.b16 %v1480
        %v2197 = vunpack.c.l.b16 %v1481
        %v2198 = vunpack.c.h.b16 %v1481
        %v2199 = vunpack.c.l.b16 %v1482
        %v2200 = vunpack.c.h.b16 %v1482
        %v2201 = vunpack.c.l.b16 %v1483
        %v2202 = vunpack.c.h.b16 %v1483
        %v2203 = vunpack.c.l.b16 %v1484
        %v2204 = vunpack.c.h.b16 %v1484
        %v2205 = vunpack.c.l.b16 %v1485
        %v2206 = vunpack.c.h.b16 %v1485
        %v2207 = vunpack.c.l.b16 %v1486
        %v2208 = vunpack.c.h.b16 %v1486
        %v2209 = vunpack.c.l.b16 %v1487
        %v2210 = vunpack.c.h.b16 %v1487
        %v2211 = vunpack.c.l.b16 %v1488
        %v2212 = vunpack.c.h.b16 %v1488
        %v2213 = vunpack.c.l.b16 %v1489
        %v2214 = vunpack.c.h.b16 %v1489
        %v2215 = vunpack.c.l.b16 %v1490
        %v2216 = vunpack.c.h.b16 %v1490
        %v2217 = vunpack.c.l.b16 %v1491
        %v2218 = vunpack.c.h.b16 %v1491
        %v2219 = vunpack.c.l.b16 %v1492
        %v2220 = vunpack.c.h.b16 %v1492
        %v2221 = vunpack.c.l.b16 %v1493
        %v2222 = vunpack.c.h.b16 %v1493
        %v2223 = vunpack.c.l.b16 %v1494
        %v2224 = vunpack.c.h.b16 %v1494
        %v2225 = vunpack.c.l.b16 %v1495
        %v2226 = vunpack.c.h.b16 %v1495
        %v2227 = vunpack.c.l.b16 %v1496
        %v2228 = vunpack.c.h.b16 %v1496
        %v2229 = vunpack.c.l.b16 %v1497
        %v2230 = vunpack.c.h.b16 %v1497
        %v2231 = vunpack.c.l.b16 %v1498
        %v2232 = vunpack.c.h.b16 %v1498
        %v2233 = vunpack.c.l.b16 %v1499
        %v2234 = vunpack.c.h.b16 %v1499
        %v2235 = vunpack.c.l.b16 %v1500
        %v2236 = vunpack.c.h.b16 %v1500
        %v2237 = vunpack.c.l.b16 %v1501
        %v2238 = vunpack.c.h.b16 %v1501
        %v2239 = vunpack.c.l.b16 %v1502
        %v2240 = vunpack.c.h.b16 %v1502
        %v2241 = vunpack.c.l.b16 %v1503
        %v2242 = vunpack.c.h.b16 %v1503
        %v2243 = vunpack.c.l.b16 %v1504
        %v2244 = vunpack.c.h.b16 %v1504
        %v2245 = vunpack.c.l.b16 %v1505
        %v2246 = vunpack.c.h.b16 %v1505
        %v2247 = vunpack.c.l.b16 %v1506
        %v2248 = vunpack.c.h.b16 %v1506
        %v2249 = vunpack.c.l.b16 %v1507
        %v2250 = vunpack.c.h.b16 %v1507
        %v2251 = vunpack.c.l.b16 %v1508
        %v2252 = vunpack.c.h.b16 %v1508
        %v2253 = vunpack.c.l.b16 %v1509
        %v2254 = vunpack.c.h.b16 %v1509
        %v2255 = vunpack.c.l.b16 %v1510
        %v2256 = vunpack.c.h.b16 %v1510
        %v2257 = vunpack.c.l.b16 %v1511
        %v2258 = vunpack.c.h.b16 %v1511
        %v2259 = vunpack.c.l.b16 %v1512
        %v2260 = vunpack.c.h.b16 %v1512
        %v2261 = vunpack.c.l.b16 %v1513
        %v2262 = vunpack.c.h.b16 %v1513
        %v2263 = vunpack.c.l.b16 %v1514
        %v2264 = vunpack.c.h.b16 %v1514
        %v2265 = vunpack.c.l.b16 %v1515
        %v2266 = vunpack.c.h.b16 %v1515
        %v2267 = vunpack.c.l.b16 %v1516
        %v2268 = vunpack.c.h.b16 %v1516
        %v2269 = vunpack.c.l.b16 %v1517
        %v2270 = vunpack.c.h.b16 %v1517
        %v2271 = vunpack.c.l.b16 %v1518
        %v2272 = vunpack.c.h.b16 %v1518
        %v2273 = vunpack.c.l.b16 %v1519
        %v2274 = vunpack.c.h.b16 %v1519
        %v2275 = vunpack.c.l.b16 %v1520
        %v2276 = vunpack.c.h.b16 %v1520
        %v2277 = vunpack.c.l.b16 %v1521
        %v2278 = vunpack.c.h.b16 %v1521
        %v2279 = vunpack.c.l.b16 %v1522
        %v2280 = vunpack.c.h.b16 %v1522
        %v2281 = vunpack.c.l.b16 %v1523
        %v2282 = vunpack.c.h.b16 %v1523
        %v2283 = vunpack.c.l.b16 %v1524
        %v2284 = vunpack.c.h.b16 %v1524
        %v2285 = vunpack.c.l.b16 %v1525
        %v2286 = vunpack.c.h.b16 %v1525
        %v2287 = vunpack.c.l.b16 %v1526
        %v2288 = vunpack.c.h.b16 %v1526
        %v2289 = vunpack.c.l.b16 %v1527
        %v2290 = vunpack.c.h.b16 %v1527
        %v2291 = vunpack.c.l.b16 %v1528
        %v2292 = vunpack.c.h.b16 %v1528
        %v2293 = vunpack.c.l.b16 %v1529
        %v2294 = vunpack.c.h.b16 %v1529
        %v2295 = vunpack.c.l.b16 %v1530
        %v2296 = vunpack.c.h.b16 %v1530
        %v2297 = vunpack.c.l.b16 %v1531
        %v2298 = vunpack.c.h.b16 %v1531
        %v2299 = vunpack.c.l.b16 %v1532
        %v2300 = vunpack.c.h.b16 %v1532
        %v2301 = vunpack.c.l.b16 %v1533
        %v2302 = vunpack.c.h.b16 %v1533
        %v2303 = vunpack.c.l.b16 %v1534
        %v2304 = vunpack.c.h.b16 %v1534
        %v2305 = vunpack.c.l.b16 %v1535
        %v2306 = vunpack.c.h.b16 %v1535
        %v2307 = vunpack.c.l.b16 %v1536
        %v2308 = vunpack.c.h.b16 %v1536
        %v2309 = vunpack.c.l.b16 %v1537
        %v2310 = vunpack.c.h.b16 %v1537
        %v2311 = vunpack.c.l.b16 %v1538
        %v2312 = vunpack.c.h.b16 %v1538
        %v2313 = vunpack.c.l.b16 %v1539
        %v2314 = vunpack.c.h.b16 %v1539
        %v2315 = vunpack.c.l.b16 %v1540
        %v2316 = vunpack.c.h.b16 %v1540
        %v2317 = vunpack.c.l.b16 %v1541
        %v2318 = vunpack.c.h.b16 %v1541
        %v2319 = vunpack.c.l.b16 %v1542
        %v2320 = vunpack.c.h.b16 %v1542
        %v2321 = vunpack.c.l.b16 %v1543
        %v2322 = vunpack.c.h.b16 %v1543
        %v2323 = vunpack.c.l.b16 %v1544
        %v2324 = vunpack.c.h.b16 %v1544
        %v2325 = vunpack.c.l.b16 %v1545
        %v2326 = vunpack.c.h.b16 %v1545
        %v2327 = vunpack.c.l.b16 %v1546
        %v2328 = vunpack.c.h.b16 %v1546
        %v2329 = vunpack.c.l.b16 %v1547
        %v2330 = vunpack.c.h.b16 %v1547
        %v2331 = vunpack.c.l.b16 %v1548
        %v2332 = vunpack.c.h.b16 %v1548
        %v2333 = vunpack.c.l.b16 %v1549
        %v2334 = vunpack.c.h.b16 %v1549
        %v2335 = vunpack.c.l.b16 %v1550
        %v2336 = vunpack.c.h.b16 %v1550
        %v2337 = vunpack.c.l.b16 %v1551
        %v2338 = vunpack.c.h.b16 %v1551
        %v2339 = vunpack.c.l.b16 %v1552
        %v2340 = vunpack.c.h.b16 %v1552
        %v2341 = vunpack.c.l.b16 %v1553
        %v2342 = vunpack.c.h.b16 %v1553
        %v2343 = vunpack.c.l.b16 %v1554
        %v2344 = vunpack.c.h.b16 %v1554
        %v2345 = vunpack.c.l.b16 %v1555
        %v2346 = vunpack.c.h.b16 %v1555
        %v2347 = vunpack.c.l.b16 %v1556
        %v2348 = vunpack.c.h.b16 %v1556
        %v2349 = vunpack.c.l.b16 %v1557
        %v2350 = vunpack.c.h.b16 %v1557
        %v2351 = vunpack.c.l.b16 %v1558
        %v2352 = vunpack.c.h.b16 %v1558
        %v2353 = vunpack.c.l.b16 %v1559
        %v2354 = vunpack.c.h.b16 %v1559
        %v2355 = vunpack.c.l.b16 %v1560
        %v2356 = vunpack.c.h.b16 %v1560
        %v2357 = vunpack.c.l.b16 %v1561
        %v2358 = vunpack.c.h.b16 %v1561
        %v2359 = vunpack.c.l.b16 %v1562
        %v2360 = vunpack.c.h.b16 %v1562
        %v2361 = vunpack.c.l.b16 %v1563
        %v2362 = vunpack.c.h.b16 %v1563
        %v2363 = vunpack.c.l.b16 %v1564
        %v2364 = vunpack.c.h.b16 %v1564
        %v2365 = vunpack.c.l.b16 %v1565
        %v2366 = vunpack.c.h.b16 %v1565
        %v2367 = vunpack.c.l.b16 %v1566
        %v2368 = vunpack.c.h.b16 %v1566
        %v2369 = vunpack.c.l.b16 %v1567
        %v2370 = vunpack.c.h.b16 %v1567
        %v2371 = vunpack.c.l.b16 %v1568
        %v2372 = vunpack.c.h.b16 %v1568
        %v2373 = vunpack.c.l.b16 %v1569
        %v2374 = vunpack.c.h.b16 %v1569
        %v2375 = vunpack.c.l.b16 %v1570
        %v2376 = vunpack.c.h.b16 %v1570
        %v2377 = vunpack.c.l.b16 %v1571
        %v2378 = vunpack.c.h.b16 %v1571
        %v2379 = vunpack.c.l.b16 %v1572
        %v2380 = vunpack.c.h.b16 %v1572
        %v2381 = vunpack.c.l.b16 %v1573
        %v2382 = vunpack.c.h.b16 %v1573
        %v2383 = vunpack.c.l.b16 %v1574
        %v2384 = vunpack.c.h.b16 %v1574
        %v2385 = vunpack.c.l.b16 %v1575
        %v2386 = vunpack.c.h.b16 %v1575
        %v2387 = vunpack.c.l.b16 %v1576
        %v2388 = vunpack.c.h.b16 %v1576
        %v2389 = vunpack.c.l.b16 %v1577
        %v2390 = vunpack.c.h.b16 %v1577
        %v2391 = vunpack.c.l.b16 %v1578
        %v2392 = vunpack.c.h.b16 %v1578
        %v2393 = vunpack.c.l.b16 %v1579
        %v2394 = vunpack.c.h.b16 %v1579
        %v2395 = vunpack.c.l.b16 %v1580
        %v2396 = vunpack.c.h.b16 %v1580
        %v2397 = vunpack.c.l.b16 %v1581
        %v2398 = vunpack.c.h.b16 %v1581
        %v2399 = vunpack.c.l.b16 %v1582
        %v2400 = vunpack.c.h.b16 %v1582
        %v2401 = vunpack.c.l.b16 %v1583
        %v2402 = vunpack.c.h.b16 %v1583
        %v2403 = vunpack.c.l.b16 %v1584
        %v2404 = vunpack.c.h.b16 %v1584
        %v2405 = vunpack.c.l.b16 %v1585
        %v2406 = vunpack.c.h.b16 %v1585
        %v2407 = vunpack.c.l.b16 %v1586
        %v2408 = vunpack.c.h.b16 %v1586
        %v2409 = vunpack.c.l.b16 %v1587
        %v2410 = vunpack.c.h.b16 %v1587
        %v2411 = vunpack.c.l.b16 %v1588
        %v2412 = vunpack.c.h.b16 %v1588
        %v2413 = vunpack.c.l.b16 %v1589
        %v2414 = vunpack.c.h.b16 %v1589
        %v2415 = vunpack.c.l.b16 %v1590
        %v2416 = vunpack.c.h.b16 %v1590
        %v2417 = vunpack.c.l.b16 %v1591
        %v2418 = vunpack.c.h.b16 %v1591
        %v2419 = vunpack.c.l.b16 %v1592
        %v2420 = vunpack.c.h.b16 %v1592
        %v2421 = vunpack.c.l.b16 %v1593
        %v2422 = vunpack.c.h.b16 %v1593
        %v2423 = vunpack.c.l.b16 %v1594
        %v2424 = vunpack.c.h.b16 %v1594
        %v2425 = vunpack.c.l.b16 %v1595
        %v2426 = vunpack.c.h.b16 %v1595
        %v2427 = vunpack.c.l.b16 %v1596
        %v2428 = vunpack.c.h.b16 %v1596
        %v2429 = vunpack.c.l.b16 %v1597
        %v2430 = vunpack.c.h.b16 %v1597
        %v2431 = vunpack.c.l.b16 %v1598
        %v2432 = vunpack.c.h.b16 %v1598
        %v2433 = vunpack.c.l.b16 %v1599
        %v2434 = vunpack.c.h.b16 %v1599
        %v2435 = vunpack.c.l.b16 %v1600
        %v2436 = vunpack.c.h.b16 %v1600
        %v2437 = vunpack.c.l.b16 %v1601
        %v2438 = vunpack.c.h.b16 %v1601
        %v2439 = vunpack.c.l.b16 %v1602
        %v2440 = vunpack.c.h.b16 %v1602
        %v2441 = vunpack.c.l.b16 %v1603
        %v2442 = vunpack.c.h.b16 %v1603
        %v2443 = vunpack.c.l.b16 %v1604
        %v2444 = vunpack.c.h.b16 %v1604
        %v2445 = vunpack.c.l.b16 %v1605
        %v2446 = vunpack.c.h.b16 %v1605
        %v2447 = vunpack.c.l.b16 %v1606
        %v2448 = vunpack.c.h.b16 %v1606
        %v2449 = vunpack.c.l.b16 %v1607
        %v2450 = vunpack.c.h.b16 %v1607
        %v2451 = vunpack.c.l.b16 %v1608
        %v2452 = vunpack.c.h.b16 %v1608
        %v2453 = vunpack.c.l.b16 %v1609
        %v2454 = vunpack.c.h.b16 %v1609
        %v2455 = vunpack.c.l.b16 %v1610
        %v2456 = vunpack.c.h.b16 %v1610
        %v2457 = vunpack.c.l.b16 %v1611
        %v2458 = vunpack.c.h.b16 %v1611
        %v2459 = vunpack.c.l.b16 %v1612
        %v2460 = vunpack.c.h.b16 %v1612
        %v2461 = vunpack.c.l.b16 %v1613
        %v2462 = vunpack.c.h.b16 %v1613
        %v2463 = vunpack.c.l.b16 %v1614
        %v2464 = vunpack.c.h.b16 %v1614
        %v2465 = vunpack.c.l.b16 %v1615
        %v2466 = vunpack.c.h.b16 %v1615
        %v2467 = vunpack.c.l.b16 %v1616
        %v2468 = vunpack.c.h.b16 %v1616
        %v2469 = vunpack.c.l.b16 %v1617
        %v2470 = vunpack.c.h.b16 %v1617
        %v2471 = vunpack.c.l.b16 %v1618
        %v2472 = vunpack.c.h.b16 %v1618
        %v2473 = vunpack.c.l.b16 %v1619
        %v2474 = vunpack.c.h.b16 %v1619
        %v2475 = vunpack.c.l.b16 %v1620
        %v2476 = vunpack.c.h.b16 %v1620
        %v2477 = vunpack.c.l.b16 %v1621
        %v2478 = vunpack.c.h.b16 %v1621
        %v2479 = vunpack.c.l.b16 %v1622
        %v2480 = vunpack.c.h.b16 %v1622
        %v2481 = vunpack.c.l.b16 %v1623
        %v2482 = vunpack.c.h.b16 %v1623
        %v2483 = vunpack.c.l.b16 %v1624
        %v2484 = vunpack.c.h.b16 %v1624
        %v2485 = vunpack.c.l.b16 %v1625
        %v2486 = vunpack.c.h.b16 %v1625
        %v2487 = vunpack.c.l.b16 %v1626
        %v2488 = vunpack.c.h.b16 %v1626
        %v2489 = vunpack.c.l.b16 %v1627
        %v2490 = vunpack.c.h.b16 %v1627
        %v2491 = vunpack.c.l.b16 %v1628
        %v2492 = vunpack.c.h.b16 %v1628
        %v2493 = vunpack.c.l.b16 %v1629
        %v2494 = vunpack.c.h.b16 %v1629
        %v2495 = vunpack.c.l.b16 %v1630
        %v2496 = vunpack.c.h.b16 %v1630
        %v2497 = vunpack.c.l.b16 %v1631
        %v2498 = vunpack.c.h.b16 %v1631
        %v2499 = vunpack.c.l.b16 %v1632
        %v2500 = vunpack.c.h.b16 %v1632
        %v2501 = vunpack.c.l.b16 %v1633
        %v2502 = vunpack.c.h.b16 %v1633
        %v2503 = vunpack.c.l.b16 %v1634
        %v2504 = vunpack.c.h.b16 %v1634
        %v2505 = vunpack.c.l.b16 %v1635
        %v2506 = vunpack.c.h.b16 %v1635
        %v2507 = vunpack.c.l.b16 %v1636
        %v2508 = vunpack.c.h.b16 %v1636
        %v2509 = vunpack.c.l.b16 %v1637
        %v2510 = vunpack.c.h.b16 %v1637
        %v2511 = vunpack.c.l.b16 %v1638
        %v2512 = vunpack.c.h.b16 %v1638
        %v2513 = vunpack.c.l.b16 %v1639
        %v2514 = vunpack.c.h.b16 %v1639
        %v2515 = vunpack.c.l.b16 %v1640
        %v2516 = vunpack.c.h.b16 %v1640
        %v2517 = vunpack.c.l.b16 %v1641
        %v2518 = vunpack.c.h.b16 %v1641
        %v2519 = vunpack.c.l.b16 %v1642
        %v2520 = vunpack.c.h.b16 %v1642
        %v2521 = vunpack.c.l.b16 %v1643
        %v2522 = vunpack.c.h.b16 %v1643
        %v2523 = vunpack.c.l.b16 %v1644
        %v2524 = vunpack.c.h.b16 %v1644
        %v2525 = vunpack.c.l.b16 %v1645
        %v2526 = vunpack.c.h.b16 %v1645
        %v2527 = vunpack.c.l.b16 %v1646
        %v2528 = vunpack.c.h.b16 %v1646
        %v2529 = vunpack.c.l.b16 %v1647
        %v2530 = vunpack.c.h.b16 %v1647
        %v2531 = vunpack.c.l.b16 %v1648
        %v2532 = vunpack.c.h.b16 %v1648
        %v2533 = vunpack.c.l.b16 %v1649
        %v2534 = vunpack.c.h.b16 %v1649
        %v2535 = vunpack.c.l.b16 %v1650
        %v2536 = vunpack.c.h.b16 %v1650
        %v2537 = vunpack.c.l.b16 %v1651
        %v2538 = vunpack.c.h.b16 %v1651
        %v2539 = vunpack.c.l.b16 %v1652
        %v2540 = vunpack.c.h.b16 %v1652
        %v2541 = vunpack.c.l.b16 %v1653
        %v2542 = vunpack.c.h.b16 %v1653
        %v2543 = vunpack.c.l.b16 %v1654
        %v2544 = vunpack.c.h.b16 %v1654
        %v2545 = vunpack.c.l.b16 %v1655
        %v2546 = vunpack.c.h.b16 %v1655
        %v2547 = vunpack.c.l.b16 %v1656
        %v2548 = vunpack.c.h.b16 %v1656
        %v2549 = vunpack.c.l.b16 %v1657
        %v2550 = vunpack.c.h.b16 %v1657
        %v2551 = vunpack.c.l.b16 %v1658
        %v2552 = vunpack.c.h.b16 %v1658
        %v2553 = vunpack.c.l.b16 %v1659
        %v2554 = vunpack.c.h.b16 %v1659
        %v2555 = vunpack.c.l.b16 %v1660
        %v2556 = vunpack.c.h.b16 %v1660
        %v2557 = vunpack.c.l.b16 %v1661
        %v2558 = vunpack.c.h.b16 %v1661
        %v2559 = vunpack.c.l.b16 %v1662
        %v2560 = vunpack.c.h.b16 %v1662
        %v2561 = vunpack.c.l.b16 %v1663
        %v2562 = vunpack.c.h.b16 %v1663
        %v2563 = vunpack.c.l.b16 %v1664
        %v2564 = vunpack.c.h.b16 %v1664
        %v2565 = vpack.c.b16 %v2021, %v1989
        %v2566 = vpack.c.b16 %v2022, %v1990
        %v2567 = vpack.c.b16 %v2023, %v1991
        %v2568 = vpack.c.b16 %v2024, %v1992
        %v2569 = vpack.c.b16 %v2025, %v1993
        %v2570 = vpack.c.b16 %v2026, %v1994
        %v2571 = vpack.c.b16 %v2027, %v1995
        %v2572 = vpack.c.b16 %v2028, %v1996
        %v2573 = vpack.c.b16 %v2029, %v1997
        %v2574 = vpack.c.b16 %v2030, %v1998
        %v2575 = vpack.c.b16 %v2031, %v1999
        %v2576 = vpack.c.b16 %v2032, %v2000
        %v2577 = vpack.c.b16 %v2033, %v2001
        %v2578 = vpack.c.b16 %v2034, %v2002
        %v2579 = vpack.c.b16 %v2035, %v2003
        %v2580 = vpack.c.b16 %v2036, %v2004
        %v2581 = vpack.c.b16 %v2037, %v2005
        %v2582 = vpack.c.b16 %v2038, %v2006
        %v2583 = vpack.c.b16 %v2039, %v2007
        %v2584 = vpack.c.b16 %v2040, %v2008
        %v2585 = vpack.c.b16 %v2041, %v2009
        %v2586 = vpack.c.b16 %v2042, %v2010
        %v2587 = vpack.c.b16 %v2043, %v2011
        %v2588 = vpack.c.b16 %v2044, %v2012
        %v2589 = vpack.c.b16 %v2045, %v2013
        %v2590 = vpack.c.b16 %v2046, %v2014
        %v2591 = vpack.c.b16 %v2047, %v2015
        %v2592 = vpack.c.b16 %v2048, %v2016
        %v2593 = vpack.c.b16 %v2049, %v2017
        %v2594 = vpack.c.b16 %v2050, %v2018
        %v2595 = vpack.c.b16 %v2051, %v2019
        %v2596 = vpack.c.b16 %v2052, %v2020
        %v2597 = vpack.c.b16 %v2085, %v2053
        %v2598 = vpack.c.b16 %v2086, %v2054
        %v2599 = vpack.c.b16 %v2087, %v2055
        %v2600 = vpack.c.b16 %v2088, %v2056
        %v2601 = vpack.c.b16 %v2089, %v2057
        %v2602 = vpack.c.b16 %v2090, %v2058
        %v2603 = vpack.c.b16 %v2091, %v2059
        %v2604 = vpack.c.b16 %v2092, %v2060
        %v2605 = vpack.c.b16 %v2093, %v2061
        %v2606 = vpack.c.b16 %v2094, %v2062
        %v2607 = vpack.c.b16 %v2095, %v2063
        %v2608 = vpack.c.b16 %v2096, %v2064
        %v2609 = vpack.c.b16 %v2097, %v2065
        %v2610 = vpack.c.b16 %v2098, %v2066
        %v2611 = vpack.c.b16 %v2099, %v2067
        %v2612 = vpack.c.b16 %v2100, %v2068
        %v2613 = vpack.c.b16 %v2101, %v2069
        %v2614 = vpack.c.b16 %v2102, %v2070
        %v2615 = vpack.c.b16 %v2103, %v2071
        %v2616 = vpack.c.b16 %v2104, %v2072
        %v2617 = vpack.c.b16 %v2105, %v2073
        %v2618 = vpack.c.b16 %v2106, %v2074
        %v2619 = vpack.c.b16 %v2107, %v2075
        %v2620 = vpack.c.b16 %v2108, %v2076
        %v2621 = vpack.c.b16 %v2109, %v2077
        %v2622 = vpack.c.b16 %v2110, %v2078
        %v2623 = vpack.c.b16 %v2111, %v2079
        %v2624 = vpack.c.b16 %v2112, %v2080
        %v2625 = vpack.c.b16 %v2113, %v2081
        %v2626 = vpack.c.b16 %v2114, %v2082
        %v2627 = vpack.c.b16 %v2115, %v2083
        %v2628 = vpack.c.b16 %v2116, %v2084
        %v2629 = vpack.c.b16 %v2149, %v2117
        %v2630 = vpack.c.b16 %v2150, %v2118
        %v2631 = vpack.c.b16 %v2151, %v2119
        %v2632 = vpack.c.b16 %v2152, %v2120
        %v2633 = vpack.c.b16 %v2153, %v2121
        %v2634 = vpack.c.b16 %v2154, %v2122
        %v2635 = vpack.c.b16 %v2155, %v2123
        %v2636 = vpack.c.b16 %v2156, %v2124
        %v2637 = vpack.c.b16 %v2157, %v2125
        %v2638 = vpack.c.b16 %v2158, %v2126
        %v2639 = vpack.c.b16 %v2159, %v2127
        %v2640 = vpack.c.b16 %v2160, %v2128
        %v2641 = vpack.c.b16 %v2161, %v2129
        %v2642 = vpack.c.b16 %v2162, %v2130
        %v2643 = vpack.c.b16 %v2163, %v2131
        %v2644 = vpack.c.b16 %v2164, %v2132
        %v2645 = vpack.c.b16 %v2165, %v2133
        %v2646 = vpack.c.b16 %v2166, %v2134
        %v2647 = vpack.c.b16 %v2167, %v2135
        %v2648 = vpack.c.b16 %v2168, %v2136
        %v2649 = vpack.c.b16 %v2169, %v2137
        %v2650 = vpack.c.b16 %v2170, %v2138
        %v2651 = vpack.c.b16 %v2171, %v2139
        %v2652 = vpack.c.b16 %v2172, %v2140
        %v2653 = vpack.c.b16 %v2173, %v2141
        %v2654 = vpack.c.b16 %v2174, %v2142
        %v2655 = vpack.c.b16 %v2175, %v2143
        %v2656 = vpack.c.b16 %v2176, %v2144
        %v2657 = vpack.c.b16 %v2177, %v2145
        %v2658 = vpack.c.b16 %v2178, %v2146
        %v2659 = vpack.c.b16 %v2179, %v2147
        %v2660 = vpack.c.b16 %v2180, %v2148
        %v2661 = vpack.c.b16 %v2213, %v2181
        %v2662 = vpack.c.b16 %v2214, %v2182
        %v2663 = vpack.c.b16 %v2215, %v2183
        %v2664 = vpack.c.b16 %v2216, %v2184
        %v2665 = vpack.c.b16 %v2217, %v2185
        %v2666 = vpack.c.b16 %v2218, %v2186
        %v2667 = vpack.c.b16 %v2219, %v2187
        %v2668 = vpack.c.b16 %v2220, %v2188
        %v2669 = vpack.c.b16 %v2221, %v2189
        %v2670 = vpack.c.b16 %v2222, %v2190
        %v2671 = vpack.c.b16 %v2223, %v2191
        %v2672 = vpack.c.b16 %v2224, %v2192
        %v2673 = vpack.c.b16 %v2225, %v2193
        %v2674 = vpack.c.b16 %v2226, %v2194
        %v2675 = vpack.c.b16 %v2227, %v2195
        %v2676 = vpack.c.b16 %v2228, %v2196
        %v2677 = vpack.c.b16 %v2229, %v2197
        %v2678 = vpack.c.b16 %v2230, %v2198
        %v2679 = vpack.c.b16 %v2231, %v2199
        %v2680 = vpack.c.b16 %v2232, %v2200
        %v2681 = vpack.c.b16 %v2233, %v2201
        %v2682 = vpack.c.b16 %v2234, %v2202
        %v2683 = vpack.c.b16 %v2235, %v2203
        %v2684 = vpack.c.b16 %v2236, %v2204
        %v2685 = vpack.c.b16 %v2237, %v2205
        %v2686 = vpack.c.b16 %v2238, %v2206
        %v2687 = vpack.c.b16 %v2239, %v2207
        %v2688 = vpack.c.b16 %v2240, %v2208
        %v2689 = vpack.c.b16 %v2241, %v2209
        %v2690 = vpack.c.b16 %v2242, %v2210
        %v2691 = vpack.c.b16 %v2243, %v2211
        %v2692 = vpack.c.b16 %v2244, %v2212
        %v2693 = vpack.c.b16 %v2277, %v2245
        %v2694 = vpack.c.b16 %v2278, %v2246
        %v2695 = vpack.c.b16 %v2279, %v2247
        %v2696 = vpack.c.b16 %v2280, %v2248
        %v2697 = vpack.c.b16 %v2281, %v2249
        %v2698 = vpack.c.b16 %v2282, %v2250
        %v2699 = vpack.c.b16 %v2283, %v2251
        %v2700 = vpack.c.b16 %v2284, %v2252
        %v2701 = vpack.c.b16 %v2285, %v2253
        %v2702 = vpack.c.b16 %v2286, %v2254
        %v2703 = vpack.c.b16 %v2287, %v2255
        %v2704 = vpack.c.b16 %v2288, %v2256
        %v2705 = vpack.c.b16 %v2289, %v2257
        %v2706 = vpack.c.b16 %v2290, %v2258
        %v2707 = vpack.c.b16 %v2291, %v2259
        %v2708 = vpack.c.b16 %v2292, %v2260
        %v2709 = vpack.c.b16 %v2293, %v2261
        %v2710 = vpack.c.b16 %v2294, %v2262
        %v2711 = vpack.c.b16 %v2295, %v2263
        %v2712 = vpack.c.b16 %v2296, %v2264
        %v2713 = vpack.c.b16 %v2297, %v2265
        %v2714 = vpack.c.b16 %v2298, %v2266
        %v2715 = vpack.c.b16 %v2299, %v2267
        %v2716 = vpack.c.b16 %v2300, %v2268
        %v2717 = vpack.c.b16 %v2301, %v2269
        %v2718 = vpack.c.b16 %v2302, %v2270
        %v2719 = vpack.c.b16 %v2303, %v2271
        %v2720 = vpack.c.b16 %v2304, %v2272
        %v2721 = vpack.c.b16 %v2305, %v2273
        %v2722 = vpack.c.b16 %v2306, %v2274
        %v2723 = vpack.c.b16 %v2307, %v2275
        %v2724 = vpack.c.b16 %v2308, %v2276
        %v2725 = vpack.c.b16 %v2341, %v2309
        %v2726 = vpack.c.b16 %v2342, %v2310
        %v2727 = vpack.c.b16 %v2343, %v2311
        %v2728 = vpack.c.b16 %v2344, %v2312
        %v2729 = vpack.c.b16 %v2345, %v2313
        %v2730 = vpack.c.b16 %v2346, %v2314
        %v2731 = vpack.c.b16 %v2347, %v2315
        %v2732 = vpack.c.b16 %v2348, %v2316
        %v2733 = vpack.c.b16 %v2349, %v2317
        %v2734 = vpack.c.b16 %v2350, %v2318
        %v2735 = vpack.c.b16 %v2351, %v2319
        %v2736 = vpack.c.b16 %v2352, %v2320
        %v2737 = vpack.c.b16 %v2353, %v2321
        %v2738 = vpack.c.b16 %v2354, %v2322
        %v2739 = vpack.c.b16 %v2355, %v2323
        %v2740 = vpack.c.b16 %v2356, %v2324
        %v2741 = vpack.c.b16 %v2357, %v2325
        %v2742 = vpack.c.b16 %v2358, %v2326
        %v2743 = vpack.c.b16 %v2359, %v2327
        %v2744 = vpack.c.b16 %v2360, %v2328
        %v2745 = vpack.c.b16 %v2361, %v2329
        %v2746 = vpack.c.b16 %v2362, %v2330
        %v2747 = vpack.c.b16 %v2363, %v2331
        %v2748 = vpack.c.b16 %v2364, %v2332
        %v2749 = vpack.c.b16 %v2365, %v2333
        %v2750 = vpack.c.b16 %v2366, %v2334
        %v2751 = vpack.c.b16 %v2367, %v2335
        %v2752 = vpack.c.b16 %v2368, %v2336
        %v2753 = vpack.c.b16 %v2369, %v2337
        %v2754 = vpack.c.b16 %v2370, %v2338
        %v2755 = vpack.c.b16 %v2371, %v2339
        %v2756 = vpack.c.b16 %v2372, %v2340
        %v2757 = vpack.c.b16 %v2405, %v2373
        %v2758 = vpack.c.b16 %v2406, %v2374
        %v2759 = vpack.c.b16 %v2407, %v2375
        %v2760 = vpack.c.b16 %v2408, %v2376
        %v2761 = vpack.c.b16 %v2409, %v2377
        %v2762 = vpack.c.b16 %v2410, %v2378
        %v2763 = vpack.c.b16 %v2411, %v2379
        %v2764 = vpack.c.b16 %v2412, %v2380
        %v2765 = vpack.c.b16 %v2413, %v2381
        %v2766 = vpack.c.b16 %v2414, %v2382
        %v2767 = vpack.c.b16 %v2415, %v2383
        %v2768 = vpack.c.b16 %v2416, %v2384
        %v2769 = vpack.c.b16 %v2417, %v2385
        %v2770 = vpack.c.b16 %v2418, %v2386
        %v2771 = vpack.c.b16 %v2419, %v2387
        %v2772 = vpack.c.b16 %v2420, %v2388
        %v2773 = vpack.c.b16 %v2421, %v2389
        %v2774 = vpack.c.b16 %v2422, %v2390
        %v2775 = vpack.c.b16 %v2423, %v2391
        %v2776 = vpack.c.b16 %v2424, %v2392
        %v2777 = vpack.c.b16 %v2425, %v2393
        %v2778 = vpack.c.b16 %v2426, %v2394
        %v2779 = vpack.c.b16 %v2427, %v2395
        %v2780 = vpack.c.b16 %v2428, %v2396
        %v2781 = vpack.c.b16 %v2429, %v2397
        %v2782 = vpack.c.b16 %v2430, %v2398
        %v2783 = vpack.c.b16 %v2431, %v2399
        %v2784 = vpack.c.b16 %v2432, %v2400
        %v2785 = vpack.c.b16 %v2433, %v2401
        %v2786 = vpack.c.b16 %v2434, %v2402
        %v2787 = vpack.c.b16 %v2435, %v2403
        %v2788 = vpack.c.b16 %v2436, %v2404
        %v2789 = vpack.c.b16 %v2469, %v2437
        %v2790 = vpack.c.b16 %v2470, %v2438
        %v2791 = vpack.c.b16 %v2471, %v2439
        %v2792 = vpack.c.b16 %v2472, %v2440
        %v2793 = vpack.c.b16 %v2473, %v2441
        %v2794 = vpack.c.b16 %v2474, %v2442
        %v2795 = vpack.c.b16 %v2475, %v2443
        %v2796 = vpack.c.b16 %v2476, %v2444
        %v2797 = vpack.c.b16 %v2477, %v2445
        %v2798 = vpack.c.b16 %v2478, %v2446
        %v2799 = vpack.c.b16 %v2479, %v2447
        %v2800 = vpack.c.b16 %v2480, %v2448
        %v2801 = vpack.c.b16 %v2481, %v2449
        %v2802 = vpack.c.b16 %v2482, %v2450
        %v2803 = vpack.c.b16 %v2483, %v2451
        %v2804 = vpack.c.b16 %v2484, %v2452
        %v2805 = vpack.c.b16 %v2485, %v2453
        %v2806 = vpack.c.b16 %v2486, %v2454
        %v2807 = vpack.c.b16 %v2487, %v2455
        %v2808 = vpack.c.b16 %v2488, %v2456
        %v2809 = vpack.c.b16 %v2489, %v2457
        %v2810 = vpack.c.b16 %v2490, %v2458
        %v2811 = vpack.c.b16 %v2491, %v2459
        %v2812 = vpack.c.b16 %v2492, %v2460
        %v2813 = vpack.c.b16 %v2493, %v2461
        %v2814 = vpack.c.b16 %v2494, %v2462
        %v2815 = vpack.c.b16 %v2495, %v2463
        %v2816 = vpack.c.b16 %v2496, %v2464
        %v2817 = vpack.c.b16 %v2497, %v2465
        %v2818 = vpack.c.b16 %v2498, %v2466
        %v2819 = vpack.c.b16 %v2499, %v2467
        %v2820 = vpack.c.b16 %v2500, %v2468
        %v2821 = vpack.c.b16 %v2533, %v2501
        %v2822 = vpack.c.b16 %v2534, %v2502
        %v2823 = vpack.c.b16 %v2535, %v2503
        %v2824 = vpack.c.b16 %v2536, %v2504
        %v2825 = vpack.c.b16 %v2537, %v2505
        %v2826 = vpack.c.b16 %v2538, %v2506
        %v2827 = vpack.c.b16 %v2539, %v2507
        %v2828 = vpack.c.b16 %v2540, %v2508
        %v2829 = vpack.c.b16 %v2541, %v2509
        %v2830 = vpack.c.b16 %v2542, %v2510
        %v2831 = vpack.c.b16 %v2543, %v2511
        %v2832 = vpack.c.b16 %v2544, %v2512
        %v2833 = vpack.c.b16 %v2545, %v2513
        %v2834 = vpack.c.b16 %v2546, %v2514
        %v2835 = vpack.c.b16 %v2547, %v2515
        %v2836 = vpack.c.b16 %v2548, %v2516
        %v2837 = vpack.c.b16 %v2549, %v2517
        %v2838 = vpack.c.b16 %v2550, %v2518
        %v2839 = vpack.c.b16 %v2551, %v2519
        %v2840 = vpack.c.b16 %v2552, %v2520
        %v2841 = vpack.c.b16 %v2553, %v2521
        %v2842 = vpack.c.b16 %v2554, %v2522
        %v2843 = vpack.c.b16 %v2555, %v2523
        %v2844 = vpack.c.b16 %v2556, %v2524
        %v2845 = vpack.c.b16 %v2557, %v2525
        %v2846 = vpack.c.b16 %v2558, %v2526
        %v2847 = vpack.c.b16 %v2559, %v2527
        %v2848 = vpack.c.b16 %v2560, %v2528
        %v2849 = vpack.c.b16 %v2561, %v2529
        %v2850 = vpack.c.b16 %v2562, %v2530
        %v2851 = vpack.c.b16 %v2563, %v2531
        %v2852 = vpack.c.b16 %v2564, %v2532
        %vm3141 = vcmask 130048
        %v3143 = vsel %vm3141, %v1690, 0
        %v3146 = vsel %vm3141, %v1692, 0
        %v3149 = vsel %vm3141, %v1694, 0
        %v3152 = vsel %vm3141, %v1696, 0
        %3154 = vmatprep.subr.bf16.mxu0 %v2790
        %3155 = vmatpush1.bf16.msra.mxu0 %v2789
        %3156 = vmatprep.subr.bf16.mxu0 %v2758
        %3157 = vmatpush1.bf16.msra.mxu0 %v2757
        %3158 = vmatprep.subr.bf16.mxu0 %v2726
        %3159 = vmatpush1.bf16.msra.mxu0 %v2725
        %3160 = vmatprep.subr.bf16.mxu0 %v2694
        %3161 = vmatpush1.bf16.msra.mxu0 %v2693
        %3162 = vmatprep.subr.bf16.mxu0 %v2662
        %3163 = vmatpush1.bf16.msra.mxu0 %v2661
        %3164 = vmatprep.subr.bf16.mxu0 %v2630
        %3165 = vmatpush1.bf16.msra.mxu0 %v2629
        %3166 = vmatprep.subr.bf16.mxu0 %v2598
        %3167 = vmatpush1.bf16.msra.mxu0 %v2597
        %3168 = vmatprep.subr.bf16.mxu0 %v2566
        %3169 = vmatpush1.bf16.msra.mxu0 %v2565
        %3170 = vmatprep.subr.bf16.mxu0 0
        %3171 = vmatpush2.bf16.msra.mxu0 0
        %3172 = vmatprep.subr.bf16.mxu0 0
        %3173 = vmatpush2.bf16.msra.mxu0 0
        %3174 = vmatprep.subr.bf16.mxu0 0
        %3175 = vmatpush2.bf16.msra.mxu0 0
        %3176 = vmatprep.subr.bf16.mxu0 0
        %3177 = vmatpush2.bf16.msra.mxu0 0
        %3178 = vmatprep.subr.bf16.mxu0 0
        %3179 = vmatpush2.bf16.msra.mxu0 0
        %3180 = vmatprep.subr.bf16.mxu0 0
        %3181 = vmatpush2.bf16.msra.mxu0 0
        %3182 = vmatprep.subr.bf16.mxu0 0
        %3183 = vmatpush2.bf16.msra.mxu0 0
        %3184 = vmatprep.subr.bf16.mxu0 %v2822
        %3185 = vmatpush2.bf16.msra.mxu0 %v2821
        %3186 = vmatprep.mubr.bf16.mxu0 %v3143
        %3187 = vmatmul.mubr.bf16.gmra.mxu0 %v1689
        %v3188 = vpop.f32.mrf.mxu0
        %v3189 = vadd.f32 0.0, %v3188
        %v3190 = vpop.f32.mrf.mxu0
        %v3191 = vadd.f32 0.0, %v3190
        %v3192 = vpop.f32.mrf.mxu0
        %v3193 = vadd.f32 0.0, %v3192
        %v3194 = vpop.f32.mrf.mxu0
        %v3195 = vadd.f32 0.0, %v3194
        %3196 = vmatprep.mubr.bf16.mxu0 %v3146
        %3197 = vmatmul.mubr.bf16.gmra.mxu0 %v1691
        %v3198 = vpop.f32.mrf.mxu0
        %v3199 = vadd.f32 0.0, %v3198
        %v3200 = vpop.f32.mrf.mxu0
        %v3201 = vadd.f32 0.0, %v3200
        %v3202 = vpop.f32.mrf.mxu0
        %v3203 = vadd.f32 0.0, %v3202
        %v3204 = vpop.f32.mrf.mxu0
        %v3205 = vadd.f32 0.0, %v3204
        %3206 = vmatprep.mubr.bf16.mxu0 %v3149
        %3207 = vmatmul.mubr.bf16.gmra.mxu0 %v1693
        %v3208 = vpop.f32.mrf.mxu0
        %v3209 = vadd.f32 0.0, %v3208
        %v3210 = vpop.f32.mrf.mxu0
        %v3211 = vadd.f32 0.0, %v3210
        %v3212 = vpop.f32.mrf.mxu0
        %v3213 = vadd.f32 0.0, %v3212
        %v3214 = vpop.f32.mrf.mxu0
        %v3215 = vadd.f32 0.0, %v3214
        %3216 = vmatprep.mubr.bf16.mxu0 %v3152
        %3217 = vmatmul.mubr.bf16.gmra.mxu0 %v1695
        %v3218 = vpop.f32.mrf.mxu0
        %v3219 = vadd.f32 0.0, %v3218
        %v3220 = vpop.f32.mrf.mxu0
        %v3221 = vadd.f32 0.0, %v3220
        %v3222 = vpop.f32.mrf.mxu0
        %v3223 = vadd.f32 0.0, %v3222
        %v3224 = vpop.f32.mrf.mxu0
        %v3225 = vadd.f32 0.0, %v3224
        %3226 = vdwg.mxu0
        %3227 = vmatprep.subr.bf16.mxu0 %v2792
        %3228 = vmatpush1.bf16.msra.mxu0 %v2791
        %3229 = vmatprep.subr.bf16.mxu0 %v2760
        %3230 = vmatpush1.bf16.msra.mxu0 %v2759
        %3231 = vmatprep.subr.bf16.mxu0 %v2728
        %3232 = vmatpush1.bf16.msra.mxu0 %v2727
        %3233 = vmatprep.subr.bf16.mxu0 %v2696
        %3234 = vmatpush1.bf16.msra.mxu0 %v2695
        %3235 = vmatprep.subr.bf16.mxu0 %v2664
        %3236 = vmatpush1.bf16.msra.mxu0 %v2663
        %3237 = vmatprep.subr.bf16.mxu0 %v2632
        %3238 = vmatpush1.bf16.msra.mxu0 %v2631
        %3239 = vmatprep.subr.bf16.mxu0 %v2600
        %3240 = vmatpush1.bf16.msra.mxu0 %v2599
        %3241 = vmatprep.subr.bf16.mxu0 %v2568
        %3242 = vmatpush1.bf16.msra.mxu0 %v2567
        %3243 = vmatprep.subr.bf16.mxu0 0
        %3244 = vmatpush2.bf16.msra.mxu0 0
        %3245 = vmatprep.subr.bf16.mxu0 0
        %3246 = vmatpush2.bf16.msra.mxu0 0
        %3247 = vmatprep.subr.bf16.mxu0 0
        %3248 = vmatpush2.bf16.msra.mxu0 0
        %3249 = vmatprep.subr.bf16.mxu0 0
        %3250 = vmatpush2.bf16.msra.mxu0 0
        %3251 = vmatprep.subr.bf16.mxu0 0
        %3252 = vmatpush2.bf16.msra.mxu0 0
        %3253 = vmatprep.subr.bf16.mxu0 0
        %3254 = vmatpush2.bf16.msra.mxu0 0
        %3255 = vmatprep.subr.bf16.mxu0 0
        %3256 = vmatpush2.bf16.msra.mxu0 0
        %3257 = vmatprep.subr.bf16.mxu0 %v2824
        %3258 = vmatpush2.bf16.msra.mxu0 %v2823
        %3259 = vmatprep.mubr.bf16.mxu0 %v3143
        %3260 = vmatmul.mubr.bf16.gmra.mxu0 %v1689
        %v3261 = vpop.f32.mrf.mxu0
        %v3262 = vadd.f32 0.0, %v3261
        %v3263 = vpop.f32.mrf.mxu0
        %v3264 = vadd.f32 0.0, %v3263
        %v3265 = vpop.f32.mrf.mxu0
        %v3266 = vadd.f32 0.0, %v3265
        %v3267 = vpop.f32.mrf.mxu0
        %v3268 = vadd.f32 0.0, %v3267
        %3269 = vmatprep.mubr.bf16.mxu0 %v3146
        %3270 = vmatmul.mubr.bf16.gmra.mxu0 %v1691
        %v3271 = vpop.f32.mrf.mxu0
        %v3272 = vadd.f32 0.0, %v3271
        %v3273 = vpop.f32.mrf.mxu0
        %v3274 = vadd.f32 0.0, %v3273
        %v3275 = vpop.f32.mrf.mxu0
        %v3276 = vadd.f32 0.0, %v3275
        %v3277 = vpop.f32.mrf.mxu0
        %v3278 = vadd.f32 0.0, %v3277
        %3279 = vmatprep.mubr.bf16.mxu0 %v3149
        %3280 = vmatmul.mubr.bf16.gmra.mxu0 %v1693
        %v3281 = vpop.f32.mrf.mxu0
        %v3282 = vadd.f32 0.0, %v3281
        %v3283 = vpop.f32.mrf.mxu0
        %v3284 = vadd.f32 0.0, %v3283
        %v3285 = vpop.f32.mrf.mxu0
        %v3286 = vadd.f32 0.0, %v3285
        %v3287 = vpop.f32.mrf.mxu0
        %v3288 = vadd.f32 0.0, %v3287
        %3289 = vmatprep.mubr.bf16.mxu0 %v3152
        %3290 = vmatmul.mubr.bf16.gmra.mxu0 %v1695
        %v3291 = vpop.f32.mrf.mxu0
        %v3292 = vadd.f32 0.0, %v3291
        %v3293 = vpop.f32.mrf.mxu0
        %v3294 = vadd.f32 0.0, %v3293
        %v3295 = vpop.f32.mrf.mxu0
        %v3296 = vadd.f32 0.0, %v3295
        %v3297 = vpop.f32.mrf.mxu0
        %v3298 = vadd.f32 0.0, %v3297
        %3299 = vdwg.mxu0
        %3300 = vmatprep.subr.bf16.mxu0 %v2794
        %3301 = vmatpush1.bf16.msra.mxu0 %v2793
        %3302 = vmatprep.subr.bf16.mxu0 %v2762
        %3303 = vmatpush1.bf16.msra.mxu0 %v2761
        %3304 = vmatprep.subr.bf16.mxu0 %v2730
        %3305 = vmatpush1.bf16.msra.mxu0 %v2729
        %3306 = vmatprep.subr.bf16.mxu0 %v2698
        %3307 = vmatpush1.bf16.msra.mxu0 %v2697
        %3308 = vmatprep.subr.bf16.mxu0 %v2666
        %3309 = vmatpush1.bf16.msra.mxu0 %v2665
        %3310 = vmatprep.subr.bf16.mxu0 %v2634
        %3311 = vmatpush1.bf16.msra.mxu0 %v2633
        %3312 = vmatprep.subr.bf16.mxu0 %v2602
        %3313 = vmatpush1.bf16.msra.mxu0 %v2601
        %3314 = vmatprep.subr.bf16.mxu0 %v2570
        %3315 = vmatpush1.bf16.msra.mxu0 %v2569
        %3316 = vmatprep.subr.bf16.mxu0 0
        %3317 = vmatpush2.bf16.msra.mxu0 0
        %3318 = vmatprep.subr.bf16.mxu0 0
        %3319 = vmatpush2.bf16.msra.mxu0 0
        %3320 = vmatprep.subr.bf16.mxu0 0
        %3321 = vmatpush2.bf16.msra.mxu0 0
        %3322 = vmatprep.subr.bf16.mxu0 0
        %3323 = vmatpush2.bf16.msra.mxu0 0
        %3324 = vmatprep.subr.bf16.mxu0 0
        %3325 = vmatpush2.bf16.msra.mxu0 0
        %3326 = vmatprep.subr.bf16.mxu0 0
        %3327 = vmatpush2.bf16.msra.mxu0 0
        %3328 = vmatprep.subr.bf16.mxu0 0
        %3329 = vmatpush2.bf16.msra.mxu0 0
        %3330 = vmatprep.subr.bf16.mxu0 %v2826
        %3331 = vmatpush2.bf16.msra.mxu0 %v2825
        %3332 = vmatprep.mubr.bf16.mxu0 %v3143
        %3333 = vmatmul.mubr.bf16.gmra.mxu0 %v1689
        %v3334 = vpop.f32.mrf.mxu0
        %v3335 = vadd.f32 0.0, %v3334
        %v3336 = vpop.f32.mrf.mxu0
        %v3337 = vadd.f32 0.0, %v3336
        %v3338 = vpop.f32.mrf.mxu0
        %v3339 = vadd.f32 0.0, %v3338
        %v3340 = vpop.f32.mrf.mxu0
        %v3341 = vadd.f32 0.0, %v3340
        %3342 = vmatprep.mubr.bf16.mxu0 %v3146
        %3343 = vmatmul.mubr.bf16.gmra.mxu0 %v1691
        %v3344 = vpop.f32.mrf.mxu0
        %v3345 = vadd.f32 0.0, %v3344
        %v3346 = vpop.f32.mrf.mxu0
        %v3347 = vadd.f32 0.0, %v3346
        %v3348 = vpop.f32.mrf.mxu0
        %v3349 = vadd.f32 0.0, %v3348
        %v3350 = vpop.f32.mrf.mxu0
        %v3351 = vadd.f32 0.0, %v3350
        %3352 = vmatprep.mubr.bf16.mxu0 %v3149
        %3353 = vmatmul.mubr.bf16.gmra.mxu0 %v1693
        %v3354 = vpop.f32.mrf.mxu0
        %v3355 = vadd.f32 0.0, %v3354
        %v3356 = vpop.f32.mrf.mxu0
        %v3357 = vadd.f32 0.0, %v3356
        %v3358 = vpop.f32.mrf.mxu0
        %v3359 = vadd.f32 0.0, %v3358
        %v3360 = vpop.f32.mrf.mxu0
        %v3361 = vadd.f32 0.0, %v3360
        %3362 = vmatprep.mubr.bf16.mxu0 %v3152
        %3363 = vmatmul.mubr.bf16.gmra.mxu0 %v1695
        %v3364 = vpop.f32.mrf.mxu0
        %v3365 = vadd.f32 0.0, %v3364
        %v3366 = vpop.f32.mrf.mxu0
        %v3367 = vadd.f32 0.0, %v3366
        %v3368 = vpop.f32.mrf.mxu0
        %v3369 = vadd.f32 0.0, %v3368
        %v3370 = vpop.f32.mrf.mxu0
        %v3371 = vadd.f32 0.0, %v3370
        %3372 = vdwg.mxu0
        %3373 = vmatprep.subr.bf16.mxu0 %v2796
        %3374 = vmatpush1.bf16.msra.mxu0 %v2795
        %3375 = vmatprep.subr.bf16.mxu0 %v2764
        %3376 = vmatpush1.bf16.msra.mxu0 %v2763
        %3377 = vmatprep.subr.bf16.mxu0 %v2732
        %3378 = vmatpush1.bf16.msra.mxu0 %v2731
        %3379 = vmatprep.subr.bf16.mxu0 %v2700
        %3380 = vmatpush1.bf16.msra.mxu0 %v2699
        %3381 = vmatprep.subr.bf16.mxu0 %v2668
        %3382 = vmatpush1.bf16.msra.mxu0 %v2667
        %3383 = vmatprep.subr.bf16.mxu0 %v2636
        %3384 = vmatpush1.bf16.msra.mxu0 %v2635
        %3385 = vmatprep.subr.bf16.mxu0 %v2604
        %3386 = vmatpush1.bf16.msra.mxu0 %v2603
        %3387 = vmatprep.subr.bf16.mxu0 %v2572
        %3388 = vmatpush1.bf16.msra.mxu0 %v2571
        %3389 = vmatprep.subr.bf16.mxu0 0
        %3390 = vmatpush2.bf16.msra.mxu0 0
        %3391 = vmatprep.subr.bf16.mxu0 0
        %3392 = vmatpush2.bf16.msra.mxu0 0
        %3393 = vmatprep.subr.bf16.mxu0 0
        %3394 = vmatpush2.bf16.msra.mxu0 0
        %3395 = vmatprep.subr.bf16.mxu0 0
        %3396 = vmatpush2.bf16.msra.mxu0 0
        %3397 = vmatprep.subr.bf16.mxu0 0
        %3398 = vmatpush2.bf16.msra.mxu0 0
        %3399 = vmatprep.subr.bf16.mxu0 0
        %3400 = vmatpush2.bf16.msra.mxu0 0
        %3401 = vmatprep.subr.bf16.mxu0 0
        %3402 = vmatpush2.bf16.msra.mxu0 0
        %3403 = vmatprep.subr.bf16.mxu0 %v2828
        %3404 = vmatpush2.bf16.msra.mxu0 %v2827
        %3405 = vmatprep.mubr.bf16.mxu0 %v3143
        %3406 = vmatmul.mubr.bf16.gmra.mxu0 %v1689
        %v3407 = vpop.f32.mrf.mxu0
        %v3408 = vadd.f32 0.0, %v3407
        %v3409 = vpop.f32.mrf.mxu0
        %v3410 = vadd.f32 0.0, %v3409
        %v3411 = vpop.f32.mrf.mxu0
        %v3412 = vadd.f32 0.0, %v3411
        %v3413 = vpop.f32.mrf.mxu0
        %v3414 = vadd.f32 0.0, %v3413
        %3415 = vmatprep.mubr.bf16.mxu0 %v3146
        %3416 = vmatmul.mubr.bf16.gmra.mxu0 %v1691
        %v3417 = vpop.f32.mrf.mxu0
        %v3418 = vadd.f32 0.0, %v3417
        %v3419 = vpop.f32.mrf.mxu0
        %v3420 = vadd.f32 0.0, %v3419
        %v3421 = vpop.f32.mrf.mxu0
        %v3422 = vadd.f32 0.0, %v3421
        %v3423 = vpop.f32.mrf.mxu0
        %v3424 = vadd.f32 0.0, %v3423
        %3425 = vmatprep.mubr.bf16.mxu0 %v3149
        %3426 = vmatmul.mubr.bf16.gmra.mxu0 %v1693
        %v3427 = vpop.f32.mrf.mxu0
        %v3428 = vadd.f32 0.0, %v3427
        %v3429 = vpop.f32.mrf.mxu0
        %v3430 = vadd.f32 0.0, %v3429
        %v3431 = vpop.f32.mrf.mxu0
        %v3432 = vadd.f32 0.0, %v3431
        %v3433 = vpop.f32.mrf.mxu0
        %v3434 = vadd.f32 0.0, %v3433
        %3435 = vmatprep.mubr.bf16.mxu0 %v3152
        %3436 = vmatmul.mubr.bf16.gmra.mxu0 %v1695
        %v3437 = vpop.f32.mrf.mxu0
        %v3438 = vadd.f32 0.0, %v3437
        %v3439 = vpop.f32.mrf.mxu0
        %v3440 = vadd.f32 0.0, %v3439
        %v3441 = vpop.f32.mrf.mxu0
        %v3442 = vadd.f32 0.0, %v3441
        %v3443 = vpop.f32.mrf.mxu0
        %v3444 = vadd.f32 0.0, %v3443
        %3445 = vdwg.mxu0
        %3446 = vmatprep.subr.bf16.mxu0 %v2798
        %3447 = vmatpush1.bf16.msra.mxu0 %v2797
        %3448 = vmatprep.subr.bf16.mxu0 %v2766
        %3449 = vmatpush1.bf16.msra.mxu0 %v2765
        %3450 = vmatprep.subr.bf16.mxu0 %v2734
        %3451 = vmatpush1.bf16.msra.mxu0 %v2733
        %3452 = vmatprep.subr.bf16.mxu0 %v2702
        %3453 = vmatpush1.bf16.msra.mxu0 %v2701
        %3454 = vmatprep.subr.bf16.mxu0 %v2670
        %3455 = vmatpush1.bf16.msra.mxu0 %v2669
        %3456 = vmatprep.subr.bf16.mxu0 %v2638
        %3457 = vmatpush1.bf16.msra.mxu0 %v2637
        %3458 = vmatprep.subr.bf16.mxu0 %v2606
        %3459 = vmatpush1.bf16.msra.mxu0 %v2605
        %3460 = vmatprep.subr.bf16.mxu0 %v2574
        %3461 = vmatpush1.bf16.msra.mxu0 %v2573
        %3462 = vmatprep.subr.bf16.mxu0 0
        %3463 = vmatpush2.bf16.msra.mxu0 0
        %3464 = vmatprep.subr.bf16.mxu0 0
        %3465 = vmatpush2.bf16.msra.mxu0 0
        %3466 = vmatprep.subr.bf16.mxu0 0
        %3467 = vmatpush2.bf16.msra.mxu0 0
        %3468 = vmatprep.subr.bf16.mxu0 0
        %3469 = vmatpush2.bf16.msra.mxu0 0
        %3470 = vmatprep.subr.bf16.mxu0 0
        %3471 = vmatpush2.bf16.msra.mxu0 0
        %3472 = vmatprep.subr.bf16.mxu0 0
        %3473 = vmatpush2.bf16.msra.mxu0 0
        %3474 = vmatprep.subr.bf16.mxu0 0
        %3475 = vmatpush2.bf16.msra.mxu0 0
        %3476 = vmatprep.subr.bf16.mxu0 %v2830
        %3477 = vmatpush2.bf16.msra.mxu0 %v2829
        %3478 = vmatprep.mubr.bf16.mxu0 %v3143
        %3479 = vmatmul.mubr.bf16.gmra.mxu0 %v1689
        %v3480 = vpop.f32.mrf.mxu0
        %v3481 = vadd.f32 0.0, %v3480
        %v3482 = vpop.f32.mrf.mxu0
        %v3483 = vadd.f32 0.0, %v3482
        %v3484 = vpop.f32.mrf.mxu0
        %v3485 = vadd.f32 0.0, %v3484
        %v3486 = vpop.f32.mrf.mxu0
        %v3487 = vadd.f32 0.0, %v3486
        %3488 = vmatprep.mubr.bf16.mxu0 %v3146
        %3489 = vmatmul.mubr.bf16.gmra.mxu0 %v1691
        %v3490 = vpop.f32.mrf.mxu0
        %v3491 = vadd.f32 0.0, %v3490
        %v3492 = vpop.f32.mrf.mxu0
        %v3493 = vadd.f32 0.0, %v3492
        %v3494 = vpop.f32.mrf.mxu0
        %v3495 = vadd.f32 0.0, %v3494
        %v3496 = vpop.f32.mrf.mxu0
        %v3497 = vadd.f32 0.0, %v3496
        %3498 = vmatprep.mubr.bf16.mxu0 %v3149
        %3499 = vmatmul.mubr.bf16.gmra.mxu0 %v1693
        %v3500 = vpop.f32.mrf.mxu0
        %v3501 = vadd.f32 0.0, %v3500
        %v3502 = vpop.f32.mrf.mxu0
        %v3503 = vadd.f32 0.0, %v3502
        %v3504 = vpop.f32.mrf.mxu0
        %v3505 = vadd.f32 0.0, %v3504
        %v3506 = vpop.f32.mrf.mxu0
        %v3507 = vadd.f32 0.0, %v3506
        %3508 = vmatprep.mubr.bf16.mxu0 %v3152
        %3509 = vmatmul.mubr.bf16.gmra.mxu0 %v1695
        %v3510 = vpop.f32.mrf.mxu0
        %v3511 = vadd.f32 0.0, %v3510
        %v3512 = vpop.f32.mrf.mxu0
        %v3513 = vadd.f32 0.0, %v3512
        %v3514 = vpop.f32.mrf.mxu0
        %v3515 = vadd.f32 0.0, %v3514
        %v3516 = vpop.f32.mrf.mxu0
        %v3517 = vadd.f32 0.0, %v3516
        %3518 = vdwg.mxu0
        %3519 = vmatprep.subr.bf16.mxu0 %v2800
        %3520 = vmatpush1.bf16.msra.mxu0 %v2799
        %3521 = vmatprep.subr.bf16.mxu0 %v2768
        %3522 = vmatpush1.bf16.msra.mxu0 %v2767
        %3523 = vmatprep.subr.bf16.mxu0 %v2736
        %3524 = vmatpush1.bf16.msra.mxu0 %v2735
        %3525 = vmatprep.subr.bf16.mxu0 %v2704
        %3526 = vmatpush1.bf16.msra.mxu0 %v2703
        %3527 = vmatprep.subr.bf16.mxu0 %v2672
        %3528 = vmatpush1.bf16.msra.mxu0 %v2671
        %3529 = vmatprep.subr.bf16.mxu0 %v2640
        %3530 = vmatpush1.bf16.msra.mxu0 %v2639
        %3531 = vmatprep.subr.bf16.mxu0 %v2608
        %3532 = vmatpush1.bf16.msra.mxu0 %v2607
        %3533 = vmatprep.subr.bf16.mxu0 %v2576
        %3534 = vmatpush1.bf16.msra.mxu0 %v2575
        %3535 = vmatprep.subr.bf16.mxu0 0
        %3536 = vmatpush2.bf16.msra.mxu0 0
        %3537 = vmatprep.subr.bf16.mxu0 0
        %3538 = vmatpush2.bf16.msra.mxu0 0
        %3539 = vmatprep.subr.bf16.mxu0 0
        %3540 = vmatpush2.bf16.msra.mxu0 0
        %3541 = vmatprep.subr.bf16.mxu0 0
        %3542 = vmatpush2.bf16.msra.mxu0 0
        %3543 = vmatprep.subr.bf16.mxu0 0
        %3544 = vmatpush2.bf16.msra.mxu0 0
        %3545 = vmatprep.subr.bf16.mxu0 0
        %3546 = vmatpush2.bf16.msra.mxu0 0
        %3547 = vmatprep.subr.bf16.mxu0 0
        %3548 = vmatpush2.bf16.msra.mxu0 0
        %3549 = vmatprep.subr.bf16.mxu0 %v2832
        %3550 = vmatpush2.bf16.msra.mxu0 %v2831
        %3551 = vmatprep.mubr.bf16.mxu0 %v3143
        %3552 = vmatmul.mubr.bf16.gmra.mxu0 %v1689
        %v3553 = vpop.f32.mrf.mxu0
        %v3554 = vadd.f32 0.0, %v3553
        %v3555 = vpop.f32.mrf.mxu0
        %v3556 = vadd.f32 0.0, %v3555
        %v3557 = vpop.f32.mrf.mxu0
        %v3558 = vadd.f32 0.0, %v3557
        %v3559 = vpop.f32.mrf.mxu0
        %v3560 = vadd.f32 0.0, %v3559
        %3561 = vmatprep.mubr.bf16.mxu0 %v3146
        %3562 = vmatmul.mubr.bf16.gmra.mxu0 %v1691
        %v3563 = vpop.f32.mrf.mxu0
        %v3564 = vadd.f32 0.0, %v3563
        %v3565 = vpop.f32.mrf.mxu0
        %v3566 = vadd.f32 0.0, %v3565
        %v3567 = vpop.f32.mrf.mxu0
        %v3568 = vadd.f32 0.0, %v3567
        %v3569 = vpop.f32.mrf.mxu0
        %v3570 = vadd.f32 0.0, %v3569
        %3571 = vmatprep.mubr.bf16.mxu0 %v3149
        %3572 = vmatmul.mubr.bf16.gmra.mxu0 %v1693
        %v3573 = vpop.f32.mrf.mxu0
        %v3574 = vadd.f32 0.0, %v3573
        %v3575 = vpop.f32.mrf.mxu0
        %v3576 = vadd.f32 0.0, %v3575
        %v3577 = vpop.f32.mrf.mxu0
        %v3578 = vadd.f32 0.0, %v3577
        %v3579 = vpop.f32.mrf.mxu0
        %v3580 = vadd.f32 0.0, %v3579
        %3581 = vmatprep.mubr.bf16.mxu0 %v3152
        %3582 = vmatmul.mubr.bf16.gmra.mxu0 %v1695
        %v3583 = vpop.f32.mrf.mxu0
        %v3584 = vadd.f32 0.0, %v3583
        %v3585 = vpop.f32.mrf.mxu0
        %v3586 = vadd.f32 0.0, %v3585
        %v3587 = vpop.f32.mrf.mxu0
        %v3588 = vadd.f32 0.0, %v3587
        %v3589 = vpop.f32.mrf.mxu0
        %v3590 = vadd.f32 0.0, %v3589
        %3591 = vdwg.mxu0
        %3592 = vmatprep.subr.bf16.mxu0 %v2802
        %3593 = vmatpush1.bf16.msra.mxu0 %v2801
        %3594 = vmatprep.subr.bf16.mxu0 %v2770
        %3595 = vmatpush1.bf16.msra.mxu0 %v2769
        %3596 = vmatprep.subr.bf16.mxu0 %v2738
        %3597 = vmatpush1.bf16.msra.mxu0 %v2737
        %3598 = vmatprep.subr.bf16.mxu0 %v2706
        %3599 = vmatpush1.bf16.msra.mxu0 %v2705
        %3600 = vmatprep.subr.bf16.mxu0 %v2674
        %3601 = vmatpush1.bf16.msra.mxu0 %v2673
        %3602 = vmatprep.subr.bf16.mxu0 %v2642
        %3603 = vmatpush1.bf16.msra.mxu0 %v2641
        %3604 = vmatprep.subr.bf16.mxu0 %v2610
        %3605 = vmatpush1.bf16.msra.mxu0 %v2609
        %3606 = vmatprep.subr.bf16.mxu0 %v2578
        %3607 = vmatpush1.bf16.msra.mxu0 %v2577
        %3608 = vmatprep.subr.bf16.mxu0 0
        %3609 = vmatpush2.bf16.msra.mxu0 0
        %3610 = vmatprep.subr.bf16.mxu0 0
        %3611 = vmatpush2.bf16.msra.mxu0 0
        %3612 = vmatprep.subr.bf16.mxu0 0
        %3613 = vmatpush2.bf16.msra.mxu0 0
        %3614 = vmatprep.subr.bf16.mxu0 0
        %3615 = vmatpush2.bf16.msra.mxu0 0
        %3616 = vmatprep.subr.bf16.mxu0 0
        %3617 = vmatpush2.bf16.msra.mxu0 0
        %3618 = vmatprep.subr.bf16.mxu0 0
        %3619 = vmatpush2.bf16.msra.mxu0 0
        %3620 = vmatprep.subr.bf16.mxu0 0
        %3621 = vmatpush2.bf16.msra.mxu0 0
        %3622 = vmatprep.subr.bf16.mxu0 %v2834
        %3623 = vmatpush2.bf16.msra.mxu0 %v2833
        %3624 = vmatprep.mubr.bf16.mxu0 %v3143
        %3625 = vmatmul.mubr.bf16.gmra.mxu0 %v1689
        %v3626 = vpop.f32.mrf.mxu0
        %v3627 = vadd.f32 0.0, %v3626
        %v3628 = vpop.f32.mrf.mxu0
        %v3629 = vadd.f32 0.0, %v3628
        %v3630 = vpop.f32.mrf.mxu0
        %v3631 = vadd.f32 0.0, %v3630
        %v3632 = vpop.f32.mrf.mxu0
        %v3633 = vadd.f32 0.0, %v3632
        %3634 = vmatprep.mubr.bf16.mxu0 %v3146
        %3635 = vmatmul.mubr.bf16.gmra.mxu0 %v1691
        %v3636 = vpop.f32.mrf.mxu0
        %v3637 = vadd.f32 0.0, %v3636
        %v3638 = vpop.f32.mrf.mxu0
        %v3639 = vadd.f32 0.0, %v3638
        %v3640 = vpop.f32.mrf.mxu0
        %v3641 = vadd.f32 0.0, %v3640
        %v3642 = vpop.f32.mrf.mxu0
        %v3643 = vadd.f32 0.0, %v3642
        %3644 = vmatprep.mubr.bf16.mxu0 %v3149
        %3645 = vmatmul.mubr.bf16.gmra.mxu0 %v1693
        %v3646 = vpop.f32.mrf.mxu0
        %v3647 = vadd.f32 0.0, %v3646
        %v3648 = vpop.f32.mrf.mxu0
        %v3649 = vadd.f32 0.0, %v3648
        %v3650 = vpop.f32.mrf.mxu0
        %v3651 = vadd.f32 0.0, %v3650
        %v3652 = vpop.f32.mrf.mxu0
        %v3653 = vadd.f32 0.0, %v3652
        %3654 = vmatprep.mubr.bf16.mxu0 %v3152
        %3655 = vmatmul.mubr.bf16.gmra.mxu0 %v1695
        %v3656 = vpop.f32.mrf.mxu0
        %v3657 = vadd.f32 0.0, %v3656
        %v3658 = vpop.f32.mrf.mxu0
        %v3659 = vadd.f32 0.0, %v3658
        %v3660 = vpop.f32.mrf.mxu0
        %v3661 = vadd.f32 0.0, %v3660
        %v3662 = vpop.f32.mrf.mxu0
        %v3663 = vadd.f32 0.0, %v3662
        %3664 = vdwg.mxu0
        %3665 = vmatprep.subr.bf16.mxu0 %v2804
        %3666 = vmatpush1.bf16.msra.mxu0 %v2803
        %3667 = vmatprep.subr.bf16.mxu0 %v2772
        %3668 = vmatpush1.bf16.msra.mxu0 %v2771
        %3669 = vmatprep.subr.bf16.mxu0 %v2740
        %3670 = vmatpush1.bf16.msra.mxu0 %v2739
        %3671 = vmatprep.subr.bf16.mxu0 %v2708
        %3672 = vmatpush1.bf16.msra.mxu0 %v2707
        %3673 = vmatprep.subr.bf16.mxu0 %v2676
        %3674 = vmatpush1.bf16.msra.mxu0 %v2675
        %3675 = vmatprep.subr.bf16.mxu0 %v2644
        %3676 = vmatpush1.bf16.msra.mxu0 %v2643
        %3677 = vmatprep.subr.bf16.mxu0 %v2612
        %3678 = vmatpush1.bf16.msra.mxu0 %v2611
        %3679 = vmatprep.subr.bf16.mxu0 %v2580
        %3680 = vmatpush1.bf16.msra.mxu0 %v2579
        %3681 = vmatprep.subr.bf16.mxu0 0
        %3682 = vmatpush2.bf16.msra.mxu0 0
        %3683 = vmatprep.subr.bf16.mxu0 0
        %3684 = vmatpush2.bf16.msra.mxu0 0
        %3685 = vmatprep.subr.bf16.mxu0 0
        %3686 = vmatpush2.bf16.msra.mxu0 0
        %3687 = vmatprep.subr.bf16.mxu0 0
        %3688 = vmatpush2.bf16.msra.mxu0 0
        %3689 = vmatprep.subr.bf16.mxu0 0
        %3690 = vmatpush2.bf16.msra.mxu0 0
        %3691 = vmatprep.subr.bf16.mxu0 0
        %3692 = vmatpush2.bf16.msra.mxu0 0
        %3693 = vmatprep.subr.bf16.mxu0 0
        %3694 = vmatpush2.bf16.msra.mxu0 0
        %3695 = vmatprep.subr.bf16.mxu0 %v2836
        %3696 = vmatpush2.bf16.msra.mxu0 %v2835
        %3697 = vmatprep.mubr.bf16.mxu0 %v3143
        %3698 = vmatmul.mubr.bf16.gmra.mxu0 %v1689
        %v3699 = vpop.f32.mrf.mxu0
        %v3700 = vadd.f32 0.0, %v3699
        %v3701 = vpop.f32.mrf.mxu0
        %v3702 = vadd.f32 0.0, %v3701
        %v3703 = vpop.f32.mrf.mxu0
        %v3704 = vadd.f32 0.0, %v3703
        %v3705 = vpop.f32.mrf.mxu0
        %v3706 = vadd.f32 0.0, %v3705
        %3707 = vmatprep.mubr.bf16.mxu0 %v3146
        %3708 = vmatmul.mubr.bf16.gmra.mxu0 %v1691
        %v3709 = vpop.f32.mrf.mxu0
        %v3710 = vadd.f32 0.0, %v3709
        %v3711 = vpop.f32.mrf.mxu0
        %v3712 = vadd.f32 0.0, %v3711
        %v3713 = vpop.f32.mrf.mxu0
        %v3714 = vadd.f32 0.0, %v3713
        %v3715 = vpop.f32.mrf.mxu0
        %v3716 = vadd.f32 0.0, %v3715
        %3717 = vmatprep.mubr.bf16.mxu0 %v3149
        %3718 = vmatmul.mubr.bf16.gmra.mxu0 %v1693
        %v3719 = vpop.f32.mrf.mxu0
        %v3720 = vadd.f32 0.0, %v3719
        %v3721 = vpop.f32.mrf.mxu0
        %v3722 = vadd.f32 0.0, %v3721
        %v3723 = vpop.f32.mrf.mxu0
        %v3724 = vadd.f32 0.0, %v3723
        %v3725 = vpop.f32.mrf.mxu0
        %v3726 = vadd.f32 0.0, %v3725
        %3727 = vmatprep.mubr.bf16.mxu0 %v3152
        %3728 = vmatmul.mubr.bf16.gmra.mxu0 %v1695
        %v3729 = vpop.f32.mrf.mxu0
        %v3730 = vadd.f32 0.0, %v3729
        %v3731 = vpop.f32.mrf.mxu0
        %v3732 = vadd.f32 0.0, %v3731
        %v3733 = vpop.f32.mrf.mxu0
        %v3734 = vadd.f32 0.0, %v3733
        %v3735 = vpop.f32.mrf.mxu0
        %v3736 = vadd.f32 0.0, %v3735
        %3737 = vdwg.mxu0
        %3738 = vmatprep.subr.bf16.mxu0 %v2806
        %3739 = vmatpush1.bf16.msra.mxu0 %v2805
        %3740 = vmatprep.subr.bf16.mxu0 %v2774
        %3741 = vmatpush1.bf16.msra.mxu0 %v2773
        %3742 = vmatprep.subr.bf16.mxu0 %v2742
        %3743 = vmatpush1.bf16.msra.mxu0 %v2741
        %3744 = vmatprep.subr.bf16.mxu0 %v2710
        %3745 = vmatpush1.bf16.msra.mxu0 %v2709
        %3746 = vmatprep.subr.bf16.mxu0 %v2678
        %3747 = vmatpush1.bf16.msra.mxu0 %v2677
        %3748 = vmatprep.subr.bf16.mxu0 %v2646
        %3749 = vmatpush1.bf16.msra.mxu0 %v2645
        %3750 = vmatprep.subr.bf16.mxu0 %v2614
        %3751 = vmatpush1.bf16.msra.mxu0 %v2613
        %3752 = vmatprep.subr.bf16.mxu0 %v2582
        %3753 = vmatpush1.bf16.msra.mxu0 %v2581
        %3754 = vmatprep.subr.bf16.mxu0 0
        %3755 = vmatpush2.bf16.msra.mxu0 0
        %3756 = vmatprep.subr.bf16.mxu0 0
        %3757 = vmatpush2.bf16.msra.mxu0 0
        %3758 = vmatprep.subr.bf16.mxu0 0
        %3759 = vmatpush2.bf16.msra.mxu0 0
        %3760 = vmatprep.subr.bf16.mxu0 0
        %3761 = vmatpush2.bf16.msra.mxu0 0
        %3762 = vmatprep.subr.bf16.mxu0 0
        %3763 = vmatpush2.bf16.msra.mxu0 0
        %3764 = vmatprep.subr.bf16.mxu0 0
        %3765 = vmatpush2.bf16.msra.mxu0 0
        %3766 = vmatprep.subr.bf16.mxu0 0
        %3767 = vmatpush2.bf16.msra.mxu0 0
        %3768 = vmatprep.subr.bf16.mxu0 %v2838
        %3769 = vmatpush2.bf16.msra.mxu0 %v2837
        %3770 = vmatprep.mubr.bf16.mxu0 %v3143
        %3771 = vmatmul.mubr.bf16.gmra.mxu0 %v1689
        %v3772 = vpop.f32.mrf.mxu0
        %v3773 = vadd.f32 0.0, %v3772
        %v3774 = vpop.f32.mrf.mxu0
        %v3775 = vadd.f32 0.0, %v3774
        %v3776 = vpop.f32.mrf.mxu0
        %v3777 = vadd.f32 0.0, %v3776
        %v3778 = vpop.f32.mrf.mxu0
        %v3779 = vadd.f32 0.0, %v3778
        %3780 = vmatprep.mubr.bf16.mxu0 %v3146
        %3781 = vmatmul.mubr.bf16.gmra.mxu0 %v1691
        %v3782 = vpop.f32.mrf.mxu0
        %v3783 = vadd.f32 0.0, %v3782
        %v3784 = vpop.f32.mrf.mxu0
        %v3785 = vadd.f32 0.0, %v3784
        %v3786 = vpop.f32.mrf.mxu0
        %v3787 = vadd.f32 0.0, %v3786
        %v3788 = vpop.f32.mrf.mxu0
        %v3789 = vadd.f32 0.0, %v3788
        %3790 = vmatprep.mubr.bf16.mxu0 %v3149
        %3791 = vmatmul.mubr.bf16.gmra.mxu0 %v1693
        %v3792 = vpop.f32.mrf.mxu0
        %v3793 = vadd.f32 0.0, %v3792
        %v3794 = vpop.f32.mrf.mxu0
        %v3795 = vadd.f32 0.0, %v3794
        %v3796 = vpop.f32.mrf.mxu0
        %v3797 = vadd.f32 0.0, %v3796
        %v3798 = vpop.f32.mrf.mxu0
        %v3799 = vadd.f32 0.0, %v3798
        %3800 = vmatprep.mubr.bf16.mxu0 %v3152
        %3801 = vmatmul.mubr.bf16.gmra.mxu0 %v1695
        %v3802 = vpop.f32.mrf.mxu0
        %v3803 = vadd.f32 0.0, %v3802
        %v3804 = vpop.f32.mrf.mxu0
        %v3805 = vadd.f32 0.0, %v3804
        %v3806 = vpop.f32.mrf.mxu0
        %v3807 = vadd.f32 0.0, %v3806
        %v3808 = vpop.f32.mrf.mxu0
        %v3809 = vadd.f32 0.0, %v3808
        %3810 = vdwg.mxu0
        %3811 = vmatprep.subr.bf16.mxu0 %v2808
        %3812 = vmatpush1.bf16.msra.mxu0 %v2807
        %3813 = vmatprep.subr.bf16.mxu0 %v2776
        %3814 = vmatpush1.bf16.msra.mxu0 %v2775
        %3815 = vmatprep.subr.bf16.mxu0 %v2744
        %3816 = vmatpush1.bf16.msra.mxu0 %v2743
        %3817 = vmatprep.subr.bf16.mxu0 %v2712
        %3818 = vmatpush1.bf16.msra.mxu0 %v2711
        %3819 = vmatprep.subr.bf16.mxu0 %v2680
        %3820 = vmatpush1.bf16.msra.mxu0 %v2679
        %3821 = vmatprep.subr.bf16.mxu0 %v2648
        %3822 = vmatpush1.bf16.msra.mxu0 %v2647
        %3823 = vmatprep.subr.bf16.mxu0 %v2616
        %3824 = vmatpush1.bf16.msra.mxu0 %v2615
        %3825 = vmatprep.subr.bf16.mxu0 %v2584
        %3826 = vmatpush1.bf16.msra.mxu0 %v2583
        %3827 = vmatprep.subr.bf16.mxu0 0
        %3828 = vmatpush2.bf16.msra.mxu0 0
        %3829 = vmatprep.subr.bf16.mxu0 0
        %3830 = vmatpush2.bf16.msra.mxu0 0
        %3831 = vmatprep.subr.bf16.mxu0 0
        %3832 = vmatpush2.bf16.msra.mxu0 0
        %3833 = vmatprep.subr.bf16.mxu0 0
        %3834 = vmatpush2.bf16.msra.mxu0 0
        %3835 = vmatprep.subr.bf16.mxu0 0
        %3836 = vmatpush2.bf16.msra.mxu0 0
        %3837 = vmatprep.subr.bf16.mxu0 0
        %3838 = vmatpush2.bf16.msra.mxu0 0
        %3839 = vmatprep.subr.bf16.mxu0 0
        %3840 = vmatpush2.bf16.msra.mxu0 0
        %3841 = vmatprep.subr.bf16.mxu0 %v2840
        %3842 = vmatpush2.bf16.msra.mxu0 %v2839
        %3843 = vmatprep.mubr.bf16.mxu0 %v3143
        %3844 = vmatmul.mubr.bf16.gmra.mxu0 %v1689
        %v3845 = vpop.f32.mrf.mxu0
        %v3846 = vadd.f32 0.0, %v3845
        %v3847 = vpop.f32.mrf.mxu0
        %v3848 = vadd.f32 0.0, %v3847
        %v3849 = vpop.f32.mrf.mxu0
        %v3850 = vadd.f32 0.0, %v3849
        %v3851 = vpop.f32.mrf.mxu0
        %v3852 = vadd.f32 0.0, %v3851
        %3853 = vmatprep.mubr.bf16.mxu0 %v3146
        %3854 = vmatmul.mubr.bf16.gmra.mxu0 %v1691
        %v3855 = vpop.f32.mrf.mxu0
        %v3856 = vadd.f32 0.0, %v3855
        %v3857 = vpop.f32.mrf.mxu0
        %v3858 = vadd.f32 0.0, %v3857
        %v3859 = vpop.f32.mrf.mxu0
        %v3860 = vadd.f32 0.0, %v3859
        %v3861 = vpop.f32.mrf.mxu0
        %v3862 = vadd.f32 0.0, %v3861
        %3863 = vmatprep.mubr.bf16.mxu0 %v3149
        %3864 = vmatmul.mubr.bf16.gmra.mxu0 %v1693
        %v3865 = vpop.f32.mrf.mxu0
        %v3866 = vadd.f32 0.0, %v3865
        %v3867 = vpop.f32.mrf.mxu0
        %v3868 = vadd.f32 0.0, %v3867
        %v3869 = vpop.f32.mrf.mxu0
        %v3870 = vadd.f32 0.0, %v3869
        %v3871 = vpop.f32.mrf.mxu0
        %v3872 = vadd.f32 0.0, %v3871
        %3873 = vmatprep.mubr.bf16.mxu0 %v3152
        %3874 = vmatmul.mubr.bf16.gmra.mxu0 %v1695
        %v3875 = vpop.f32.mrf.mxu0
        %v3876 = vadd.f32 0.0, %v3875
        %v3877 = vpop.f32.mrf.mxu0
        %v3878 = vadd.f32 0.0, %v3877
        %v3879 = vpop.f32.mrf.mxu0
        %v3880 = vadd.f32 0.0, %v3879
        %v3881 = vpop.f32.mrf.mxu0
        %v3882 = vadd.f32 0.0, %v3881
        %3883 = vdwg.mxu0
        %3884 = vmatprep.subr.bf16.mxu0 %v2810
        %3885 = vmatpush1.bf16.msra.mxu0 %v2809
        %3886 = vmatprep.subr.bf16.mxu0 %v2778
        %3887 = vmatpush1.bf16.msra.mxu0 %v2777
        %3888 = vmatprep.subr.bf16.mxu0 %v2746
        %3889 = vmatpush1.bf16.msra.mxu0 %v2745
        %3890 = vmatprep.subr.bf16.mxu0 %v2714
        %3891 = vmatpush1.bf16.msra.mxu0 %v2713
        %3892 = vmatprep.subr.bf16.mxu0 %v2682
        %3893 = vmatpush1.bf16.msra.mxu0 %v2681
        %3894 = vmatprep.subr.bf16.mxu0 %v2650
        %3895 = vmatpush1.bf16.msra.mxu0 %v2649
        %3896 = vmatprep.subr.bf16.mxu0 %v2618
        %3897 = vmatpush1.bf16.msra.mxu0 %v2617
        %3898 = vmatprep.subr.bf16.mxu0 %v2586
        %3899 = vmatpush1.bf16.msra.mxu0 %v2585
        %3900 = vmatprep.subr.bf16.mxu0 0
        %3901 = vmatpush2.bf16.msra.mxu0 0
        %3902 = vmatprep.subr.bf16.mxu0 0
        %3903 = vmatpush2.bf16.msra.mxu0 0
        %3904 = vmatprep.subr.bf16.mxu0 0
        %3905 = vmatpush2.bf16.msra.mxu0 0
        %3906 = vmatprep.subr.bf16.mxu0 0
        %3907 = vmatpush2.bf16.msra.mxu0 0
        %3908 = vmatprep.subr.bf16.mxu0 0
        %3909 = vmatpush2.bf16.msra.mxu0 0
        %3910 = vmatprep.subr.bf16.mxu0 0
        %3911 = vmatpush2.bf16.msra.mxu0 0
        %3912 = vmatprep.subr.bf16.mxu0 0
        %3913 = vmatpush2.bf16.msra.mxu0 0
        %3914 = vmatprep.subr.bf16.mxu0 %v2842
        %3915 = vmatpush2.bf16.msra.mxu0 %v2841
        %3916 = vmatprep.mubr.bf16.mxu0 %v3143
        %3917 = vmatmul.mubr.bf16.gmra.mxu0 %v1689
        %v3918 = vpop.f32.mrf.mxu0
        %v3919 = vadd.f32 0.0, %v3918
        %v3920 = vpop.f32.mrf.mxu0
        %v3921 = vadd.f32 0.0, %v3920
        %v3922 = vpop.f32.mrf.mxu0
        %v3923 = vadd.f32 0.0, %v3922
        %v3924 = vpop.f32.mrf.mxu0
        %v3925 = vadd.f32 0.0, %v3924
        %3926 = vmatprep.mubr.bf16.mxu0 %v3146
        %3927 = vmatmul.mubr.bf16.gmra.mxu0 %v1691
        %v3928 = vpop.f32.mrf.mxu0
        %v3929 = vadd.f32 0.0, %v3928
        %v3930 = vpop.f32.mrf.mxu0
        %v3931 = vadd.f32 0.0, %v3930
        %v3932 = vpop.f32.mrf.mxu0
        %v3933 = vadd.f32 0.0, %v3932
        %v3934 = vpop.f32.mrf.mxu0
        %v3935 = vadd.f32 0.0, %v3934
        %3936 = vmatprep.mubr.bf16.mxu0 %v3149
        %3937 = vmatmul.mubr.bf16.gmra.mxu0 %v1693
        %v3938 = vpop.f32.mrf.mxu0
        %v3939 = vadd.f32 0.0, %v3938
        %v3940 = vpop.f32.mrf.mxu0
        %v3941 = vadd.f32 0.0, %v3940
        %v3942 = vpop.f32.mrf.mxu0
        %v3943 = vadd.f32 0.0, %v3942
        %v3944 = vpop.f32.mrf.mxu0
        %v3945 = vadd.f32 0.0, %v3944
        %3946 = vmatprep.mubr.bf16.mxu0 %v3152
        %3947 = vmatmul.mubr.bf16.gmra.mxu0 %v1695
        %v3948 = vpop.f32.mrf.mxu0
        %v3949 = vadd.f32 0.0, %v3948
        %v3950 = vpop.f32.mrf.mxu0
        %v3951 = vadd.f32 0.0, %v3950
        %v3952 = vpop.f32.mrf.mxu0
        %v3953 = vadd.f32 0.0, %v3952
        %v3954 = vpop.f32.mrf.mxu0
        %v3955 = vadd.f32 0.0, %v3954
        %3956 = vdwg.mxu0
        %3957 = vmatprep.subr.bf16.mxu0 %v2812
        %3958 = vmatpush1.bf16.msra.mxu0 %v2811
        %3959 = vmatprep.subr.bf16.mxu0 %v2780
        %3960 = vmatpush1.bf16.msra.mxu0 %v2779
        %3961 = vmatprep.subr.bf16.mxu0 %v2748
        %3962 = vmatpush1.bf16.msra.mxu0 %v2747
        %3963 = vmatprep.subr.bf16.mxu0 %v2716
        %3964 = vmatpush1.bf16.msra.mxu0 %v2715
        %3965 = vmatprep.subr.bf16.mxu0 %v2684
        %3966 = vmatpush1.bf16.msra.mxu0 %v2683
        %3967 = vmatprep.subr.bf16.mxu0 %v2652
        %3968 = vmatpush1.bf16.msra.mxu0 %v2651
        %3969 = vmatprep.subr.bf16.mxu0 %v2620
        %3970 = vmatpush1.bf16.msra.mxu0 %v2619
        %3971 = vmatprep.subr.bf16.mxu0 %v2588
        %3972 = vmatpush1.bf16.msra.mxu0 %v2587
        %3973 = vmatprep.subr.bf16.mxu0 0
        %3974 = vmatpush2.bf16.msra.mxu0 0
        %3975 = vmatprep.subr.bf16.mxu0 0
        %3976 = vmatpush2.bf16.msra.mxu0 0
        %3977 = vmatprep.subr.bf16.mxu0 0
        %3978 = vmatpush2.bf16.msra.mxu0 0
        %3979 = vmatprep.subr.bf16.mxu0 0
        %3980 = vmatpush2.bf16.msra.mxu0 0
        %3981 = vmatprep.subr.bf16.mxu0 0
        %3982 = vmatpush2.bf16.msra.mxu0 0
        %3983 = vmatprep.subr.bf16.mxu0 0
        %3984 = vmatpush2.bf16.msra.mxu0 0
        %3985 = vmatprep.subr.bf16.mxu0 0
        %3986 = vmatpush2.bf16.msra.mxu0 0
        %3987 = vmatprep.subr.bf16.mxu0 %v2844
        %3988 = vmatpush2.bf16.msra.mxu0 %v2843
        %3989 = vmatprep.mubr.bf16.mxu0 %v3143
        %3990 = vmatmul.mubr.bf16.gmra.mxu0 %v1689
        %v3991 = vpop.f32.mrf.mxu0
        %v3992 = vadd.f32 0.0, %v3991
        %v3993 = vpop.f32.mrf.mxu0
        %v3994 = vadd.f32 0.0, %v3993
        %v3995 = vpop.f32.mrf.mxu0
        %v3996 = vadd.f32 0.0, %v3995
        %v3997 = vpop.f32.mrf.mxu0
        %v3998 = vadd.f32 0.0, %v3997
        %3999 = vmatprep.mubr.bf16.mxu0 %v3146
        %4000 = vmatmul.mubr.bf16.gmra.mxu0 %v1691
        %v4001 = vpop.f32.mrf.mxu0
        %v4002 = vadd.f32 0.0, %v4001
        %v4003 = vpop.f32.mrf.mxu0
        %v4004 = vadd.f32 0.0, %v4003
        %v4005 = vpop.f32.mrf.mxu0
        %v4006 = vadd.f32 0.0, %v4005
        %v4007 = vpop.f32.mrf.mxu0
        %v4008 = vadd.f32 0.0, %v4007
        %4009 = vmatprep.mubr.bf16.mxu0 %v3149
        %4010 = vmatmul.mubr.bf16.gmra.mxu0 %v1693
        %v4011 = vpop.f32.mrf.mxu0
        %v4012 = vadd.f32 0.0, %v4011
        %v4013 = vpop.f32.mrf.mxu0
        %v4014 = vadd.f32 0.0, %v4013
        %v4015 = vpop.f32.mrf.mxu0
        %v4016 = vadd.f32 0.0, %v4015
        %v4017 = vpop.f32.mrf.mxu0
        %v4018 = vadd.f32 0.0, %v4017
        %4019 = vmatprep.mubr.bf16.mxu0 %v3152
        %4020 = vmatmul.mubr.bf16.gmra.mxu0 %v1695
        %v4021 = vpop.f32.mrf.mxu0
        %v4022 = vadd.f32 0.0, %v4021
        %v4023 = vpop.f32.mrf.mxu0
        %v4024 = vadd.f32 0.0, %v4023
        %v4025 = vpop.f32.mrf.mxu0
        %v4026 = vadd.f32 0.0, %v4025
        %v4027 = vpop.f32.mrf.mxu0
        %v4028 = vadd.f32 0.0, %v4027
        %4029 = vdwg.mxu0
        %4030 = vmatprep.subr.bf16.mxu0 %v2814
        %4031 = vmatpush1.bf16.msra.mxu0 %v2813
        %4032 = vmatprep.subr.bf16.mxu0 %v2782
        %4033 = vmatpush1.bf16.msra.mxu0 %v2781
        %4034 = vmatprep.subr.bf16.mxu0 %v2750
        %4035 = vmatpush1.bf16.msra.mxu0 %v2749
        %4036 = vmatprep.subr.bf16.mxu0 %v2718
        %4037 = vmatpush1.bf16.msra.mxu0 %v2717
        %4038 = vmatprep.subr.bf16.mxu0 %v2686
        %4039 = vmatpush1.bf16.msra.mxu0 %v2685
        %4040 = vmatprep.subr.bf16.mxu0 %v2654
        %4041 = vmatpush1.bf16.msra.mxu0 %v2653
        %4042 = vmatprep.subr.bf16.mxu0 %v2622
        %4043 = vmatpush1.bf16.msra.mxu0 %v2621
        %4044 = vmatprep.subr.bf16.mxu0 %v2590
        %4045 = vmatpush1.bf16.msra.mxu0 %v2589
        %4046 = vmatprep.subr.bf16.mxu0 0
        %4047 = vmatpush2.bf16.msra.mxu0 0
        %4048 = vmatprep.subr.bf16.mxu0 0
        %4049 = vmatpush2.bf16.msra.mxu0 0
        %4050 = vmatprep.subr.bf16.mxu0 0
        %4051 = vmatpush2.bf16.msra.mxu0 0
        %4052 = vmatprep.subr.bf16.mxu0 0
        %4053 = vmatpush2.bf16.msra.mxu0 0
        %4054 = vmatprep.subr.bf16.mxu0 0
        %4055 = vmatpush2.bf16.msra.mxu0 0
        %4056 = vmatprep.subr.bf16.mxu0 0
        %4057 = vmatpush2.bf16.msra.mxu0 0
        %4058 = vmatprep.subr.bf16.mxu0 0
        %4059 = vmatpush2.bf16.msra.mxu0 0
        %4060 = vmatprep.subr.bf16.mxu0 %v2846
        %4061 = vmatpush2.bf16.msra.mxu0 %v2845
        %4062 = vmatprep.mubr.bf16.mxu0 %v3143
        %4063 = vmatmul.mubr.bf16.gmra.mxu0 %v1689
        %v4064 = vpop.f32.mrf.mxu0
        %v4065 = vadd.f32 0.0, %v4064
        %v4066 = vpop.f32.mrf.mxu0
        %v4067 = vadd.f32 0.0, %v4066
        %v4068 = vpop.f32.mrf.mxu0
        %v4069 = vadd.f32 0.0, %v4068
        %v4070 = vpop.f32.mrf.mxu0
        %v4071 = vadd.f32 0.0, %v4070
        %4072 = vmatprep.mubr.bf16.mxu0 %v3146
        %4073 = vmatmul.mubr.bf16.gmra.mxu0 %v1691
        %v4074 = vpop.f32.mrf.mxu0
        %v4075 = vadd.f32 0.0, %v4074
        %v4076 = vpop.f32.mrf.mxu0
        %v4077 = vadd.f32 0.0, %v4076
        %v4078 = vpop.f32.mrf.mxu0
        %v4079 = vadd.f32 0.0, %v4078
        %v4080 = vpop.f32.mrf.mxu0
        %v4081 = vadd.f32 0.0, %v4080
        %4082 = vmatprep.mubr.bf16.mxu0 %v3149
        %4083 = vmatmul.mubr.bf16.gmra.mxu0 %v1693
        %v4084 = vpop.f32.mrf.mxu0
        %v4085 = vadd.f32 0.0, %v4084
        %v4086 = vpop.f32.mrf.mxu0
        %v4087 = vadd.f32 0.0, %v4086
        %v4088 = vpop.f32.mrf.mxu0
        %v4089 = vadd.f32 0.0, %v4088
        %v4090 = vpop.f32.mrf.mxu0
        %v4091 = vadd.f32 0.0, %v4090
        %4092 = vmatprep.mubr.bf16.mxu0 %v3152
        %4093 = vmatmul.mubr.bf16.gmra.mxu0 %v1695
        %v4094 = vpop.f32.mrf.mxu0
        %v4095 = vadd.f32 0.0, %v4094
        %v4096 = vpop.f32.mrf.mxu0
        %v4097 = vadd.f32 0.0, %v4096
        %v4098 = vpop.f32.mrf.mxu0
        %v4099 = vadd.f32 0.0, %v4098
        %v4100 = vpop.f32.mrf.mxu0
        %v4101 = vadd.f32 0.0, %v4100
        %4102 = vdwg.mxu0
        %4103 = vmatprep.subr.bf16.mxu0 %v2816
        %4104 = vmatpush1.bf16.msra.mxu0 %v2815
        %4105 = vmatprep.subr.bf16.mxu0 %v2784
        %4106 = vmatpush1.bf16.msra.mxu0 %v2783
        %4107 = vmatprep.subr.bf16.mxu0 %v2752
        %4108 = vmatpush1.bf16.msra.mxu0 %v2751
        %4109 = vmatprep.subr.bf16.mxu0 %v2720
        %4110 = vmatpush1.bf16.msra.mxu0 %v2719
        %4111 = vmatprep.subr.bf16.mxu0 %v2688
        %4112 = vmatpush1.bf16.msra.mxu0 %v2687
        %4113 = vmatprep.subr.bf16.mxu0 %v2656
        %4114 = vmatpush1.bf16.msra.mxu0 %v2655
        %4115 = vmatprep.subr.bf16.mxu0 %v2624
        %4116 = vmatpush1.bf16.msra.mxu0 %v2623
        %4117 = vmatprep.subr.bf16.mxu0 %v2592
        %4118 = vmatpush1.bf16.msra.mxu0 %v2591
        %4119 = vmatprep.subr.bf16.mxu0 0
        %4120 = vmatpush2.bf16.msra.mxu0 0
        %4121 = vmatprep.subr.bf16.mxu0 0
        %4122 = vmatpush2.bf16.msra.mxu0 0
        %4123 = vmatprep.subr.bf16.mxu0 0
        %4124 = vmatpush2.bf16.msra.mxu0 0
        %4125 = vmatprep.subr.bf16.mxu0 0
        %4126 = vmatpush2.bf16.msra.mxu0 0
        %4127 = vmatprep.subr.bf16.mxu0 0
        %4128 = vmatpush2.bf16.msra.mxu0 0
        %4129 = vmatprep.subr.bf16.mxu0 0
        %4130 = vmatpush2.bf16.msra.mxu0 0
        %4131 = vmatprep.subr.bf16.mxu0 0
        %4132 = vmatpush2.bf16.msra.mxu0 0
        %4133 = vmatprep.subr.bf16.mxu0 %v2848
        %4134 = vmatpush2.bf16.msra.mxu0 %v2847
        %4135 = vmatprep.mubr.bf16.mxu0 %v3143
        %4136 = vmatmul.mubr.bf16.gmra.mxu0 %v1689
        %v4137 = vpop.f32.mrf.mxu0
        %v4138 = vadd.f32 0.0, %v4137
        %v4139 = vpop.f32.mrf.mxu0
        %v4140 = vadd.f32 0.0, %v4139
        %v4141 = vpop.f32.mrf.mxu0
        %v4142 = vadd.f32 0.0, %v4141
        %v4143 = vpop.f32.mrf.mxu0
        %v4144 = vadd.f32 0.0, %v4143
        %4145 = vmatprep.mubr.bf16.mxu0 %v3146
        %4146 = vmatmul.mubr.bf16.gmra.mxu0 %v1691
        %v4147 = vpop.f32.mrf.mxu0
        %v4148 = vadd.f32 0.0, %v4147
        %v4149 = vpop.f32.mrf.mxu0
        %v4150 = vadd.f32 0.0, %v4149
        %v4151 = vpop.f32.mrf.mxu0
        %v4152 = vadd.f32 0.0, %v4151
        %v4153 = vpop.f32.mrf.mxu0
        %v4154 = vadd.f32 0.0, %v4153
        %4155 = vmatprep.mubr.bf16.mxu0 %v3149
        %4156 = vmatmul.mubr.bf16.gmra.mxu0 %v1693
        %v4157 = vpop.f32.mrf.mxu0
        %v4158 = vadd.f32 0.0, %v4157
        %v4159 = vpop.f32.mrf.mxu0
        %v4160 = vadd.f32 0.0, %v4159
        %v4161 = vpop.f32.mrf.mxu0
        %v4162 = vadd.f32 0.0, %v4161
        %v4163 = vpop.f32.mrf.mxu0
        %v4164 = vadd.f32 0.0, %v4163
        %4165 = vmatprep.mubr.bf16.mxu0 %v3152
        %4166 = vmatmul.mubr.bf16.gmra.mxu0 %v1695
        %v4167 = vpop.f32.mrf.mxu0
        %v4168 = vadd.f32 0.0, %v4167
        %v4169 = vpop.f32.mrf.mxu0
        %v4170 = vadd.f32 0.0, %v4169
        %v4171 = vpop.f32.mrf.mxu0
        %v4172 = vadd.f32 0.0, %v4171
        %v4173 = vpop.f32.mrf.mxu0
        %v4174 = vadd.f32 0.0, %v4173
        %4175 = vdwg.mxu0
        %4176 = vmatprep.subr.bf16.mxu0 %v2818
        %4177 = vmatpush1.bf16.msra.mxu0 %v2817
        %4178 = vmatprep.subr.bf16.mxu0 %v2786
        %4179 = vmatpush1.bf16.msra.mxu0 %v2785
        %4180 = vmatprep.subr.bf16.mxu0 %v2754
        %4181 = vmatpush1.bf16.msra.mxu0 %v2753
        %4182 = vmatprep.subr.bf16.mxu0 %v2722
        %4183 = vmatpush1.bf16.msra.mxu0 %v2721
        %4184 = vmatprep.subr.bf16.mxu0 %v2690
        %4185 = vmatpush1.bf16.msra.mxu0 %v2689
        %4186 = vmatprep.subr.bf16.mxu0 %v2658
        %4187 = vmatpush1.bf16.msra.mxu0 %v2657
        %4188 = vmatprep.subr.bf16.mxu0 %v2626
        %4189 = vmatpush1.bf16.msra.mxu0 %v2625
        %4190 = vmatprep.subr.bf16.mxu0 %v2594
        %4191 = vmatpush1.bf16.msra.mxu0 %v2593
        %4192 = vmatprep.subr.bf16.mxu0 0
        %4193 = vmatpush2.bf16.msra.mxu0 0
        %4194 = vmatprep.subr.bf16.mxu0 0
        %4195 = vmatpush2.bf16.msra.mxu0 0
        %4196 = vmatprep.subr.bf16.mxu0 0
        %4197 = vmatpush2.bf16.msra.mxu0 0
        %4198 = vmatprep.subr.bf16.mxu0 0
        %4199 = vmatpush2.bf16.msra.mxu0 0
        %4200 = vmatprep.subr.bf16.mxu0 0
        %4201 = vmatpush2.bf16.msra.mxu0 0
        %4202 = vmatprep.subr.bf16.mxu0 0
        %4203 = vmatpush2.bf16.msra.mxu0 0
        %4204 = vmatprep.subr.bf16.mxu0 0
        %4205 = vmatpush2.bf16.msra.mxu0 0
        %4206 = vmatprep.subr.bf16.mxu0 %v2850
        %4207 = vmatpush2.bf16.msra.mxu0 %v2849
        %4208 = vmatprep.mubr.bf16.mxu0 %v3143
        %4209 = vmatmul.mubr.bf16.gmra.mxu0 %v1689
        %v4210 = vpop.f32.mrf.mxu0
        %v4211 = vadd.f32 0.0, %v4210
        %v4212 = vpop.f32.mrf.mxu0
        %v4213 = vadd.f32 0.0, %v4212
        %v4214 = vpop.f32.mrf.mxu0
        %v4215 = vadd.f32 0.0, %v4214
        %v4216 = vpop.f32.mrf.mxu0
        %v4217 = vadd.f32 0.0, %v4216
        %4218 = vmatprep.mubr.bf16.mxu0 %v3146
        %4219 = vmatmul.mubr.bf16.gmra.mxu0 %v1691
        %v4220 = vpop.f32.mrf.mxu0
        %v4221 = vadd.f32 0.0, %v4220
        %v4222 = vpop.f32.mrf.mxu0
        %v4223 = vadd.f32 0.0, %v4222
        %v4224 = vpop.f32.mrf.mxu0
        %v4225 = vadd.f32 0.0, %v4224
        %v4226 = vpop.f32.mrf.mxu0
        %v4227 = vadd.f32 0.0, %v4226
        %4228 = vmatprep.mubr.bf16.mxu0 %v3149
        %4229 = vmatmul.mubr.bf16.gmra.mxu0 %v1693
        %v4230 = vpop.f32.mrf.mxu0
        %v4231 = vadd.f32 0.0, %v4230
        %v4232 = vpop.f32.mrf.mxu0
        %v4233 = vadd.f32 0.0, %v4232
        %v4234 = vpop.f32.mrf.mxu0
        %v4235 = vadd.f32 0.0, %v4234
        %v4236 = vpop.f32.mrf.mxu0
        %v4237 = vadd.f32 0.0, %v4236
        %4238 = vmatprep.mubr.bf16.mxu0 %v3152
        %4239 = vmatmul.mubr.bf16.gmra.mxu0 %v1695
        %v4240 = vpop.f32.mrf.mxu0
        %v4241 = vadd.f32 0.0, %v4240
        %v4242 = vpop.f32.mrf.mxu0
        %v4243 = vadd.f32 0.0, %v4242
        %v4244 = vpop.f32.mrf.mxu0
        %v4245 = vadd.f32 0.0, %v4244
        %v4246 = vpop.f32.mrf.mxu0
        %v4247 = vadd.f32 0.0, %v4246
        %4248 = vdwg.mxu0
        %4249 = vmatprep.subr.bf16.mxu0 %v2820
        %4250 = vmatpush1.bf16.msra.mxu0 %v2819
        %4251 = vmatprep.subr.bf16.mxu0 %v2788
        %4252 = vmatpush1.bf16.msra.mxu0 %v2787
        %4253 = vmatprep.subr.bf16.mxu0 %v2756
        %4254 = vmatpush1.bf16.msra.mxu0 %v2755
        %4255 = vmatprep.subr.bf16.mxu0 %v2724
        %4256 = vmatpush1.bf16.msra.mxu0 %v2723
        %4257 = vmatprep.subr.bf16.mxu0 %v2692
        %4258 = vmatpush1.bf16.msra.mxu0 %v2691
        %4259 = vmatprep.subr.bf16.mxu0 %v2660
        %4260 = vmatpush1.bf16.msra.mxu0 %v2659
        %4261 = vmatprep.subr.bf16.mxu0 %v2628
        %4262 = vmatpush1.bf16.msra.mxu0 %v2627
        %4263 = vmatprep.subr.bf16.mxu0 %v2596
        %4264 = vmatpush1.bf16.msra.mxu0 %v2595
        %4265 = vmatprep.subr.bf16.mxu0 0
        %4266 = vmatpush2.bf16.msra.mxu0 0
        %4267 = vmatprep.subr.bf16.mxu0 0
        %4268 = vmatpush2.bf16.msra.mxu0 0
        %4269 = vmatprep.subr.bf16.mxu0 0
        %4270 = vmatpush2.bf16.msra.mxu0 0
        %4271 = vmatprep.subr.bf16.mxu0 0
        %4272 = vmatpush2.bf16.msra.mxu0 0
        %4273 = vmatprep.subr.bf16.mxu0 0
        %4274 = vmatpush2.bf16.msra.mxu0 0
        %4275 = vmatprep.subr.bf16.mxu0 0
        %4276 = vmatpush2.bf16.msra.mxu0 0
        %4277 = vmatprep.subr.bf16.mxu0 0
        %4278 = vmatpush2.bf16.msra.mxu0 0
        %4279 = vmatprep.subr.bf16.mxu0 %v2852
        %4280 = vmatpush2.bf16.msra.mxu0 %v2851
        %4281 = vmatprep.mubr.bf16.mxu0 %v3143
        %4282 = vmatmul.mubr.bf16.gmra.mxu0 %v1689
        %v4283 = vpop.f32.mrf.mxu0
        %v4284 = vadd.f32 0.0, %v4283
        %v4285 = vpop.f32.mrf.mxu0
        %v4286 = vadd.f32 0.0, %v4285
        %v4287 = vpop.f32.mrf.mxu0
        %v4288 = vadd.f32 0.0, %v4287
        %v4289 = vpop.f32.mrf.mxu0
        %v4290 = vadd.f32 0.0, %v4289
        %4291 = vmatprep.mubr.bf16.mxu0 %v3146
        %4292 = vmatmul.mubr.bf16.gmra.mxu0 %v1691
        %v4293 = vpop.f32.mrf.mxu0
        %v4294 = vadd.f32 0.0, %v4293
        %v4295 = vpop.f32.mrf.mxu0
        %v4296 = vadd.f32 0.0, %v4295
        %v4297 = vpop.f32.mrf.mxu0
        %v4298 = vadd.f32 0.0, %v4297
        %v4299 = vpop.f32.mrf.mxu0
        %v4300 = vadd.f32 0.0, %v4299
        %4301 = vmatprep.mubr.bf16.mxu0 %v3149
        %4302 = vmatmul.mubr.bf16.gmra.mxu0 %v1693
        %v4303 = vpop.f32.mrf.mxu0
        %v4304 = vadd.f32 0.0, %v4303
        %v4305 = vpop.f32.mrf.mxu0
        %v4306 = vadd.f32 0.0, %v4305
        %v4307 = vpop.f32.mrf.mxu0
        %v4308 = vadd.f32 0.0, %v4307
        %v4309 = vpop.f32.mrf.mxu0
        %v4310 = vadd.f32 0.0, %v4309
        %4311 = vmatprep.mubr.bf16.mxu0 %v3152
        %4312 = vmatmul.mubr.bf16.gmra.mxu0 %v1695
        %v4313 = vpop.f32.mrf.mxu0
        %v4314 = vadd.f32 0.0, %v4313
        %v4315 = vpop.f32.mrf.mxu0
        %v4316 = vadd.f32 0.0, %v4315
        %v4317 = vpop.f32.mrf.mxu0
        %v4318 = vadd.f32 0.0, %v4317
        %v4319 = vpop.f32.mrf.mxu0
        %v4320 = vadd.f32 0.0, %v4319
        %4321 = vdwg.mxu0
        %v4322 = vadd.f32 %v1113, %v3189
        %v4323 = vadd.f32 %v1114, %v3191
        %v4324 = vadd.f32 %v1115, %v3262
        %v4325 = vadd.f32 %v1116, %v3264
        %v4326 = vadd.f32 %v1117, %v3335
        %v4327 = vadd.f32 %v1118, %v3337
        %v4328 = vadd.f32 %v1119, %v3408
        %v4329 = vadd.f32 %v1120, %v3410
        %v4330 = vadd.f32 %v1121, %v3481
        %v4331 = vadd.f32 %v1122, %v3483
        %v4332 = vadd.f32 %v1123, %v3554
        %v4333 = vadd.f32 %v1124, %v3556
        %v4334 = vadd.f32 %v1125, %v3627
        %v4335 = vadd.f32 %v1126, %v3629
        %v4336 = vadd.f32 %v1127, %v3700
        %v4337 = vadd.f32 %v1128, %v3702
        %v4338 = vadd.f32 %v1129, %v3773
        %v4339 = vadd.f32 %v1130, %v3775
        %v4340 = vadd.f32 %v1131, %v3846
        %v4341 = vadd.f32 %v1132, %v3848
        %v4342 = vadd.f32 %v1133, %v3919
        %v4343 = vadd.f32 %v1134, %v3921
        %v4344 = vadd.f32 %v1135, %v3992
        %v4345 = vadd.f32 %v1136, %v3994
        %v4346 = vadd.f32 %v1137, %v4065
        %v4347 = vadd.f32 %v1138, %v4067
        %v4348 = vadd.f32 %v1139, %v4138
        %v4349 = vadd.f32 %v1140, %v4140
        %v4350 = vadd.f32 %v1141, %v4211
        %v4351 = vadd.f32 %v1142, %v4213
        %v4352 = vadd.f32 %v1143, %v4284
        %v4353 = vadd.f32 %v1144, %v4286
        %v4354 = vadd.f32 %v1145, %v3193
        %v4355 = vadd.f32 %v1146, %v3195
        %v4356 = vadd.f32 %v1147, %v3266
        %v4357 = vadd.f32 %v1148, %v3268
        %v4358 = vadd.f32 %v1149, %v3339
        %v4359 = vadd.f32 %v1150, %v3341
        %v4360 = vadd.f32 %v1151, %v3412
        %v4361 = vadd.f32 %v1152, %v3414
        %v4362 = vadd.f32 %v1153, %v3485
        %v4363 = vadd.f32 %v1154, %v3487
        %v4364 = vadd.f32 %v1155, %v3558
        %v4365 = vadd.f32 %v1156, %v3560
        %v4366 = vadd.f32 %v1157, %v3631
        %v4367 = vadd.f32 %v1158, %v3633
        %v4368 = vadd.f32 %v1159, %v3704
        %v4369 = vadd.f32 %v1160, %v3706
        %v4370 = vadd.f32 %v1161, %v3777
        %v4371 = vadd.f32 %v1162, %v3779
        %v4372 = vadd.f32 %v1163, %v3850
        %v4373 = vadd.f32 %v1164, %v3852
        %v4374 = vadd.f32 %v1165, %v3923
        %v4375 = vadd.f32 %v1166, %v3925
        %v4376 = vadd.f32 %v1167, %v3996
        %v4377 = vadd.f32 %v1168, %v3998
        %v4378 = vadd.f32 %v1169, %v4069
        %v4379 = vadd.f32 %v1170, %v4071
        %v4380 = vadd.f32 %v1171, %v4142
        %v4381 = vadd.f32 %v1172, %v4144
        %v4382 = vadd.f32 %v1173, %v4215
        %v4383 = vadd.f32 %v1174, %v4217
        %v4384 = vadd.f32 %v1175, %v4288
        %v4385 = vadd.f32 %v1176, %v4290
        %v4386 = vadd.f32 %v1177, %v3199
        %v4387 = vadd.f32 %v1178, %v3201
        %v4388 = vadd.f32 %v1179, %v3272
        %v4389 = vadd.f32 %v1180, %v3274
        %v4390 = vadd.f32 %v1181, %v3345
        %v4391 = vadd.f32 %v1182, %v3347
        %v4392 = vadd.f32 %v1183, %v3418
        %v4393 = vadd.f32 %v1184, %v3420
        %v4394 = vadd.f32 %v1185, %v3491
        %v4395 = vadd.f32 %v1186, %v3493
        %v4396 = vadd.f32 %v1187, %v3564
        %v4397 = vadd.f32 %v1188, %v3566
        %v4398 = vadd.f32 %v1189, %v3637
        %v4399 = vadd.f32 %v1190, %v3639
        %v4400 = vadd.f32 %v1191, %v3710
        %v4401 = vadd.f32 %v1192, %v3712
        %v4402 = vadd.f32 %v1193, %v3783
        %v4403 = vadd.f32 %v1194, %v3785
        %v4404 = vadd.f32 %v1195, %v3856
        %v4405 = vadd.f32 %v1196, %v3858
        %v4406 = vadd.f32 %v1197, %v3929
        %v4407 = vadd.f32 %v1198, %v3931
        %v4408 = vadd.f32 %v1199, %v4002
        %v4409 = vadd.f32 %v1200, %v4004
        %v4410 = vadd.f32 %v1201, %v4075
        %v4411 = vadd.f32 %v1202, %v4077
        %v4412 = vadd.f32 %v1203, %v4148
        %v4413 = vadd.f32 %v1204, %v4150
        %v4414 = vadd.f32 %v1205, %v4221
        %v4415 = vadd.f32 %v1206, %v4223
        %v4416 = vadd.f32 %v1207, %v4294
        %v4417 = vadd.f32 %v1208, %v4296
        %v4418 = vadd.f32 %v1209, %v3203
        %v4419 = vadd.f32 %v1210, %v3205
        %v4420 = vadd.f32 %v1211, %v3276
        %v4421 = vadd.f32 %v1212, %v3278
        %v4422 = vadd.f32 %v1213, %v3349
        %v4423 = vadd.f32 %v1214, %v3351
        %v4424 = vadd.f32 %v1215, %v3422
        %v4425 = vadd.f32 %v1216, %v3424
        %v4426 = vadd.f32 %v1217, %v3495
        %v4427 = vadd.f32 %v1218, %v3497
        %v4428 = vadd.f32 %v1219, %v3568
        %v4429 = vadd.f32 %v1220, %v3570
        %v4430 = vadd.f32 %v1221, %v3641
        %v4431 = vadd.f32 %v1222, %v3643
        %v4432 = vadd.f32 %v1223, %v3714
        %v4433 = vadd.f32 %v1224, %v3716
        %v4434 = vadd.f32 %v1225, %v3787
        %v4435 = vadd.f32 %v1226, %v3789
        %v4436 = vadd.f32 %v1227, %v3860
        %v4437 = vadd.f32 %v1228, %v3862
        %v4438 = vadd.f32 %v1229, %v3933
        %v4439 = vadd.f32 %v1230, %v3935
        %v4440 = vadd.f32 %v1231, %v4006
        %v4441 = vadd.f32 %v1232, %v4008
        %v4442 = vadd.f32 %v1233, %v4079
        %v4443 = vadd.f32 %v1234, %v4081
        %v4444 = vadd.f32 %v1235, %v4152
        %v4445 = vadd.f32 %v1236, %v4154
        %v4446 = vadd.f32 %v1237, %v4225
        %v4447 = vadd.f32 %v1238, %v4227
        %v4448 = vadd.f32 %v1239, %v4298
        %v4449 = vadd.f32 %v1240, %v4300
        %v4450 = vadd.f32 %v1241, %v3209
        %v4451 = vadd.f32 %v1242, %v3211
        %v4452 = vadd.f32 %v1243, %v3282
        %v4453 = vadd.f32 %v1244, %v3284
        %v4454 = vadd.f32 %v1245, %v3355
        %v4455 = vadd.f32 %v1246, %v3357
        %v4456 = vadd.f32 %v1247, %v3428
        %v4457 = vadd.f32 %v1248, %v3430
        %v4458 = vadd.f32 %v1249, %v3501
        %v4459 = vadd.f32 %v1250, %v3503
        %v4460 = vadd.f32 %v1251, %v3574
        %v4461 = vadd.f32 %v1252, %v3576
        %v4462 = vadd.f32 %v1253, %v3647
        %v4463 = vadd.f32 %v1254, %v3649
        %v4464 = vadd.f32 %v1255, %v3720
        %v4465 = vadd.f32 %v1256, %v3722
        %v4466 = vadd.f32 %v1257, %v3793
        %v4467 = vadd.f32 %v1258, %v3795
        %v4468 = vadd.f32 %v1259, %v3866
        %v4469 = vadd.f32 %v1260, %v3868
        %v4470 = vadd.f32 %v1261, %v3939
        %v4471 = vadd.f32 %v1262, %v3941
        %v4472 = vadd.f32 %v1263, %v4012
        %v4473 = vadd.f32 %v1264, %v4014
        %v4474 = vadd.f32 %v1265, %v4085
        %v4475 = vadd.f32 %v1266, %v4087
        %v4476 = vadd.f32 %v1267, %v4158
        %v4477 = vadd.f32 %v1268, %v4160
        %v4478 = vadd.f32 %v1269, %v4231
        %v4479 = vadd.f32 %v1270, %v4233
        %v4480 = vadd.f32 %v1271, %v4304
        %v4481 = vadd.f32 %v1272, %v4306
        %v4482 = vadd.f32 %v1273, %v3213
        %v4483 = vadd.f32 %v1274, %v3215
        %v4484 = vadd.f32 %v1275, %v3286
        %v4485 = vadd.f32 %v1276, %v3288
        %v4486 = vadd.f32 %v1277, %v3359
        %v4487 = vadd.f32 %v1278, %v3361
        %v4488 = vadd.f32 %v1279, %v3432
        %v4489 = vadd.f32 %v1280, %v3434
        %v4490 = vadd.f32 %v1281, %v3505
        %v4491 = vadd.f32 %v1282, %v3507
        %v4492 = vadd.f32 %v1283, %v3578
        %v4493 = vadd.f32 %v1284, %v3580
        %v4494 = vadd.f32 %v1285, %v3651
        %v4495 = vadd.f32 %v1286, %v3653
        %v4496 = vadd.f32 %v1287, %v3724
        %v4497 = vadd.f32 %v1288, %v3726
        %v4498 = vadd.f32 %v1289, %v3797
        %v4499 = vadd.f32 %v1290, %v3799
        %v4500 = vadd.f32 %v1291, %v3870
        %v4501 = vadd.f32 %v1292, %v3872
        %v4502 = vadd.f32 %v1293, %v3943
        %v4503 = vadd.f32 %v1294, %v3945
        %v4504 = vadd.f32 %v1295, %v4016
        %v4505 = vadd.f32 %v1296, %v4018
        %v4506 = vadd.f32 %v1297, %v4089
        %v4507 = vadd.f32 %v1298, %v4091
        %v4508 = vadd.f32 %v1299, %v4162
        %v4509 = vadd.f32 %v1300, %v4164
        %v4510 = vadd.f32 %v1301, %v4235
        %v4511 = vadd.f32 %v1302, %v4237
        %v4512 = vadd.f32 %v1303, %v4308
        %v4513 = vadd.f32 %v1304, %v4310
        %v4514 = vadd.f32 %v1305, %v3219
        %v4515 = vadd.f32 %v1306, %v3221
        %v4516 = vadd.f32 %v1307, %v3292
        %v4517 = vadd.f32 %v1308, %v3294
        %v4518 = vadd.f32 %v1309, %v3365
        %v4519 = vadd.f32 %v1310, %v3367
        %v4520 = vadd.f32 %v1311, %v3438
        %v4521 = vadd.f32 %v1312, %v3440
        %v4522 = vadd.f32 %v1313, %v3511
        %v4523 = vadd.f32 %v1314, %v3513
        %v4524 = vadd.f32 %v1315, %v3584
        %v4525 = vadd.f32 %v1316, %v3586
        %v4526 = vadd.f32 %v1317, %v3657
        %v4527 = vadd.f32 %v1318, %v3659
        %v4528 = vadd.f32 %v1319, %v3730
        %v4529 = vadd.f32 %v1320, %v3732
        %v4530 = vadd.f32 %v1321, %v3803
        %v4531 = vadd.f32 %v1322, %v3805
        %v4532 = vadd.f32 %v1323, %v3876
        %v4533 = vadd.f32 %v1324, %v3878
        %v4534 = vadd.f32 %v1325, %v3949
        %v4535 = vadd.f32 %v1326, %v3951
        %v4536 = vadd.f32 %v1327, %v4022
        %v4537 = vadd.f32 %v1328, %v4024
        %v4538 = vadd.f32 %v1329, %v4095
        %v4539 = vadd.f32 %v1330, %v4097
        %v4540 = vadd.f32 %v1331, %v4168
        %v4541 = vadd.f32 %v1332, %v4170
        %v4542 = vadd.f32 %v1333, %v4241
        %v4543 = vadd.f32 %v1334, %v4243
        %v4544 = vadd.f32 %v1335, %v4314
        %v4545 = vadd.f32 %v1336, %v4316
        %v4546 = vadd.f32 %v1337, %v3223
        %v4547 = vadd.f32 %v1338, %v3225
        %v4548 = vadd.f32 %v1339, %v3296
        %v4549 = vadd.f32 %v1340, %v3298
        %v4550 = vadd.f32 %v1341, %v3369
        %v4551 = vadd.f32 %v1342, %v3371
        %v4552 = vadd.f32 %v1343, %v3442
        %v4553 = vadd.f32 %v1344, %v3444
        %v4554 = vadd.f32 %v1345, %v3515
        %v4555 = vadd.f32 %v1346, %v3517
        %v4556 = vadd.f32 %v1347, %v3588
        %v4557 = vadd.f32 %v1348, %v3590
        %v4558 = vadd.f32 %v1349, %v3661
        %v4559 = vadd.f32 %v1350, %v3663
        %v4560 = vadd.f32 %v1351, %v3734
        %v4561 = vadd.f32 %v1352, %v3736
        %v4562 = vadd.f32 %v1353, %v3807
        %v4563 = vadd.f32 %v1354, %v3809
        %v4564 = vadd.f32 %v1355, %v3880
        %v4565 = vadd.f32 %v1356, %v3882
        %v4566 = vadd.f32 %v1357, %v3953
        %v4567 = vadd.f32 %v1358, %v3955
        %v4568 = vadd.f32 %v1359, %v4026
        %v4569 = vadd.f32 %v1360, %v4028
        %v4570 = vadd.f32 %v1361, %v4099
        %v4571 = vadd.f32 %v1362, %v4101
        %v4572 = vadd.f32 %v1363, %v4172
        %v4573 = vadd.f32 %v1364, %v4174
        %v4574 = vadd.f32 %v1365, %v4245
        %v4575 = vadd.f32 %v1366, %v4247
        %v4576 = vadd.f32 %v1367, %v4318
        %v4577 = vadd.f32 %v1368, %v4320
        %4578 = vst [vmem:[#allocation2] sm:$0xff] %v4322
        %4579 = vst [vmem:[#allocation2 + $0x8] sm:$0xff] %v4323
        %4580 = vst [vmem:[#allocation2 + $0x10] sm:$0xff] %v4324
        %4581 = vst [vmem:[#allocation2 + $0x18] sm:$0xff] %v4325
        %4582 = vst [vmem:[#allocation2 + $0x20] sm:$0xff] %v4326
        %4583 = vst [vmem:[#allocation2 + $0x28] sm:$0xff] %v4327
        %4584 = vst [vmem:[#allocation2 + $0x30] sm:$0xff] %v4328
        %4585 = vst [vmem:[#allocation2 + $0x38] sm:$0xff] %v4329
        %4586 = vst [vmem:[#allocation2 + $0x40] sm:$0xff] %v4330
        %4587 = vst [vmem:[#allocation2 + $0x48] sm:$0xff] %v4331
        %4588 = vst [vmem:[#allocation2 + $0x50] sm:$0xff] %v4332
        %4589 = vst [vmem:[#allocation2 + $0x58] sm:$0xff] %v4333
        %4590 = vst [vmem:[#allocation2 + $0x60] sm:$0xff] %v4334
        %4591 = vst [vmem:[#allocation2 + $0x68] sm:$0xff] %v4335
        %4592 = vst [vmem:[#allocation2 + $0x70] sm:$0xff] %v4336
        %4593 = vst [vmem:[#allocation2 + $0x78] sm:$0xff] %v4337
        %4594 = vst [vmem:[#allocation2 + $0x80] sm:$0xff] %v4338
        %4595 = vst [vmem:[#allocation2 + $0x88] sm:$0xff] %v4339
        %4596 = vst [vmem:[#allocation2 + $0x90] sm:$0xff] %v4340
        %4597 = vst [vmem:[#allocation2 + $0x98] sm:$0xff] %v4341
        %4598 = vst [vmem:[#allocation2 + $0xa0] sm:$0xff] %v4342
        %4599 = vst [vmem:[#allocation2 + $0xa8] sm:$0xff] %v4343
        %4600 = vst [vmem:[#allocation2 + $0xb0] sm:$0xff] %v4344
        %4601 = vst [vmem:[#allocation2 + $0xb8] sm:$0xff] %v4345
        %4602 = vst [vmem:[#allocation2 + $0xc0] sm:$0xff] %v4346
        %4603 = vst [vmem:[#allocation2 + $0xc8] sm:$0xff] %v4347
        %4604 = vst [vmem:[#allocation2 + $0xd0] sm:$0xff] %v4348
        %4605 = vst [vmem:[#allocation2 + $0xd8] sm:$0xff] %v4349
        %4606 = vst [vmem:[#allocation2 + $0xe0] sm:$0xff] %v4350
        %4607 = vst [vmem:[#allocation2 + $0xe8] sm:$0xff] %v4351
        %4608 = vst [vmem:[#allocation2 + $0xf0] sm:$0xff] %v4352
        %4609 = vst [vmem:[#allocation2 + $0xf8] sm:$0xff] %v4353
        %4610 = vst [vmem:[#allocation2 + $0x100] sm:$0xff] %v4354
        %4611 = vst [vmem:[#allocation2 + $0x108] sm:$0xff] %v4355
        %4612 = vst [vmem:[#allocation2 + $0x110] sm:$0xff] %v4356
        %4613 = vst [vmem:[#allocation2 + $0x118] sm:$0xff] %v4357
        %4614 = vst [vmem:[#allocation2 + $0x120] sm:$0xff] %v4358
        %4615 = vst [vmem:[#allocation2 + $0x128] sm:$0xff] %v4359
        %4616 = vst [vmem:[#allocation2 + $0x130] sm:$0xff] %v4360
        %4617 = vst [vmem:[#allocation2 + $0x138] sm:$0xff] %v4361
        %4618 = vst [vmem:[#allocation2 + $0x140] sm:$0xff] %v4362
        %4619 = vst [vmem:[#allocation2 + $0x148] sm:$0xff] %v4363
        %4620 = vst [vmem:[#allocation2 + $0x150] sm:$0xff] %v4364
        %4621 = vst [vmem:[#allocation2 + $0x158] sm:$0xff] %v4365
        %4622 = vst [vmem:[#allocation2 + $0x160] sm:$0xff] %v4366
        %4623 = vst [vmem:[#allocation2 + $0x168] sm:$0xff] %v4367
        %4624 = vst [vmem:[#allocation2 + $0x170] sm:$0xff] %v4368
        %4625 = vst [vmem:[#allocation2 + $0x178] sm:$0xff] %v4369
        %4626 = vst [vmem:[#allocation2 + $0x180] sm:$0xff] %v4370
        %4627 = vst [vmem:[#allocation2 + $0x188] sm:$0xff] %v4371
        %4628 = vst [vmem:[#allocation2 + $0x190] sm:$0xff] %v4372
        %4629 = vst [vmem:[#allocation2 + $0x198] sm:$0xff] %v4373
        %4630 = vst [vmem:[#allocation2 + $0x1a0] sm:$0xff] %v4374
        %4631 = vst [vmem:[#allocation2 + $0x1a8] sm:$0xff] %v4375
        %4632 = vst [vmem:[#allocation2 + $0x1b0] sm:$0xff] %v4376
        %4633 = vst [vmem:[#allocation2 + $0x1b8] sm:$0xff] %v4377
        %4634 = vst [vmem:[#allocation2 + $0x1c0] sm:$0xff] %v4378
        %4635 = vst [vmem:[#allocation2 + $0x1c8] sm:$0xff] %v4379
        %4636 = vst [vmem:[#allocation2 + $0x1d0] sm:$0xff] %v4380
        %4637 = vst [vmem:[#allocation2 + $0x1d8] sm:$0xff] %v4381
        %4638 = vst [vmem:[#allocation2 + $0x1e0] sm:$0xff] %v4382
        %4639 = vst [vmem:[#allocation2 + $0x1e8] sm:$0xff] %v4383
        %4640 = vst [vmem:[#allocation2 + $0x1f0] sm:$0xff] %v4384
        %4641 = vst [vmem:[#allocation2 + $0x1f8] sm:$0xff] %v4385
        %4642 = vst [vmem:[#allocation2 + $0x200] sm:$0xff] %v4386
        %4643 = vst [vmem:[#allocation2 + $0x208] sm:$0xff] %v4387
        %4644 = vst [vmem:[#allocation2 + $0x210] sm:$0xff] %v4388
        %4645 = vst [vmem:[#allocation2 + $0x218] sm:$0xff] %v4389
        %4646 = vst [vmem:[#allocation2 + $0x220] sm:$0xff] %v4390
        %4647 = vst [vmem:[#allocation2 + $0x228] sm:$0xff] %v4391
        %4648 = vst [vmem:[#allocation2 + $0x230] sm:$0xff] %v4392
        %4649 = vst [vmem:[#allocation2 + $0x238] sm:$0xff] %v4393
        %4650 = vst [vmem:[#allocation2 + $0x240] sm:$0xff] %v4394
        %4651 = vst [vmem:[#allocation2 + $0x248] sm:$0xff] %v4395
        %4652 = vst [vmem:[#allocation2 + $0x250] sm:$0xff] %v4396
        %4653 = vst [vmem:[#allocation2 + $0x258] sm:$0xff] %v4397
        %4654 = vst [vmem:[#allocation2 + $0x260] sm:$0xff] %v4398
        %4655 = vst [vmem:[#allocation2 + $0x268] sm:$0xff] %v4399
        %4656 = vst [vmem:[#allocation2 + $0x270] sm:$0xff] %v4400
        %4657 = vst [vmem:[#allocation2 + $0x278] sm:$0xff] %v4401
        %4658 = vst [vmem:[#allocation2 + $0x280] sm:$0xff] %v4402
        %4659 = vst [vmem:[#allocation2 + $0x288] sm:$0xff] %v4403
        %4660 = vst [vmem:[#allocation2 + $0x290] sm:$0xff] %v4404
        %4661 = vst [vmem:[#allocation2 + $0x298] sm:$0xff] %v4405
        %4662 = vst [vmem:[#allocation2 + $0x2a0] sm:$0xff] %v4406
        %4663 = vst [vmem:[#allocation2 + $0x2a8] sm:$0xff] %v4407
        %4664 = vst [vmem:[#allocation2 + $0x2b0] sm:$0xff] %v4408
        %4665 = vst [vmem:[#allocation2 + $0x2b8] sm:$0xff] %v4409
        %4666 = vst [vmem:[#allocation2 + $0x2c0] sm:$0xff] %v4410
        %4667 = vst [vmem:[#allocation2 + $0x2c8] sm:$0xff] %v4411
        %4668 = vst [vmem:[#allocation2 + $0x2d0] sm:$0xff] %v4412
        %4669 = vst [vmem:[#allocation2 + $0x2d8] sm:$0xff] %v4413
        %4670 = vst [vmem:[#allocation2 + $0x2e0] sm:$0xff] %v4414
        %4671 = vst [vmem:[#allocation2 + $0x2e8] sm:$0xff] %v4415
        %4672 = vst [vmem:[#allocation2 + $0x2f0] sm:$0xff] %v4416
        %4673 = vst [vmem:[#allocation2 + $0x2f8] sm:$0xff] %v4417
        %4674 = vst [vmem:[#allocation2 + $0x300] sm:$0xff] %v4418
        %4675 = vst [vmem:[#allocation2 + $0x308] sm:$0xff] %v4419
        %4676 = vst [vmem:[#allocation2 + $0x310] sm:$0xff] %v4420
        %4677 = vst [vmem:[#allocation2 + $0x318] sm:$0xff] %v4421
        %4678 = vst [vmem:[#allocation2 + $0x320] sm:$0xff] %v4422
        %4679 = vst [vmem:[#allocation2 + $0x328] sm:$0xff] %v4423
        %4680 = vst [vmem:[#allocation2 + $0x330] sm:$0xff] %v4424
        %4681 = vst [vmem:[#allocation2 + $0x338] sm:$0xff] %v4425
        %4682 = vst [vmem:[#allocation2 + $0x340] sm:$0xff] %v4426
        %4683 = vst [vmem:[#allocation2 + $0x348] sm:$0xff] %v4427
        %4684 = vst [vmem:[#allocation2 + $0x350] sm:$0xff] %v4428
        %4685 = vst [vmem:[#allocation2 + $0x358] sm:$0xff] %v4429
        %4686 = vst [vmem:[#allocation2 + $0x360] sm:$0xff] %v4430
        %4687 = vst [vmem:[#allocation2 + $0x368] sm:$0xff] %v4431
        %4688 = vst [vmem:[#allocation2 + $0x370] sm:$0xff] %v4432
        %4689 = vst [vmem:[#allocation2 + $0x378] sm:$0xff] %v4433
        %4690 = vst [vmem:[#allocation2 + $0x380] sm:$0xff] %v4434
        %4691 = vst [vmem:[#allocation2 + $0x388] sm:$0xff] %v4435
        %4692 = vst [vmem:[#allocation2 + $0x390] sm:$0xff] %v4436
        %4693 = vst [vmem:[#allocation2 + $0x398] sm:$0xff] %v4437
        %4694 = vst [vmem:[#allocation2 + $0x3a0] sm:$0xff] %v4438
        %4695 = vst [vmem:[#allocation2 + $0x3a8] sm:$0xff] %v4439
        %4696 = vst [vmem:[#allocation2 + $0x3b0] sm:$0xff] %v4440
        %4697 = vst [vmem:[#allocation2 + $0x3b8] sm:$0xff] %v4441
        %4698 = vst [vmem:[#allocation2 + $0x3c0] sm:$0xff] %v4442
        %4699 = vst [vmem:[#allocation2 + $0x3c8] sm:$0xff] %v4443
        %4700 = vst [vmem:[#allocation2 + $0x3d0] sm:$0xff] %v4444
        %4701 = vst [vmem:[#allocation2 + $0x3d8] sm:$0xff] %v4445
        %4702 = vst [vmem:[#allocation2 + $0x3e0] sm:$0xff] %v4446
        %4703 = vst [vmem:[#allocation2 + $0x3e8] sm:$0xff] %v4447
        %4704 = vst [vmem:[#allocation2 + $0x3f0] sm:$0xff] %v4448
        %4705 = vst [vmem:[#allocation2 + $0x3f8] sm:$0xff] %v4449
        %4706 = vst [vmem:[#allocation2 + $0x400] sm:$0xff] %v4450
        %4707 = vst [vmem:[#allocation2 + $0x408] sm:$0xff] %v4451
        %4708 = vst [vmem:[#allocation2 + $0x410] sm:$0xff] %v4452
        %4709 = vst [vmem:[#allocation2 + $0x418] sm:$0xff] %v4453
        %4710 = vst [vmem:[#allocation2 + $0x420] sm:$0xff] %v4454
        %4711 = vst [vmem:[#allocation2 + $0x428] sm:$0xff] %v4455
        %4712 = vst [vmem:[#allocation2 + $0x430] sm:$0xff] %v4456
        %4713 = vst [vmem:[#allocation2 + $0x438] sm:$0xff] %v4457
        %4714 = vst [vmem:[#allocation2 + $0x440] sm:$0xff] %v4458
        %4715 = vst [vmem:[#allocation2 + $0x448] sm:$0xff] %v4459
        %4716 = vst [vmem:[#allocation2 + $0x450] sm:$0xff] %v4460
        %4717 = vst [vmem:[#allocation2 + $0x458] sm:$0xff] %v4461
        %4718 = vst [vmem:[#allocation2 + $0x460] sm:$0xff] %v4462
        %4719 = vst [vmem:[#allocation2 + $0x468] sm:$0xff] %v4463
        %4720 = vst [vmem:[#allocation2 + $0x470] sm:$0xff] %v4464
        %4721 = vst [vmem:[#allocation2 + $0x478] sm:$0xff] %v4465
        %4722 = vst [vmem:[#allocation2 + $0x480] sm:$0xff] %v4466
        %4723 = vst [vmem:[#allocation2 + $0x488] sm:$0xff] %v4467
        %4724 = vst [vmem:[#allocation2 + $0x490] sm:$0xff] %v4468
        %4725 = vst [vmem:[#allocation2 + $0x498] sm:$0xff] %v4469
        %4726 = vst [vmem:[#allocation2 + $0x4a0] sm:$0xff] %v4470
        %4727 = vst [vmem:[#allocation2 + $0x4a8] sm:$0xff] %v4471
        %4728 = vst [vmem:[#allocation2 + $0x4b0] sm:$0xff] %v4472
        %4729 = vst [vmem:[#allocation2 + $0x4b8] sm:$0xff] %v4473
        %4730 = vst [vmem:[#allocation2 + $0x4c0] sm:$0xff] %v4474
        %4731 = vst [vmem:[#allocation2 + $0x4c8] sm:$0xff] %v4475
        %4732 = vst [vmem:[#allocation2 + $0x4d0] sm:$0xff] %v4476
        %4733 = vst [vmem:[#allocation2 + $0x4d8] sm:$0xff] %v4477
        %4734 = vst [vmem:[#allocation2 + $0x4e0] sm:$0xff] %v4478
        %4735 = vst [vmem:[#allocation2 + $0x4e8] sm:$0xff] %v4479
        %4736 = vst [vmem:[#allocation2 + $0x4f0] sm:$0xff] %v4480
        %4737 = vst [vmem:[#allocation2 + $0x4f8] sm:$0xff] %v4481
        %4738 = vst [vmem:[#allocation2 + $0x500] sm:$0xff] %v4482
        %4739 = vst [vmem:[#allocation2 + $0x508] sm:$0xff] %v4483
        %4740 = vst [vmem:[#allocation2 + $0x510] sm:$0xff] %v4484
        %4741 = vst [vmem:[#allocation2 + $0x518] sm:$0xff] %v4485
        %4742 = vst [vmem:[#allocation2 + $0x520] sm:$0xff] %v4486
        %4743 = vst [vmem:[#allocation2 + $0x528] sm:$0xff] %v4487
        %4744 = vst [vmem:[#allocation2 + $0x530] sm:$0xff] %v4488
        %4745 = vst [vmem:[#allocation2 + $0x538] sm:$0xff] %v4489
        %4746 = vst [vmem:[#allocation2 + $0x540] sm:$0xff] %v4490
        %4747 = vst [vmem:[#allocation2 + $0x548] sm:$0xff] %v4491
        %4748 = vst [vmem:[#allocation2 + $0x550] sm:$0xff] %v4492
        %4749 = vst [vmem:[#allocation2 + $0x558] sm:$0xff] %v4493
        %4750 = vst [vmem:[#allocation2 + $0x560] sm:$0xff] %v4494
        %4751 = vst [vmem:[#allocation2 + $0x568] sm:$0xff] %v4495
        %4752 = vst [vmem:[#allocation2 + $0x570] sm:$0xff] %v4496
        %4753 = vst [vmem:[#allocation2 + $0x578] sm:$0xff] %v4497
        %4754 = vst [vmem:[#allocation2 + $0x580] sm:$0xff] %v4498
        %4755 = vst [vmem:[#allocation2 + $0x588] sm:$0xff] %v4499
        %4756 = vst [vmem:[#allocation2 + $0x590] sm:$0xff] %v4500
        %4757 = vst [vmem:[#allocation2 + $0x598] sm:$0xff] %v4501
        %4758 = vst [vmem:[#allocation2 + $0x5a0] sm:$0xff] %v4502
        %4759 = vst [vmem:[#allocation2 + $0x5a8] sm:$0xff] %v4503
        %4760 = vst [vmem:[#allocation2 + $0x5b0] sm:$0xff] %v4504
        %4761 = vst [vmem:[#allocation2 + $0x5b8] sm:$0xff] %v4505
        %4762 = vst [vmem:[#allocation2 + $0x5c0] sm:$0xff] %v4506
        %4763 = vst [vmem:[#allocation2 + $0x5c8] sm:$0xff] %v4507
        %4764 = vst [vmem:[#allocation2 + $0x5d0] sm:$0xff] %v4508
        %4765 = vst [vmem:[#allocation2 + $0x5d8] sm:$0xff] %v4509
        %4766 = vst [vmem:[#allocation2 + $0x5e0] sm:$0xff] %v4510
        %4767 = vst [vmem:[#allocation2 + $0x5e8] sm:$0xff] %v4511
        %4768 = vst [vmem:[#allocation2 + $0x5f0] sm:$0xff] %v4512
        %4769 = vst [vmem:[#allocation2 + $0x5f8] sm:$0xff] %v4513
        %4770 = vst [vmem:[#allocation2 + $0x600] sm:$0xff] %v4514
        %4771 = vst [vmem:[#allocation2 + $0x608] sm:$0xff] %v4515
        %4772 = vst [vmem:[#allocation2 + $0x610] sm:$0xff] %v4516
        %4773 = vst [vmem:[#allocation2 + $0x618] sm:$0xff] %v4517
        %4774 = vst [vmem:[#allocation2 + $0x620] sm:$0xff] %v4518
        %4775 = vst [vmem:[#allocation2 + $0x628] sm:$0xff] %v4519
        %4776 = vst [vmem:[#allocation2 + $0x630] sm:$0xff] %v4520
        %4777 = vst [vmem:[#allocation2 + $0x638] sm:$0xff] %v4521
        %4778 = vst [vmem:[#allocation2 + $0x640] sm:$0xff] %v4522
        %4779 = vst [vmem:[#allocation2 + $0x648] sm:$0xff] %v4523
        %4780 = vst [vmem:[#allocation2 + $0x650] sm:$0xff] %v4524
        %4781 = vst [vmem:[#allocation2 + $0x658] sm:$0xff] %v4525
        %4782 = vst [vmem:[#allocation2 + $0x660] sm:$0xff] %v4526
        %4783 = vst [vmem:[#allocation2 + $0x668] sm:$0xff] %v4527
        %4784 = vst [vmem:[#allocation2 + $0x670] sm:$0xff] %v4528
        %4785 = vst [vmem:[#allocation2 + $0x678] sm:$0xff] %v4529
        %4786 = vst [vmem:[#allocation2 + $0x680] sm:$0xff] %v4530
        %4787 = vst [vmem:[#allocation2 + $0x688] sm:$0xff] %v4531
        %4788 = vst [vmem:[#allocation2 + $0x690] sm:$0xff] %v4532
        %4789 = vst [vmem:[#allocation2 + $0x698] sm:$0xff] %v4533
        %4790 = vst [vmem:[#allocation2 + $0x6a0] sm:$0xff] %v4534
        %4791 = vst [vmem:[#allocation2 + $0x6a8] sm:$0xff] %v4535
        %4792 = vst [vmem:[#allocation2 + $0x6b0] sm:$0xff] %v4536
        %4793 = vst [vmem:[#allocation2 + $0x6b8] sm:$0xff] %v4537
        %4794 = vst [vmem:[#allocation2 + $0x6c0] sm:$0xff] %v4538
        %4795 = vst [vmem:[#allocation2 + $0x6c8] sm:$0xff] %v4539
        %4796 = vst [vmem:[#allocation2 + $0x6d0] sm:$0xff] %v4540
        %4797 = vst [vmem:[#allocation2 + $0x6d8] sm:$0xff] %v4541
        %4798 = vst [vmem:[#allocation2 + $0x6e0] sm:$0xff] %v4542
        %4799 = vst [vmem:[#allocation2 + $0x6e8] sm:$0xff] %v4543
        %4800 = vst [vmem:[#allocation2 + $0x6f0] sm:$0xff] %v4544
        %4801 = vst [vmem:[#allocation2 + $0x6f8] sm:$0xff] %v4545
        %4802 = vst [vmem:[#allocation2 + $0x700] sm:$0xff] %v4546
        %4803 = vst [vmem:[#allocation2 + $0x708] sm:$0xff] %v4547
        %4804 = vst [vmem:[#allocation2 + $0x710] sm:$0xff] %v4548
        %4805 = vst [vmem:[#allocation2 + $0x718] sm:$0xff] %v4549
        %4806 = vst [vmem:[#allocation2 + $0x720] sm:$0xff] %v4550
        %4807 = vst [vmem:[#allocation2 + $0x728] sm:$0xff] %v4551
        %4808 = vst [vmem:[#allocation2 + $0x730] sm:$0xff] %v4552
        %4809 = vst [vmem:[#allocation2 + $0x738] sm:$0xff] %v4553
        %4810 = vst [vmem:[#allocation2 + $0x740] sm:$0xff] %v4554
        %4811 = vst [vmem:[#allocation2 + $0x748] sm:$0xff] %v4555
        %4812 = vst [vmem:[#allocation2 + $0x750] sm:$0xff] %v4556
        %4813 = vst [vmem:[#allocation2 + $0x758] sm:$0xff] %v4557
        %4814 = vst [vmem:[#allocation2 + $0x760] sm:$0xff] %v4558
        %4815 = vst [vmem:[#allocation2 + $0x768] sm:$0xff] %v4559
        %4816 = vst [vmem:[#allocation2 + $0x770] sm:$0xff] %v4560
        %4817 = vst [vmem:[#allocation2 + $0x778] sm:$0xff] %v4561
        %4818 = vst [vmem:[#allocation2 + $0x780] sm:$0xff] %v4562
        %4819 = vst [vmem:[#allocation2 + $0x788] sm:$0xff] %v4563
        %4820 = vst [vmem:[#allocation2 + $0x790] sm:$0xff] %v4564
        %4821 = vst [vmem:[#allocation2 + $0x798] sm:$0xff] %v4565
        %4822 = vst [vmem:[#allocation2 + $0x7a0] sm:$0xff] %v4566
        %4823 = vst [vmem:[#allocation2 + $0x7a8] sm:$0xff] %v4567
        %4824 = vst [vmem:[#allocation2 + $0x7b0] sm:$0xff] %v4568
        %4825 = vst [vmem:[#allocation2 + $0x7b8] sm:$0xff] %v4569
        %4826 = vst [vmem:[#allocation2 + $0x7c0] sm:$0xff] %v4570
        %4827 = vst [vmem:[#allocation2 + $0x7c8] sm:$0xff] %v4571
        %4828 = vst [vmem:[#allocation2 + $0x7d0] sm:$0xff] %v4572
        %4829 = vst [vmem:[#allocation2 + $0x7d8] sm:$0xff] %v4573
        %4830 = vst [vmem:[#allocation2 + $0x7e0] sm:$0xff] %v4574
        %4831 = vst [vmem:[#allocation2 + $0x7e8] sm:$0xff] %v4575
        %4832 = vst [vmem:[#allocation2 + $0x7f0] sm:$0xff] %v4576
        %4833 = vst [vmem:[#allocation2 + $0x7f8] sm:$0xff] %v4577
        // Predicated region
        $region60: #{_lambda_.1} parent=50 // pred_check
          %p4834 = pneg %p853
        $region61: #{_lambda_.1} parent=50 // pred_check_branch
          %4836 = sbr.rel (%p4834) target = $region63
        $region62: #{_lambda_.1} parent=50 // pred_region
          %v4837 = vld [vmem:[#allocation2] sm:$0xff]
          %v4838 = vld [vmem:[#allocation2 + $0x8] sm:$0xff]
          %v4839 = vld [vmem:[#allocation2 + $0x10] sm:$0xff]
          %v4840 = vld [vmem:[#allocation2 + $0x18] sm:$0xff]
          %v4841 = vld [vmem:[#allocation2 + $0x20] sm:$0xff]
          %v4842 = vld [vmem:[#allocation2 + $0x28] sm:$0xff]
          %v4843 = vld [vmem:[#allocation2 + $0x30] sm:$0xff]
          %v4844 = vld [vmem:[#allocation2 + $0x38] sm:$0xff]
          %v4845 = vld [vmem:[#allocation2 + $0x40] sm:$0xff]
          %v4846 = vld [vmem:[#allocation2 + $0x48] sm:$0xff]
          %v4847 = vld [vmem:[#allocation2 + $0x50] sm:$0xff]
          %v4848 = vld [vmem:[#allocation2 + $0x58] sm:$0xff]
          %v4849 = vld [vmem:[#allocation2 + $0x60] sm:$0xff]
          %v4850 = vld [vmem:[#allocation2 + $0x68] sm:$0xff]
          %v4851 = vld [vmem:[#allocation2 + $0x70] sm:$0xff]
          %v4852 = vld [vmem:[#allocation2 + $0x78] sm:$0xff]
          %v4853 = vld [vmem:[#allocation2 + $0x80] sm:$0xff]
          %v4854 = vld [vmem:[#allocation2 + $0x88] sm:$0xff]
          %v4855 = vld [vmem:[#allocation2 + $0x90] sm:$0xff]
          %v4856 = vld [vmem:[#allocation2 + $0x98] sm:$0xff]
          %v4857 = vld [vmem:[#allocation2 + $0xa0] sm:$0xff]
          %v4858 = vld [vmem:[#allocation2 + $0xa8] sm:$0xff]
          %v4859 = vld [vmem:[#allocation2 + $0xb0] sm:$0xff]
          %v4860 = vld [vmem:[#allocation2 + $0xb8] sm:$0xff]
          %v4861 = vld [vmem:[#allocation2 + $0xc0] sm:$0xff]
          %v4862 = vld [vmem:[#allocation2 + $0xc8] sm:$0xff]
          %v4863 = vld [vmem:[#allocation2 + $0xd0] sm:$0xff]
          %v4864 = vld [vmem:[#allocation2 + $0xd8] sm:$0xff]
          %v4865 = vld [vmem:[#allocation2 + $0xe0] sm:$0xff]
          %v4866 = vld [vmem:[#allocation2 + $0xe8] sm:$0xff]
          %v4867 = vld [vmem:[#allocation2 + $0xf0] sm:$0xff]
          %v4868 = vld [vmem:[#allocation2 + $0xf8] sm:$0xff]
          %v4869 = vld [vmem:[#allocation2 + $0x100] sm:$0xff]
          %v4870 = vld [vmem:[#allocation2 + $0x108] sm:$0xff]
          %v4871 = vld [vmem:[#allocation2 + $0x110] sm:$0xff]
          %v4872 = vld [vmem:[#allocation2 + $0x118] sm:$0xff]
          %v4873 = vld [vmem:[#allocation2 + $0x120] sm:$0xff]
          %v4874 = vld [vmem:[#allocation2 + $0x128] sm:$0xff]
          %v4875 = vld [vmem:[#allocation2 + $0x130] sm:$0xff]
          %v4876 = vld [vmem:[#allocation2 + $0x138] sm:$0xff]
          %v4877 = vld [vmem:[#allocation2 + $0x140] sm:$0xff]
          %v4878 = vld [vmem:[#allocation2 + $0x148] sm:$0xff]
          %v4879 = vld [vmem:[#allocation2 + $0x150] sm:$0xff]
          %v4880 = vld [vmem:[#allocation2 + $0x158] sm:$0xff]
          %v4881 = vld [vmem:[#allocation2 + $0x160] sm:$0xff]
          %v4882 = vld [vmem:[#allocation2 + $0x168] sm:$0xff]
          %v4883 = vld [vmem:[#allocation2 + $0x170] sm:$0xff]
          %v4884 = vld [vmem:[#allocation2 + $0x178] sm:$0xff]
          %v4885 = vld [vmem:[#allocation2 + $0x180] sm:$0xff]
          %v4886 = vld [vmem:[#allocation2 + $0x188] sm:$0xff]
          %v4887 = vld [vmem:[#allocation2 + $0x190] sm:$0xff]
          %v4888 = vld [vmem:[#allocation2 + $0x198] sm:$0xff]
          %v4889 = vld [vmem:[#allocation2 + $0x1a0] sm:$0xff]
          %v4890 = vld [vmem:[#allocation2 + $0x1a8] sm:$0xff]
          %v4891 = vld [vmem:[#allocation2 + $0x1b0] sm:$0xff]
          %v4892 = vld [vmem:[#allocation2 + $0x1b8] sm:$0xff]
          %v4893 = vld [vmem:[#allocation2 + $0x1c0] sm:$0xff]
          %v4894 = vld [vmem:[#allocation2 + $0x1c8] sm:$0xff]
          %v4895 = vld [vmem:[#allocation2 + $0x1d0] sm:$0xff]
          %v4896 = vld [vmem:[#allocation2 + $0x1d8] sm:$0xff]
          %v4897 = vld [vmem:[#allocation2 + $0x1e0] sm:$0xff]
          %v4898 = vld [vmem:[#allocation2 + $0x1e8] sm:$0xff]
          %v4899 = vld [vmem:[#allocation2 + $0x1f0] sm:$0xff]
          %v4900 = vld [vmem:[#allocation2 + $0x1f8] sm:$0xff]
          %v4901 = vld [vmem:[#allocation2 + $0x200] sm:$0xff]
          %v4902 = vld [vmem:[#allocation2 + $0x208] sm:$0xff]
          %v4903 = vld [vmem:[#allocation2 + $0x210] sm:$0xff]
          %v4904 = vld [vmem:[#allocation2 + $0x218] sm:$0xff]
          %v4905 = vld [vmem:[#allocation2 + $0x220] sm:$0xff]
          %v4906 = vld [vmem:[#allocation2 + $0x228] sm:$0xff]
          %v4907 = vld [vmem:[#allocation2 + $0x230] sm:$0xff]
          %v4908 = vld [vmem:[#allocation2 + $0x238] sm:$0xff]
          %v4909 = vld [vmem:[#allocation2 + $0x240] sm:$0xff]
          %v4910 = vld [vmem:[#allocation2 + $0x248] sm:$0xff]
          %v4911 = vld [vmem:[#allocation2 + $0x250] sm:$0xff]
          %v4912 = vld [vmem:[#allocation2 + $0x258] sm:$0xff]
          %v4913 = vld [vmem:[#allocation2 + $0x260] sm:$0xff]
          %v4914 = vld [vmem:[#allocation2 + $0x268] sm:$0xff]
          %v4915 = vld [vmem:[#allocation2 + $0x270] sm:$0xff]
          %v4916 = vld [vmem:[#allocation2 + $0x278] sm:$0xff]
          %v4917 = vld [vmem:[#allocation2 + $0x280] sm:$0xff]
          %v4918 = vld [vmem:[#allocation2 + $0x288] sm:$0xff]
          %v4919 = vld [vmem:[#allocation2 + $0x290] sm:$0xff]
          %v4920 = vld [vmem:[#allocation2 + $0x298] sm:$0xff]
          %v4921 = vld [vmem:[#allocation2 + $0x2a0] sm:$0xff]
          %v4922 = vld [vmem:[#allocation2 + $0x2a8] sm:$0xff]
          %v4923 = vld [vmem:[#allocation2 + $0x2b0] sm:$0xff]
          %v4924 = vld [vmem:[#allocation2 + $0x2b8] sm:$0xff]
          %v4925 = vld [vmem:[#allocation2 + $0x2c0] sm:$0xff]
          %v4926 = vld [vmem:[#allocation2 + $0x2c8] sm:$0xff]
          %v4927 = vld [vmem:[#allocation2 + $0x2d0] sm:$0xff]
          %v4928 = vld [vmem:[#allocation2 + $0x2d8] sm:$0xff]
          %v4929 = vld [vmem:[#allocation2 + $0x2e0] sm:$0xff]
          %v4930 = vld [vmem:[#allocation2 + $0x2e8] sm:$0xff]
          %v4931 = vld [vmem:[#allocation2 + $0x2f0] sm:$0xff]
          %v4932 = vld [vmem:[#allocation2 + $0x2f8] sm:$0xff]
          %v4933 = vld [vmem:[#allocation2 + $0x300] sm:$0xff]
          %v4934 = vld [vmem:[#allocation2 + $0x308] sm:$0xff]
          %v4935 = vld [vmem:[#allocation2 + $0x310] sm:$0xff]
          %v4936 = vld [vmem:[#allocation2 + $0x318] sm:$0xff]
          %v4937 = vld [vmem:[#allocation2 + $0x320] sm:$0xff]
          %v4938 = vld [vmem:[#allocation2 + $0x328] sm:$0xff]
          %v4939 = vld [vmem:[#allocation2 + $0x330] sm:$0xff]
          %v4940 = vld [vmem:[#allocation2 + $0x338] sm:$0xff]
          %v4941 = vld [vmem:[#allocation2 + $0x340] sm:$0xff]
          %v4942 = vld [vmem:[#allocation2 + $0x348] sm:$0xff]
          %v4943 = vld [vmem:[#allocation2 + $0x350] sm:$0xff]
          %v4944 = vld [vmem:[#allocation2 + $0x358] sm:$0xff]
          %v4945 = vld [vmem:[#allocation2 + $0x360] sm:$0xff]
          %v4946 = vld [vmem:[#allocation2 + $0x368] sm:$0xff]
          %v4947 = vld [vmem:[#allocation2 + $0x370] sm:$0xff]
          %v4948 = vld [vmem:[#allocation2 + $0x378] sm:$0xff]
          %v4949 = vld [vmem:[#allocation2 + $0x380] sm:$0xff]
          %v4950 = vld [vmem:[#allocation2 + $0x388] sm:$0xff]
          %v4951 = vld [vmem:[#allocation2 + $0x390] sm:$0xff]
          %v4952 = vld [vmem:[#allocation2 + $0x398] sm:$0xff]
          %v4953 = vld [vmem:[#allocation2 + $0x3a0] sm:$0xff]
          %v4954 = vld [vmem:[#allocation2 + $0x3a8] sm:$0xff]
          %v4955 = vld [vmem:[#allocation2 + $0x3b0] sm:$0xff]
          %v4956 = vld [vmem:[#allocation2 + $0x3b8] sm:$0xff]
          %v4957 = vld [vmem:[#allocation2 + $0x3c0] sm:$0xff]
          %v4958 = vld [vmem:[#allocation2 + $0x3c8] sm:$0xff]
          %v4959 = vld [vmem:[#allocation2 + $0x3d0] sm:$0xff]
          %v4960 = vld [vmem:[#allocation2 + $0x3d8] sm:$0xff]
          %v4961 = vld [vmem:[#allocation2 + $0x3e0] sm:$0xff]
          %v4962 = vld [vmem:[#allocation2 + $0x3e8] sm:$0xff]
          %v4963 = vld [vmem:[#allocation2 + $0x3f0] sm:$0xff]
          %v4964 = vld [vmem:[#allocation2 + $0x3f8] sm:$0xff]
          %v4965 = vld [vmem:[#allocation2 + $0x400] sm:$0xff]
          %v4966 = vld [vmem:[#allocation2 + $0x408] sm:$0xff]
          %v4967 = vld [vmem:[#allocation2 + $0x410] sm:$0xff]
          %v4968 = vld [vmem:[#allocation2 + $0x418] sm:$0xff]
          %v4969 = vld [vmem:[#allocation2 + $0x420] sm:$0xff]
          %v4970 = vld [vmem:[#allocation2 + $0x428] sm:$0xff]
          %v4971 = vld [vmem:[#allocation2 + $0x430] sm:$0xff]
          %v4972 = vld [vmem:[#allocation2 + $0x438] sm:$0xff]
          %v4973 = vld [vmem:[#allocation2 + $0x440] sm:$0xff]
          %v4974 = vld [vmem:[#allocation2 + $0x448] sm:$0xff]
          %v4975 = vld [vmem:[#allocation2 + $0x450] sm:$0xff]
          %v4976 = vld [vmem:[#allocation2 + $0x458] sm:$0xff]
          %v4977 = vld [vmem:[#allocation2 + $0x460] sm:$0xff]
          %v4978 = vld [vmem:[#allocation2 + $0x468] sm:$0xff]
          %v4979 = vld [vmem:[#allocation2 + $0x470] sm:$0xff]
          %v4980 = vld [vmem:[#allocation2 + $0x478] sm:$0xff]
          %v4981 = vld [vmem:[#allocation2 + $0x480] sm:$0xff]
          %v4982 = vld [vmem:[#allocation2 + $0x488] sm:$0xff]
          %v4983 = vld [vmem:[#allocation2 + $0x490] sm:$0xff]
          %v4984 = vld [vmem:[#allocation2 + $0x498] sm:$0xff]
          %v4985 = vld [vmem:[#allocation2 + $0x4a0] sm:$0xff]
          %v4986 = vld [vmem:[#allocation2 + $0x4a8] sm:$0xff]
          %v4987 = vld [vmem:[#allocation2 + $0x4b0] sm:$0xff]
          %v4988 = vld [vmem:[#allocation2 + $0x4b8] sm:$0xff]
          %v4989 = vld [vmem:[#allocation2 + $0x4c0] sm:$0xff]
          %v4990 = vld [vmem:[#allocation2 + $0x4c8] sm:$0xff]
          %v4991 = vld [vmem:[#allocation2 + $0x4d0] sm:$0xff]
          %v4992 = vld [vmem:[#allocation2 + $0x4d8] sm:$0xff]
          %v4993 = vld [vmem:[#allocation2 + $0x4e0] sm:$0xff]
          %v4994 = vld [vmem:[#allocation2 + $0x4e8] sm:$0xff]
          %v4995 = vld [vmem:[#allocation2 + $0x4f0] sm:$0xff]
          %v4996 = vld [vmem:[#allocation2 + $0x4f8] sm:$0xff]
          %v4997 = vld [vmem:[#allocation2 + $0x500] sm:$0xff]
          %v4998 = vld [vmem:[#allocation2 + $0x508] sm:$0xff]
          %v4999 = vld [vmem:[#allocation2 + $0x510] sm:$0xff]
          %v5000 = vld [vmem:[#allocation2 + $0x518] sm:$0xff]
          %v5001 = vld [vmem:[#allocation2 + $0x520] sm:$0xff]
          %v5002 = vld [vmem:[#allocation2 + $0x528] sm:$0xff]
          %v5003 = vld [vmem:[#allocation2 + $0x530] sm:$0xff]
          %v5004 = vld [vmem:[#allocation2 + $0x538] sm:$0xff]
          %v5005 = vld [vmem:[#allocation2 + $0x540] sm:$0xff]
          %v5006 = vld [vmem:[#allocation2 + $0x548] sm:$0xff]
          %v5007 = vld [vmem:[#allocation2 + $0x550] sm:$0xff]
          %v5008 = vld [vmem:[#allocation2 + $0x558] sm:$0xff]
          %v5009 = vld [vmem:[#allocation2 + $0x560] sm:$0xff]
          %v5010 = vld [vmem:[#allocation2 + $0x568] sm:$0xff]
          %v5011 = vld [vmem:[#allocation2 + $0x570] sm:$0xff]
          %v5012 = vld [vmem:[#allocation2 + $0x578] sm:$0xff]
          %v5013 = vld [vmem:[#allocation2 + $0x580] sm:$0xff]
          %v5014 = vld [vmem:[#allocation2 + $0x588] sm:$0xff]
          %v5015 = vld [vmem:[#allocation2 + $0x590] sm:$0xff]
          %v5016 = vld [vmem:[#allocation2 + $0x598] sm:$0xff]
          %v5017 = vld [vmem:[#allocation2 + $0x5a0] sm:$0xff]
          %v5018 = vld [vmem:[#allocation2 + $0x5a8] sm:$0xff]
          %v5019 = vld [vmem:[#allocation2 + $0x5b0] sm:$0xff]
          %v5020 = vld [vmem:[#allocation2 + $0x5b8] sm:$0xff]
          %v5021 = vld [vmem:[#allocation2 + $0x5c0] sm:$0xff]
          %v5022 = vld [vmem:[#allocation2 + $0x5c8] sm:$0xff]
          %v5023 = vld [vmem:[#allocation2 + $0x5d0] sm:$0xff]
          %v5024 = vld [vmem:[#allocation2 + $0x5d8] sm:$0xff]
          %v5025 = vld [vmem:[#allocation2 + $0x5e0] sm:$0xff]
          %v5026 = vld [vmem:[#allocation2 + $0x5e8] sm:$0xff]
          %v5027 = vld [vmem:[#allocation2 + $0x5f0] sm:$0xff]
          %v5028 = vld [vmem:[#allocation2 + $0x5f8] sm:$0xff]
          %v5029 = vld [vmem:[#allocation2 + $0x600] sm:$0xff]
          %v5030 = vld [vmem:[#allocation2 + $0x608] sm:$0xff]
          %v5031 = vld [vmem:[#allocation2 + $0x610] sm:$0xff]
          %v5032 = vld [vmem:[#allocation2 + $0x618] sm:$0xff]
          %v5033 = vld [vmem:[#allocation2 + $0x620] sm:$0xff]
          %v5034 = vld [vmem:[#allocation2 + $0x628] sm:$0xff]
          %v5035 = vld [vmem:[#allocation2 + $0x630] sm:$0xff]
          %v5036 = vld [vmem:[#allocation2 + $0x638] sm:$0xff]
          %v5037 = vld [vmem:[#allocation2 + $0x640] sm:$0xff]
          %v5038 = vld [vmem:[#allocation2 + $0x648] sm:$0xff]
          %v5039 = vld [vmem:[#allocation2 + $0x650] sm:$0xff]
          %v5040 = vld [vmem:[#allocation2 + $0x658] sm:$0xff]
          %v5041 = vld [vmem:[#allocation2 + $0x660] sm:$0xff]
          %v5042 = vld [vmem:[#allocation2 + $0x668] sm:$0xff]
          %v5043 = vld [vmem:[#allocation2 + $0x670] sm:$0xff]
          %v5044 = vld [vmem:[#allocation2 + $0x678] sm:$0xff]
          %v5045 = vld [vmem:[#allocation2 + $0x680] sm:$0xff]
          %v5046 = vld [vmem:[#allocation2 + $0x688] sm:$0xff]
          %v5047 = vld [vmem:[#allocation2 + $0x690] sm:$0xff]
          %v5048 = vld [vmem:[#allocation2 + $0x698] sm:$0xff]
          %v5049 = vld [vmem:[#allocation2 + $0x6a0] sm:$0xff]
          %v5050 = vld [vmem:[#allocation2 + $0x6a8] sm:$0xff]
          %v5051 = vld [vmem:[#allocation2 + $0x6b0] sm:$0xff]
          %v5052 = vld [vmem:[#allocation2 + $0x6b8] sm:$0xff]
          %v5053 = vld [vmem:[#allocation2 + $0x6c0] sm:$0xff]
          %v5054 = vld [vmem:[#allocation2 + $0x6c8] sm:$0xff]
          %v5055 = vld [vmem:[#allocation2 + $0x6d0] sm:$0xff]
          %v5056 = vld [vmem:[#allocation2 + $0x6d8] sm:$0xff]
          %v5057 = vld [vmem:[#allocation2 + $0x6e0] sm:$0xff]
          %v5058 = vld [vmem:[#allocation2 + $0x6e8] sm:$0xff]
          %v5059 = vld [vmem:[#allocation2 + $0x6f0] sm:$0xff]
          %v5060 = vld [vmem:[#allocation2 + $0x6f8] sm:$0xff]
          %v5061 = vld [vmem:[#allocation2 + $0x700] sm:$0xff]
          %v5062 = vld [vmem:[#allocation2 + $0x708] sm:$0xff]
          %v5063 = vld [vmem:[#allocation2 + $0x710] sm:$0xff]
          %v5064 = vld [vmem:[#allocation2 + $0x718] sm:$0xff]
          %v5065 = vld [vmem:[#allocation2 + $0x720] sm:$0xff]
          %v5066 = vld [vmem:[#allocation2 + $0x728] sm:$0xff]
          %v5067 = vld [vmem:[#allocation2 + $0x730] sm:$0xff]
          %v5068 = vld [vmem:[#allocation2 + $0x738] sm:$0xff]
          %v5069 = vld [vmem:[#allocation2 + $0x740] sm:$0xff]
          %v5070 = vld [vmem:[#allocation2 + $0x748] sm:$0xff]
          %v5071 = vld [vmem:[#allocation2 + $0x750] sm:$0xff]
          %v5072 = vld [vmem:[#allocation2 + $0x758] sm:$0xff]
          %v5073 = vld [vmem:[#allocation2 + $0x760] sm:$0xff]
          %v5074 = vld [vmem:[#allocation2 + $0x768] sm:$0xff]
          %v5075 = vld [vmem:[#allocation2 + $0x770] sm:$0xff]
          %v5076 = vld [vmem:[#allocation2 + $0x778] sm:$0xff]
          %v5077 = vld [vmem:[#allocation2 + $0x780] sm:$0xff]
          %v5078 = vld [vmem:[#allocation2 + $0x788] sm:$0xff]
          %v5079 = vld [vmem:[#allocation2 + $0x790] sm:$0xff]
          %v5080 = vld [vmem:[#allocation2 + $0x798] sm:$0xff]
          %v5081 = vld [vmem:[#allocation2 + $0x7a0] sm:$0xff]
          %v5082 = vld [vmem:[#allocation2 + $0x7a8] sm:$0xff]
          %v5083 = vld [vmem:[#allocation2 + $0x7b0] sm:$0xff]
          %v5084 = vld [vmem:[#allocation2 + $0x7b8] sm:$0xff]
          %v5085 = vld [vmem:[#allocation2 + $0x7c0] sm:$0xff]
          %v5086 = vld [vmem:[#allocation2 + $0x7c8] sm:$0xff]
          %v5087 = vld [vmem:[#allocation2 + $0x7d0] sm:$0xff]
          %v5088 = vld [vmem:[#allocation2 + $0x7d8] sm:$0xff]
          %v5089 = vld [vmem:[#allocation2 + $0x7e0] sm:$0xff]
          %v5090 = vld [vmem:[#allocation2 + $0x7e8] sm:$0xff]
          %v5091 = vld [vmem:[#allocation2 + $0x7f0] sm:$0xff]
          %v5092 = vld [vmem:[#allocation2 + $0x7f8] sm:$0xff]
          %v5093 = vld [vmem:[%s848] sm:$0xff]
          %v5094 = vld [vmem:[%s848 + $0x8] sm:$0xff]
          %v5095 = vld [vmem:[%s848 + $0x10] sm:$0xff]
          %v5096 = vld [vmem:[%s848 + $0x18] sm:$0xff]
          %v5097 = vld [vmem:[%s848 + $0x20] sm:$0xff]
          %v5098 = vld [vmem:[%s848 + $0x28] sm:$0xff]
          %v5099 = vld [vmem:[%s848 + $0x30] sm:$0xff]
          %v5100 = vld [vmem:[%s848 + $0x38] sm:$0xff]
          %5102 = vset.pattern.permute.xlu0 0
          %5103 = vperm.xlu0 %5102, %v5093
          %v5104 = vpop.permute.xlu0 %5103
          %5107 = vset.pattern.permute.xlu0 0
          %5108 = vperm.xlu0 %5107, %v5094
          %v5109 = vpop.permute.xlu0 %5108
          %5112 = vset.pattern.permute.xlu0 0
          %5113 = vperm.xlu0 %5112, %v5095
          %v5114 = vpop.permute.xlu0 %5113
          %5117 = vset.pattern.permute.xlu0 0
          %5118 = vperm.xlu0 %5117, %v5096
          %v5119 = vpop.permute.xlu0 %5118
          %5122 = vset.pattern.permute.xlu0 0
          %5123 = vperm.xlu0 %5122, %v5097
          %v5124 = vpop.permute.xlu0 %5123
          %5127 = vset.pattern.permute.xlu0 0
          %5128 = vperm.xlu0 %5127, %v5098
          %v5129 = vpop.permute.xlu0 %5128
          %5132 = vset.pattern.permute.xlu0 0
          %5133 = vperm.xlu0 %5132, %v5099
          %v5134 = vpop.permute.xlu0 %5133
          %5137 = vset.pattern.permute.xlu0 0
          %5138 = vperm.xlu0 %5137, %v5100
          %v5139 = vpop.permute.xlu0 %5138
          %v5141 = vadd.f32 %v4837, %v5104
          %v5142 = vadd.f32 %v4838, %v5104
          %v5143 = vadd.f32 %v4839, %v5104
          %v5144 = vadd.f32 %v4840, %v5104
          %v5145 = vadd.f32 %v4841, %v5104
          %v5146 = vadd.f32 %v4842, %v5104
          %v5147 = vadd.f32 %v4843, %v5104
          %v5148 = vadd.f32 %v4844, %v5104
          %v5149 = vadd.f32 %v4845, %v5104
          %v5150 = vadd.f32 %v4846, %v5104
          %v5151 = vadd.f32 %v4847, %v5104
          %v5152 = vadd.f32 %v4848, %v5104
          %v5153 = vadd.f32 %v4849, %v5104
          %v5154 = vadd.f32 %v4850, %v5104
          %v5155 = vadd.f32 %v4851, %v5104
          %v5156 = vadd.f32 %v4852, %v5104
          %v5157 = vadd.f32 %v4853, %v5104
          %v5158 = vadd.f32 %v4854, %v5104
          %v5159 = vadd.f32 %v4855, %v5104
          %v5160 = vadd.f32 %v4856, %v5104
          %v5161 = vadd.f32 %v4857, %v5104
          %v5162 = vadd.f32 %v4858, %v5104
          %v5163 = vadd.f32 %v4859, %v5104
          %v5164 = vadd.f32 %v4860, %v5104
          %v5165 = vadd.f32 %v4861, %v5104
          %v5166 = vadd.f32 %v4862, %v5104
          %v5167 = vadd.f32 %v4863, %v5104
          %v5168 = vadd.f32 %v4864, %v5104
          %v5169 = vadd.f32 %v4865, %v5104
          %v5170 = vadd.f32 %v4866, %v5104
          %v5171 = vadd.f32 %v4867, %v5104
          %v5172 = vadd.f32 %v4868, %v5104
          %v5173 = vadd.f32 %v4869, %v5109
          %v5174 = vadd.f32 %v4870, %v5109
          %v5175 = vadd.f32 %v4871, %v5109
          %v5176 = vadd.f32 %v4872, %v5109
          %v5177 = vadd.f32 %v4873, %v5109
          %v5178 = vadd.f32 %v4874, %v5109
          %v5179 = vadd.f32 %v4875, %v5109
          %v5180 = vadd.f32 %v4876, %v5109
          %v5181 = vadd.f32 %v4877, %v5109
          %v5182 = vadd.f32 %v4878, %v5109
          %v5183 = vadd.f32 %v4879, %v5109
          %v5184 = vadd.f32 %v4880, %v5109
          %v5185 = vadd.f32 %v4881, %v5109
          %v5186 = vadd.f32 %v4882, %v5109
          %v5187 = vadd.f32 %v4883, %v5109
          %v5188 = vadd.f32 %v4884, %v5109
          %v5189 = vadd.f32 %v4885, %v5109
          %v5190 = vadd.f32 %v4886, %v5109
          %v5191 = vadd.f32 %v4887, %v5109
          %v5192 = vadd.f32 %v4888, %v5109
          %v5193 = vadd.f32 %v4889, %v5109
          %v5194 = vadd.f32 %v4890, %v5109
          %v5195 = vadd.f32 %v4891, %v5109
          %v5196 = vadd.f32 %v4892, %v5109
          %v5197 = vadd.f32 %v4893, %v5109
          %v5198 = vadd.f32 %v4894, %v5109
          %v5199 = vadd.f32 %v4895, %v5109
          %v5200 = vadd.f32 %v4896, %v5109
          %v5201 = vadd.f32 %v4897, %v5109
          %v5202 = vadd.f32 %v4898, %v5109
          %v5203 = vadd.f32 %v4899, %v5109
          %v5204 = vadd.f32 %v4900, %v5109
          %v5205 = vadd.f32 %v4901, %v5114
          %v5206 = vadd.f32 %v4902, %v5114
          %v5207 = vadd.f32 %v4903, %v5114
          %v5208 = vadd.f32 %v4904, %v5114
          %v5209 = vadd.f32 %v4905, %v5114
          %v5210 = vadd.f32 %v4906, %v5114
          %v5211 = vadd.f32 %v4907, %v5114
          %v5212 = vadd.f32 %v4908, %v5114
          %v5213 = vadd.f32 %v4909, %v5114
          %v5214 = vadd.f32 %v4910, %v5114
          %v5215 = vadd.f32 %v4911, %v5114
          %v5216 = vadd.f32 %v4912, %v5114
          %v5217 = vadd.f32 %v4913, %v5114
          %v5218 = vadd.f32 %v4914, %v5114
          %v5219 = vadd.f32 %v4915, %v5114
          %v5220 = vadd.f32 %v4916, %v5114
          %v5221 = vadd.f32 %v4917, %v5114
          %v5222 = vadd.f32 %v4918, %v5114
          %v5223 = vadd.f32 %v4919, %v5114
          %v5224 = vadd.f32 %v4920, %v5114
          %v5225 = vadd.f32 %v4921, %v5114
          %v5226 = vadd.f32 %v4922, %v5114
          %v5227 = vadd.f32 %v4923, %v5114
          %v5228 = vadd.f32 %v4924, %v5114
          %v5229 = vadd.f32 %v4925, %v5114
          %v5230 = vadd.f32 %v4926, %v5114
          %v5231 = vadd.f32 %v4927, %v5114
          %v5232 = vadd.f32 %v4928, %v5114
          %v5233 = vadd.f32 %v4929, %v5114
          %v5234 = vadd.f32 %v4930, %v5114
          %v5235 = vadd.f32 %v4931, %v5114
          %v5236 = vadd.f32 %v4932, %v5114
          %v5237 = vadd.f32 %v4933, %v5119
          %v5238 = vadd.f32 %v4934, %v5119
          %v5239 = vadd.f32 %v4935, %v5119
          %v5240 = vadd.f32 %v4936, %v5119
          %v5241 = vadd.f32 %v4937, %v5119
          %v5242 = vadd.f32 %v4938, %v5119
          %v5243 = vadd.f32 %v4939, %v5119
          %v5244 = vadd.f32 %v4940, %v5119
          %v5245 = vadd.f32 %v4941, %v5119
          %v5246 = vadd.f32 %v4942, %v5119
          %v5247 = vadd.f32 %v4943, %v5119
          %v5248 = vadd.f32 %v4944, %v5119
          %v5249 = vadd.f32 %v4945, %v5119
          %v5250 = vadd.f32 %v4946, %v5119
          %v5251 = vadd.f32 %v4947, %v5119
          %v5252 = vadd.f32 %v4948, %v5119
          %v5253 = vadd.f32 %v4949, %v5119
          %v5254 = vadd.f32 %v4950, %v5119
          %v5255 = vadd.f32 %v4951, %v5119
          %v5256 = vadd.f32 %v4952, %v5119
          %v5257 = vadd.f32 %v4953, %v5119
          %v5258 = vadd.f32 %v4954, %v5119
          %v5259 = vadd.f32 %v4955, %v5119
          %v5260 = vadd.f32 %v4956, %v5119
          %v5261 = vadd.f32 %v4957, %v5119
          %v5262 = vadd.f32 %v4958, %v5119
          %v5263 = vadd.f32 %v4959, %v5119
          %v5264 = vadd.f32 %v4960, %v5119
          %v5265 = vadd.f32 %v4961, %v5119
          %v5266 = vadd.f32 %v4962, %v5119
          %v5267 = vadd.f32 %v4963, %v5119
          %v5268 = vadd.f32 %v4964, %v5119
          %v5269 = vadd.f32 %v4965, %v5124
          %v5270 = vadd.f32 %v4966, %v5124
          %v5271 = vadd.f32 %v4967, %v5124
          %v5272 = vadd.f32 %v4968, %v5124
          %v5273 = vadd.f32 %v4969, %v5124
          %v5274 = vadd.f32 %v4970, %v5124
          %v5275 = vadd.f32 %v4971, %v5124
          %v5276 = vadd.f32 %v4972, %v5124
          %v5277 = vadd.f32 %v4973, %v5124
          %v5278 = vadd.f32 %v4974, %v5124
          %v5279 = vadd.f32 %v4975, %v5124
          %v5280 = vadd.f32 %v4976, %v5124
          %v5281 = vadd.f32 %v4977, %v5124
          %v5282 = vadd.f32 %v4978, %v5124
          %v5283 = vadd.f32 %v4979, %v5124
          %v5284 = vadd.f32 %v4980, %v5124
          %v5285 = vadd.f32 %v4981, %v5124
          %v5286 = vadd.f32 %v4982, %v5124
          %v5287 = vadd.f32 %v4983, %v5124
          %v5288 = vadd.f32 %v4984, %v5124
          %v5289 = vadd.f32 %v4985, %v5124
          %v5290 = vadd.f32 %v4986, %v5124
          %v5291 = vadd.f32 %v4987, %v5124
          %v5292 = vadd.f32 %v4988, %v5124
          %v5293 = vadd.f32 %v4989, %v5124
          %v5294 = vadd.f32 %v4990, %v5124
          %v5295 = vadd.f32 %v4991, %v5124
          %v5296 = vadd.f32 %v4992, %v5124
          %v5297 = vadd.f32 %v4993, %v5124
          %v5298 = vadd.f32 %v4994, %v5124
          %v5299 = vadd.f32 %v4995, %v5124
          %v5300 = vadd.f32 %v4996, %v5124
          %v5301 = vadd.f32 %v4997, %v5129
          %v5302 = vadd.f32 %v4998, %v5129
          %v5303 = vadd.f32 %v4999, %v5129
          %v5304 = vadd.f32 %v5000, %v5129
          %v5305 = vadd.f32 %v5001, %v5129
          %v5306 = vadd.f32 %v5002, %v5129
          %v5307 = vadd.f32 %v5003, %v5129
          %v5308 = vadd.f32 %v5004, %v5129
          %v5309 = vadd.f32 %v5005, %v5129
          %v5310 = vadd.f32 %v5006, %v5129
          %v5311 = vadd.f32 %v5007, %v5129
          %v5312 = vadd.f32 %v5008, %v5129
          %v5313 = vadd.f32 %v5009, %v5129
          %v5314 = vadd.f32 %v5010, %v5129
          %v5315 = vadd.f32 %v5011, %v5129
          %v5316 = vadd.f32 %v5012, %v5129
          %v5317 = vadd.f32 %v5013, %v5129
          %v5318 = vadd.f32 %v5014, %v5129
          %v5319 = vadd.f32 %v5015, %v5129
          %v5320 = vadd.f32 %v5016, %v5129
          %v5321 = vadd.f32 %v5017, %v5129
          %v5322 = vadd.f32 %v5018, %v5129
          %v5323 = vadd.f32 %v5019, %v5129
          %v5324 = vadd.f32 %v5020, %v5129
          %v5325 = vadd.f32 %v5021, %v5129
          %v5326 = vadd.f32 %v5022, %v5129
          %v5327 = vadd.f32 %v5023, %v5129
          %v5328 = vadd.f32 %v5024, %v5129
          %v5329 = vadd.f32 %v5025, %v5129
          %v5330 = vadd.f32 %v5026, %v5129
          %v5331 = vadd.f32 %v5027, %v5129
          %v5332 = vadd.f32 %v5028, %v5129
          %v5333 = vadd.f32 %v5029, %v5134
          %v5334 = vadd.f32 %v5030, %v5134
          %v5335 = vadd.f32 %v5031, %v5134
          %v5336 = vadd.f32 %v5032, %v5134
          %v5337 = vadd.f32 %v5033, %v5134
          %v5338 = vadd.f32 %v5034, %v5134
          %v5339 = vadd.f32 %v5035, %v5134
          %v5340 = vadd.f32 %v5036, %v5134
          %v5341 = vadd.f32 %v5037, %v5134
          %v5342 = vadd.f32 %v5038, %v5134
          %v5343 = vadd.f32 %v5039, %v5134
          %v5344 = vadd.f32 %v5040, %v5134
          %v5345 = vadd.f32 %v5041, %v5134
          %v5346 = vadd.f32 %v5042, %v5134
          %v5347 = vadd.f32 %v5043, %v5134
          %v5348 = vadd.f32 %v5044, %v5134
          %v5349 = vadd.f32 %v5045, %v5134
          %v5350 = vadd.f32 %v5046, %v5134
          %v5351 = vadd.f32 %v5047, %v5134
          %v5352 = vadd.f32 %v5048, %v5134
          %v5353 = vadd.f32 %v5049, %v5134
          %v5354 = vadd.f32 %v5050, %v5134
          %v5355 = vadd.f32 %v5051, %v5134
          %v5356 = vadd.f32 %v5052, %v5134
          %v5357 = vadd.f32 %v5053, %v5134
          %v5358 = vadd.f32 %v5054, %v5134
          %v5359 = vadd.f32 %v5055, %v5134
          %v5360 = vadd.f32 %v5056, %v5134
          %v5361 = vadd.f32 %v5057, %v5134
          %v5362 = vadd.f32 %v5058, %v5134
          %v5363 = vadd.f32 %v5059, %v5134
          %v5364 = vadd.f32 %v5060, %v5134
          %v5365 = vadd.f32 %v5061, %v5139
          %v5366 = vadd.f32 %v5062, %v5139
          %v5367 = vadd.f32 %v5063, %v5139
          %v5368 = vadd.f32 %v5064, %v5139
          %v5369 = vadd.f32 %v5065, %v5139
          %v5370 = vadd.f32 %v5066, %v5139
          %v5371 = vadd.f32 %v5067, %v5139
          %v5372 = vadd.f32 %v5068, %v5139
          %v5373 = vadd.f32 %v5069, %v5139
          %v5374 = vadd.f32 %v5070, %v5139
          %v5375 = vadd.f32 %v5071, %v5139
          %v5376 = vadd.f32 %v5072, %v5139
          %v5377 = vadd.f32 %v5073, %v5139
          %v5378 = vadd.f32 %v5074, %v5139
          %v5379 = vadd.f32 %v5075, %v5139
          %v5380 = vadd.f32 %v5076, %v5139
          %v5381 = vadd.f32 %v5077, %v5139
          %v5382 = vadd.f32 %v5078, %v5139
          %v5383 = vadd.f32 %v5079, %v5139
          %v5384 = vadd.f32 %v5080, %v5139
          %v5385 = vadd.f32 %v5081, %v5139
          %v5386 = vadd.f32 %v5082, %v5139
          %v5387 = vadd.f32 %v5083, %v5139
          %v5388 = vadd.f32 %v5084, %v5139
          %v5389 = vadd.f32 %v5085, %v5139
          %v5390 = vadd.f32 %v5086, %v5139
          %v5391 = vadd.f32 %v5087, %v5139
          %v5392 = vadd.f32 %v5088, %v5139
          %v5393 = vadd.f32 %v5089, %v5139
          %v5394 = vadd.f32 %v5090, %v5139
          %v5395 = vadd.f32 %v5091, %v5139
          %v5396 = vadd.f32 %v5092, %v5139
          %v5397 = vmax.f32 %v5141, 0.0
          %v5398 = vmax.f32 %v5142, 0.0
          %v5399 = vmax.f32 %v5143, 0.0
          %v5400 = vmax.f32 %v5144, 0.0
          %v5401 = vmax.f32 %v5145, 0.0
          %v5402 = vmax.f32 %v5146, 0.0
          %v5403 = vmax.f32 %v5147, 0.0
          %v5404 = vmax.f32 %v5148, 0.0
          %v5405 = vmax.f32 %v5149, 0.0
          %v5406 = vmax.f32 %v5150, 0.0
          %v5407 = vmax.f32 %v5151, 0.0
          %v5408 = vmax.f32 %v5152, 0.0
          %v5409 = vmax.f32 %v5153, 0.0
          %v5410 = vmax.f32 %v5154, 0.0
          %v5411 = vmax.f32 %v5155, 0.0
          %v5412 = vmax.f32 %v5156, 0.0
          %v5413 = vmax.f32 %v5157, 0.0
          %v5414 = vmax.f32 %v5158, 0.0
          %v5415 = vmax.f32 %v5159, 0.0
          %v5416 = vmax.f32 %v5160, 0.0
          %v5417 = vmax.f32 %v5161, 0.0
          %v5418 = vmax.f32 %v5162, 0.0
          %v5419 = vmax.f32 %v5163, 0.0
          %v5420 = vmax.f32 %v5164, 0.0
          %v5421 = vmax.f32 %v5165, 0.0
          %v5422 = vmax.f32 %v5166, 0.0
          %v5423 = vmax.f32 %v5167, 0.0
          %v5424 = vmax.f32 %v5168, 0.0
          %v5425 = vmax.f32 %v5169, 0.0
          %v5426 = vmax.f32 %v5170, 0.0
          %v5427 = vmax.f32 %v5171, 0.0
          %v5428 = vmax.f32 %v5172, 0.0
          %v5429 = vmax.f32 %v5173, 0.0
          %v5430 = vmax.f32 %v5174, 0.0
          %v5431 = vmax.f32 %v5175, 0.0
          %v5432 = vmax.f32 %v5176, 0.0
          %v5433 = vmax.f32 %v5177, 0.0
          %v5434 = vmax.f32 %v5178, 0.0
          %v5435 = vmax.f32 %v5179, 0.0
          %v5436 = vmax.f32 %v5180, 0.0
          %v5437 = vmax.f32 %v5181, 0.0
          %v5438 = vmax.f32 %v5182, 0.0
          %v5439 = vmax.f32 %v5183, 0.0
          %v5440 = vmax.f32 %v5184, 0.0
          %v5441 = vmax.f32 %v5185, 0.0
          %v5442 = vmax.f32 %v5186, 0.0
          %v5443 = vmax.f32 %v5187, 0.0
          %v5444 = vmax.f32 %v5188, 0.0
          %v5445 = vmax.f32 %v5189, 0.0
          %v5446 = vmax.f32 %v5190, 0.0
          %v5447 = vmax.f32 %v5191, 0.0
          %v5448 = vmax.f32 %v5192, 0.0
          %v5449 = vmax.f32 %v5193, 0.0
          %v5450 = vmax.f32 %v5194, 0.0
          %v5451 = vmax.f32 %v5195, 0.0
          %v5452 = vmax.f32 %v5196, 0.0
          %v5453 = vmax.f32 %v5197, 0.0
          %v5454 = vmax.f32 %v5198, 0.0
          %v5455 = vmax.f32 %v5199, 0.0
          %v5456 = vmax.f32 %v5200, 0.0
          %v5457 = vmax.f32 %v5201, 0.0
          %v5458 = vmax.f32 %v5202, 0.0
          %v5459 = vmax.f32 %v5203, 0.0
          %v5460 = vmax.f32 %v5204, 0.0
          %v5461 = vmax.f32 %v5205, 0.0
          %v5462 = vmax.f32 %v5206, 0.0
          %v5463 = vmax.f32 %v5207, 0.0
          %v5464 = vmax.f32 %v5208, 0.0
          %v5465 = vmax.f32 %v5209, 0.0
          %v5466 = vmax.f32 %v5210, 0.0
          %v5467 = vmax.f32 %v5211, 0.0
          %v5468 = vmax.f32 %v5212, 0.0
          %v5469 = vmax.f32 %v5213, 0.0
          %v5470 = vmax.f32 %v5214, 0.0
          %v5471 = vmax.f32 %v5215, 0.0
          %v5472 = vmax.f32 %v5216, 0.0
          %v5473 = vmax.f32 %v5217, 0.0
          %v5474 = vmax.f32 %v5218, 0.0
          %v5475 = vmax.f32 %v5219, 0.0
          %v5476 = vmax.f32 %v5220, 0.0
          %v5477 = vmax.f32 %v5221, 0.0
          %v5478 = vmax.f32 %v5222, 0.0
          %v5479 = vmax.f32 %v5223, 0.0
          %v5480 = vmax.f32 %v5224, 0.0
          %v5481 = vmax.f32 %v5225, 0.0
          %v5482 = vmax.f32 %v5226, 0.0
          %v5483 = vmax.f32 %v5227, 0.0
          %v5484 = vmax.f32 %v5228, 0.0
          %v5485 = vmax.f32 %v5229, 0.0
          %v5486 = vmax.f32 %v5230, 0.0
          %v5487 = vmax.f32 %v5231, 0.0
          %v5488 = vmax.f32 %v5232, 0.0
          %v5489 = vmax.f32 %v5233, 0.0
          %v5490 = vmax.f32 %v5234, 0.0
          %v5491 = vmax.f32 %v5235, 0.0
          %v5492 = vmax.f32 %v5236, 0.0
          %v5493 = vmax.f32 %v5237, 0.0
          %v5494 = vmax.f32 %v5238, 0.0
          %v5495 = vmax.f32 %v5239, 0.0
          %v5496 = vmax.f32 %v5240, 0.0
          %v5497 = vmax.f32 %v5241, 0.0
          %v5498 = vmax.f32 %v5242, 0.0
          %v5499 = vmax.f32 %v5243, 0.0
          %v5500 = vmax.f32 %v5244, 0.0
          %v5501 = vmax.f32 %v5245, 0.0
          %v5502 = vmax.f32 %v5246, 0.0
          %v5503 = vmax.f32 %v5247, 0.0
          %v5504 = vmax.f32 %v5248, 0.0
          %v5505 = vmax.f32 %v5249, 0.0
          %v5506 = vmax.f32 %v5250, 0.0
          %v5507 = vmax.f32 %v5251, 0.0
          %v5508 = vmax.f32 %v5252, 0.0
          %v5509 = vmax.f32 %v5253, 0.0
          %v5510 = vmax.f32 %v5254, 0.0
          %v5511 = vmax.f32 %v5255, 0.0
          %v5512 = vmax.f32 %v5256, 0.0
          %v5513 = vmax.f32 %v5257, 0.0
          %v5514 = vmax.f32 %v5258, 0.0
          %v5515 = vmax.f32 %v5259, 0.0
          %v5516 = vmax.f32 %v5260, 0.0
          %v5517 = vmax.f32 %v5261, 0.0
          %v5518 = vmax.f32 %v5262, 0.0
          %v5519 = vmax.f32 %v5263, 0.0
          %v5520 = vmax.f32 %v5264, 0.0
          %v5521 = vmax.f32 %v5265, 0.0
          %v5522 = vmax.f32 %v5266, 0.0
          %v5523 = vmax.f32 %v5267, 0.0
          %v5524 = vmax.f32 %v5268, 0.0
          %v5525 = vmax.f32 %v5269, 0.0
          %v5526 = vmax.f32 %v5270, 0.0
          %v5527 = vmax.f32 %v5271, 0.0
          %v5528 = vmax.f32 %v5272, 0.0
          %v5529 = vmax.f32 %v5273, 0.0
          %v5530 = vmax.f32 %v5274, 0.0
          %v5531 = vmax.f32 %v5275, 0.0
          %v5532 = vmax.f32 %v5276, 0.0
          %v5533 = vmax.f32 %v5277, 0.0
          %v5534 = vmax.f32 %v5278, 0.0
          %v5535 = vmax.f32 %v5279, 0.0
          %v5536 = vmax.f32 %v5280, 0.0
          %v5537 = vmax.f32 %v5281, 0.0
          %v5538 = vmax.f32 %v5282, 0.0
          %v5539 = vmax.f32 %v5283, 0.0
          %v5540 = vmax.f32 %v5284, 0.0
          %v5541 = vmax.f32 %v5285, 0.0
          %v5542 = vmax.f32 %v5286, 0.0
          %v5543 = vmax.f32 %v5287, 0.0
          %v5544 = vmax.f32 %v5288, 0.0
          %v5545 = vmax.f32 %v5289, 0.0
          %v5546 = vmax.f32 %v5290, 0.0
          %v5547 = vmax.f32 %v5291, 0.0
          %v5548 = vmax.f32 %v5292, 0.0
          %v5549 = vmax.f32 %v5293, 0.0
          %v5550 = vmax.f32 %v5294, 0.0
          %v5551 = vmax.f32 %v5295, 0.0
          %v5552 = vmax.f32 %v5296, 0.0
          %v5553 = vmax.f32 %v5297, 0.0
          %v5554 = vmax.f32 %v5298, 0.0
          %v5555 = vmax.f32 %v5299, 0.0
          %v5556 = vmax.f32 %v5300, 0.0
          %v5557 = vmax.f32 %v5301, 0.0
          %v5558 = vmax.f32 %v5302, 0.0
          %v5559 = vmax.f32 %v5303, 0.0
          %v5560 = vmax.f32 %v5304, 0.0
          %v5561 = vmax.f32 %v5305, 0.0
          %v5562 = vmax.f32 %v5306, 0.0
          %v5563 = vmax.f32 %v5307, 0.0
          %v5564 = vmax.f32 %v5308, 0.0
          %v5565 = vmax.f32 %v5309, 0.0
          %v5566 = vmax.f32 %v5310, 0.0
          %v5567 = vmax.f32 %v5311, 0.0
          %v5568 = vmax.f32 %v5312, 0.0
          %v5569 = vmax.f32 %v5313, 0.0
          %v5570 = vmax.f32 %v5314, 0.0
          %v5571 = vmax.f32 %v5315, 0.0
          %v5572 = vmax.f32 %v5316, 0.0
          %v5573 = vmax.f32 %v5317, 0.0
          %v5574 = vmax.f32 %v5318, 0.0
          %v5575 = vmax.f32 %v5319, 0.0
          %v5576 = vmax.f32 %v5320, 0.0
          %v5577 = vmax.f32 %v5321, 0.0
          %v5578 = vmax.f32 %v5322, 0.0
          %v5579 = vmax.f32 %v5323, 0.0
          %v5580 = vmax.f32 %v5324, 0.0
          %v5581 = vmax.f32 %v5325, 0.0
          %v5582 = vmax.f32 %v5326, 0.0
          %v5583 = vmax.f32 %v5327, 0.0
          %v5584 = vmax.f32 %v5328, 0.0
          %v5585 = vmax.f32 %v5329, 0.0
          %v5586 = vmax.f32 %v5330, 0.0
          %v5587 = vmax.f32 %v5331, 0.0
          %v5588 = vmax.f32 %v5332, 0.0
          %v5589 = vmax.f32 %v5333, 0.0
          %v5590 = vmax.f32 %v5334, 0.0
          %v5591 = vmax.f32 %v5335, 0.0
          %v5592 = vmax.f32 %v5336, 0.0
          %v5593 = vmax.f32 %v5337, 0.0
          %v5594 = vmax.f32 %v5338, 0.0
          %v5595 = vmax.f32 %v5339, 0.0
          %v5596 = vmax.f32 %v5340, 0.0
          %v5597 = vmax.f32 %v5341, 0.0
          %v5598 = vmax.f32 %v5342, 0.0
          %v5599 = vmax.f32 %v5343, 0.0
          %v5600 = vmax.f32 %v5344, 0.0
          %v5601 = vmax.f32 %v5345, 0.0
          %v5602 = vmax.f32 %v5346, 0.0
          %v5603 = vmax.f32 %v5347, 0.0
          %v5604 = vmax.f32 %v5348, 0.0
          %v5605 = vmax.f32 %v5349, 0.0
          %v5606 = vmax.f32 %v5350, 0.0
          %v5607 = vmax.f32 %v5351, 0.0
          %v5608 = vmax.f32 %v5352, 0.0
          %v5609 = vmax.f32 %v5353, 0.0
          %v5610 = vmax.f32 %v5354, 0.0
          %v5611 = vmax.f32 %v5355, 0.0
          %v5612 = vmax.f32 %v5356, 0.0
          %v5613 = vmax.f32 %v5357, 0.0
          %v5614 = vmax.f32 %v5358, 0.0
          %v5615 = vmax.f32 %v5359, 0.0
          %v5616 = vmax.f32 %v5360, 0.0
          %v5617 = vmax.f32 %v5361, 0.0
          %v5618 = vmax.f32 %v5362, 0.0
          %v5619 = vmax.f32 %v5363, 0.0
          %v5620 = vmax.f32 %v5364, 0.0
          %v5621 = vmax.f32 %v5365, 0.0
          %v5622 = vmax.f32 %v5366, 0.0
          %v5623 = vmax.f32 %v5367, 0.0
          %v5624 = vmax.f32 %v5368, 0.0
          %v5625 = vmax.f32 %v5369, 0.0
          %v5626 = vmax.f32 %v5370, 0.0
          %v5627 = vmax.f32 %v5371, 0.0
          %v5628 = vmax.f32 %v5372, 0.0
          %v5629 = vmax.f32 %v5373, 0.0
          %v5630 = vmax.f32 %v5374, 0.0
          %v5631 = vmax.f32 %v5375, 0.0
          %v5632 = vmax.f32 %v5376, 0.0
          %v5633 = vmax.f32 %v5377, 0.0
          %v5634 = vmax.f32 %v5378, 0.0
          %v5635 = vmax.f32 %v5379, 0.0
          %v5636 = vmax.f32 %v5380, 0.0
          %v5637 = vmax.f32 %v5381, 0.0
          %v5638 = vmax.f32 %v5382, 0.0
          %v5639 = vmax.f32 %v5383, 0.0
          %v5640 = vmax.f32 %v5384, 0.0
          %v5641 = vmax.f32 %v5385, 0.0
          %v5642 = vmax.f32 %v5386, 0.0
          %v5643 = vmax.f32 %v5387, 0.0
          %v5644 = vmax.f32 %v5388, 0.0
          %v5645 = vmax.f32 %v5389, 0.0
          %v5646 = vmax.f32 %v5390, 0.0
          %v5647 = vmax.f32 %v5391, 0.0
          %v5648 = vmax.f32 %v5392, 0.0
          %v5649 = vmax.f32 %v5393, 0.0
          %v5650 = vmax.f32 %v5394, 0.0
          %v5651 = vmax.f32 %v5395, 0.0
          %v5652 = vmax.f32 %v5396, 0.0
          %5653 = vst [vmem:[%s829] sm:$0xff] %v5397
          %5654 = vst [vmem:[%s829 + $0x8] sm:$0xff] %v5398
          %5655 = vst [vmem:[%s829 + $0x10] sm:$0xff] %v5399
          %5656 = vst [vmem:[%s829 + $0x18] sm:$0xff] %v5400
          %5657 = vst [vmem:[%s829 + $0x20] sm:$0xff] %v5401
          %5658 = vst [vmem:[%s829 + $0x28] sm:$0xff] %v5402
          %5659 = vst [vmem:[%s829 + $0x30] sm:$0xff] %v5403
          %5660 = vst [vmem:[%s829 + $0x38] sm:$0xff] %v5404
          %5661 = vst [vmem:[%s829 + $0x40] sm:$0xff] %v5405
          %5662 = vst [vmem:[%s829 + $0x48] sm:$0xff] %v5406
          %5663 = vst [vmem:[%s829 + $0x50] sm:$0xff] %v5407
          %5664 = vst [vmem:[%s829 + $0x58] sm:$0xff] %v5408
          %5665 = vst [vmem:[%s829 + $0x60] sm:$0xff] %v5409
          %5666 = vst [vmem:[%s829 + $0x68] sm:$0xff] %v5410
          %5667 = vst [vmem:[%s829 + $0x70] sm:$0xff] %v5411
          %5668 = vst [vmem:[%s829 + $0x78] sm:$0xff] %v5412
          %5669 = vst [vmem:[%s829 + $0x80] sm:$0xff] %v5413
          %5670 = vst [vmem:[%s829 + $0x88] sm:$0xff] %v5414
          %5671 = vst [vmem:[%s829 + $0x90] sm:$0xff] %v5415
          %5672 = vst [vmem:[%s829 + $0x98] sm:$0xff] %v5416
          %5673 = vst [vmem:[%s829 + $0xa0] sm:$0xff] %v5417
          %5674 = vst [vmem:[%s829 + $0xa8] sm:$0xff] %v5418
          %5675 = vst [vmem:[%s829 + $0xb0] sm:$0xff] %v5419
          %5676 = vst [vmem:[%s829 + $0xb8] sm:$0xff] %v5420
          %5677 = vst [vmem:[%s829 + $0xc0] sm:$0xff] %v5421
          %5678 = vst [vmem:[%s829 + $0xc8] sm:$0xff] %v5422
          %5679 = vst [vmem:[%s829 + $0xd0] sm:$0xff] %v5423
          %5680 = vst [vmem:[%s829 + $0xd8] sm:$0xff] %v5424
          %5681 = vst [vmem:[%s829 + $0xe0] sm:$0xff] %v5425
          %5682 = vst [vmem:[%s829 + $0xe8] sm:$0xff] %v5426
          %5683 = vst [vmem:[%s829 + $0xf0] sm:$0xff] %v5427
          %5684 = vst [vmem:[%s829 + $0xf8] sm:$0xff] %v5428
          %5685 = vst [vmem:[%s829 + $0x100] sm:$0xff] %v5429
          %5686 = vst [vmem:[%s829 + $0x108] sm:$0xff] %v5430
          %5687 = vst [vmem:[%s829 + $0x110] sm:$0xff] %v5431
          %5688 = vst [vmem:[%s829 + $0x118] sm:$0xff] %v5432
          %5689 = vst [vmem:[%s829 + $0x120] sm:$0xff] %v5433
          %5690 = vst [vmem:[%s829 + $0x128] sm:$0xff] %v5434
          %5691 = vst [vmem:[%s829 + $0x130] sm:$0xff] %v5435
          %5692 = vst [vmem:[%s829 + $0x138] sm:$0xff] %v5436
          %5693 = vst [vmem:[%s829 + $0x140] sm:$0xff] %v5437
          %5694 = vst [vmem:[%s829 + $0x148] sm:$0xff] %v5438
          %5695 = vst [vmem:[%s829 + $0x150] sm:$0xff] %v5439
          %5696 = vst [vmem:[%s829 + $0x158] sm:$0xff] %v5440
          %5697 = vst [vmem:[%s829 + $0x160] sm:$0xff] %v5441
          %5698 = vst [vmem:[%s829 + $0x168] sm:$0xff] %v5442
          %5699 = vst [vmem:[%s829 + $0x170] sm:$0xff] %v5443
          %5700 = vst [vmem:[%s829 + $0x178] sm:$0xff] %v5444
          %5701 = vst [vmem:[%s829 + $0x180] sm:$0xff] %v5445
          %5702 = vst [vmem:[%s829 + $0x188] sm:$0xff] %v5446
          %5703 = vst [vmem:[%s829 + $0x190] sm:$0xff] %v5447
          %5704 = vst [vmem:[%s829 + $0x198] sm:$0xff] %v5448
          %5705 = vst [vmem:[%s829 + $0x1a0] sm:$0xff] %v5449
          %5706 = vst [vmem:[%s829 + $0x1a8] sm:$0xff] %v5450
          %5707 = vst [vmem:[%s829 + $0x1b0] sm:$0xff] %v5451
          %5708 = vst [vmem:[%s829 + $0x1b8] sm:$0xff] %v5452
          %5709 = vst [vmem:[%s829 + $0x1c0] sm:$0xff] %v5453
          %5710 = vst [vmem:[%s829 + $0x1c8] sm:$0xff] %v5454
          %5711 = vst [vmem:[%s829 + $0x1d0] sm:$0xff] %v5455
          %5712 = vst [vmem:[%s829 + $0x1d8] sm:$0xff] %v5456
          %5713 = vst [vmem:[%s829 + $0x1e0] sm:$0xff] %v5457
          %5714 = vst [vmem:[%s829 + $0x1e8] sm:$0xff] %v5458
          %5715 = vst [vmem:[%s829 + $0x1f0] sm:$0xff] %v5459
          %5716 = vst [vmem:[%s829 + $0x1f8] sm:$0xff] %v5460
          %5717 = vst [vmem:[%s829 + $0x200] sm:$0xff] %v5461
          %5718 = vst [vmem:[%s829 + $0x208] sm:$0xff] %v5462
          %5719 = vst [vmem:[%s829 + $0x210] sm:$0xff] %v5463
          %5720 = vst [vmem:[%s829 + $0x218] sm:$0xff] %v5464
          %5721 = vst [vmem:[%s829 + $0x220] sm:$0xff] %v5465
          %5722 = vst [vmem:[%s829 + $0x228] sm:$0xff] %v5466
          %5723 = vst [vmem:[%s829 + $0x230] sm:$0xff] %v5467
          %5724 = vst [vmem:[%s829 + $0x238] sm:$0xff] %v5468
          %5725 = vst [vmem:[%s829 + $0x240] sm:$0xff] %v5469
          %5726 = vst [vmem:[%s829 + $0x248] sm:$0xff] %v5470
          %5727 = vst [vmem:[%s829 + $0x250] sm:$0xff] %v5471
          %5728 = vst [vmem:[%s829 + $0x258] sm:$0xff] %v5472
          %5729 = vst [vmem:[%s829 + $0x260] sm:$0xff] %v5473
          %5730 = vst [vmem:[%s829 + $0x268] sm:$0xff] %v5474
          %5731 = vst [vmem:[%s829 + $0x270] sm:$0xff] %v5475
          %5732 = vst [vmem:[%s829 + $0x278] sm:$0xff] %v5476
          %5733 = vst [vmem:[%s829 + $0x280] sm:$0xff] %v5477
          %5734 = vst [vmem:[%s829 + $0x288] sm:$0xff] %v5478
          %5735 = vst [vmem:[%s829 + $0x290] sm:$0xff] %v5479
          %5736 = vst [vmem:[%s829 + $0x298] sm:$0xff] %v5480
          %5737 = vst [vmem:[%s829 + $0x2a0] sm:$0xff] %v5481
          %5738 = vst [vmem:[%s829 + $0x2a8] sm:$0xff] %v5482
          %5739 = vst [vmem:[%s829 + $0x2b0] sm:$0xff] %v5483
          %5740 = vst [vmem:[%s829 + $0x2b8] sm:$0xff] %v5484
          %5741 = vst [vmem:[%s829 + $0x2c0] sm:$0xff] %v5485
          %5742 = vst [vmem:[%s829 + $0x2c8] sm:$0xff] %v5486
          %5743 = vst [vmem:[%s829 + $0x2d0] sm:$0xff] %v5487
          %5744 = vst [vmem:[%s829 + $0x2d8] sm:$0xff] %v5488
          %5745 = vst [vmem:[%s829 + $0x2e0] sm:$0xff] %v5489
          %5746 = vst [vmem:[%s829 + $0x2e8] sm:$0xff] %v5490
          %5747 = vst [vmem:[%s829 + $0x2f0] sm:$0xff] %v5491
          %5748 = vst [vmem:[%s829 + $0x2f8] sm:$0xff] %v5492
          %5749 = vst [vmem:[%s829 + $0x300] sm:$0xff] %v5493
          %5750 = vst [vmem:[%s829 + $0x308] sm:$0xff] %v5494
          %5751 = vst [vmem:[%s829 + $0x310] sm:$0xff] %v5495
          %5752 = vst [vmem:[%s829 + $0x318] sm:$0xff] %v5496
          %5753 = vst [vmem:[%s829 + $0x320] sm:$0xff] %v5497
          %5754 = vst [vmem:[%s829 + $0x328] sm:$0xff] %v5498
          %5755 = vst [vmem:[%s829 + $0x330] sm:$0xff] %v5499
          %5756 = vst [vmem:[%s829 + $0x338] sm:$0xff] %v5500
          %5757 = vst [vmem:[%s829 + $0x340] sm:$0xff] %v5501
          %5758 = vst [vmem:[%s829 + $0x348] sm:$0xff] %v5502
          %5759 = vst [vmem:[%s829 + $0x350] sm:$0xff] %v5503
          %5760 = vst [vmem:[%s829 + $0x358] sm:$0xff] %v5504
          %5761 = vst [vmem:[%s829 + $0x360] sm:$0xff] %v5505
          %5762 = vst [vmem:[%s829 + $0x368] sm:$0xff] %v5506
          %5763 = vst [vmem:[%s829 + $0x370] sm:$0xff] %v5507
          %5764 = vst [vmem:[%s829 + $0x378] sm:$0xff] %v5508
          %5765 = vst [vmem:[%s829 + $0x380] sm:$0xff] %v5509
          %5766 = vst [vmem:[%s829 + $0x388] sm:$0xff] %v5510
          %5767 = vst [vmem:[%s829 + $0x390] sm:$0xff] %v5511
          %5768 = vst [vmem:[%s829 + $0x398] sm:$0xff] %v5512
          %5769 = vst [vmem:[%s829 + $0x3a0] sm:$0xff] %v5513
          %5770 = vst [vmem:[%s829 + $0x3a8] sm:$0xff] %v5514
          %5771 = vst [vmem:[%s829 + $0x3b0] sm:$0xff] %v5515
          %5772 = vst [vmem:[%s829 + $0x3b8] sm:$0xff] %v5516
          %5773 = vst [vmem:[%s829 + $0x3c0] sm:$0xff] %v5517
          %5774 = vst [vmem:[%s829 + $0x3c8] sm:$0xff] %v5518
          %5775 = vst [vmem:[%s829 + $0x3d0] sm:$0xff] %v5519
          %5776 = vst [vmem:[%s829 + $0x3d8] sm:$0xff] %v5520
          %5777 = vst [vmem:[%s829 + $0x3e0] sm:$0xff] %v5521
          %5778 = vst [vmem:[%s829 + $0x3e8] sm:$0xff] %v5522
          %5779 = vst [vmem:[%s829 + $0x3f0] sm:$0xff] %v5523
          %5780 = vst [vmem:[%s829 + $0x3f8] sm:$0xff] %v5524
          %5781 = vst [vmem:[%s829 + $0x400] sm:$0xff] %v5525
          %5782 = vst [vmem:[%s829 + $0x408] sm:$0xff] %v5526
          %5783 = vst [vmem:[%s829 + $0x410] sm:$0xff] %v5527
          %5784 = vst [vmem:[%s829 + $0x418] sm:$0xff] %v5528
          %5785 = vst [vmem:[%s829 + $0x420] sm:$0xff] %v5529
          %5786 = vst [vmem:[%s829 + $0x428] sm:$0xff] %v5530
          %5787 = vst [vmem:[%s829 + $0x430] sm:$0xff] %v5531
          %5788 = vst [vmem:[%s829 + $0x438] sm:$0xff] %v5532
          %5789 = vst [vmem:[%s829 + $0x440] sm:$0xff] %v5533
          %5790 = vst [vmem:[%s829 + $0x448] sm:$0xff] %v5534
          %5791 = vst [vmem:[%s829 + $0x450] sm:$0xff] %v5535
          %5792 = vst [vmem:[%s829 + $0x458] sm:$0xff] %v5536
          %5793 = vst [vmem:[%s829 + $0x460] sm:$0xff] %v5537
          %5794 = vst [vmem:[%s829 + $0x468] sm:$0xff] %v5538
          %5795 = vst [vmem:[%s829 + $0x470] sm:$0xff] %v5539
          %5796 = vst [vmem:[%s829 + $0x478] sm:$0xff] %v5540
          %5797 = vst [vmem:[%s829 + $0x480] sm:$0xff] %v5541
          %5798 = vst [vmem:[%s829 + $0x488] sm:$0xff] %v5542
          %5799 = vst [vmem:[%s829 + $0x490] sm:$0xff] %v5543
          %5800 = vst [vmem:[%s829 + $0x498] sm:$0xff] %v5544
          %5801 = vst [vmem:[%s829 + $0x4a0] sm:$0xff] %v5545
          %5802 = vst [vmem:[%s829 + $0x4a8] sm:$0xff] %v5546
          %5803 = vst [vmem:[%s829 + $0x4b0] sm:$0xff] %v5547
          %5804 = vst [vmem:[%s829 + $0x4b8] sm:$0xff] %v5548
          %5805 = vst [vmem:[%s829 + $0x4c0] sm:$0xff] %v5549
          %5806 = vst [vmem:[%s829 + $0x4c8] sm:$0xff] %v5550
          %5807 = vst [vmem:[%s829 + $0x4d0] sm:$0xff] %v5551
          %5808 = vst [vmem:[%s829 + $0x4d8] sm:$0xff] %v5552
          %5809 = vst [vmem:[%s829 + $0x4e0] sm:$0xff] %v5553
          %5810 = vst [vmem:[%s829 + $0x4e8] sm:$0xff] %v5554
          %5811 = vst [vmem:[%s829 + $0x4f0] sm:$0xff] %v5555
          %5812 = vst [vmem:[%s829 + $0x4f8] sm:$0xff] %v5556
          %5813 = vst [vmem:[%s829 + $0x500] sm:$0xff] %v5557
          %5814 = vst [vmem:[%s829 + $0x508] sm:$0xff] %v5558
          %5815 = vst [vmem:[%s829 + $0x510] sm:$0xff] %v5559
          %5816 = vst [vmem:[%s829 + $0x518] sm:$0xff] %v5560
          %5817 = vst [vmem:[%s829 + $0x520] sm:$0xff] %v5561
          %5818 = vst [vmem:[%s829 + $0x528] sm:$0xff] %v5562
          %5819 = vst [vmem:[%s829 + $0x530] sm:$0xff] %v5563
          %5820 = vst [vmem:[%s829 + $0x538] sm:$0xff] %v5564
          %5821 = vst [vmem:[%s829 + $0x540] sm:$0xff] %v5565
          %5822 = vst [vmem:[%s829 + $0x548] sm:$0xff] %v5566
          %5823 = vst [vmem:[%s829 + $0x550] sm:$0xff] %v5567
          %5824 = vst [vmem:[%s829 + $0x558] sm:$0xff] %v5568
          %5825 = vst [vmem:[%s829 + $0x560] sm:$0xff] %v5569
          %5826 = vst [vmem:[%s829 + $0x568] sm:$0xff] %v5570
          %5827 = vst [vmem:[%s829 + $0x570] sm:$0xff] %v5571
          %5828 = vst [vmem:[%s829 + $0x578] sm:$0xff] %v5572
          %5829 = vst [vmem:[%s829 + $0x580] sm:$0xff] %v5573
          %5830 = vst [vmem:[%s829 + $0x588] sm:$0xff] %v5574
          %5831 = vst [vmem:[%s829 + $0x590] sm:$0xff] %v5575
          %5832 = vst [vmem:[%s829 + $0x598] sm:$0xff] %v5576
          %5833 = vst [vmem:[%s829 + $0x5a0] sm:$0xff] %v5577
          %5834 = vst [vmem:[%s829 + $0x5a8] sm:$0xff] %v5578
          %5835 = vst [vmem:[%s829 + $0x5b0] sm:$0xff] %v5579
          %5836 = vst [vmem:[%s829 + $0x5b8] sm:$0xff] %v5580
          %5837 = vst [vmem:[%s829 + $0x5c0] sm:$0xff] %v5581
          %5838 = vst [vmem:[%s829 + $0x5c8] sm:$0xff] %v5582
          %5839 = vst [vmem:[%s829 + $0x5d0] sm:$0xff] %v5583
          %5840 = vst [vmem:[%s829 + $0x5d8] sm:$0xff] %v5584
          %5841 = vst [vmem:[%s829 + $0x5e0] sm:$0xff] %v5585
          %5842 = vst [vmem:[%s829 + $0x5e8] sm:$0xff] %v5586
          %5843 = vst [vmem:[%s829 + $0x5f0] sm:$0xff] %v5587
          %5844 = vst [vmem:[%s829 + $0x5f8] sm:$0xff] %v5588
          %5845 = vst [vmem:[%s829 + $0x600] sm:$0xff] %v5589
          %5846 = vst [vmem:[%s829 + $0x608] sm:$0xff] %v5590
          %5847 = vst [vmem:[%s829 + $0x610] sm:$0xff] %v5591
          %5848 = vst [vmem:[%s829 + $0x618] sm:$0xff] %v5592
          %5849 = vst [vmem:[%s829 + $0x620] sm:$0xff] %v5593
          %5850 = vst [vmem:[%s829 + $0x628] sm:$0xff] %v5594
          %5851 = vst [vmem:[%s829 + $0x630] sm:$0xff] %v5595
          %5852 = vst [vmem:[%s829 + $0x638] sm:$0xff] %v5596
          %5853 = vst [vmem:[%s829 + $0x640] sm:$0xff] %v5597
          %5854 = vst [vmem:[%s829 + $0x648] sm:$0xff] %v5598
          %5855 = vst [vmem:[%s829 + $0x650] sm:$0xff] %v5599
          %5856 = vst [vmem:[%s829 + $0x658] sm:$0xff] %v5600
          %5857 = vst [vmem:[%s829 + $0x660] sm:$0xff] %v5601
          %5858 = vst [vmem:[%s829 + $0x668] sm:$0xff] %v5602
          %5859 = vst [vmem:[%s829 + $0x670] sm:$0xff] %v5603
          %5860 = vst [vmem:[%s829 + $0x678] sm:$0xff] %v5604
          %5861 = vst [vmem:[%s829 + $0x680] sm:$0xff] %v5605
          %5862 = vst [vmem:[%s829 + $0x688] sm:$0xff] %v5606
          %5863 = vst [vmem:[%s829 + $0x690] sm:$0xff] %v5607
          %5864 = vst [vmem:[%s829 + $0x698] sm:$0xff] %v5608
          %5865 = vst [vmem:[%s829 + $0x6a0] sm:$0xff] %v5609
          %5866 = vst [vmem:[%s829 + $0x6a8] sm:$0xff] %v5610
          %5867 = vst [vmem:[%s829 + $0x6b0] sm:$0xff] %v5611
          %5868 = vst [vmem:[%s829 + $0x6b8] sm:$0xff] %v5612
          %5869 = vst [vmem:[%s829 + $0x6c0] sm:$0xff] %v5613
          %5870 = vst [vmem:[%s829 + $0x6c8] sm:$0xff] %v5614
          %5871 = vst [vmem:[%s829 + $0x6d0] sm:$0xff] %v5615
          %5872 = vst [vmem:[%s829 + $0x6d8] sm:$0xff] %v5616
          %5873 = vst [vmem:[%s829 + $0x6e0] sm:$0xff] %v5617
          %5874 = vst [vmem:[%s829 + $0x6e8] sm:$0xff] %v5618
          %5875 = vst [vmem:[%s829 + $0x6f0] sm:$0xff] %v5619
          %5876 = vst [vmem:[%s829 + $0x6f8] sm:$0xff] %v5620
          %5877 = vst [vmem:[%s829 + $0x700] sm:$0xff] %v5621
          %5878 = vst [vmem:[%s829 + $0x708] sm:$0xff] %v5622
          %5879 = vst [vmem:[%s829 + $0x710] sm:$0xff] %v5623
          %5880 = vst [vmem:[%s829 + $0x718] sm:$0xff] %v5624
          %5881 = vst [vmem:[%s829 + $0x720] sm:$0xff] %v5625
          %5882 = vst [vmem:[%s829 + $0x728] sm:$0xff] %v5626
          %5883 = vst [vmem:[%s829 + $0x730] sm:$0xff] %v5627
          %5884 = vst [vmem:[%s829 + $0x738] sm:$0xff] %v5628
          %5885 = vst [vmem:[%s829 + $0x740] sm:$0xff] %v5629
          %5886 = vst [vmem:[%s829 + $0x748] sm:$0xff] %v5630
          %5887 = vst [vmem:[%s829 + $0x750] sm:$0xff] %v5631
          %5888 = vst [vmem:[%s829 + $0x758] sm:$0xff] %v5632
          %5889 = vst [vmem:[%s829 + $0x760] sm:$0xff] %v5633
          %5890 = vst [vmem:[%s829 + $0x768] sm:$0xff] %v5634
          %5891 = vst [vmem:[%s829 + $0x770] sm:$0xff] %v5635
          %5892 = vst [vmem:[%s829 + $0x778] sm:$0xff] %v5636
          %5893 = vst [vmem:[%s829 + $0x780] sm:$0xff] %v5637
          %5894 = vst [vmem:[%s829 + $0x788] sm:$0xff] %v5638
          %5895 = vst [vmem:[%s829 + $0x790] sm:$0xff] %v5639
          %5896 = vst [vmem:[%s829 + $0x798] sm:$0xff] %v5640
          %5897 = vst [vmem:[%s829 + $0x7a0] sm:$0xff] %v5641
          %5898 = vst [vmem:[%s829 + $0x7a8] sm:$0xff] %v5642
          %5899 = vst [vmem:[%s829 + $0x7b0] sm:$0xff] %v5643
          %5900 = vst [vmem:[%s829 + $0x7b8] sm:$0xff] %v5644
          %5901 = vst [vmem:[%s829 + $0x7c0] sm:$0xff] %v5645
          %5902 = vst [vmem:[%s829 + $0x7c8] sm:$0xff] %v5646
          %5903 = vst [vmem:[%s829 + $0x7d0] sm:$0xff] %v5647
          %5904 = vst [vmem:[%s829 + $0x7d8] sm:$0xff] %v5648
          %5905 = vst [vmem:[%s829 + $0x7e0] sm:$0xff] %v5649
          %5906 = vst [vmem:[%s829 + $0x7e8] sm:$0xff] %v5650
          %5907 = vst [vmem:[%s829 + $0x7f0] sm:$0xff] %v5651
          %5908 = vst [vmem:[%s829 + $0x7f8] sm:$0xff] %v5652
        $region63: #{_lambda_.1} parent=50 // pred_fallthru
          _
        %s5909 = sand.u32 %s125, 1
        %s5910 = sand.u32 %s125, 1
        %s5911 = smul.addr %s5910, 2048
        %s5912 = scalar_lea.vmem [#allocation4], %s5911
        // Predicated region
        $region64: #{_lambda_.1} parent=50 // pred_check
          %p5913 = pneg %p135
        $region65: #{_lambda_.1} parent=50 // pred_check_branch
          %5915 = sbr.rel (%p5913) target = $region67
        $region66: #{_lambda_.1} parent=50 // pred_region
          %s5916 = smul.u32 8, %s20
          %s5917 = smul.u32 32, %s19
          %s5918 = smul.addr %s5916, 64
          %s5919 = sadd.s32 %s5917, %s5918
          %s5920 = smul.addr %s5919, 8
          %s5921 = scalar_lea.vmem %s3, %s5920
          // Predicated region
          $region68: #{_lambda_.1} parent=66 // pred_check
            _
          $region69: #{_lambda_.1} parent=66 // pred_check_branch
            %5923 = sbr.rel (0) target = $region71
          $region70: #{_lambda_.1} parent=66 // pred_region
            // Predicated region
            $region72: #{_lambda_.1} parent=70 // pred_check
              _
            $region73: #{_lambda_.1} parent=70 // pred_check_branch
              %5925 = sbr.rel (0) target = $region75
            $region74: #{_lambda_.1} parent=70 // pred_region
              loop: start=0, step=1, limit=1
              $region76: #{_lambda_.1} parent=74 // loop_pre_header
                _
              $region77: #{_lambda_.1} parent=74 // loop_header
                %s5927 = sphi 0, %s5931
                %p5928 = scmp.ge.s32.totalorder %s5927, 1
                %s5932 = sphi %s5912, %s5912
                %s5933 = sphi %s5921, %s5921
              $region78: #{_lambda_.1} parent=74 // loop_header_branch
                %5930 = sbr.rel (%p5928) target = $region82
              $region79: #{_lambda_.1} parent=74 // loop_body
                %v5934 = vld [vmem:[%s5932] sm:$0xff]
                %5935 = vst [vmem:[%s5933] sm:$0xff] %v5934
                %v5936 = vld [vmem:[%s5932 + $0x8] sm:$0xff]
                %5937 = vst [vmem:[%s5933 + $0x8] sm:$0xff] %v5936
                %v5938 = vld [vmem:[%s5932 + $0x10] sm:$0xff]
                %5939 = vst [vmem:[%s5933 + $0x10] sm:$0xff] %v5938
                %v5940 = vld [vmem:[%s5932 + $0x18] sm:$0xff]
                %5941 = vst [vmem:[%s5933 + $0x18] sm:$0xff] %v5940
                %v5942 = vld [vmem:[%s5932 + $0x20] sm:$0xff]
                %5943 = vst [vmem:[%s5933 + $0x20] sm:$0xff] %v5942
                %v5944 = vld [vmem:[%s5932 + $0x28] sm:$0xff]
                %5945 = vst [vmem:[%s5933 + $0x28] sm:$0xff] %v5944
                %v5946 = vld [vmem:[%s5932 + $0x30] sm:$0xff]
                %5947 = vst [vmem:[%s5933 + $0x30] sm:$0xff] %v5946
                %v5948 = vld [vmem:[%s5932 + $0x38] sm:$0xff]
                %5949 = vst [vmem:[%s5933 + $0x38] sm:$0xff] %v5948
                %v5950 = vld [vmem:[%s5932 + $0x40] sm:$0xff]
                %5951 = vst [vmem:[%s5933 + $0x40] sm:$0xff] %v5950
                %v5952 = vld [vmem:[%s5932 + $0x48] sm:$0xff]
                %5953 = vst [vmem:[%s5933 + $0x48] sm:$0xff] %v5952
                %v5954 = vld [vmem:[%s5932 + $0x50] sm:$0xff]
                %5955 = vst [vmem:[%s5933 + $0x50] sm:$0xff] %v5954
                %v5956 = vld [vmem:[%s5932 + $0x58] sm:$0xff]
                %5957 = vst [vmem:[%s5933 + $0x58] sm:$0xff] %v5956
                %v5958 = vld [vmem:[%s5932 + $0x60] sm:$0xff]
                %5959 = vst [vmem:[%s5933 + $0x60] sm:$0xff] %v5958
                %v5960 = vld [vmem:[%s5932 + $0x68] sm:$0xff]
                %5961 = vst [vmem:[%s5933 + $0x68] sm:$0xff] %v5960
                %v5962 = vld [vmem:[%s5932 + $0x70] sm:$0xff]
                %5963 = vst [vmem:[%s5933 + $0x70] sm:$0xff] %v5962
                %v5964 = vld [vmem:[%s5932 + $0x78] sm:$0xff]
                %5965 = vst [vmem:[%s5933 + $0x78] sm:$0xff] %v5964
                %v5966 = vld [vmem:[%s5932 + $0x80] sm:$0xff]
                %5967 = vst [vmem:[%s5933 + $0x80] sm:$0xff] %v5966
                %v5968 = vld [vmem:[%s5932 + $0x88] sm:$0xff]
                %5969 = vst [vmem:[%s5933 + $0x88] sm:$0xff] %v5968
                %v5970 = vld [vmem:[%s5932 + $0x90] sm:$0xff]
                %5971 = vst [vmem:[%s5933 + $0x90] sm:$0xff] %v5970
                %v5972 = vld [vmem:[%s5932 + $0x98] sm:$0xff]
                %5973 = vst [vmem:[%s5933 + $0x98] sm:$0xff] %v5972
                %v5974 = vld [vmem:[%s5932 + $0xa0] sm:$0xff]
                %5975 = vst [vmem:[%s5933 + $0xa0] sm:$0xff] %v5974
                %v5976 = vld [vmem:[%s5932 + $0xa8] sm:$0xff]
                %5977 = vst [vmem:[%s5933 + $0xa8] sm:$0xff] %v5976
                %v5978 = vld [vmem:[%s5932 + $0xb0] sm:$0xff]
                %5979 = vst [vmem:[%s5933 + $0xb0] sm:$0xff] %v5978
                %v5980 = vld [vmem:[%s5932 + $0xb8] sm:$0xff]
                %5981 = vst [vmem:[%s5933 + $0xb8] sm:$0xff] %v5980
                %v5982 = vld [vmem:[%s5932 + $0xc0] sm:$0xff]
                %5983 = vst [vmem:[%s5933 + $0xc0] sm:$0xff] %v5982
                %v5984 = vld [vmem:[%s5932 + $0xc8] sm:$0xff]
                %5985 = vst [vmem:[%s5933 + $0xc8] sm:$0xff] %v5984
                %v5986 = vld [vmem:[%s5932 + $0xd0] sm:$0xff]
                %5987 = vst [vmem:[%s5933 + $0xd0] sm:$0xff] %v5986
                %v5988 = vld [vmem:[%s5932 + $0xd8] sm:$0xff]
                %5989 = vst [vmem:[%s5933 + $0xd8] sm:$0xff] %v5988
                %v5990 = vld [vmem:[%s5932 + $0xe0] sm:$0xff]
                %5991 = vst [vmem:[%s5933 + $0xe0] sm:$0xff] %v5990
                %v5992 = vld [vmem:[%s5932 + $0xe8] sm:$0xff]
                %5993 = vst [vmem:[%s5933 + $0xe8] sm:$0xff] %v5992
                %v5994 = vld [vmem:[%s5932 + $0xf0] sm:$0xff]
                %5995 = vst [vmem:[%s5933 + $0xf0] sm:$0xff] %v5994
                %v5996 = vld [vmem:[%s5932 + $0xf8] sm:$0xff]
                %5997 = vst [vmem:[%s5933 + $0xf8] sm:$0xff] %v5996
                %v5998 = vld [vmem:[%s5932 + $0x100] sm:$0xff]
                %5999 = vst [vmem:[%s5933 + $0x200] sm:$0xff] %v5998
                %v6000 = vld [vmem:[%s5932 + $0x108] sm:$0xff]
                %6001 = vst [vmem:[%s5933 + $0x208] sm:$0xff] %v6000
                %v6002 = vld [vmem:[%s5932 + $0x110] sm:$0xff]
                %6003 = vst [vmem:[%s5933 + $0x210] sm:$0xff] %v6002
                %v6004 = vld [vmem:[%s5932 + $0x118] sm:$0xff]
                %6005 = vst [vmem:[%s5933 + $0x218] sm:$0xff] %v6004
                %v6006 = vld [vmem:[%s5932 + $0x120] sm:$0xff]
                %6007 = vst [vmem:[%s5933 + $0x220] sm:$0xff] %v6006
                %v6008 = vld [vmem:[%s5932 + $0x128] sm:$0xff]
                %6009 = vst [vmem:[%s5933 + $0x228] sm:$0xff] %v6008
                %v6010 = vld [vmem:[%s5932 + $0x130] sm:$0xff]
                %6011 = vst [vmem:[%s5933 + $0x230] sm:$0xff] %v6010
                %v6012 = vld [vmem:[%s5932 + $0x138] sm:$0xff]
                %6013 = vst [vmem:[%s5933 + $0x238] sm:$0xff] %v6012
                %v6014 = vld [vmem:[%s5932 + $0x140] sm:$0xff]
                %6015 = vst [vmem:[%s5933 + $0x240] sm:$0xff] %v6014
                %v6016 = vld [vmem:[%s5932 + $0x148] sm:$0xff]
                %6017 = vst [vmem:[%s5933 + $0x248] sm:$0xff] %v6016
                %v6018 = vld [vmem:[%s5932 + $0x150] sm:$0xff]
                %6019 = vst [vmem:[%s5933 + $0x250] sm:$0xff] %v6018
                %v6020 = vld [vmem:[%s5932 + $0x158] sm:$0xff]
                %6021 = vst [vmem:[%s5933 + $0x258] sm:$0xff] %v6020
                %v6022 = vld [vmem:[%s5932 + $0x160] sm:$0xff]
                %6023 = vst [vmem:[%s5933 + $0x260] sm:$0xff] %v6022
                %v6024 = vld [vmem:[%s5932 + $0x168] sm:$0xff]
                %6025 = vst [vmem:[%s5933 + $0x268] sm:$0xff] %v6024
                %v6026 = vld [vmem:[%s5932 + $0x170] sm:$0xff]
                %6027 = vst [vmem:[%s5933 + $0x270] sm:$0xff] %v6026
                %v6028 = vld [vmem:[%s5932 + $0x178] sm:$0xff]
                %6029 = vst [vmem:[%s5933 + $0x278] sm:$0xff] %v6028
                %v6030 = vld [vmem:[%s5932 + $0x180] sm:$0xff]
                %6031 = vst [vmem:[%s5933 + $0x280] sm:$0xff] %v6030
                %v6032 = vld [vmem:[%s5932 + $0x188] sm:$0xff]
                %6033 = vst [vmem:[%s5933 + $0x288] sm:$0xff] %v6032
                %v6034 = vld [vmem:[%s5932 + $0x190] sm:$0xff]
                %6035 = vst [vmem:[%s5933 + $0x290] sm:$0xff] %v6034
                %v6036 = vld [vmem:[%s5932 + $0x198] sm:$0xff]
                %6037 = vst [vmem:[%s5933 + $0x298] sm:$0xff] %v6036
                %v6038 = vld [vmem:[%s5932 + $0x1a0] sm:$0xff]
                %6039 = vst [vmem:[%s5933 + $0x2a0] sm:$0xff] %v6038
                %v6040 = vld [vmem:[%s5932 + $0x1a8] sm:$0xff]
                %6041 = vst [vmem:[%s5933 + $0x2a8] sm:$0xff] %v6040
                %v6042 = vld [vmem:[%s5932 + $0x1b0] sm:$0xff]
                %6043 = vst [vmem:[%s5933 + $0x2b0] sm:$0xff] %v6042
                %v6044 = vld [vmem:[%s5932 + $0x1b8] sm:$0xff]
                %6045 = vst [vmem:[%s5933 + $0x2b8] sm:$0xff] %v6044
                %v6046 = vld [vmem:[%s5932 + $0x1c0] sm:$0xff]
                %6047 = vst [vmem:[%s5933 + $0x2c0] sm:$0xff] %v6046
                %v6048 = vld [vmem:[%s5932 + $0x1c8] sm:$0xff]
                %6049 = vst [vmem:[%s5933 + $0x2c8] sm:$0xff] %v6048
                %v6050 = vld [vmem:[%s5932 + $0x1d0] sm:$0xff]
                %6051 = vst [vmem:[%s5933 + $0x2d0] sm:$0xff] %v6050
                %v6052 = vld [vmem:[%s5932 + $0x1d8] sm:$0xff]
                %6053 = vst [vmem:[%s5933 + $0x2d8] sm:$0xff] %v6052
                %v6054 = vld [vmem:[%s5932 + $0x1e0] sm:$0xff]
                %6055 = vst [vmem:[%s5933 + $0x2e0] sm:$0xff] %v6054
                %v6056 = vld [vmem:[%s5932 + $0x1e8] sm:$0xff]
                %6057 = vst [vmem:[%s5933 + $0x2e8] sm:$0xff] %v6056
                %v6058 = vld [vmem:[%s5932 + $0x1f0] sm:$0xff]
                %6059 = vst [vmem:[%s5933 + $0x2f0] sm:$0xff] %v6058
                %v6060 = vld [vmem:[%s5932 + $0x1f8] sm:$0xff]
                %6061 = vst [vmem:[%s5933 + $0x2f8] sm:$0xff] %v6060
                %v6062 = vld [vmem:[%s5932 + $0x200] sm:$0xff]
                %6063 = vst [vmem:[%s5933 + $0x400] sm:$0xff] %v6062
                %v6064 = vld [vmem:[%s5932 + $0x208] sm:$0xff]
                %6065 = vst [vmem:[%s5933 + $0x408] sm:$0xff] %v6064
                %v6066 = vld [vmem:[%s5932 + $0x210] sm:$0xff]
                %6067 = vst [vmem:[%s5933 + $0x410] sm:$0xff] %v6066
                %v6068 = vld [vmem:[%s5932 + $0x218] sm:$0xff]
                %6069 = vst [vmem:[%s5933 + $0x418] sm:$0xff] %v6068
                %v6070 = vld [vmem:[%s5932 + $0x220] sm:$0xff]
                %6071 = vst [vmem:[%s5933 + $0x420] sm:$0xff] %v6070
                %v6072 = vld [vmem:[%s5932 + $0x228] sm:$0xff]
                %6073 = vst [vmem:[%s5933 + $0x428] sm:$0xff] %v6072
                %v6074 = vld [vmem:[%s5932 + $0x230] sm:$0xff]
                %6075 = vst [vmem:[%s5933 + $0x430] sm:$0xff] %v6074
                %v6076 = vld [vmem:[%s5932 + $0x238] sm:$0xff]
                %6077 = vst [vmem:[%s5933 + $0x438] sm:$0xff] %v6076
                %v6078 = vld [vmem:[%s5932 + $0x240] sm:$0xff]
                %6079 = vst [vmem:[%s5933 + $0x440] sm:$0xff] %v6078
                %v6080 = vld [vmem:[%s5932 + $0x248] sm:$0xff]
                %6081 = vst [vmem:[%s5933 + $0x448] sm:$0xff] %v6080
                %v6082 = vld [vmem:[%s5932 + $0x250] sm:$0xff]
                %6083 = vst [vmem:[%s5933 + $0x450] sm:$0xff] %v6082
                %v6084 = vld [vmem:[%s5932 + $0x258] sm:$0xff]
                %6085 = vst [vmem:[%s5933 + $0x458] sm:$0xff] %v6084
                %v6086 = vld [vmem:[%s5932 + $0x260] sm:$0xff]
                %6087 = vst [vmem:[%s5933 + $0x460] sm:$0xff] %v6086
                %v6088 = vld [vmem:[%s5932 + $0x268] sm:$0xff]
                %6089 = vst [vmem:[%s5933 + $0x468] sm:$0xff] %v6088
                %v6090 = vld [vmem:[%s5932 + $0x270] sm:$0xff]
                %6091 = vst [vmem:[%s5933 + $0x470] sm:$0xff] %v6090
                %v6092 = vld [vmem:[%s5932 + $0x278] sm:$0xff]
                %6093 = vst [vmem:[%s5933 + $0x478] sm:$0xff] %v6092
                %v6094 = vld [vmem:[%s5932 + $0x280] sm:$0xff]
                %6095 = vst [vmem:[%s5933 + $0x480] sm:$0xff] %v6094
                %v6096 = vld [vmem:[%s5932 + $0x288] sm:$0xff]
                %6097 = vst [vmem:[%s5933 + $0x488] sm:$0xff] %v6096
                %v6098 = vld [vmem:[%s5932 + $0x290] sm:$0xff]
                %6099 = vst [vmem:[%s5933 + $0x490] sm:$0xff] %v6098
                %v6100 = vld [vmem:[%s5932 + $0x298] sm:$0xff]
                %6101 = vst [vmem:[%s5933 + $0x498] sm:$0xff] %v6100
                %v6102 = vld [vmem:[%s5932 + $0x2a0] sm:$0xff]
                %6103 = vst [vmem:[%s5933 + $0x4a0] sm:$0xff] %v6102
                %v6104 = vld [vmem:[%s5932 + $0x2a8] sm:$0xff]
                %6105 = vst [vmem:[%s5933 + $0x4a8] sm:$0xff] %v6104
                %v6106 = vld [vmem:[%s5932 + $0x2b0] sm:$0xff]
                %6107 = vst [vmem:[%s5933 + $0x4b0] sm:$0xff] %v6106
                %v6108 = vld [vmem:[%s5932 + $0x2b8] sm:$0xff]
                %6109 = vst [vmem:[%s5933 + $0x4b8] sm:$0xff] %v6108
                %v6110 = vld [vmem:[%s5932 + $0x2c0] sm:$0xff]
                %6111 = vst [vmem:[%s5933 + $0x4c0] sm:$0xff] %v6110
                %v6112 = vld [vmem:[%s5932 + $0x2c8] sm:$0xff]
                %6113 = vst [vmem:[%s5933 + $0x4c8] sm:$0xff] %v6112
                %v6114 = vld [vmem:[%s5932 + $0x2d0] sm:$0xff]
                %6115 = vst [vmem:[%s5933 + $0x4d0] sm:$0xff] %v6114
                %v6116 = vld [vmem:[%s5932 + $0x2d8] sm:$0xff]
                %6117 = vst [vmem:[%s5933 + $0x4d8] sm:$0xff] %v6116
                %v6118 = vld [vmem:[%s5932 + $0x2e0] sm:$0xff]
                %6119 = vst [vmem:[%s5933 + $0x4e0] sm:$0xff] %v6118
                %v6120 = vld [vmem:[%s5932 + $0x2e8] sm:$0xff]
                %6121 = vst [vmem:[%s5933 + $0x4e8] sm:$0xff] %v6120
                %v6122 = vld [vmem:[%s5932 + $0x2f0] sm:$0xff]
                %6123 = vst [vmem:[%s5933 + $0x4f0] sm:$0xff] %v6122
                %v6124 = vld [vmem:[%s5932 + $0x2f8] sm:$0xff]
                %6125 = vst [vmem:[%s5933 + $0x4f8] sm:$0xff] %v6124
                %v6126 = vld [vmem:[%s5932 + $0x300] sm:$0xff]
                %6127 = vst [vmem:[%s5933 + $0x600] sm:$0xff] %v6126
                %v6128 = vld [vmem:[%s5932 + $0x308] sm:$0xff]
                %6129 = vst [vmem:[%s5933 + $0x608] sm:$0xff] %v6128
                %v6130 = vld [vmem:[%s5932 + $0x310] sm:$0xff]
                %6131 = vst [vmem:[%s5933 + $0x610] sm:$0xff] %v6130
                %v6132 = vld [vmem:[%s5932 + $0x318] sm:$0xff]
                %6133 = vst [vmem:[%s5933 + $0x618] sm:$0xff] %v6132
                %v6134 = vld [vmem:[%s5932 + $0x320] sm:$0xff]
                %6135 = vst [vmem:[%s5933 + $0x620] sm:$0xff] %v6134
                %v6136 = vld [vmem:[%s5932 + $0x328] sm:$0xff]
                %6137 = vst [vmem:[%s5933 + $0x628] sm:$0xff] %v6136
                %v6138 = vld [vmem:[%s5932 + $0x330] sm:$0xff]
                %6139 = vst [vmem:[%s5933 + $0x630] sm:$0xff] %v6138
                %v6140 = vld [vmem:[%s5932 + $0x338] sm:$0xff]
                %6141 = vst [vmem:[%s5933 + $0x638] sm:$0xff] %v6140
                %v6142 = vld [vmem:[%s5932 + $0x340] sm:$0xff]
                %6143 = vst [vmem:[%s5933 + $0x640] sm:$0xff] %v6142
                %v6144 = vld [vmem:[%s5932 + $0x348] sm:$0xff]
                %6145 = vst [vmem:[%s5933 + $0x648] sm:$0xff] %v6144
                %v6146 = vld [vmem:[%s5932 + $0x350] sm:$0xff]
                %6147 = vst [vmem:[%s5933 + $0x650] sm:$0xff] %v6146
                %v6148 = vld [vmem:[%s5932 + $0x358] sm:$0xff]
                %6149 = vst [vmem:[%s5933 + $0x658] sm:$0xff] %v6148
                %v6150 = vld [vmem:[%s5932 + $0x360] sm:$0xff]
                %6151 = vst [vmem:[%s5933 + $0x660] sm:$0xff] %v6150
                %v6152 = vld [vmem:[%s5932 + $0x368] sm:$0xff]
                %6153 = vst [vmem:[%s5933 + $0x668] sm:$0xff] %v6152
                %v6154 = vld [vmem:[%s5932 + $0x370] sm:$0xff]
                %6155 = vst [vmem:[%s5933 + $0x670] sm:$0xff] %v6154
                %v6156 = vld [vmem:[%s5932 + $0x378] sm:$0xff]
                %6157 = vst [vmem:[%s5933 + $0x678] sm:$0xff] %v6156
                %v6158 = vld [vmem:[%s5932 + $0x380] sm:$0xff]
                %6159 = vst [vmem:[%s5933 + $0x680] sm:$0xff] %v6158
                %v6160 = vld [vmem:[%s5932 + $0x388] sm:$0xff]
                %6161 = vst [vmem:[%s5933 + $0x688] sm:$0xff] %v6160
                %v6162 = vld [vmem:[%s5932 + $0x390] sm:$0xff]
                %6163 = vst [vmem:[%s5933 + $0x690] sm:$0xff] %v6162
                %v6164 = vld [vmem:[%s5932 + $0x398] sm:$0xff]
                %6165 = vst [vmem:[%s5933 + $0x698] sm:$0xff] %v6164
                %v6166 = vld [vmem:[%s5932 + $0x3a0] sm:$0xff]
                %6167 = vst [vmem:[%s5933 + $0x6a0] sm:$0xff] %v6166
                %v6168 = vld [vmem:[%s5932 + $0x3a8] sm:$0xff]
                %6169 = vst [vmem:[%s5933 + $0x6a8] sm:$0xff] %v6168
                %v6170 = vld [vmem:[%s5932 + $0x3b0] sm:$0xff]
                %6171 = vst [vmem:[%s5933 + $0x6b0] sm:$0xff] %v6170
                %v6172 = vld [vmem:[%s5932 + $0x3b8] sm:$0xff]
                %6173 = vst [vmem:[%s5933 + $0x6b8] sm:$0xff] %v6172
                %v6174 = vld [vmem:[%s5932 + $0x3c0] sm:$0xff]
                %6175 = vst [vmem:[%s5933 + $0x6c0] sm:$0xff] %v6174
                %v6176 = vld [vmem:[%s5932 + $0x3c8] sm:$0xff]
                %6177 = vst [vmem:[%s5933 + $0x6c8] sm:$0xff] %v6176
                %v6178 = vld [vmem:[%s5932 + $0x3d0] sm:$0xff]
                %6179 = vst [vmem:[%s5933 + $0x6d0] sm:$0xff] %v6178
                %v6180 = vld [vmem:[%s5932 + $0x3d8] sm:$0xff]
                %6181 = vst [vmem:[%s5933 + $0x6d8] sm:$0xff] %v6180
                %v6182 = vld [vmem:[%s5932 + $0x3e0] sm:$0xff]
                %6183 = vst [vmem:[%s5933 + $0x6e0] sm:$0xff] %v6182
                %v6184 = vld [vmem:[%s5932 + $0x3e8] sm:$0xff]
                %6185 = vst [vmem:[%s5933 + $0x6e8] sm:$0xff] %v6184
                %v6186 = vld [vmem:[%s5932 + $0x3f0] sm:$0xff]
                %6187 = vst [vmem:[%s5933 + $0x6f0] sm:$0xff] %v6186
                %v6188 = vld [vmem:[%s5932 + $0x3f8] sm:$0xff]
                %6189 = vst [vmem:[%s5933 + $0x6f8] sm:$0xff] %v6188
                %v6190 = vld [vmem:[%s5932 + $0x400] sm:$0xff]
                %6191 = vst [vmem:[%s5933 + $0x800] sm:$0xff] %v6190
                %v6192 = vld [vmem:[%s5932 + $0x408] sm:$0xff]
                %6193 = vst [vmem:[%s5933 + $0x808] sm:$0xff] %v6192
                %v6194 = vld [vmem:[%s5932 + $0x410] sm:$0xff]
                %6195 = vst [vmem:[%s5933 + $0x810] sm:$0xff] %v6194
                %v6196 = vld [vmem:[%s5932 + $0x418] sm:$0xff]
                %6197 = vst [vmem:[%s5933 + $0x818] sm:$0xff] %v6196
                %v6198 = vld [vmem:[%s5932 + $0x420] sm:$0xff]
                %6199 = vst [vmem:[%s5933 + $0x820] sm:$0xff] %v6198
                %v6200 = vld [vmem:[%s5932 + $0x428] sm:$0xff]
                %6201 = vst [vmem:[%s5933 + $0x828] sm:$0xff] %v6200
                %v6202 = vld [vmem:[%s5932 + $0x430] sm:$0xff]
                %6203 = vst [vmem:[%s5933 + $0x830] sm:$0xff] %v6202
                %v6204 = vld [vmem:[%s5932 + $0x438] sm:$0xff]
                %6205 = vst [vmem:[%s5933 + $0x838] sm:$0xff] %v6204
                %v6206 = vld [vmem:[%s5932 + $0x440] sm:$0xff]
                %6207 = vst [vmem:[%s5933 + $0x840] sm:$0xff] %v6206
                %v6208 = vld [vmem:[%s5932 + $0x448] sm:$0xff]
                %6209 = vst [vmem:[%s5933 + $0x848] sm:$0xff] %v6208
                %v6210 = vld [vmem:[%s5932 + $0x450] sm:$0xff]
                %6211 = vst [vmem:[%s5933 + $0x850] sm:$0xff] %v6210
                %v6212 = vld [vmem:[%s5932 + $0x458] sm:$0xff]
                %6213 = vst [vmem:[%s5933 + $0x858] sm:$0xff] %v6212
                %v6214 = vld [vmem:[%s5932 + $0x460] sm:$0xff]
                %6215 = vst [vmem:[%s5933 + $0x860] sm:$0xff] %v6214
                %v6216 = vld [vmem:[%s5932 + $0x468] sm:$0xff]
                %6217 = vst [vmem:[%s5933 + $0x868] sm:$0xff] %v6216
                %v6218 = vld [vmem:[%s5932 + $0x470] sm:$0xff]
                %6219 = vst [vmem:[%s5933 + $0x870] sm:$0xff] %v6218
                %v6220 = vld [vmem:[%s5932 + $0x478] sm:$0xff]
                %6221 = vst [vmem:[%s5933 + $0x878] sm:$0xff] %v6220
                %v6222 = vld [vmem:[%s5932 + $0x480] sm:$0xff]
                %6223 = vst [vmem:[%s5933 + $0x880] sm:$0xff] %v6222
                %v6224 = vld [vmem:[%s5932 + $0x488] sm:$0xff]
                %6225 = vst [vmem:[%s5933 + $0x888] sm:$0xff] %v6224
                %v6226 = vld [vmem:[%s5932 + $0x490] sm:$0xff]
                %6227 = vst [vmem:[%s5933 + $0x890] sm:$0xff] %v6226
                %v6228 = vld [vmem:[%s5932 + $0x498] sm:$0xff]
                %6229 = vst [vmem:[%s5933 + $0x898] sm:$0xff] %v6228
                %v6230 = vld [vmem:[%s5932 + $0x4a0] sm:$0xff]
                %6231 = vst [vmem:[%s5933 + $0x8a0] sm:$0xff] %v6230
                %v6232 = vld [vmem:[%s5932 + $0x4a8] sm:$0xff]
                %6233 = vst [vmem:[%s5933 + $0x8a8] sm:$0xff] %v6232
                %v6234 = vld [vmem:[%s5932 + $0x4b0] sm:$0xff]
                %6235 = vst [vmem:[%s5933 + $0x8b0] sm:$0xff] %v6234
                %v6236 = vld [vmem:[%s5932 + $0x4b8] sm:$0xff]
                %6237 = vst [vmem:[%s5933 + $0x8b8] sm:$0xff] %v6236
                %v6238 = vld [vmem:[%s5932 + $0x4c0] sm:$0xff]
                %6239 = vst [vmem:[%s5933 + $0x8c0] sm:$0xff] %v6238
                %v6240 = vld [vmem:[%s5932 + $0x4c8] sm:$0xff]
                %6241 = vst [vmem:[%s5933 + $0x8c8] sm:$0xff] %v6240
                %v6242 = vld [vmem:[%s5932 + $0x4d0] sm:$0xff]
                %6243 = vst [vmem:[%s5933 + $0x8d0] sm:$0xff] %v6242
                %v6244 = vld [vmem:[%s5932 + $0x4d8] sm:$0xff]
                %6245 = vst [vmem:[%s5933 + $0x8d8] sm:$0xff] %v6244
                %v6246 = vld [vmem:[%s5932 + $0x4e0] sm:$0xff]
                %6247 = vst [vmem:[%s5933 + $0x8e0] sm:$0xff] %v6246
                %v6248 = vld [vmem:[%s5932 + $0x4e8] sm:$0xff]
                %6249 = vst [vmem:[%s5933 + $0x8e8] sm:$0xff] %v6248
                %v6250 = vld [vmem:[%s5932 + $0x4f0] sm:$0xff]
                %6251 = vst [vmem:[%s5933 + $0x8f0] sm:$0xff] %v6250
                %v6252 = vld [vmem:[%s5932 + $0x4f8] sm:$0xff]
                %6253 = vst [vmem:[%s5933 + $0x8f8] sm:$0xff] %v6252
                %v6254 = vld [vmem:[%s5932 + $0x500] sm:$0xff]
                %6255 = vst [vmem:[%s5933 + $0xa00] sm:$0xff] %v6254
                %v6256 = vld [vmem:[%s5932 + $0x508] sm:$0xff]
                %6257 = vst [vmem:[%s5933 + $0xa08] sm:$0xff] %v6256
                %v6258 = vld [vmem:[%s5932 + $0x510] sm:$0xff]
                %6259 = vst [vmem:[%s5933 + $0xa10] sm:$0xff] %v6258
                %v6260 = vld [vmem:[%s5932 + $0x518] sm:$0xff]
                %6261 = vst [vmem:[%s5933 + $0xa18] sm:$0xff] %v6260
                %v6262 = vld [vmem:[%s5932 + $0x520] sm:$0xff]
                %6263 = vst [vmem:[%s5933 + $0xa20] sm:$0xff] %v6262
                %v6264 = vld [vmem:[%s5932 + $0x528] sm:$0xff]
                %6265 = vst [vmem:[%s5933 + $0xa28] sm:$0xff] %v6264
                %v6266 = vld [vmem:[%s5932 + $0x530] sm:$0xff]
                %6267 = vst [vmem:[%s5933 + $0xa30] sm:$0xff] %v6266
                %v6268 = vld [vmem:[%s5932 + $0x538] sm:$0xff]
                %6269 = vst [vmem:[%s5933 + $0xa38] sm:$0xff] %v6268
                %v6270 = vld [vmem:[%s5932 + $0x540] sm:$0xff]
                %6271 = vst [vmem:[%s5933 + $0xa40] sm:$0xff] %v6270
                %v6272 = vld [vmem:[%s5932 + $0x548] sm:$0xff]
                %6273 = vst [vmem:[%s5933 + $0xa48] sm:$0xff] %v6272
                %v6274 = vld [vmem:[%s5932 + $0x550] sm:$0xff]
                %6275 = vst [vmem:[%s5933 + $0xa50] sm:$0xff] %v6274
                %v6276 = vld [vmem:[%s5932 + $0x558] sm:$0xff]
                %6277 = vst [vmem:[%s5933 + $0xa58] sm:$0xff] %v6276
                %v6278 = vld [vmem:[%s5932 + $0x560] sm:$0xff]
                %6279 = vst [vmem:[%s5933 + $0xa60] sm:$0xff] %v6278
                %v6280 = vld [vmem:[%s5932 + $0x568] sm:$0xff]
                %6281 = vst [vmem:[%s5933 + $0xa68] sm:$0xff] %v6280
                %v6282 = vld [vmem:[%s5932 + $0x570] sm:$0xff]
                %6283 = vst [vmem:[%s5933 + $0xa70] sm:$0xff] %v6282
                %v6284 = vld [vmem:[%s5932 + $0x578] sm:$0xff]
                %6285 = vst [vmem:[%s5933 + $0xa78] sm:$0xff] %v6284
                %v6286 = vld [vmem:[%s5932 + $0x580] sm:$0xff]
                %6287 = vst [vmem:[%s5933 + $0xa80] sm:$0xff] %v6286
                %v6288 = vld [vmem:[%s5932 + $0x588] sm:$0xff]
                %6289 = vst [vmem:[%s5933 + $0xa88] sm:$0xff] %v6288
                %v6290 = vld [vmem:[%s5932 + $0x590] sm:$0xff]
                %6291 = vst [vmem:[%s5933 + $0xa90] sm:$0xff] %v6290
                %v6292 = vld [vmem:[%s5932 + $0x598] sm:$0xff]
                %6293 = vst [vmem:[%s5933 + $0xa98] sm:$0xff] %v6292
                %v6294 = vld [vmem:[%s5932 + $0x5a0] sm:$0xff]
                %6295 = vst [vmem:[%s5933 + $0xaa0] sm:$0xff] %v6294
                %v6296 = vld [vmem:[%s5932 + $0x5a8] sm:$0xff]
                %6297 = vst [vmem:[%s5933 + $0xaa8] sm:$0xff] %v6296
                %v6298 = vld [vmem:[%s5932 + $0x5b0] sm:$0xff]
                %6299 = vst [vmem:[%s5933 + $0xab0] sm:$0xff] %v6298
                %v6300 = vld [vmem:[%s5932 + $0x5b8] sm:$0xff]
                %6301 = vst [vmem:[%s5933 + $0xab8] sm:$0xff] %v6300
                %v6302 = vld [vmem:[%s5932 + $0x5c0] sm:$0xff]
                %6303 = vst [vmem:[%s5933 + $0xac0] sm:$0xff] %v6302
                %v6304 = vld [vmem:[%s5932 + $0x5c8] sm:$0xff]
                %6305 = vst [vmem:[%s5933 + $0xac8] sm:$0xff] %v6304
                %v6306 = vld [vmem:[%s5932 + $0x5d0] sm:$0xff]
                %6307 = vst [vmem:[%s5933 + $0xad0] sm:$0xff] %v6306
                %v6308 = vld [vmem:[%s5932 + $0x5d8] sm:$0xff]
                %6309 = vst [vmem:[%s5933 + $0xad8] sm:$0xff] %v6308
                %v6310 = vld [vmem:[%s5932 + $0x5e0] sm:$0xff]
                %6311 = vst [vmem:[%s5933 + $0xae0] sm:$0xff] %v6310
                %v6312 = vld [vmem:[%s5932 + $0x5e8] sm:$0xff]
                %6313 = vst [vmem:[%s5933 + $0xae8] sm:$0xff] %v6312
                %v6314 = vld [vmem:[%s5932 + $0x5f0] sm:$0xff]
                %6315 = vst [vmem:[%s5933 + $0xaf0] sm:$0xff] %v6314
                %v6316 = vld [vmem:[%s5932 + $0x5f8] sm:$0xff]
                %6317 = vst [vmem:[%s5933 + $0xaf8] sm:$0xff] %v6316
                %v6318 = vld [vmem:[%s5932 + $0x600] sm:$0xff]
                %6319 = vst [vmem:[%s5933 + $0xc00] sm:$0xff] %v6318
                %v6320 = vld [vmem:[%s5932 + $0x608] sm:$0xff]
                %6321 = vst [vmem:[%s5933 + $0xc08] sm:$0xff] %v6320
                %v6322 = vld [vmem:[%s5932 + $0x610] sm:$0xff]
                %6323 = vst [vmem:[%s5933 + $0xc10] sm:$0xff] %v6322
                %v6324 = vld [vmem:[%s5932 + $0x618] sm:$0xff]
                %6325 = vst [vmem:[%s5933 + $0xc18] sm:$0xff] %v6324
                %v6326 = vld [vmem:[%s5932 + $0x620] sm:$0xff]
                %6327 = vst [vmem:[%s5933 + $0xc20] sm:$0xff] %v6326
                %v6328 = vld [vmem:[%s5932 + $0x628] sm:$0xff]
                %6329 = vst [vmem:[%s5933 + $0xc28] sm:$0xff] %v6328
                %v6330 = vld [vmem:[%s5932 + $0x630] sm:$0xff]
                %6331 = vst [vmem:[%s5933 + $0xc30] sm:$0xff] %v6330
                %v6332 = vld [vmem:[%s5932 + $0x638] sm:$0xff]
                %6333 = vst [vmem:[%s5933 + $0xc38] sm:$0xff] %v6332
                %v6334 = vld [vmem:[%s5932 + $0x640] sm:$0xff]
                %6335 = vst [vmem:[%s5933 + $0xc40] sm:$0xff] %v6334
                %v6336 = vld [vmem:[%s5932 + $0x648] sm:$0xff]
                %6337 = vst [vmem:[%s5933 + $0xc48] sm:$0xff] %v6336
                %v6338 = vld [vmem:[%s5932 + $0x650] sm:$0xff]
                %6339 = vst [vmem:[%s5933 + $0xc50] sm:$0xff] %v6338
                %v6340 = vld [vmem:[%s5932 + $0x658] sm:$0xff]
                %6341 = vst [vmem:[%s5933 + $0xc58] sm:$0xff] %v6340
                %v6342 = vld [vmem:[%s5932 + $0x660] sm:$0xff]
                %6343 = vst [vmem:[%s5933 + $0xc60] sm:$0xff] %v6342
                %v6344 = vld [vmem:[%s5932 + $0x668] sm:$0xff]
                %6345 = vst [vmem:[%s5933 + $0xc68] sm:$0xff] %v6344
                %v6346 = vld [vmem:[%s5932 + $0x670] sm:$0xff]
                %6347 = vst [vmem:[%s5933 + $0xc70] sm:$0xff] %v6346
                %v6348 = vld [vmem:[%s5932 + $0x678] sm:$0xff]
                %6349 = vst [vmem:[%s5933 + $0xc78] sm:$0xff] %v6348
                %v6350 = vld [vmem:[%s5932 + $0x680] sm:$0xff]
                %6351 = vst [vmem:[%s5933 + $0xc80] sm:$0xff] %v6350
                %v6352 = vld [vmem:[%s5932 + $0x688] sm:$0xff]
                %6353 = vst [vmem:[%s5933 + $0xc88] sm:$0xff] %v6352
                %v6354 = vld [vmem:[%s5932 + $0x690] sm:$0xff]
                %6355 = vst [vmem:[%s5933 + $0xc90] sm:$0xff] %v6354
                %v6356 = vld [vmem:[%s5932 + $0x698] sm:$0xff]
                %6357 = vst [vmem:[%s5933 + $0xc98] sm:$0xff] %v6356
                %v6358 = vld [vmem:[%s5932 + $0x6a0] sm:$0xff]
                %6359 = vst [vmem:[%s5933 + $0xca0] sm:$0xff] %v6358
                %v6360 = vld [vmem:[%s5932 + $0x6a8] sm:$0xff]
                %6361 = vst [vmem:[%s5933 + $0xca8] sm:$0xff] %v6360
                %v6362 = vld [vmem:[%s5932 + $0x6b0] sm:$0xff]
                %6363 = vst [vmem:[%s5933 + $0xcb0] sm:$0xff] %v6362
                %v6364 = vld [vmem:[%s5932 + $0x6b8] sm:$0xff]
                %6365 = vst [vmem:[%s5933 + $0xcb8] sm:$0xff] %v6364
                %v6366 = vld [vmem:[%s5932 + $0x6c0] sm:$0xff]
                %6367 = vst [vmem:[%s5933 + $0xcc0] sm:$0xff] %v6366
                %v6368 = vld [vmem:[%s5932 + $0x6c8] sm:$0xff]
                %6369 = vst [vmem:[%s5933 + $0xcc8] sm:$0xff] %v6368
                %v6370 = vld [vmem:[%s5932 + $0x6d0] sm:$0xff]
                %6371 = vst [vmem:[%s5933 + $0xcd0] sm:$0xff] %v6370
                %v6372 = vld [vmem:[%s5932 + $0x6d8] sm:$0xff]
                %6373 = vst [vmem:[%s5933 + $0xcd8] sm:$0xff] %v6372
                %v6374 = vld [vmem:[%s5932 + $0x6e0] sm:$0xff]
                %6375 = vst [vmem:[%s5933 + $0xce0] sm:$0xff] %v6374
                %v6376 = vld [vmem:[%s5932 + $0x6e8] sm:$0xff]
                %6377 = vst [vmem:[%s5933 + $0xce8] sm:$0xff] %v6376
                %v6378 = vld [vmem:[%s5932 + $0x6f0] sm:$0xff]
                %6379 = vst [vmem:[%s5933 + $0xcf0] sm:$0xff] %v6378
                %v6380 = vld [vmem:[%s5932 + $0x6f8] sm:$0xff]
                %6381 = vst [vmem:[%s5933 + $0xcf8] sm:$0xff] %v6380
                %v6382 = vld [vmem:[%s5932 + $0x700] sm:$0xff]
                %6383 = vst [vmem:[%s5933 + $0xe00] sm:$0xff] %v6382
                %v6384 = vld [vmem:[%s5932 + $0x708] sm:$0xff]
                %6385 = vst [vmem:[%s5933 + $0xe08] sm:$0xff] %v6384
                %v6386 = vld [vmem:[%s5932 + $0x710] sm:$0xff]
                %6387 = vst [vmem:[%s5933 + $0xe10] sm:$0xff] %v6386
                %v6388 = vld [vmem:[%s5932 + $0x718] sm:$0xff]
                %6389 = vst [vmem:[%s5933 + $0xe18] sm:$0xff] %v6388
                %v6390 = vld [vmem:[%s5932 + $0x720] sm:$0xff]
                %6391 = vst [vmem:[%s5933 + $0xe20] sm:$0xff] %v6390
                %v6392 = vld [vmem:[%s5932 + $0x728] sm:$0xff]
                %6393 = vst [vmem:[%s5933 + $0xe28] sm:$0xff] %v6392
                %v6394 = vld [vmem:[%s5932 + $0x730] sm:$0xff]
                %6395 = vst [vmem:[%s5933 + $0xe30] sm:$0xff] %v6394
                %v6396 = vld [vmem:[%s5932 + $0x738] sm:$0xff]
                %6397 = vst [vmem:[%s5933 + $0xe38] sm:$0xff] %v6396
                %v6398 = vld [vmem:[%s5932 + $0x740] sm:$0xff]
                %6399 = vst [vmem:[%s5933 + $0xe40] sm:$0xff] %v6398
                %v6400 = vld [vmem:[%s5932 + $0x748] sm:$0xff]
                %6401 = vst [vmem:[%s5933 + $0xe48] sm:$0xff] %v6400
                %v6402 = vld [vmem:[%s5932 + $0x750] sm:$0xff]
                %6403 = vst [vmem:[%s5933 + $0xe50] sm:$0xff] %v6402
                %v6404 = vld [vmem:[%s5932 + $0x758] sm:$0xff]
                %6405 = vst [vmem:[%s5933 + $0xe58] sm:$0xff] %v6404
                %v6406 = vld [vmem:[%s5932 + $0x760] sm:$0xff]
                %6407 = vst [vmem:[%s5933 + $0xe60] sm:$0xff] %v6406
                %v6408 = vld [vmem:[%s5932 + $0x768] sm:$0xff]
                %6409 = vst [vmem:[%s5933 + $0xe68] sm:$0xff] %v6408
                %v6410 = vld [vmem:[%s5932 + $0x770] sm:$0xff]
                %6411 = vst [vmem:[%s5933 + $0xe70] sm:$0xff] %v6410
                %v6412 = vld [vmem:[%s5932 + $0x778] sm:$0xff]
                %6413 = vst [vmem:[%s5933 + $0xe78] sm:$0xff] %v6412
                %v6414 = vld [vmem:[%s5932 + $0x780] sm:$0xff]
                %6415 = vst [vmem:[%s5933 + $0xe80] sm:$0xff] %v6414
                %v6416 = vld [vmem:[%s5932 + $0x788] sm:$0xff]
                %6417 = vst [vmem:[%s5933 + $0xe88] sm:$0xff] %v6416
                %v6418 = vld [vmem:[%s5932 + $0x790] sm:$0xff]
                %6419 = vst [vmem:[%s5933 + $0xe90] sm:$0xff] %v6418
                %v6420 = vld [vmem:[%s5932 + $0x798] sm:$0xff]
                %6421 = vst [vmem:[%s5933 + $0xe98] sm:$0xff] %v6420
                %v6422 = vld [vmem:[%s5932 + $0x7a0] sm:$0xff]
                %6423 = vst [vmem:[%s5933 + $0xea0] sm:$0xff] %v6422
                %v6424 = vld [vmem:[%s5932 + $0x7a8] sm:$0xff]
                %6425 = vst [vmem:[%s5933 + $0xea8] sm:$0xff] %v6424
                %v6426 = vld [vmem:[%s5932 + $0x7b0] sm:$0xff]
                %6427 = vst [vmem:[%s5933 + $0xeb0] sm:$0xff] %v6426
                %v6428 = vld [vmem:[%s5932 + $0x7b8] sm:$0xff]
                %6429 = vst [vmem:[%s5933 + $0xeb8] sm:$0xff] %v6428
                %v6430 = vld [vmem:[%s5932 + $0x7c0] sm:$0xff]
                %6431 = vst [vmem:[%s5933 + $0xec0] sm:$0xff] %v6430
                %v6432 = vld [vmem:[%s5932 + $0x7c8] sm:$0xff]
                %6433 = vst [vmem:[%s5933 + $0xec8] sm:$0xff] %v6432
                %v6434 = vld [vmem:[%s5932 + $0x7d0] sm:$0xff]
                %6435 = vst [vmem:[%s5933 + $0xed0] sm:$0xff] %v6434
                %v6436 = vld [vmem:[%s5932 + $0x7d8] sm:$0xff]
                %6437 = vst [vmem:[%s5933 + $0xed8] sm:$0xff] %v6436
                %v6438 = vld [vmem:[%s5932 + $0x7e0] sm:$0xff]
                %6439 = vst [vmem:[%s5933 + $0xee0] sm:$0xff] %v6438
                %v6440 = vld [vmem:[%s5932 + $0x7e8] sm:$0xff]
                %6441 = vst [vmem:[%s5933 + $0xee8] sm:$0xff] %v6440
                %v6442 = vld [vmem:[%s5932 + $0x7f0] sm:$0xff]
                %6443 = vst [vmem:[%s5933 + $0xef0] sm:$0xff] %v6442
                %v6444 = vld [vmem:[%s5932 + $0x7f8] sm:$0xff]
                %6445 = vst [vmem:[%s5933 + $0xef8] sm:$0xff] %v6444
              $region80: #{_lambda_.1} parent=74 // loop_footer
                %s5931 = sadd.s32 1, %s5927
              $region81: #{_lambda_.1} parent=74 // loop_footer_branch
                %5926 = sbr.rel target = $region77
              $region82: #{_lambda_.1} parent=74 // loop_exit
                _
            $region75: #{_lambda_.1} parent=70 // pred_fallthru
              _
            // Predicated region
            $region83: #{_lambda_.1} parent=70 // pred_check
              _
            $region84: #{_lambda_.1} parent=70 // pred_check_branch
              %6447 = sbr.rel target = $region86
            $region85: #{_lambda_.1} parent=70 // pred_region
              _
            $region86: #{_lambda_.1} parent=70 // pred_fallthru
              _
          $region71: #{_lambda_.1} parent=66 // pred_fallthru
            _
          %6448 = vnop
        $region67: #{_lambda_.1} parent=50 // pred_fallthru
          _
      $region51: #{_lambda_.1} parent=5 // pred_fallthru
        _
      %p6449 = scmp.le.s32.totalorder 2, %s9
      // Predicated region
      $region87: #{_lambda_.1} parent=5 // pred_check
        %p6450 = pneg %p6449
      $region88: #{_lambda_.1} parent=5 // pred_check_branch
        %6452 = sbr.rel (%p6450) target = $region90
      $region89: #{_lambda_.1} parent=5 // pred_region
        %s6453 = ssub.s32 %s9, 2
        // Predicated region
        $region91: #{_lambda_.1} parent=89 // pred_check
          %p6454 = pneg %p141
        $region92: #{_lambda_.1} parent=89 // pred_check_branch
          %6456 = sbr.rel (%p6454) target = $region94
        $region93: #{_lambda_.1} parent=89 // pred_region
          %s6457 = sand.u32 %s126, 1
          %s6458 = sand.u32 %s126, 1
          %s6459 = smul.addr %s6458, 2048
          %s6460 = scalar_lea.vmem [#allocation4], %s6459
        $region94: #{_lambda_.1} parent=89 // pred_fallthru
          _
      $region90: #{_lambda_.1} parent=5 // pred_fallthru
        _
    $region6: #{_lambda_.1} parent=1 // loop_footer
      %s13 = sadd.s32 1, %s9
    $region7: #{_lambda_.1} parent=1 // loop_footer_branch
      %8 = sbr.rel target = $region3
    $region8: #{_lambda_.1} parent=1 // loop_exit
      _

</llo_original>
